<compile_context>
chip_gen: v7x
topology: tpu7x:2x2x1
jax: 0.10.0
libtpu: 0.0.40
codegen_flags: <defaults>
</compile_context>

<pallas_src>
import jax
import jax.numpy as jnp
from jax.experimental import pallas as pl
from jax.experimental.pallas import tpu as pltpu


def _att_kernel(x_ref, w1_ref, b1_ref, w2_ref, o_ref):
    # x_ref block: (TB, H, D); weights are full, VMEM-resident arrays.
    x3 = x_ref[...]                                     # (TB, H, D), f32 or bf16
    tb, hh, dd = x3.shape

    # ---- affine1 + tanh: one big MXU matmul over the flattened (TB*H, D) slab ----
    x2 = x3.reshape(tb * hh, dd)                        # merge leading dims (minor dim unchanged)
    h = jnp.tanh(
        jnp.dot(x2, w1_ref[...], preferred_element_type=jnp.float32) + b1_ref[...]
    )                                                   # (TB*H, A) f32

    # ---- score projection (A -> 1): VPU multiply + lane reduce (no N=1 MXU matmul) ----
    s = jnp.sum(h * w2_ref[...], axis=-1, keepdims=True)            # (TB*H, 1) f32
    s3 = s.reshape(tb, hh, 1)                                        # (TB, H, 1)

    # ---- per-example softmax over the history axis ----
    m = jnp.max(s3, axis=1, keepdims=True)                           # (TB, 1, 1)
    e = jnp.exp(s3 - m)                                              # (TB, H, 1)
    l = jnp.sum(e, axis=1, keepdims=True)                            # (TB, 1, 1)
    alpha = e * pl.reciprocal(l, approx=False)                       # (TB, H, 1)

    # ---- weighted sum over history -> lane-dense (TB, D) output slab ----
    user = jnp.sum(alpha * x3.astype(jnp.float32), axis=1)           # (TB, D) f32
    o_ref[...] = user.astype(o_ref.dtype)


def att_user_encoder(history_embedding, w1, b1, w2, news_num,
                     *, block_b=128, stream_dtype=None, vmem_limit_bytes=None):
    """history_embedding: [B, H, D]. w1: [D, A], b1: [1, A], w2: [A, 1].

    Returns [B, news_num, D] float32.  The news_num expansion is pure broadcast glue
    (view semantics in the PyTorch original) — consumers should fuse it rather than
    materialize news_num x the HBM writes.

    stream_dtype=jnp.bfloat16 streams history/W1 in bf16 (halves HBM traffic on this
    HBM-bound op); softmax and accumulation remain f32.
    """
    B, H, D = history_embedding.shape
    A = w1.shape[1]
    assert w1.shape == (D, A) and b1.shape == (1, A) and w2.shape == (A, 1)

    if stream_dtype is not None:
        history_embedding = history_embedding.astype(stream_dtype)
        w1 = w1.astype(stream_dtype)
    b1 = b1.astype(jnp.float32)
    w2_row = jnp.reshape(w2, (1, A)).astype(jnp.float32)   # row layout -> lane broadcast in-kernel

    tb = min(block_b, B)
    grid = (pl.cdiv(B, tb),)

    user_repr = pl.pallas_call(
        _att_kernel,
        out_shape=jax.ShapeDtypeStruct((B, D), jnp.float32),
        grid_spec=pltpu.PrefetchScalarGridSpec(
            num_scalar_prefetch=0,
            grid=grid,
            in_specs=[
                pl.BlockSpec((tb, H, D), lambda b: (b, 0, 0)),   # TB histories per step
                pl.BlockSpec((D, A), lambda b: (0, 0)),          # W1 (constant index -> resident)
                pl.BlockSpec((1, A), lambda b: (0, 0)),          # b1 (resident)
                pl.BlockSpec((1, A), lambda b: (0, 0)),          # w2 as a row (resident)
            ],
            out_specs=pl.BlockSpec((tb, D), lambda b: (b, 0)),   # lane-dense (TB, D) store
        ),
        compiler_params=pltpu.CompilerParams(
            dimension_semantics=("parallel",),                   # v7x: shard batch blocks over 2 TCs
            vmem_limit_bytes=vmem_limit_bytes,
        ),
    )(history_embedding, w1, b1, w2_row)

    # .unsqueeze(1).expand(-1, news_num, -1) — pure view/broadcast glue.
    return jnp.broadcast_to(user_repr[:, None, :], (B, news_num, D))


def _reference(history_embedding, w1, b1, w2, news_num):
    x = history_embedding.astype(jnp.float32)
    h = jnp.tanh(jnp.einsum("bhd,da->bha", x, w1.astype(jnp.float32)) + b1[0])
    a = jnp.einsum("bha,ao->bh", h, w2.astype(jnp.float32))
    alpha = jax.nn.softmax(a, axis=1)
    user = jnp.einsum("bh,bhd->bd", alpha, x)
    B, _, D = history_embedding.shape
    return jnp.broadcast_to(user[:, None, :], (B, news_num, D))


if __name__ == "__main__":
    # batch, history length, news_embedding_dim, attention_dim
    B, H, D, A = 256, 16, 128, 64
    news_num = 4

    key = jax.random.PRNGKey(0)
    k_hist, k_w1, k_b1, k_w2 = jax.random.split(key, 4)

    history_embedding = jax.random.normal(k_hist, (B, H, D), dtype=jnp.float32)
    # Deterministic xavier-ish init for the Attention parameters.
    w1 = jax.random.normal(k_w1, (D, A), dtype=jnp.float32) * (1.0 / jnp.sqrt(D))
    b1 = jax.random.normal(k_b1, (1, A), dtype=jnp.float32) * 0.01
    w2 = jax.random.normal(k_w2, (A, 1), dtype=jnp.float32) * (1.0 / jnp.sqrt(A))

    ref = _reference(history_embedding, w1, b1, w2, news_num)

    # f32 path — tight numerical check.
    out = att_user_encoder(history_embedding, w1, b1, w2, news_num)
    out = jax.block_until_ready(out)
    assert out.shape == (B, news_num, D)
    assert jnp.allclose(out, ref, atol=1e-5, rtol=1e-5)

    # bf16-streamed path (halves HBM traffic on this HBM-bound op) — loose check.
    out_bf16 = att_user_encoder(history_embedding, w1, b1, w2, news_num,
                                stream_dtype=jnp.bfloat16)
    out_bf16 = jax.block_until_ready(out_bf16)
    assert out_bf16.shape == (B, news_num, D)
    assert jnp.allclose(out_bf16, ref, atol=1e-1, rtol=1e-1)

    print("KERNEL_OK")
</pallas_src>

<mosaic_0001>
module attributes {stable_mosaic.version = 11 : i64} {
  func.func @_att_kernel(%arg0: i32, %arg1: memref<128x16x128xf32, #tpu.memory_space<vmem>>, %arg2: memref<128x64xf32, #tpu.memory_space<vmem>>, %arg3: memref<1x64xf32, #tpu.memory_space<vmem>>, %arg4: memref<1x64xf32, #tpu.memory_space<vmem>>, %arg5: memref<128x128xf32, #tpu.memory_space<vmem>>) attributes {dimension_semantics = [#tpu.dimension_semantics<parallel>], iteration_bounds = array<i64: 2>, scalar_prefetch = 0 : i64, scratch_operands = 0 : i64, tpu.core_type = #tpu.core_type<tc>, window_params = [{transform_indices = @transform_0, window_bounds = array<i64: 128, 16, 128>}, {pipeline_mode = #tpu.pipeline_mode<synchronous>, transform_indices = @transform_1, window_bounds = array<i64: 128, 64>}, {pipeline_mode = #tpu.pipeline_mode<synchronous>, transform_indices = @transform_2, window_bounds = array<i64: 1, 64>}, {pipeline_mode = #tpu.pipeline_mode<synchronous>, transform_indices = @transform_3, window_bounds = array<i64: 1, 64>}, {transform_indices = @transform_4, window_bounds = array<i64: 128, 128>}]} {
    %c0 = arith.constant 0 : index
    %c0_0 = arith.constant 0 : index
    %c0_1 = arith.constant 0 : index
    %0 = vector.load %arg1[%c0, %c0_0, %c0_1] : memref<128x16x128xf32, #tpu.memory_space<vmem>>, vector<128x16x128xf32>
    %1 = vector.shape_cast %0 : vector<128x16x128xf32> to vector<2048x128xf32>
    %c0_2 = arith.constant 0 : index
    %c0_3 = arith.constant 0 : index
    %2 = vector.load %arg2[%c0_2, %c0_3] : memref<128x64xf32, #tpu.memory_space<vmem>>, vector<128x64xf32>
    %cst = arith.constant dense<0.000000e+00> : vector<2048x64xf32>
    %3 = tpu.matmul %1, %2, %cst {dimension_numbers = #tpu.dot_dimension_numbers<[1], [0], [0], [1], [0, 0, 1, 1], [], []>} : vector<2048x128xf32>, vector<128x64xf32>, vector<2048x64xf32> -> vector<2048x64xf32>
    %c0_4 = arith.constant 0 : index
    %c0_5 = arith.constant 0 : index
    %4 = vector.load %arg3[%c0_4, %c0_5] : memref<1x64xf32, #tpu.memory_space<vmem>>, vector<1x64xf32>
    %5 = vector.broadcast %4 : vector<1x64xf32> to vector<2048x64xf32>
    %6 = arith.addf %3, %5 : vector<2048x64xf32>
    %7 = math.tanh %6 : vector<2048x64xf32>
    %c0_6 = arith.constant 0 : index
    %c0_7 = arith.constant 0 : index
    %8 = vector.load %arg4[%c0_6, %c0_7] : memref<1x64xf32, #tpu.memory_space<vmem>>, vector<1x64xf32>
    %9 = vector.broadcast %8 : vector<1x64xf32> to vector<2048x64xf32>
    %10 = arith.mulf %7, %9 : vector<2048x64xf32>
    %cst_8 = arith.constant dense<0.000000e+00> : vector<2048xf32>
    %11 = vector.multi_reduction <add>, %10, %cst_8 [1] : vector<2048x64xf32> to vector<2048xf32>
    %12 = vector.shape_cast %11 : vector<2048xf32> to vector<2048x1xf32>
    %13 = vector.shape_cast %12 : vector<2048x1xf32> to vector<128x16x1xf32>
    %cst_9 = arith.constant dense<0xFF800000> : vector<128x1xf32>
    %14 = vector.multi_reduction <maximumf>, %13, %cst_9 [1] : vector<128x16x1xf32> to vector<128x1xf32>
    %15 = vector.shape_cast %14 : vector<128x1xf32> to vector<128x1x1xf32>
    %16 = vector.broadcast %15 : vector<128x1x1xf32> to vector<128x16x1xf32>
    %17 = arith.subf %13, %16 : vector<128x16x1xf32>
    %18 = math.exp %17 : vector<128x16x1xf32>
    %cst_10 = arith.constant dense<0.000000e+00> : vector<128x1xf32>
    %19 = vector.multi_reduction <add>, %18, %cst_10 [1] : vector<128x16x1xf32> to vector<128x1xf32>
    %20 = vector.shape_cast %19 : vector<128x1xf32> to vector<128x1x1xf32>
    %21 = tpu.reciprocal %20 : vector<128x1x1xf32> -> vector<128x1x1xf32>
    %22 = vector.broadcast %21 : vector<128x1x1xf32> to vector<128x16x1xf32>
    %23 = arith.mulf %18, %22 : vector<128x16x1xf32>
    %24 = vector.broadcast %23 : vector<128x16x1xf32> to vector<128x16x128xf32>
    %25 = arith.mulf %24, %0 : vector<128x16x128xf32>
    %cst_11 = arith.constant dense<0.000000e+00> : vector<128x128xf32>
    %26 = vector.multi_reduction <add>, %25, %cst_11 [1] : vector<128x16x128xf32> to vector<128x128xf32>
    %c0_12 = arith.constant 0 : index
    %c0_13 = arith.constant 0 : index
    %27 = vector.load %arg5[%c0_12, %c0_13] : memref<128x128xf32, #tpu.memory_space<vmem>>, vector<128x128xf32>
    tpu.vector_store %arg5[%c0_12, %c0_13], %26 {strides = array<i32>} : memref<128x128xf32, #tpu.memory_space<vmem>>, vector<128x128xf32>,
    return
  }
  func.func @transform_0(%arg0: i32) -> (i32, i32, i32) {
    %c0_i32 = arith.constant 0 : i32
    %c0_i32_0 = arith.constant 0 : i32
    %c0_i32_1 = arith.constant 0 : i32
    return %arg0, %c0_i32, %c0_i32_0 : i32, i32, i32
  }
  func.func @transform_1(%arg0: i32) -> (i32, i32) {
    %c0_i32 = arith.constant 0 : i32
    %c0_i32_0 = arith.constant 0 : i32
    %c0_i32_1 = arith.constant 0 : i32
    return %c0_i32, %c0_i32_0 : i32, i32
  }
  func.func @transform_2(%arg0: i32) -> (i32, i32) {
    %c0_i32 = arith.constant 0 : i32
    %c0_i32_0 = arith.constant 0 : i32
    %c0_i32_1 = arith.constant 0 : i32
    return %c0_i32, %c0_i32_0 : i32, i32
  }
  func.func @transform_3(%arg0: i32) -> (i32, i32) {
    %c0_i32 = arith.constant 0 : i32
    %c0_i32_0 = arith.constant 0 : i32
    %c0_i32_1 = arith.constant 0 : i32
    return %c0_i32, %c0_i32_0 : i32, i32
  }
  func.func @transform_4(%arg0: i32) -> (i32, i32) {
    %c0_i32 = arith.constant 0 : i32
    %c0_i32_0 = arith.constant 0 : i32
    return %arg0, %c0_i32 : i32, i32
  }
}

</mosaic_0001>

<llo_original>
// kernel: tpu_custom_call.1
$region0: #{tpu_custom_call.1}
  #allocation0 [shape = 'u32[]', space=smem, size = 0x4, offset = 0x4, fixed_abs, tag = 'smem constant byte address 0x4 - core index']
  #allocation1 [shape = 'u32[144,128]{1,0:T(1,128)}', space=vmem, size = 0x12000, scoped, tag = 'internal scratch']
  %s0 = inlined_call_operand.hbm [shape: f32[256,16,128], index: 0, kind: input, shape index: {}]
  %s1 = inlined_call_operand.vmem [shape: f32[128,64], index: 1, kind: input, shape index: {}]
  %s2 = inlined_call_operand.hbm [shape: f32[1,64], index: 2, kind: input, shape index: {}]
  %s3 = inlined_call_operand.hbm [shape: f32[1,64], index: 3, kind: input, shape index: {}]
  %s4 = inlined_call_operand.hbm [shape: f32[256,128], index: 4, kind: output, shape index: {}]
  %s5 = sld [smem:[#allocation0]]
  $region61: #{tpu_custom_call.1} parent=0
    _
  %s7 = ssub.s32 1, %s5
  %s8 = scalar_select 0, %s7, %s5
  $region1: #{tpu_custom_call.1} parent=0
    #allocation2 [shape = 'u8[2097152]{0}', space=vmem, size = 0x200000, scoped, tag = 'input window, operand 0']
    #allocation3 [shape = 's32[2]{0}', space=sflag, size = 0x8, scoped, tag = 'scoped memory for tpu_custom_call.1']
    #allocation4 [shape = 's32[2]{0}', space=sflag, size = 0x8, scoped, tag = 'scoped memory for tpu_custom_call.1']
    #allocation5 [shape = 'u8[512]{0}', space=vmem, size = 0x400, scoped, tag = 'input window, operand 2, single buffered']
    #allocation6 [shape = 's32[1]{0}', space=sflag, size = 0x4, scoped, tag = 'scoped memory for tpu_custom_call.1']
    #allocation7 [shape = 'u8[512]{0}', space=vmem, size = 0x400, scoped, tag = 'input window, operand 3, single buffered']
    #allocation8 [shape = 'u8[131072]{0}', space=vmem, size = 0x20000, scoped, tag = 'output window, operand 0']
    %9 = vsyncpa [#allocation3], 0
    %s10 = scalar_lea.sflag [#allocation3], 1
    %11 = vsyncpa %s10, 0
    %12 = vsyncpa [#allocation6], 0
    %13 = vsyncpa [#allocation4], 0
    %s14 = scalar_lea.sflag [#allocation4], 1
    %15 = vsyncpa %s14, 0
    loop: start=0, step=1, limit=4
    $region2: #{tpu_custom_call.1} parent=1 // loop_pre_header
      _
    $region3: #{tpu_custom_call.1} parent=1 // loop_header
      %s17 = sphi 0, %s21
      %p18 = scmp.ge.s32.totalorder %s17, 4
      %s27 = sphi 0, %s29
      %s30 = sphi 0, %s27
      %s31 = sphi 0, %s30
      %s47 = sphi 0, %s31
      %s51 = sphi 0, %s51
      %s53 = sphi 0, %s51
      %s54 = sphi 0, %s53
      %s68 = sphi 0, %s54
      %s72 = sphi 0, %s72
      %s74 = sphi 0, %s72
      %s75 = sphi 0, %s74
      %s89 = sphi 0, %s75
      %s93 = sphi 0, %s93
      %s95 = sphi 0, %s93
      %s96 = sphi 0, %s95
      %s110 = sphi 0, %s96
      %s116 = sphi 0, %s118
      %s119 = sphi 0, %s116
      %s120 = sphi 0, %s119
      %s136 = sphi 0, %s120
    $region4: #{tpu_custom_call.1} parent=1 // loop_header_branch
      %20 = sbr.rel (%p18) target = $region8
    $region5: #{tpu_custom_call.1} parent=1 // loop_body
      %s22 = ssub.s32 %s17, 1
      %s23 = ssub.s32 %s17, 2
      %s24 = sadd.s32 %s17, 1
      %s25 = ssub.s32 %s17, %s24
      %p26 = scmp.eq.s32.totalorder %s25, 0
      %s28 = sadd.s32 %s27, 1
      %s29 = scalar_select %p26, %s27, %s28
      %p32 = pneg %p26
      %p33 = scmp.eq.s32.totalorder %s17, 1
      %p34 = por %p32, %p33
      %p35 = scmp.ne.s32.totalorder %s27, %s30
      %p36 = scmp.eq.s32.totalorder %s17, 0
      %p37 = por %p35, %p36
      %p38 = scmp.ne.s32.totalorder %s27, %s30
      %p39 = scmp.eq.s32.totalorder %s22, 1
      %p40 = por %p38, %p39
      %p41 = scmp.ne.s32.totalorder %s30, %s31
      %p42 = scmp.eq.s32.totalorder %s22, 0
      %p43 = por %p41, %p42
      %p44 = scmp.ne.s32.totalorder %s30, %s31
      %p45 = scmp.eq.s32.totalorder %s23, 1
      %p46 = por %p44, %p45
      %p48 = scmp.ne.s32.totalorder %s31, %s47
      %p49 = scmp.eq.s32.totalorder %s23, 0
      %p50 = por %p48, %p49
      %s52 = sadd.s32 %s51, 1
      %p55 = scmp.eq.s32.totalorder %s17, 1
      %p56 = scmp.ne.s32.totalorder %s51, %s53
      %p57 = scmp.eq.s32.totalorder %s17, 0
      %p58 = por %p56, %p57
      %p59 = scmp.ne.s32.totalorder %s51, %s53
      %p60 = scmp.eq.s32.totalorder %s22, 1
      %p61 = por %p59, %p60
      %p62 = scmp.ne.s32.totalorder %s53, %s54
      %p63 = scmp.eq.s32.totalorder %s22, 0
      %p64 = por %p62, %p63
      %p65 = scmp.ne.s32.totalorder %s53, %s54
      %p66 = scmp.eq.s32.totalorder %s23, 1
      %p67 = por %p65, %p66
      %p69 = scmp.ne.s32.totalorder %s54, %s68
      %p70 = scmp.eq.s32.totalorder %s23, 0
      %p71 = por %p69, %p70
      %s73 = sadd.s32 %s72, 1
      %p76 = scmp.eq.s32.totalorder %s17, 1
      %p77 = scmp.ne.s32.totalorder %s72, %s74
      %p78 = scmp.eq.s32.totalorder %s17, 0
      %p79 = por %p77, %p78
      %p80 = scmp.ne.s32.totalorder %s72, %s74
      %p81 = scmp.eq.s32.totalorder %s22, 1
      %p82 = por %p80, %p81
      %p83 = scmp.ne.s32.totalorder %s74, %s75
      %p84 = scmp.eq.s32.totalorder %s22, 0
      %p85 = por %p83, %p84
      %p86 = scmp.ne.s32.totalorder %s74, %s75
      %p87 = scmp.eq.s32.totalorder %s23, 1
      %p88 = por %p86, %p87
      %p90 = scmp.ne.s32.totalorder %s75, %s89
      %p91 = scmp.eq.s32.totalorder %s23, 0
      %p92 = por %p90, %p91
      %s94 = sadd.s32 %s93, 1
      %p97 = scmp.eq.s32.totalorder %s17, 1
      %p98 = scmp.ne.s32.totalorder %s93, %s95
      %p99 = scmp.eq.s32.totalorder %s17, 0
      %p100 = por %p98, %p99
      %p101 = scmp.ne.s32.totalorder %s93, %s95
      %p102 = scmp.eq.s32.totalorder %s22, 1
      %p103 = por %p101, %p102
      %p104 = scmp.ne.s32.totalorder %s95, %s96
      %p105 = scmp.eq.s32.totalorder %s22, 0
      %p106 = por %p104, %p105
      %p107 = scmp.ne.s32.totalorder %s95, %s96
      %p108 = scmp.eq.s32.totalorder %s23, 1
      %p109 = por %p107, %p108
      %p111 = scmp.ne.s32.totalorder %s96, %s110
      %p112 = scmp.eq.s32.totalorder %s23, 0
      %p113 = por %p111, %p112
      %s114 = ssub.s32 %s17, %s24
      %p115 = scmp.eq.s32.totalorder %s114, 0
      %s117 = sadd.s32 %s116, 1
      %s118 = scalar_select %p115, %s116, %s117
      %p121 = pneg %p115
      %p122 = scmp.eq.s32.totalorder %s17, 1
      %p123 = por %p121, %p122
      %p124 = scmp.ne.s32.totalorder %s116, %s119
      %p125 = scmp.eq.s32.totalorder %s17, 0
      %p126 = por %p124, %p125
      %p127 = scmp.ne.s32.totalorder %s116, %s119
      %p128 = scmp.eq.s32.totalorder %s22, 1
      %p129 = por %p127, %p128
      %p130 = scmp.ne.s32.totalorder %s119, %s120
      %p131 = scmp.eq.s32.totalorder %s22, 0
      %p132 = por %p130, %p131
      %p133 = scmp.ne.s32.totalorder %s119, %s120
      %p134 = scmp.eq.s32.totalorder %s23, 1
      %p135 = por %p133, %p134
      %p137 = scmp.ne.s32.totalorder %s120, %s136
      %p138 = scmp.eq.s32.totalorder %s23, 0
      %p139 = por %p137, %p138
      %p140 = scmp.le.s32.totalorder 1, %s17
      %p141 = scmp.lt.s32.totalorder %s17, 3
      %p142 = pnand %p140, %p141
      %p143 = pneg %p142
      // Predicated region
      $region9: #{tpu_custom_call.1} parent=5 // pred_check
        _
      $region10: #{tpu_custom_call.1} parent=5 // pred_check_branch
        %145 = sbr.rel (%p142) target = $region12
      $region11: #{tpu_custom_call.1} parent=5 // pred_region
        %s146 = ssub.s32 %s17, 1
        // Predicated region
        $region13: #{tpu_custom_call.1} parent=11 // pred_check
          %p147 = pneg %p64
        $region14: #{tpu_custom_call.1} parent=11 // pred_check_branch
          %149 = sbr.rel (%p147) target = $region16
        $region15: #{tpu_custom_call.1} parent=11 // pred_region
          _
        $region16: #{tpu_custom_call.1} parent=11 // pred_fallthru
          _
        // Predicated region
        $region17: #{tpu_custom_call.1} parent=11 // pred_check
          %p150 = pneg %p85
        $region18: #{tpu_custom_call.1} parent=11 // pred_check_branch
          %152 = sbr.rel (%p150) target = $region20
        $region19: #{tpu_custom_call.1} parent=11 // pred_region
          %s154 = ssub.s32 16, 16
          %155 = vsyncadd [#allocation6], %s154
          %s157 = sshll.u32 [#allocation5], 4
          %s158 = int_to_ptr.vmem [resolvable:$true] %s157
          %160 = dma.hbm_to_vmem [thread:$0]  %s2, 16, %s158, [#allocation6]
        $region20: #{tpu_custom_call.1} parent=11 // pred_fallthru
          _
        // Predicated region
        $region21: #{tpu_custom_call.1} parent=11 // pred_check
          %p161 = pneg %p106
        $region22: #{tpu_custom_call.1} parent=11 // pred_check_branch
          %163 = sbr.rel (%p161) target = $region24
        $region23: #{tpu_custom_call.1} parent=11 // pred_region
          %s165 = ssub.s32 16, 16
          %166 = vsyncadd [#allocation6], %s165
          %s168 = sshll.u32 [#allocation7], 4
          %s169 = int_to_ptr.vmem [resolvable:$true] %s168
          %171 = dma.hbm_to_vmem [thread:$0]  %s3, 16, %s169, [#allocation6]
        $region24: #{tpu_custom_call.1} parent=11 // pred_fallthru
          _
      $region12: #{tpu_custom_call.1} parent=5 // pred_fallthru
        _
      %p172 = scmp.lt.s32.totalorder %s17, 2
      // Predicated region
      $region25: #{tpu_custom_call.1} parent=5 // pred_check
        %p173 = pneg %p172
      $region26: #{tpu_custom_call.1} parent=5 // pred_check_branch
        %175 = sbr.rel (%p173) target = $region28
      $region27: #{tpu_custom_call.1} parent=5 // pred_region
        // Predicated region
        $region29: #{tpu_custom_call.1} parent=27 // pred_check
          %p176 = pneg %p37
        $region30: #{tpu_custom_call.1} parent=27 // pred_check_branch
          %178 = sbr.rel (%p176) target = $region32
        $region31: #{tpu_custom_call.1} parent=27 // pred_region
          %s179 = sand.u32 %s27, 1
          %s180 = scalar_lea.sflag [#allocation3], %s179
          %s181 = sand.u32 %s27, 1
          %s182 = smul.addr %s181, 2048
          %s183 = scalar_lea.vmem [#allocation2], %s182
          %s184 = smul.u32 128, %s17
          %s186 = ssub.s32 32768, 32768
          %187 = vsyncadd %s180, %s186
          %s188 = smul.addr %s184, 2
          %s189 = smul.addr %s188, 128
          %s190 = scalar_lea.hbm %s0, %s189
          %s191 = sshll.u32 %s183, 4
          %s192 = int_to_ptr.vmem [resolvable:$true] %s191
          %197 = dma.hbm_to_vmem [thread:$0]  %s190, 32768, %s192, %s180, 128, 128, 8
        $region32: #{tpu_custom_call.1} parent=27 // pred_fallthru
          _
      $region28: #{tpu_custom_call.1} parent=5 // pred_fallthru
        _
      %p198 = scmp.le.s32.totalorder 1, %s17
      %p199 = scmp.lt.s32.totalorder %s17, 3
      %p200 = pnand %p198, %p199
      %p201 = pneg %p200
      // Predicated region
      $region33: #{tpu_custom_call.1} parent=5 // pred_check
        _
      $region34: #{tpu_custom_call.1} parent=5 // pred_check_branch
        %203 = sbr.rel (%p200) target = $region36
      $region35: #{tpu_custom_call.1} parent=5 // pred_region
        %s204 = ssub.s32 %s17, 1
        %s205 = sand.u32 %s30, 1
        %s206 = scalar_lea.sflag [#allocation3], %s205
        %s207 = sand.u32 %s30, 1
        %s208 = smul.addr %s207, 2048
        %s209 = scalar_lea.vmem [#allocation2], %s208
        // Predicated region
        $region37: #{tpu_custom_call.1} parent=35 // pred_check
          %p210 = pneg %p43
        $region38: #{tpu_custom_call.1} parent=35 // pred_check_branch
          %212 = sbr.rel (%p210) target = $region40
        $region39: #{tpu_custom_call.1} parent=35 // pred_region
          %213 = dma.done %s206, 32768
        $region40: #{tpu_custom_call.1} parent=35 // pred_fallthru
          _
        // Predicated region
        $region41: #{tpu_custom_call.1} parent=35 // pred_check
          %p214 = pneg %p85
        $region42: #{tpu_custom_call.1} parent=35 // pred_check_branch
          %216 = sbr.rel (%p214) target = $region44
        $region43: #{tpu_custom_call.1} parent=35 // pred_region
          %217 = dma.done [#allocation6], 16
        $region44: #{tpu_custom_call.1} parent=35 // pred_fallthru
          _
        // Predicated region
        $region45: #{tpu_custom_call.1} parent=35 // pred_check
          %p218 = pneg %p106
        $region46: #{tpu_custom_call.1} parent=35 // pred_check_branch
          %220 = sbr.rel (%p218) target = $region48
        $region47: #{tpu_custom_call.1} parent=35 // pred_region
          %221 = dma.done [#allocation6], 16
        $region48: #{tpu_custom_call.1} parent=35 // pred_fallthru
          _
        %s222 = sand.u32 %s30, 1
        %s223 = scalar_lea.sflag [#allocation3], %s222
        %s224 = sand.u32 %s30, 1
        %s225 = smul.addr %s224, 2048
        %s226 = scalar_lea.vmem [#allocation2], %s225
        %p227 = pneg %p43
        %p228 = pneg %p40
        %p229 = pneg %p64
        %p230 = pneg %p61
        %p231 = pneg %p85
        %p232 = pneg %p82
        %p233 = pneg %p106
        %p234 = pneg %p103
        %p235 = pneg %p132
        %p236 = pneg %p129
        %s237 = sand.u32 %s119, 1
        %s238 = scalar_lea.sflag [#allocation4], %s237
        %s239 = sand.u32 %s119, 1
        %s240 = smul.addr %s239, 128
        %s241 = scalar_lea.vmem [#allocation8], %s240
        %s242 = smul.u32 128, %s22
        %s243 = smul.u32 16, %s22
        %v244 = vld [vmem:[%s209] sm:$0xff]
        %v245 = vld [vmem:[%s209 + $0x8] sm:$0xff]
        %v246 = vld [vmem:[%s209 + $0x10] sm:$0xff]
        %v247 = vld [vmem:[%s209 + $0x18] sm:$0xff]
        %v248 = vld [vmem:[%s209 + $0x20] sm:$0xff]
        %v249 = vld [vmem:[%s209 + $0x28] sm:$0xff]
        %v250 = vld [vmem:[%s209 + $0x30] sm:$0xff]
        %v251 = vld [vmem:[%s209 + $0x38] sm:$0xff]
        %v252 = vld [vmem:[%s209 + $0x40] sm:$0xff]
        %v253 = vld [vmem:[%s209 + $0x48] sm:$0xff]
        %v254 = vld [vmem:[%s209 + $0x50] sm:$0xff]
        %v255 = vld [vmem:[%s209 + $0x58] sm:$0xff]
        %v256 = vld [vmem:[%s209 + $0x60] sm:$0xff]
        %v257 = vld [vmem:[%s209 + $0x68] sm:$0xff]
        %v258 = vld [vmem:[%s209 + $0x70] sm:$0xff]
        %v259 = vld [vmem:[%s209 + $0x78] sm:$0xff]
        %v260 = vld [vmem:[%s209 + $0x80] sm:$0xff]
        %v261 = vld [vmem:[%s209 + $0x88] sm:$0xff]
        %v262 = vld [vmem:[%s209 + $0x90] sm:$0xff]
        %v263 = vld [vmem:[%s209 + $0x98] sm:$0xff]
        %v264 = vld [vmem:[%s209 + $0xa0] sm:$0xff]
        %v265 = vld [vmem:[%s209 + $0xa8] sm:$0xff]
        %v266 = vld [vmem:[%s209 + $0xb0] sm:$0xff]
        %v267 = vld [vmem:[%s209 + $0xb8] sm:$0xff]
        %v268 = vld [vmem:[%s209 + $0xc0] sm:$0xff]
        %v269 = vld [vmem:[%s209 + $0xc8] sm:$0xff]
        %v270 = vld [vmem:[%s209 + $0xd0] sm:$0xff]
        %v271 = vld [vmem:[%s209 + $0xd8] sm:$0xff]
        %v272 = vld [vmem:[%s209 + $0xe0] sm:$0xff]
        %v273 = vld [vmem:[%s209 + $0xe8] sm:$0xff]
        %v274 = vld [vmem:[%s209 + $0xf0] sm:$0xff]
        %v275 = vld [vmem:[%s209 + $0xf8] sm:$0xff]
        %v276 = vld [vmem:[%s209 + $0x100] sm:$0xff]
        %v277 = vld [vmem:[%s209 + $0x108] sm:$0xff]
        %v278 = vld [vmem:[%s209 + $0x110] sm:$0xff]
        %v279 = vld [vmem:[%s209 + $0x118] sm:$0xff]
        %v280 = vld [vmem:[%s209 + $0x120] sm:$0xff]
        %v281 = vld [vmem:[%s209 + $0x128] sm:$0xff]
        %v282 = vld [vmem:[%s209 + $0x130] sm:$0xff]
        %v283 = vld [vmem:[%s209 + $0x138] sm:$0xff]
        %v284 = vld [vmem:[%s209 + $0x140] sm:$0xff]
        %v285 = vld [vmem:[%s209 + $0x148] sm:$0xff]
        %v286 = vld [vmem:[%s209 + $0x150] sm:$0xff]
        %v287 = vld [vmem:[%s209 + $0x158] sm:$0xff]
        %v288 = vld [vmem:[%s209 + $0x160] sm:$0xff]
        %v289 = vld [vmem:[%s209 + $0x168] sm:$0xff]
        %v290 = vld [vmem:[%s209 + $0x170] sm:$0xff]
        %v291 = vld [vmem:[%s209 + $0x178] sm:$0xff]
        %v292 = vld [vmem:[%s209 + $0x180] sm:$0xff]
        %v293 = vld [vmem:[%s209 + $0x188] sm:$0xff]
        %v294 = vld [vmem:[%s209 + $0x190] sm:$0xff]
        %v295 = vld [vmem:[%s209 + $0x198] sm:$0xff]
        %v296 = vld [vmem:[%s209 + $0x1a0] sm:$0xff]
        %v297 = vld [vmem:[%s209 + $0x1a8] sm:$0xff]
        %v298 = vld [vmem:[%s209 + $0x1b0] sm:$0xff]
        %v299 = vld [vmem:[%s209 + $0x1b8] sm:$0xff]
        %v300 = vld [vmem:[%s209 + $0x1c0] sm:$0xff]
        %v301 = vld [vmem:[%s209 + $0x1c8] sm:$0xff]
        %v302 = vld [vmem:[%s209 + $0x1d0] sm:$0xff]
        %v303 = vld [vmem:[%s209 + $0x1d8] sm:$0xff]
        %v304 = vld [vmem:[%s209 + $0x1e0] sm:$0xff]
        %v305 = vld [vmem:[%s209 + $0x1e8] sm:$0xff]
        %v306 = vld [vmem:[%s209 + $0x1f0] sm:$0xff]
        %v307 = vld [vmem:[%s209 + $0x1f8] sm:$0xff]
        %v308 = vld [vmem:[%s209 + $0x200] sm:$0xff]
        %v309 = vld [vmem:[%s209 + $0x208] sm:$0xff]
        %v310 = vld [vmem:[%s209 + $0x210] sm:$0xff]
        %v311 = vld [vmem:[%s209 + $0x218] sm:$0xff]
        %v312 = vld [vmem:[%s209 + $0x220] sm:$0xff]
        %v313 = vld [vmem:[%s209 + $0x228] sm:$0xff]
        %v314 = vld [vmem:[%s209 + $0x230] sm:$0xff]
        %v315 = vld [vmem:[%s209 + $0x238] sm:$0xff]
        %v316 = vld [vmem:[%s209 + $0x240] sm:$0xff]
        %v317 = vld [vmem:[%s209 + $0x248] sm:$0xff]
        %v318 = vld [vmem:[%s209 + $0x250] sm:$0xff]
        %v319 = vld [vmem:[%s209 + $0x258] sm:$0xff]
        %v320 = vld [vmem:[%s209 + $0x260] sm:$0xff]
        %v321 = vld [vmem:[%s209 + $0x268] sm:$0xff]
        %v322 = vld [vmem:[%s209 + $0x270] sm:$0xff]
        %v323 = vld [vmem:[%s209 + $0x278] sm:$0xff]
        %v324 = vld [vmem:[%s209 + $0x280] sm:$0xff]
        %v325 = vld [vmem:[%s209 + $0x288] sm:$0xff]
        %v326 = vld [vmem:[%s209 + $0x290] sm:$0xff]
        %v327 = vld [vmem:[%s209 + $0x298] sm:$0xff]
        %v328 = vld [vmem:[%s209 + $0x2a0] sm:$0xff]
        %v329 = vld [vmem:[%s209 + $0x2a8] sm:$0xff]
        %v330 = vld [vmem:[%s209 + $0x2b0] sm:$0xff]
        %v331 = vld [vmem:[%s209 + $0x2b8] sm:$0xff]
        %v332 = vld [vmem:[%s209 + $0x2c0] sm:$0xff]
        %v333 = vld [vmem:[%s209 + $0x2c8] sm:$0xff]
        %v334 = vld [vmem:[%s209 + $0x2d0] sm:$0xff]
        %v335 = vld [vmem:[%s209 + $0x2d8] sm:$0xff]
        %v336 = vld [vmem:[%s209 + $0x2e0] sm:$0xff]
        %v337 = vld [vmem:[%s209 + $0x2e8] sm:$0xff]
        %v338 = vld [vmem:[%s209 + $0x2f0] sm:$0xff]
        %v339 = vld [vmem:[%s209 + $0x2f8] sm:$0xff]
        %v340 = vld [vmem:[%s209 + $0x300] sm:$0xff]
        %v341 = vld [vmem:[%s209 + $0x308] sm:$0xff]
        %v342 = vld [vmem:[%s209 + $0x310] sm:$0xff]
        %v343 = vld [vmem:[%s209 + $0x318] sm:$0xff]
        %v344 = vld [vmem:[%s209 + $0x320] sm:$0xff]
        %v345 = vld [vmem:[%s209 + $0x328] sm:$0xff]
        %v346 = vld [vmem:[%s209 + $0x330] sm:$0xff]
        %v347 = vld [vmem:[%s209 + $0x338] sm:$0xff]
        %v348 = vld [vmem:[%s209 + $0x340] sm:$0xff]
        %v349 = vld [vmem:[%s209 + $0x348] sm:$0xff]
        %v350 = vld [vmem:[%s209 + $0x350] sm:$0xff]
        %v351 = vld [vmem:[%s209 + $0x358] sm:$0xff]
        %v352 = vld [vmem:[%s209 + $0x360] sm:$0xff]
        %v353 = vld [vmem:[%s209 + $0x368] sm:$0xff]
        %v354 = vld [vmem:[%s209 + $0x370] sm:$0xff]
        %v355 = vld [vmem:[%s209 + $0x378] sm:$0xff]
        %v356 = vld [vmem:[%s209 + $0x380] sm:$0xff]
        %v357 = vld [vmem:[%s209 + $0x388] sm:$0xff]
        %v358 = vld [vmem:[%s209 + $0x390] sm:$0xff]
        %v359 = vld [vmem:[%s209 + $0x398] sm:$0xff]
        %v360 = vld [vmem:[%s209 + $0x3a0] sm:$0xff]
        %v361 = vld [vmem:[%s209 + $0x3a8] sm:$0xff]
        %v362 = vld [vmem:[%s209 + $0x3b0] sm:$0xff]
        %v363 = vld [vmem:[%s209 + $0x3b8] sm:$0xff]
        %v364 = vld [vmem:[%s209 + $0x3c0] sm:$0xff]
        %v365 = vld [vmem:[%s209 + $0x3c8] sm:$0xff]
        %v366 = vld [vmem:[%s209 + $0x3d0] sm:$0xff]
        %v367 = vld [vmem:[%s209 + $0x3d8] sm:$0xff]
        %v368 = vld [vmem:[%s209 + $0x3e0] sm:$0xff]
        %v369 = vld [vmem:[%s209 + $0x3e8] sm:$0xff]
        %v370 = vld [vmem:[%s209 + $0x3f0] sm:$0xff]
        %v371 = vld [vmem:[%s209 + $0x3f8] sm:$0xff]
        %v372 = vld [vmem:[%s209 + $0x400] sm:$0xff]
        %v373 = vld [vmem:[%s209 + $0x408] sm:$0xff]
        %v374 = vld [vmem:[%s209 + $0x410] sm:$0xff]
        %v375 = vld [vmem:[%s209 + $0x418] sm:$0xff]
        %v376 = vld [vmem:[%s209 + $0x420] sm:$0xff]
        %v377 = vld [vmem:[%s209 + $0x428] sm:$0xff]
        %v378 = vld [vmem:[%s209 + $0x430] sm:$0xff]
        %v379 = vld [vmem:[%s209 + $0x438] sm:$0xff]
        %v380 = vld [vmem:[%s209 + $0x440] sm:$0xff]
        %v381 = vld [vmem:[%s209 + $0x448] sm:$0xff]
        %v382 = vld [vmem:[%s209 + $0x450] sm:$0xff]
        %v383 = vld [vmem:[%s209 + $0x458] sm:$0xff]
        %v384 = vld [vmem:[%s209 + $0x460] sm:$0xff]
        %v385 = vld [vmem:[%s209 + $0x468] sm:$0xff]
        %v386 = vld [vmem:[%s209 + $0x470] sm:$0xff]
        %v387 = vld [vmem:[%s209 + $0x478] sm:$0xff]
        %v388 = vld [vmem:[%s209 + $0x480] sm:$0xff]
        %v389 = vld [vmem:[%s209 + $0x488] sm:$0xff]
        %v390 = vld [vmem:[%s209 + $0x490] sm:$0xff]
        %v391 = vld [vmem:[%s209 + $0x498] sm:$0xff]
        %v392 = vld [vmem:[%s209 + $0x4a0] sm:$0xff]
        %v393 = vld [vmem:[%s209 + $0x4a8] sm:$0xff]
        %v394 = vld [vmem:[%s209 + $0x4b0] sm:$0xff]
        %v395 = vld [vmem:[%s209 + $0x4b8] sm:$0xff]
        %v396 = vld [vmem:[%s209 + $0x4c0] sm:$0xff]
        %v397 = vld [vmem:[%s209 + $0x4c8] sm:$0xff]
        %v398 = vld [vmem:[%s209 + $0x4d0] sm:$0xff]
        %v399 = vld [vmem:[%s209 + $0x4d8] sm:$0xff]
        %v400 = vld [vmem:[%s209 + $0x4e0] sm:$0xff]
        %v401 = vld [vmem:[%s209 + $0x4e8] sm:$0xff]
        %v402 = vld [vmem:[%s209 + $0x4f0] sm:$0xff]
        %v403 = vld [vmem:[%s209 + $0x4f8] sm:$0xff]
        %v404 = vld [vmem:[%s209 + $0x500] sm:$0xff]
        %v405 = vld [vmem:[%s209 + $0x508] sm:$0xff]
        %v406 = vld [vmem:[%s209 + $0x510] sm:$0xff]
        %v407 = vld [vmem:[%s209 + $0x518] sm:$0xff]
        %v408 = vld [vmem:[%s209 + $0x520] sm:$0xff]
        %v409 = vld [vmem:[%s209 + $0x528] sm:$0xff]
        %v410 = vld [vmem:[%s209 + $0x530] sm:$0xff]
        %v411 = vld [vmem:[%s209 + $0x538] sm:$0xff]
        %v412 = vld [vmem:[%s209 + $0x540] sm:$0xff]
        %v413 = vld [vmem:[%s209 + $0x548] sm:$0xff]
        %v414 = vld [vmem:[%s209 + $0x550] sm:$0xff]
        %v415 = vld [vmem:[%s209 + $0x558] sm:$0xff]
        %v416 = vld [vmem:[%s209 + $0x560] sm:$0xff]
        %v417 = vld [vmem:[%s209 + $0x568] sm:$0xff]
        %v418 = vld [vmem:[%s209 + $0x570] sm:$0xff]
        %v419 = vld [vmem:[%s209 + $0x578] sm:$0xff]
        %v420 = vld [vmem:[%s209 + $0x580] sm:$0xff]
        %v421 = vld [vmem:[%s209 + $0x588] sm:$0xff]
        %v422 = vld [vmem:[%s209 + $0x590] sm:$0xff]
        %v423 = vld [vmem:[%s209 + $0x598] sm:$0xff]
        %v424 = vld [vmem:[%s209 + $0x5a0] sm:$0xff]
        %v425 = vld [vmem:[%s209 + $0x5a8] sm:$0xff]
        %v426 = vld [vmem:[%s209 + $0x5b0] sm:$0xff]
        %v427 = vld [vmem:[%s209 + $0x5b8] sm:$0xff]
        %v428 = vld [vmem:[%s209 + $0x5c0] sm:$0xff]
        %v429 = vld [vmem:[%s209 + $0x5c8] sm:$0xff]
        %v430 = vld [vmem:[%s209 + $0x5d0] sm:$0xff]
        %v431 = vld [vmem:[%s209 + $0x5d8] sm:$0xff]
        %v432 = vld [vmem:[%s209 + $0x5e0] sm:$0xff]
        %v433 = vld [vmem:[%s209 + $0x5e8] sm:$0xff]
        %v434 = vld [vmem:[%s209 + $0x5f0] sm:$0xff]
        %v435 = vld [vmem:[%s209 + $0x5f8] sm:$0xff]
        %v436 = vld [vmem:[%s209 + $0x600] sm:$0xff]
        %v437 = vld [vmem:[%s209 + $0x608] sm:$0xff]
        %v438 = vld [vmem:[%s209 + $0x610] sm:$0xff]
        %v439 = vld [vmem:[%s209 + $0x618] sm:$0xff]
        %v440 = vld [vmem:[%s209 + $0x620] sm:$0xff]
        %v441 = vld [vmem:[%s209 + $0x628] sm:$0xff]
        %v442 = vld [vmem:[%s209 + $0x630] sm:$0xff]
        %v443 = vld [vmem:[%s209 + $0x638] sm:$0xff]
        %v444 = vld [vmem:[%s209 + $0x640] sm:$0xff]
        %v445 = vld [vmem:[%s209 + $0x648] sm:$0xff]
        %v446 = vld [vmem:[%s209 + $0x650] sm:$0xff]
        %v447 = vld [vmem:[%s209 + $0x658] sm:$0xff]
        %v448 = vld [vmem:[%s209 + $0x660] sm:$0xff]
        %v449 = vld [vmem:[%s209 + $0x668] sm:$0xff]
        %v450 = vld [vmem:[%s209 + $0x670] sm:$0xff]
        %v451 = vld [vmem:[%s209 + $0x678] sm:$0xff]
        %v452 = vld [vmem:[%s209 + $0x680] sm:$0xff]
        %v453 = vld [vmem:[%s209 + $0x688] sm:$0xff]
        %v454 = vld [vmem:[%s209 + $0x690] sm:$0xff]
        %v455 = vld [vmem:[%s209 + $0x698] sm:$0xff]
        %v456 = vld [vmem:[%s209 + $0x6a0] sm:$0xff]
        %v457 = vld [vmem:[%s209 + $0x6a8] sm:$0xff]
        %v458 = vld [vmem:[%s209 + $0x6b0] sm:$0xff]
        %v459 = vld [vmem:[%s209 + $0x6b8] sm:$0xff]
        %v460 = vld [vmem:[%s209 + $0x6c0] sm:$0xff]
        %v461 = vld [vmem:[%s209 + $0x6c8] sm:$0xff]
        %v462 = vld [vmem:[%s209 + $0x6d0] sm:$0xff]
        %v463 = vld [vmem:[%s209 + $0x6d8] sm:$0xff]
        %v464 = vld [vmem:[%s209 + $0x6e0] sm:$0xff]
        %v465 = vld [vmem:[%s209 + $0x6e8] sm:$0xff]
        %v466 = vld [vmem:[%s209 + $0x6f0] sm:$0xff]
        %v467 = vld [vmem:[%s209 + $0x6f8] sm:$0xff]
        %v468 = vld [vmem:[%s209 + $0x700] sm:$0xff]
        %v469 = vld [vmem:[%s209 + $0x708] sm:$0xff]
        %v470 = vld [vmem:[%s209 + $0x710] sm:$0xff]
        %v471 = vld [vmem:[%s209 + $0x718] sm:$0xff]
        %v472 = vld [vmem:[%s209 + $0x720] sm:$0xff]
        %v473 = vld [vmem:[%s209 + $0x728] sm:$0xff]
        %v474 = vld [vmem:[%s209 + $0x730] sm:$0xff]
        %v475 = vld [vmem:[%s209 + $0x738] sm:$0xff]
        %v476 = vld [vmem:[%s209 + $0x740] sm:$0xff]
        %v477 = vld [vmem:[%s209 + $0x748] sm:$0xff]
        %v478 = vld [vmem:[%s209 + $0x750] sm:$0xff]
        %v479 = vld [vmem:[%s209 + $0x758] sm:$0xff]
        %v480 = vld [vmem:[%s209 + $0x760] sm:$0xff]
        %v481 = vld [vmem:[%s209 + $0x768] sm:$0xff]
        %v482 = vld [vmem:[%s209 + $0x770] sm:$0xff]
        %v483 = vld [vmem:[%s209 + $0x778] sm:$0xff]
        %v484 = vld [vmem:[%s209 + $0x780] sm:$0xff]
        %v485 = vld [vmem:[%s209 + $0x788] sm:$0xff]
        %v486 = vld [vmem:[%s209 + $0x790] sm:$0xff]
        %v487 = vld [vmem:[%s209 + $0x798] sm:$0xff]
        %v488 = vld [vmem:[%s209 + $0x7a0] sm:$0xff]
        %v489 = vld [vmem:[%s209 + $0x7a8] sm:$0xff]
        %v490 = vld [vmem:[%s209 + $0x7b0] sm:$0xff]
        %v491 = vld [vmem:[%s209 + $0x7b8] sm:$0xff]
        %v492 = vld [vmem:[%s209 + $0x7c0] sm:$0xff]
        %v493 = vld [vmem:[%s209 + $0x7c8] sm:$0xff]
        %v494 = vld [vmem:[%s209 + $0x7d0] sm:$0xff]
        %v495 = vld [vmem:[%s209 + $0x7d8] sm:$0xff]
        %v496 = vld [vmem:[%s209 + $0x7e0] sm:$0xff]
        %v497 = vld [vmem:[%s209 + $0x7e8] sm:$0xff]
        %v498 = vld [vmem:[%s209 + $0x7f0] sm:$0xff]
        %v499 = vld [vmem:[%s209 + $0x7f8] sm:$0xff]
        %v500 = vld [vmem:[%s1] sm:$0xff]
        %v501 = vld [vmem:[%s1 + $0x8] sm:$0xff]
        %v502 = vld [vmem:[%s1 + $0x10] sm:$0xff]
        %v503 = vld [vmem:[%s1 + $0x18] sm:$0xff]
        %v504 = vld [vmem:[%s1 + $0x20] sm:$0xff]
        %v505 = vld [vmem:[%s1 + $0x28] sm:$0xff]
        %v506 = vld [vmem:[%s1 + $0x30] sm:$0xff]
        %v507 = vld [vmem:[%s1 + $0x38] sm:$0xff]
        %v508 = vld [vmem:[%s1 + $0x40] sm:$0xff]
        %v509 = vld [vmem:[%s1 + $0x48] sm:$0xff]
        %v510 = vld [vmem:[%s1 + $0x50] sm:$0xff]
        %v511 = vld [vmem:[%s1 + $0x58] sm:$0xff]
        %v512 = vld [vmem:[%s1 + $0x60] sm:$0xff]
        %v513 = vld [vmem:[%s1 + $0x68] sm:$0xff]
        %v514 = vld [vmem:[%s1 + $0x70] sm:$0xff]
        %v515 = vld [vmem:[%s1 + $0x78] sm:$0xff]
        %v516 = vld [vmem:[#allocation5] sm:$0x1]
        %v518 = vlaneseq
        %v519 = vshrl.u32 %v518, 7
        %v520 = vsub.s32 0, %v519
        %v521 = vrot.slane %v516, %v520
        %523 = vmatprep.subr.mxu0 0.0
        %524 = vmatpush1.msra.mxu0 %v500
        %525 = vmatprep.subr.mxu0 0.0
        %526 = vmatpush1.msra.mxu0 %v501
        %527 = vmatprep.subr.mxu0 0.0
        %528 = vmatpush1.msra.mxu0 %v502
        %529 = vmatprep.subr.mxu0 0.0
        %530 = vmatpush1.msra.mxu0 %v503
        %531 = vmatprep.subr.mxu0 0.0
        %532 = vmatpush1.msra.mxu0 %v504
        %533 = vmatprep.subr.mxu0 0.0
        %534 = vmatpush1.msra.mxu0 %v505
        %535 = vmatprep.subr.mxu0 0.0
        %536 = vmatpush1.msra.mxu0 %v506
        %537 = vmatprep.subr.mxu0 0.0
        %538 = vmatpush1.msra.mxu0 %v507
        %539 = vmatprep.subr.mxu0 0.0
        %540 = vmatpush1.msra.mxu0 %v508
        %541 = vmatprep.subr.mxu0 0.0
        %542 = vmatpush1.msra.mxu0 %v509
        %543 = vmatprep.subr.mxu0 0.0
        %544 = vmatpush1.msra.mxu0 %v510
        %545 = vmatprep.subr.mxu0 0.0
        %546 = vmatpush1.msra.mxu0 %v511
        %547 = vmatprep.subr.mxu0 0.0
        %548 = vmatpush1.msra.mxu0 %v512
        %549 = vmatprep.subr.mxu0 0.0
        %550 = vmatpush1.msra.mxu0 %v513
        %551 = vmatprep.subr.mxu0 0.0
        %552 = vmatpush1.msra.mxu0 %v514
        %553 = vmatprep.subr.mxu0 0.0
        %554 = vmatpush1.msra.mxu0 %v515
        %555 = vmatprep.subr.mxu0 0.0
        %556 = vmatpush1.msra.mxu0 0.0
        %557 = vmatprep.subr.mxu0 0.0
        %558 = vmatpush1.msra.mxu0 0.0
        %559 = vmatprep.subr.mxu0 0.0
        %560 = vmatpush1.msra.mxu0 0.0
        %561 = vmatprep.subr.mxu0 0.0
        %562 = vmatpush1.msra.mxu0 0.0
        %563 = vmatprep.subr.mxu0 0.0
        %564 = vmatpush1.msra.mxu0 0.0
        %565 = vmatprep.subr.mxu0 0.0
        %566 = vmatpush1.msra.mxu0 0.0
        %567 = vmatprep.subr.mxu0 0.0
        %568 = vmatpush1.msra.mxu0 0.0
        %569 = vmatprep.subr.mxu0 0.0
        %570 = vmatpush1.msra.mxu0 0.0
        %571 = vmatprep.subr.mxu0 0.0
        %572 = vmatpush1.msra.mxu0 0.0
        %573 = vmatprep.subr.mxu0 0.0
        %574 = vmatpush1.msra.mxu0 0.0
        %575 = vmatprep.subr.mxu0 0.0
        %576 = vmatpush1.msra.mxu0 0.0
        %577 = vmatprep.subr.mxu0 0.0
        %578 = vmatpush1.msra.mxu0 0.0
        %579 = vmatprep.subr.mxu0 0.0
        %580 = vmatpush1.msra.mxu0 0.0
        %581 = vmatprep.subr.mxu0 0.0
        %582 = vmatpush1.msra.mxu0 0.0
        %583 = vmatprep.subr.mxu0 0.0
        %584 = vmatpush1.msra.mxu0 0.0
        %585 = vmatprep.subr.mxu0 0.0
        %586 = vmatpush1.msra.mxu0 0.0
        %587 = vmatprep.mubr.f32.mxu0 0.0
        %588 = vmatmul.mubr.f32.gmra.mrb[0].mxu0 %v244
        %v589 = vpop.f32.mrb[0].mxu0
        %v590 = vadd.f32 %v521, %v589
        %v591 = vpop.f32.mrb[0].mxu0
        %592 = vmatprep.mubr.f32.mxu0 0.0
        %593 = vmatmul.mubr.f32.gmra.mrb[0].mxu0 %v245
        %v594 = vpop.f32.mrb[0].mxu0
        %v595 = vadd.f32 %v521, %v594
        %v596 = vpop.f32.mrb[0].mxu0
        %597 = vmatprep.mubr.f32.mxu0 0.0
        %598 = vmatmul.mubr.f32.gmra.mrb[0].mxu0 %v246
        %v599 = vpop.f32.mrb[0].mxu0
        %v600 = vadd.f32 %v521, %v599
        %v601 = vpop.f32.mrb[0].mxu0
        %602 = vmatprep.mubr.f32.mxu0 0.0
        %603 = vmatmul.mubr.f32.gmra.mrb[0].mxu0 %v247
        %v604 = vpop.f32.mrb[0].mxu0
        %v605 = vadd.f32 %v521, %v604
        %v606 = vpop.f32.mrb[0].mxu0
        %607 = vmatprep.mubr.f32.mxu0 0.0
        %608 = vmatmul.mubr.f32.gmra.mrb[0].mxu0 %v248
        %v609 = vpop.f32.mrb[0].mxu0
        %v610 = vadd.f32 %v521, %v609
        %v611 = vpop.f32.mrb[0].mxu0
        %612 = vmatprep.mubr.f32.mxu0 0.0
        %613 = vmatmul.mubr.f32.gmra.mrb[0].mxu0 %v249
        %v614 = vpop.f32.mrb[0].mxu0
        %v615 = vadd.f32 %v521, %v614
        %v616 = vpop.f32.mrb[0].mxu0
        %617 = vmatprep.mubr.f32.mxu0 0.0
        %618 = vmatmul.mubr.f32.gmra.mrb[0].mxu0 %v250
        %v619 = vpop.f32.mrb[0].mxu0
        %v620 = vadd.f32 %v521, %v619
        %v621 = vpop.f32.mrb[0].mxu0
        %622 = vmatprep.mubr.f32.mxu0 0.0
        %623 = vmatmul.mubr.f32.gmra.mrb[0].mxu0 %v251
        %v624 = vpop.f32.mrb[0].mxu0
        %v625 = vadd.f32 %v521, %v624
        %v626 = vpop.f32.mrb[0].mxu0
        %627 = vmatprep.mubr.f32.mxu0 0.0
        %628 = vmatmul.mubr.f32.gmra.mrb[0].mxu0 %v252
        %v629 = vpop.f32.mrb[0].mxu0
        %v630 = vadd.f32 %v521, %v629
        %v631 = vpop.f32.mrb[0].mxu0
        %632 = vmatprep.mubr.f32.mxu0 0.0
        %633 = vmatmul.mubr.f32.gmra.mrb[0].mxu0 %v253
        %v634 = vpop.f32.mrb[0].mxu0
        %v635 = vadd.f32 %v521, %v634
        %v636 = vpop.f32.mrb[0].mxu0
        %637 = vmatprep.mubr.f32.mxu0 0.0
        %638 = vmatmul.mubr.f32.gmra.mrb[0].mxu0 %v254
        %v639 = vpop.f32.mrb[0].mxu0
        %v640 = vadd.f32 %v521, %v639
        %v641 = vpop.f32.mrb[0].mxu0
        %642 = vmatprep.mubr.f32.mxu0 0.0
        %643 = vmatmul.mubr.f32.gmra.mrb[0].mxu0 %v255
        %v644 = vpop.f32.mrb[0].mxu0
        %v645 = vadd.f32 %v521, %v644
        %v646 = vpop.f32.mrb[0].mxu0
        %647 = vmatprep.mubr.f32.mxu0 0.0
        %648 = vmatmul.mubr.f32.gmra.mrb[0].mxu0 %v256
        %v649 = vpop.f32.mrb[0].mxu0
        %v650 = vadd.f32 %v521, %v649
        %v651 = vpop.f32.mrb[0].mxu0
        %652 = vmatprep.mubr.f32.mxu0 0.0
        %653 = vmatmul.mubr.f32.gmra.mrb[0].mxu0 %v257
        %v654 = vpop.f32.mrb[0].mxu0
        %v655 = vadd.f32 %v521, %v654
        %v656 = vpop.f32.mrb[0].mxu0
        %657 = vmatprep.mubr.f32.mxu0 0.0
        %658 = vmatmul.mubr.f32.gmra.mrb[0].mxu0 %v258
        %v659 = vpop.f32.mrb[0].mxu0
        %v660 = vadd.f32 %v521, %v659
        %v661 = vpop.f32.mrb[0].mxu0
        %662 = vmatprep.mubr.f32.mxu0 0.0
        %663 = vmatmul.mubr.f32.gmra.mrb[0].mxu0 %v259
        %v664 = vpop.f32.mrb[0].mxu0
        %v665 = vadd.f32 %v521, %v664
        %v666 = vpop.f32.mrb[0].mxu0
        %667 = vmatprep.mubr.f32.mxu0 0.0
        %668 = vmatmul.mubr.f32.gmra.mrb[0].mxu0 %v260
        %v669 = vpop.f32.mrb[0].mxu0
        %v670 = vadd.f32 %v521, %v669
        %v671 = vpop.f32.mrb[0].mxu0
        %672 = vmatprep.mubr.f32.mxu0 0.0
        %673 = vmatmul.mubr.f32.gmra.mrb[0].mxu0 %v261
        %v674 = vpop.f32.mrb[0].mxu0
        %v675 = vadd.f32 %v521, %v674
        %v676 = vpop.f32.mrb[0].mxu0
        %677 = vmatprep.mubr.f32.mxu0 0.0
        %678 = vmatmul.mubr.f32.gmra.mrb[0].mxu0 %v262
        %v679 = vpop.f32.mrb[0].mxu0
        %v680 = vadd.f32 %v521, %v679
        %v681 = vpop.f32.mrb[0].mxu0
        %682 = vmatprep.mubr.f32.mxu0 0.0
        %683 = vmatmul.mubr.f32.gmra.mrb[0].mxu0 %v263
        %v684 = vpop.f32.mrb[0].mxu0
        %v685 = vadd.f32 %v521, %v684
        %v686 = vpop.f32.mrb[0].mxu0
        %687 = vmatprep.mubr.f32.mxu0 0.0
        %688 = vmatmul.mubr.f32.gmra.mrb[0].mxu0 %v264
        %v689 = vpop.f32.mrb[0].mxu0
        %v690 = vadd.f32 %v521, %v689
        %v691 = vpop.f32.mrb[0].mxu0
        %692 = vmatprep.mubr.f32.mxu0 0.0
        %693 = vmatmul.mubr.f32.gmra.mrb[0].mxu0 %v265
        %v694 = vpop.f32.mrb[0].mxu0
        %v695 = vadd.f32 %v521, %v694
        %v696 = vpop.f32.mrb[0].mxu0
        %697 = vmatprep.mubr.f32.mxu0 0.0
        %698 = vmatmul.mubr.f32.gmra.mrb[0].mxu0 %v266
        %v699 = vpop.f32.mrb[0].mxu0
        %v700 = vadd.f32 %v521, %v699
        %v701 = vpop.f32.mrb[0].mxu0
        %702 = vmatprep.mubr.f32.mxu0 0.0
        %703 = vmatmul.mubr.f32.gmra.mrb[0].mxu0 %v267
        %v704 = vpop.f32.mrb[0].mxu0
        %v705 = vadd.f32 %v521, %v704
        %v706 = vpop.f32.mrb[0].mxu0
        %707 = vmatprep.mubr.f32.mxu0 0.0
        %708 = vmatmul.mubr.f32.gmra.mrb[0].mxu0 %v268
        %v709 = vpop.f32.mrb[0].mxu0
        %v710 = vadd.f32 %v521, %v709
        %v711 = vpop.f32.mrb[0].mxu0
        %712 = vmatprep.mubr.f32.mxu0 0.0
        %713 = vmatmul.mubr.f32.gmra.mrb[0].mxu0 %v269
        %v714 = vpop.f32.mrb[0].mxu0
        %v715 = vadd.f32 %v521, %v714
        %v716 = vpop.f32.mrb[0].mxu0
        %717 = vmatprep.mubr.f32.mxu0 0.0
        %718 = vmatmul.mubr.f32.gmra.mrb[0].mxu0 %v270
        %v719 = vpop.f32.mrb[0].mxu0
        %v720 = vadd.f32 %v521, %v719
        %v721 = vpop.f32.mrb[0].mxu0
        %722 = vmatprep.mubr.f32.mxu0 0.0
        %723 = vmatmul.mubr.f32.gmra.mrb[0].mxu0 %v271
        %v724 = vpop.f32.mrb[0].mxu0
        %v725 = vadd.f32 %v521, %v724
        %v726 = vpop.f32.mrb[0].mxu0
        %727 = vmatprep.mubr.f32.mxu0 0.0
        %728 = vmatmul.mubr.f32.gmra.mrb[0].mxu0 %v272
        %v729 = vpop.f32.mrb[0].mxu0
        %v730 = vadd.f32 %v521, %v729
        %v731 = vpop.f32.mrb[0].mxu0
        %732 = vmatprep.mubr.f32.mxu0 0.0
        %733 = vmatmul.mubr.f32.gmra.mrb[0].mxu0 %v273
        %v734 = vpop.f32.mrb[0].mxu0
        %v735 = vadd.f32 %v521, %v734
        %v736 = vpop.f32.mrb[0].mxu0
        %737 = vmatprep.mubr.f32.mxu0 0.0
        %738 = vmatmul.mubr.f32.gmra.mrb[0].mxu0 %v274
        %v739 = vpop.f32.mrb[0].mxu0
        %v740 = vadd.f32 %v521, %v739
        %v741 = vpop.f32.mrb[0].mxu0
        %742 = vmatprep.mubr.f32.mxu0 0.0
        %743 = vmatmul.mubr.f32.gmra.mrb[0].mxu0 %v275
        %v744 = vpop.f32.mrb[0].mxu0
        %v745 = vadd.f32 %v521, %v744
        %v746 = vpop.f32.mrb[0].mxu0
        %747 = vmatprep.mubr.f32.mxu0 0.0
        %748 = vmatmul.mubr.f32.gmra.mrb[0].mxu0 %v276
        %v749 = vpop.f32.mrb[0].mxu0
        %v750 = vadd.f32 %v521, %v749
        %v751 = vpop.f32.mrb[0].mxu0
        %752 = vmatprep.mubr.f32.mxu0 0.0
        %753 = vmatmul.mubr.f32.gmra.mrb[0].mxu0 %v277
        %v754 = vpop.f32.mrb[0].mxu0
        %v755 = vadd.f32 %v521, %v754
        %v756 = vpop.f32.mrb[0].mxu0
        %757 = vmatprep.mubr.f32.mxu0 0.0
        %758 = vmatmul.mubr.f32.gmra.mrb[0].mxu0 %v278
        %v759 = vpop.f32.mrb[0].mxu0
        %v760 = vadd.f32 %v521, %v759
        %v761 = vpop.f32.mrb[0].mxu0
        %762 = vmatprep.mubr.f32.mxu0 0.0
        %763 = vmatmul.mubr.f32.gmra.mrb[0].mxu0 %v279
        %v764 = vpop.f32.mrb[0].mxu0
        %v765 = vadd.f32 %v521, %v764
        %v766 = vpop.f32.mrb[0].mxu0
        %767 = vmatprep.mubr.f32.mxu0 0.0
        %768 = vmatmul.mubr.f32.gmra.mrb[0].mxu0 %v280
        %v769 = vpop.f32.mrb[0].mxu0
        %v770 = vadd.f32 %v521, %v769
        %v771 = vpop.f32.mrb[0].mxu0
        %772 = vmatprep.mubr.f32.mxu0 0.0
        %773 = vmatmul.mubr.f32.gmra.mrb[0].mxu0 %v281
        %v774 = vpop.f32.mrb[0].mxu0
        %v775 = vadd.f32 %v521, %v774
        %v776 = vpop.f32.mrb[0].mxu0
        %777 = vmatprep.mubr.f32.mxu0 0.0
        %778 = vmatmul.mubr.f32.gmra.mrb[0].mxu0 %v282
        %v779 = vpop.f32.mrb[0].mxu0
        %v780 = vadd.f32 %v521, %v779
        %v781 = vpop.f32.mrb[0].mxu0
        %782 = vmatprep.mubr.f32.mxu0 0.0
        %783 = vmatmul.mubr.f32.gmra.mrb[0].mxu0 %v283
        %v784 = vpop.f32.mrb[0].mxu0
        %v785 = vadd.f32 %v521, %v784
        %v786 = vpop.f32.mrb[0].mxu0
        %787 = vmatprep.mubr.f32.mxu0 0.0
        %788 = vmatmul.mubr.f32.gmra.mrb[0].mxu0 %v284
        %v789 = vpop.f32.mrb[0].mxu0
        %v790 = vadd.f32 %v521, %v789
        %v791 = vpop.f32.mrb[0].mxu0
        %792 = vmatprep.mubr.f32.mxu0 0.0
        %793 = vmatmul.mubr.f32.gmra.mrb[0].mxu0 %v285
        %v794 = vpop.f32.mrb[0].mxu0
        %v795 = vadd.f32 %v521, %v794
        %v796 = vpop.f32.mrb[0].mxu0
        %797 = vmatprep.mubr.f32.mxu0 0.0
        %798 = vmatmul.mubr.f32.gmra.mrb[0].mxu0 %v286
        %v799 = vpop.f32.mrb[0].mxu0
        %v800 = vadd.f32 %v521, %v799
        %v801 = vpop.f32.mrb[0].mxu0
        %802 = vmatprep.mubr.f32.mxu0 0.0
        %803 = vmatmul.mubr.f32.gmra.mrb[0].mxu0 %v287
        %v804 = vpop.f32.mrb[0].mxu0
        %v805 = vadd.f32 %v521, %v804
        %v806 = vpop.f32.mrb[0].mxu0
        %807 = vmatprep.mubr.f32.mxu0 0.0
        %808 = vmatmul.mubr.f32.gmra.mrb[0].mxu0 %v288
        %v809 = vpop.f32.mrb[0].mxu0
        %v810 = vadd.f32 %v521, %v809
        %v811 = vpop.f32.mrb[0].mxu0
        %812 = vmatprep.mubr.f32.mxu0 0.0
        %813 = vmatmul.mubr.f32.gmra.mrb[0].mxu0 %v289
        %v814 = vpop.f32.mrb[0].mxu0
        %v815 = vadd.f32 %v521, %v814
        %v816 = vpop.f32.mrb[0].mxu0
        %817 = vmatprep.mubr.f32.mxu0 0.0
        %818 = vmatmul.mubr.f32.gmra.mrb[0].mxu0 %v290
        %v819 = vpop.f32.mrb[0].mxu0
        %v820 = vadd.f32 %v521, %v819
        %v821 = vpop.f32.mrb[0].mxu0
        %822 = vmatprep.mubr.f32.mxu0 0.0
        %823 = vmatmul.mubr.f32.gmra.mrb[0].mxu0 %v291
        %v824 = vpop.f32.mrb[0].mxu0
        %v825 = vadd.f32 %v521, %v824
        %v826 = vpop.f32.mrb[0].mxu0
        %827 = vmatprep.mubr.f32.mxu0 0.0
        %828 = vmatmul.mubr.f32.gmra.mrb[0].mxu0 %v292
        %v829 = vpop.f32.mrb[0].mxu0
        %v830 = vadd.f32 %v521, %v829
        %v831 = vpop.f32.mrb[0].mxu0
        %832 = vmatprep.mubr.f32.mxu0 0.0
        %833 = vmatmul.mubr.f32.gmra.mrb[0].mxu0 %v293
        %v834 = vpop.f32.mrb[0].mxu0
        %v835 = vadd.f32 %v521, %v834
        %v836 = vpop.f32.mrb[0].mxu0
        %837 = vmatprep.mubr.f32.mxu0 0.0
        %838 = vmatmul.mubr.f32.gmra.mrb[0].mxu0 %v294
        %v839 = vpop.f32.mrb[0].mxu0
        %v840 = vadd.f32 %v521, %v839
        %v841 = vpop.f32.mrb[0].mxu0
        %842 = vmatprep.mubr.f32.mxu0 0.0
        %843 = vmatmul.mubr.f32.gmra.mrb[0].mxu0 %v295
        %v844 = vpop.f32.mrb[0].mxu0
        %v845 = vadd.f32 %v521, %v844
        %v846 = vpop.f32.mrb[0].mxu0
        %847 = vmatprep.mubr.f32.mxu0 0.0
        %848 = vmatmul.mubr.f32.gmra.mrb[0].mxu0 %v296
        %v849 = vpop.f32.mrb[0].mxu0
        %v850 = vadd.f32 %v521, %v849
        %v851 = vpop.f32.mrb[0].mxu0
        %852 = vmatprep.mubr.f32.mxu0 0.0
        %853 = vmatmul.mubr.f32.gmra.mrb[0].mxu0 %v297
        %v854 = vpop.f32.mrb[0].mxu0
        %v855 = vadd.f32 %v521, %v854
        %v856 = vpop.f32.mrb[0].mxu0
        %857 = vmatprep.mubr.f32.mxu0 0.0
        %858 = vmatmul.mubr.f32.gmra.mrb[0].mxu0 %v298
        %v859 = vpop.f32.mrb[0].mxu0
        %v860 = vadd.f32 %v521, %v859
        %v861 = vpop.f32.mrb[0].mxu0
        %862 = vmatprep.mubr.f32.mxu0 0.0
        %863 = vmatmul.mubr.f32.gmra.mrb[0].mxu0 %v299
        %v864 = vpop.f32.mrb[0].mxu0
        %v865 = vadd.f32 %v521, %v864
        %v866 = vpop.f32.mrb[0].mxu0
        %867 = vmatprep.mubr.f32.mxu0 0.0
        %868 = vmatmul.mubr.f32.gmra.mrb[0].mxu0 %v300
        %v869 = vpop.f32.mrb[0].mxu0
        %v870 = vadd.f32 %v521, %v869
        %v871 = vpop.f32.mrb[0].mxu0
        %872 = vmatprep.mubr.f32.mxu0 0.0
        %873 = vmatmul.mubr.f32.gmra.mrb[0].mxu0 %v301
        %v874 = vpop.f32.mrb[0].mxu0
        %v875 = vadd.f32 %v521, %v874
        %v876 = vpop.f32.mrb[0].mxu0
        %877 = vmatprep.mubr.f32.mxu0 0.0
        %878 = vmatmul.mubr.f32.gmra.mrb[0].mxu0 %v302
        %v879 = vpop.f32.mrb[0].mxu0
        %v880 = vadd.f32 %v521, %v879
        %v881 = vpop.f32.mrb[0].mxu0
        %882 = vmatprep.mubr.f32.mxu0 0.0
        %883 = vmatmul.mubr.f32.gmra.mrb[0].mxu0 %v303
        %v884 = vpop.f32.mrb[0].mxu0
        %v885 = vadd.f32 %v521, %v884
        %v886 = vpop.f32.mrb[0].mxu0
        %887 = vmatprep.mubr.f32.mxu0 0.0
        %888 = vmatmul.mubr.f32.gmra.mrb[0].mxu0 %v304
        %v889 = vpop.f32.mrb[0].mxu0
        %v890 = vadd.f32 %v521, %v889
        %v891 = vpop.f32.mrb[0].mxu0
        %892 = vmatprep.mubr.f32.mxu0 0.0
        %893 = vmatmul.mubr.f32.gmra.mrb[0].mxu0 %v305
        %v894 = vpop.f32.mrb[0].mxu0
        %v895 = vadd.f32 %v521, %v894
        %v896 = vpop.f32.mrb[0].mxu0
        %897 = vmatprep.mubr.f32.mxu0 0.0
        %898 = vmatmul.mubr.f32.gmra.mrb[0].mxu0 %v306
        %v899 = vpop.f32.mrb[0].mxu0
        %v900 = vadd.f32 %v521, %v899
        %v901 = vpop.f32.mrb[0].mxu0
        %902 = vmatprep.mubr.f32.mxu0 0.0
        %903 = vmatmul.mubr.f32.gmra.mrb[0].mxu0 %v307
        %v904 = vpop.f32.mrb[0].mxu0
        %v905 = vadd.f32 %v521, %v904
        %v906 = vpop.f32.mrb[0].mxu0
        %907 = vmatprep.mubr.f32.mxu0 0.0
        %908 = vmatmul.mubr.f32.gmra.mrb[0].mxu0 %v308
        %v909 = vpop.f32.mrb[0].mxu0
        %v910 = vadd.f32 %v521, %v909
        %v911 = vpop.f32.mrb[0].mxu0
        %912 = vmatprep.mubr.f32.mxu0 0.0
        %913 = vmatmul.mubr.f32.gmra.mrb[0].mxu0 %v309
        %v914 = vpop.f32.mrb[0].mxu0
        %v915 = vadd.f32 %v521, %v914
        %v916 = vpop.f32.mrb[0].mxu0
        %917 = vmatprep.mubr.f32.mxu0 0.0
        %918 = vmatmul.mubr.f32.gmra.mrb[0].mxu0 %v310
        %v919 = vpop.f32.mrb[0].mxu0
        %v920 = vadd.f32 %v521, %v919
        %v921 = vpop.f32.mrb[0].mxu0
        %922 = vmatprep.mubr.f32.mxu0 0.0
        %923 = vmatmul.mubr.f32.gmra.mrb[0].mxu0 %v311
        %v924 = vpop.f32.mrb[0].mxu0
        %v925 = vadd.f32 %v521, %v924
        %v926 = vpop.f32.mrb[0].mxu0
        %927 = vmatprep.mubr.f32.mxu0 0.0
        %928 = vmatmul.mubr.f32.gmra.mrb[0].mxu0 %v312
        %v929 = vpop.f32.mrb[0].mxu0
        %v930 = vadd.f32 %v521, %v929
        %v931 = vpop.f32.mrb[0].mxu0
        %932 = vmatprep.mubr.f32.mxu0 0.0
        %933 = vmatmul.mubr.f32.gmra.mrb[0].mxu0 %v313
        %v934 = vpop.f32.mrb[0].mxu0
        %v935 = vadd.f32 %v521, %v934
        %v936 = vpop.f32.mrb[0].mxu0
        %937 = vmatprep.mubr.f32.mxu0 0.0
        %938 = vmatmul.mubr.f32.gmra.mrb[0].mxu0 %v314
        %v939 = vpop.f32.mrb[0].mxu0
        %v940 = vadd.f32 %v521, %v939
        %v941 = vpop.f32.mrb[0].mxu0
        %942 = vmatprep.mubr.f32.mxu0 0.0
        %943 = vmatmul.mubr.f32.gmra.mrb[0].mxu0 %v315
        %v944 = vpop.f32.mrb[0].mxu0
        %v945 = vadd.f32 %v521, %v944
        %v946 = vpop.f32.mrb[0].mxu0
        %947 = vmatprep.mubr.f32.mxu0 0.0
        %948 = vmatmul.mubr.f32.gmra.mrb[0].mxu0 %v316
        %v949 = vpop.f32.mrb[0].mxu0
        %v950 = vadd.f32 %v521, %v949
        %v951 = vpop.f32.mrb[0].mxu0
        %952 = vmatprep.mubr.f32.mxu0 0.0
        %953 = vmatmul.mubr.f32.gmra.mrb[0].mxu0 %v317
        %v954 = vpop.f32.mrb[0].mxu0
        %v955 = vadd.f32 %v521, %v954
        %v956 = vpop.f32.mrb[0].mxu0
        %957 = vmatprep.mubr.f32.mxu0 0.0
        %958 = vmatmul.mubr.f32.gmra.mrb[0].mxu0 %v318
        %v959 = vpop.f32.mrb[0].mxu0
        %v960 = vadd.f32 %v521, %v959
        %v961 = vpop.f32.mrb[0].mxu0
        %962 = vmatprep.mubr.f32.mxu0 0.0
        %963 = vmatmul.mubr.f32.gmra.mrb[0].mxu0 %v319
        %v964 = vpop.f32.mrb[0].mxu0
        %v965 = vadd.f32 %v521, %v964
        %v966 = vpop.f32.mrb[0].mxu0
        %967 = vmatprep.mubr.f32.mxu0 0.0
        %968 = vmatmul.mubr.f32.gmra.mrb[0].mxu0 %v320
        %v969 = vpop.f32.mrb[0].mxu0
        %v970 = vadd.f32 %v521, %v969
        %v971 = vpop.f32.mrb[0].mxu0
        %972 = vmatprep.mubr.f32.mxu0 0.0
        %973 = vmatmul.mubr.f32.gmra.mrb[0].mxu0 %v321
        %v974 = vpop.f32.mrb[0].mxu0
        %v975 = vadd.f32 %v521, %v974
        %v976 = vpop.f32.mrb[0].mxu0
        %977 = vmatprep.mubr.f32.mxu0 0.0
        %978 = vmatmul.mubr.f32.gmra.mrb[0].mxu0 %v322
        %v979 = vpop.f32.mrb[0].mxu0
        %v980 = vadd.f32 %v521, %v979
        %v981 = vpop.f32.mrb[0].mxu0
        %982 = vmatprep.mubr.f32.mxu0 0.0
        %983 = vmatmul.mubr.f32.gmra.mrb[0].mxu0 %v323
        %v984 = vpop.f32.mrb[0].mxu0
        %v985 = vadd.f32 %v521, %v984
        %v986 = vpop.f32.mrb[0].mxu0
        %987 = vmatprep.mubr.f32.mxu0 0.0
        %988 = vmatmul.mubr.f32.gmra.mrb[0].mxu0 %v324
        %v989 = vpop.f32.mrb[0].mxu0
        %v990 = vadd.f32 %v521, %v989
        %v991 = vpop.f32.mrb[0].mxu0
        %992 = vmatprep.mubr.f32.mxu0 0.0
        %993 = vmatmul.mubr.f32.gmra.mrb[0].mxu0 %v325
        %v994 = vpop.f32.mrb[0].mxu0
        %v995 = vadd.f32 %v521, %v994
        %v996 = vpop.f32.mrb[0].mxu0
        %997 = vmatprep.mubr.f32.mxu0 0.0
        %998 = vmatmul.mubr.f32.gmra.mrb[0].mxu0 %v326
        %v999 = vpop.f32.mrb[0].mxu0
        %v1000 = vadd.f32 %v521, %v999
        %v1001 = vpop.f32.mrb[0].mxu0
        %1002 = vmatprep.mubr.f32.mxu0 0.0
        %1003 = vmatmul.mubr.f32.gmra.mrb[0].mxu0 %v327
        %v1004 = vpop.f32.mrb[0].mxu0
        %v1005 = vadd.f32 %v521, %v1004
        %v1006 = vpop.f32.mrb[0].mxu0
        %1007 = vmatprep.mubr.f32.mxu0 0.0
        %1008 = vmatmul.mubr.f32.gmra.mrb[0].mxu0 %v328
        %v1009 = vpop.f32.mrb[0].mxu0
        %v1010 = vadd.f32 %v521, %v1009
        %v1011 = vpop.f32.mrb[0].mxu0
        %1012 = vmatprep.mubr.f32.mxu0 0.0
        %1013 = vmatmul.mubr.f32.gmra.mrb[0].mxu0 %v329
        %v1014 = vpop.f32.mrb[0].mxu0
        %v1015 = vadd.f32 %v521, %v1014
        %v1016 = vpop.f32.mrb[0].mxu0
        %1017 = vmatprep.mubr.f32.mxu0 0.0
        %1018 = vmatmul.mubr.f32.gmra.mrb[0].mxu0 %v330
        %v1019 = vpop.f32.mrb[0].mxu0
        %v1020 = vadd.f32 %v521, %v1019
        %v1021 = vpop.f32.mrb[0].mxu0
        %1022 = vmatprep.mubr.f32.mxu0 0.0
        %1023 = vmatmul.mubr.f32.gmra.mrb[0].mxu0 %v331
        %v1024 = vpop.f32.mrb[0].mxu0
        %v1025 = vadd.f32 %v521, %v1024
        %v1026 = vpop.f32.mrb[0].mxu0
        %1027 = vmatprep.mubr.f32.mxu0 0.0
        %1028 = vmatmul.mubr.f32.gmra.mrb[0].mxu0 %v332
        %v1029 = vpop.f32.mrb[0].mxu0
        %v1030 = vadd.f32 %v521, %v1029
        %v1031 = vpop.f32.mrb[0].mxu0
        %1032 = vmatprep.mubr.f32.mxu0 0.0
        %1033 = vmatmul.mubr.f32.gmra.mrb[0].mxu0 %v333
        %v1034 = vpop.f32.mrb[0].mxu0
        %v1035 = vadd.f32 %v521, %v1034
        %v1036 = vpop.f32.mrb[0].mxu0
        %1037 = vmatprep.mubr.f32.mxu0 0.0
        %1038 = vmatmul.mubr.f32.gmra.mrb[0].mxu0 %v334
        %v1039 = vpop.f32.mrb[0].mxu0
        %v1040 = vadd.f32 %v521, %v1039
        %v1041 = vpop.f32.mrb[0].mxu0
        %1042 = vmatprep.mubr.f32.mxu0 0.0
        %1043 = vmatmul.mubr.f32.gmra.mrb[0].mxu0 %v335
        %v1044 = vpop.f32.mrb[0].mxu0
        %v1045 = vadd.f32 %v521, %v1044
        %v1046 = vpop.f32.mrb[0].mxu0
        %1047 = vmatprep.mubr.f32.mxu0 0.0
        %1048 = vmatmul.mubr.f32.gmra.mrb[0].mxu0 %v336
        %v1049 = vpop.f32.mrb[0].mxu0
        %v1050 = vadd.f32 %v521, %v1049
        %v1051 = vpop.f32.mrb[0].mxu0
        %1052 = vmatprep.mubr.f32.mxu0 0.0
        %1053 = vmatmul.mubr.f32.gmra.mrb[0].mxu0 %v337
        %v1054 = vpop.f32.mrb[0].mxu0
        %v1055 = vadd.f32 %v521, %v1054
        %v1056 = vpop.f32.mrb[0].mxu0
        %1057 = vmatprep.mubr.f32.mxu0 0.0
        %1058 = vmatmul.mubr.f32.gmra.mrb[0].mxu0 %v338
        %v1059 = vpop.f32.mrb[0].mxu0
        %v1060 = vadd.f32 %v521, %v1059
        %v1061 = vpop.f32.mrb[0].mxu0
        %1062 = vmatprep.mubr.f32.mxu0 0.0
        %1063 = vmatmul.mubr.f32.gmra.mrb[0].mxu0 %v339
        %v1064 = vpop.f32.mrb[0].mxu0
        %v1065 = vadd.f32 %v521, %v1064
        %v1066 = vpop.f32.mrb[0].mxu0
        %1067 = vmatprep.mubr.f32.mxu0 0.0
        %1068 = vmatmul.mubr.f32.gmra.mrb[0].mxu0 %v340
        %v1069 = vpop.f32.mrb[0].mxu0
        %v1070 = vadd.f32 %v521, %v1069
        %v1071 = vpop.f32.mrb[0].mxu0
        %1072 = vmatprep.mubr.f32.mxu0 0.0
        %1073 = vmatmul.mubr.f32.gmra.mrb[0].mxu0 %v341
        %v1074 = vpop.f32.mrb[0].mxu0
        %v1075 = vadd.f32 %v521, %v1074
        %v1076 = vpop.f32.mrb[0].mxu0
        %1077 = vmatprep.mubr.f32.mxu0 0.0
        %1078 = vmatmul.mubr.f32.gmra.mrb[0].mxu0 %v342
        %v1079 = vpop.f32.mrb[0].mxu0
        %v1080 = vadd.f32 %v521, %v1079
        %v1081 = vpop.f32.mrb[0].mxu0
        %1082 = vmatprep.mubr.f32.mxu0 0.0
        %1083 = vmatmul.mubr.f32.gmra.mrb[0].mxu0 %v343
        %v1084 = vpop.f32.mrb[0].mxu0
        %v1085 = vadd.f32 %v521, %v1084
        %v1086 = vpop.f32.mrb[0].mxu0
        %1087 = vmatprep.mubr.f32.mxu0 0.0
        %1088 = vmatmul.mubr.f32.gmra.mrb[0].mxu0 %v344
        %v1089 = vpop.f32.mrb[0].mxu0
        %v1090 = vadd.f32 %v521, %v1089
        %v1091 = vpop.f32.mrb[0].mxu0
        %1092 = vmatprep.mubr.f32.mxu0 0.0
        %1093 = vmatmul.mubr.f32.gmra.mrb[0].mxu0 %v345
        %v1094 = vpop.f32.mrb[0].mxu0
        %v1095 = vadd.f32 %v521, %v1094
        %v1096 = vpop.f32.mrb[0].mxu0
        %1097 = vmatprep.mubr.f32.mxu0 0.0
        %1098 = vmatmul.mubr.f32.gmra.mrb[0].mxu0 %v346
        %v1099 = vpop.f32.mrb[0].mxu0
        %v1100 = vadd.f32 %v521, %v1099
        %v1101 = vpop.f32.mrb[0].mxu0
        %1102 = vmatprep.mubr.f32.mxu0 0.0
        %1103 = vmatmul.mubr.f32.gmra.mrb[0].mxu0 %v347
        %v1104 = vpop.f32.mrb[0].mxu0
        %v1105 = vadd.f32 %v521, %v1104
        %v1106 = vpop.f32.mrb[0].mxu0
        %1107 = vmatprep.mubr.f32.mxu0 0.0
        %1108 = vmatmul.mubr.f32.gmra.mrb[0].mxu0 %v348
        %v1109 = vpop.f32.mrb[0].mxu0
        %v1110 = vadd.f32 %v521, %v1109
        %v1111 = vpop.f32.mrb[0].mxu0
        %1112 = vmatprep.mubr.f32.mxu0 0.0
        %1113 = vmatmul.mubr.f32.gmra.mrb[0].mxu0 %v349
        %v1114 = vpop.f32.mrb[0].mxu0
        %v1115 = vadd.f32 %v521, %v1114
        %v1116 = vpop.f32.mrb[0].mxu0
        %1117 = vmatprep.mubr.f32.mxu0 0.0
        %1118 = vmatmul.mubr.f32.gmra.mrb[0].mxu0 %v350
        %v1119 = vpop.f32.mrb[0].mxu0
        %v1120 = vadd.f32 %v521, %v1119
        %v1121 = vpop.f32.mrb[0].mxu0
        %1122 = vmatprep.mubr.f32.mxu0 0.0
        %1123 = vmatmul.mubr.f32.gmra.mrb[0].mxu0 %v351
        %v1124 = vpop.f32.mrb[0].mxu0
        %v1125 = vadd.f32 %v521, %v1124
        %v1126 = vpop.f32.mrb[0].mxu0
        %1127 = vmatprep.mubr.f32.mxu0 0.0
        %1128 = vmatmul.mubr.f32.gmra.mrb[0].mxu0 %v352
        %v1129 = vpop.f32.mrb[0].mxu0
        %v1130 = vadd.f32 %v521, %v1129
        %v1131 = vpop.f32.mrb[0].mxu0
        %1132 = vmatprep.mubr.f32.mxu0 0.0
        %1133 = vmatmul.mubr.f32.gmra.mrb[0].mxu0 %v353
        %v1134 = vpop.f32.mrb[0].mxu0
        %v1135 = vadd.f32 %v521, %v1134
        %v1136 = vpop.f32.mrb[0].mxu0
        %1137 = vmatprep.mubr.f32.mxu0 0.0
        %1138 = vmatmul.mubr.f32.gmra.mrb[0].mxu0 %v354
        %v1139 = vpop.f32.mrb[0].mxu0
        %v1140 = vadd.f32 %v521, %v1139
        %v1141 = vpop.f32.mrb[0].mxu0
        %1142 = vmatprep.mubr.f32.mxu0 0.0
        %1143 = vmatmul.mubr.f32.gmra.mrb[0].mxu0 %v355
        %v1144 = vpop.f32.mrb[0].mxu0
        %v1145 = vadd.f32 %v521, %v1144
        %v1146 = vpop.f32.mrb[0].mxu0
        %1147 = vmatprep.mubr.f32.mxu0 0.0
        %1148 = vmatmul.mubr.f32.gmra.mrb[0].mxu0 %v356
        %v1149 = vpop.f32.mrb[0].mxu0
        %v1150 = vadd.f32 %v521, %v1149
        %v1151 = vpop.f32.mrb[0].mxu0
        %1152 = vmatprep.mubr.f32.mxu0 0.0
        %1153 = vmatmul.mubr.f32.gmra.mrb[0].mxu0 %v357
        %v1154 = vpop.f32.mrb[0].mxu0
        %v1155 = vadd.f32 %v521, %v1154
        %v1156 = vpop.f32.mrb[0].mxu0
        %1157 = vmatprep.mubr.f32.mxu0 0.0
        %1158 = vmatmul.mubr.f32.gmra.mrb[0].mxu0 %v358
        %v1159 = vpop.f32.mrb[0].mxu0
        %v1160 = vadd.f32 %v521, %v1159
        %v1161 = vpop.f32.mrb[0].mxu0
        %1162 = vmatprep.mubr.f32.mxu0 0.0
        %1163 = vmatmul.mubr.f32.gmra.mrb[0].mxu0 %v359
        %v1164 = vpop.f32.mrb[0].mxu0
        %v1165 = vadd.f32 %v521, %v1164
        %v1166 = vpop.f32.mrb[0].mxu0
        %1167 = vmatprep.mubr.f32.mxu0 0.0
        %1168 = vmatmul.mubr.f32.gmra.mrb[0].mxu0 %v360
        %v1169 = vpop.f32.mrb[0].mxu0
        %v1170 = vadd.f32 %v521, %v1169
        %v1171 = vpop.f32.mrb[0].mxu0
        %1172 = vmatprep.mubr.f32.mxu0 0.0
        %1173 = vmatmul.mubr.f32.gmra.mrb[0].mxu0 %v361
        %v1174 = vpop.f32.mrb[0].mxu0
        %v1175 = vadd.f32 %v521, %v1174
        %v1176 = vpop.f32.mrb[0].mxu0
        %1177 = vmatprep.mubr.f32.mxu0 0.0
        %1178 = vmatmul.mubr.f32.gmra.mrb[0].mxu0 %v362
        %v1179 = vpop.f32.mrb[0].mxu0
        %v1180 = vadd.f32 %v521, %v1179
        %v1181 = vpop.f32.mrb[0].mxu0
        %1182 = vmatprep.mubr.f32.mxu0 0.0
        %1183 = vmatmul.mubr.f32.gmra.mrb[0].mxu0 %v363
        %v1184 = vpop.f32.mrb[0].mxu0
        %v1185 = vadd.f32 %v521, %v1184
        %v1186 = vpop.f32.mrb[0].mxu0
        %1187 = vmatprep.mubr.f32.mxu0 0.0
        %1188 = vmatmul.mubr.f32.gmra.mrb[0].mxu0 %v364
        %v1189 = vpop.f32.mrb[0].mxu0
        %v1190 = vadd.f32 %v521, %v1189
        %v1191 = vpop.f32.mrb[0].mxu0
        %1192 = vmatprep.mubr.f32.mxu0 0.0
        %1193 = vmatmul.mubr.f32.gmra.mrb[0].mxu0 %v365
        %v1194 = vpop.f32.mrb[0].mxu0
        %v1195 = vadd.f32 %v521, %v1194
        %v1196 = vpop.f32.mrb[0].mxu0
        %1197 = vmatprep.mubr.f32.mxu0 0.0
        %1198 = vmatmul.mubr.f32.gmra.mrb[0].mxu0 %v366
        %v1199 = vpop.f32.mrb[0].mxu0
        %v1200 = vadd.f32 %v521, %v1199
        %v1201 = vpop.f32.mrb[0].mxu0
        %1202 = vmatprep.mubr.f32.mxu0 0.0
        %1203 = vmatmul.mubr.f32.gmra.mrb[0].mxu0 %v367
        %v1204 = vpop.f32.mrb[0].mxu0
        %v1205 = vadd.f32 %v521, %v1204
        %v1206 = vpop.f32.mrb[0].mxu0
        %1207 = vmatprep.mubr.f32.mxu0 0.0
        %1208 = vmatmul.mubr.f32.gmra.mrb[0].mxu0 %v368
        %v1209 = vpop.f32.mrb[0].mxu0
        %v1210 = vadd.f32 %v521, %v1209
        %v1211 = vpop.f32.mrb[0].mxu0
        %1212 = vmatprep.mubr.f32.mxu0 0.0
        %1213 = vmatmul.mubr.f32.gmra.mrb[0].mxu0 %v369
        %v1214 = vpop.f32.mrb[0].mxu0
        %v1215 = vadd.f32 %v521, %v1214
        %v1216 = vpop.f32.mrb[0].mxu0
        %1217 = vmatprep.mubr.f32.mxu0 0.0
        %1218 = vmatmul.mubr.f32.gmra.mrb[0].mxu0 %v370
        %v1219 = vpop.f32.mrb[0].mxu0
        %v1220 = vadd.f32 %v521, %v1219
        %v1221 = vpop.f32.mrb[0].mxu0
        %1222 = vmatprep.mubr.f32.mxu0 0.0
        %1223 = vmatmul.mubr.f32.gmra.mrb[0].mxu0 %v371
        %v1224 = vpop.f32.mrb[0].mxu0
        %v1225 = vadd.f32 %v521, %v1224
        %v1226 = vpop.f32.mrb[0].mxu0
        %1227 = vmatprep.mubr.f32.mxu0 0.0
        %1228 = vmatmul.mubr.f32.gmra.mrb[0].mxu0 %v372
        %v1229 = vpop.f32.mrb[0].mxu0
        %v1230 = vadd.f32 %v521, %v1229
        %v1231 = vpop.f32.mrb[0].mxu0
        %1232 = vmatprep.mubr.f32.mxu0 0.0
        %1233 = vmatmul.mubr.f32.gmra.mrb[0].mxu0 %v373
        %v1234 = vpop.f32.mrb[0].mxu0
        %v1235 = vadd.f32 %v521, %v1234
        %v1236 = vpop.f32.mrb[0].mxu0
        %1237 = vmatprep.mubr.f32.mxu0 0.0
        %1238 = vmatmul.mubr.f32.gmra.mrb[0].mxu0 %v374
        %v1239 = vpop.f32.mrb[0].mxu0
        %v1240 = vadd.f32 %v521, %v1239
        %v1241 = vpop.f32.mrb[0].mxu0
        %1242 = vmatprep.mubr.f32.mxu0 0.0
        %1243 = vmatmul.mubr.f32.gmra.mrb[0].mxu0 %v375
        %v1244 = vpop.f32.mrb[0].mxu0
        %v1245 = vadd.f32 %v521, %v1244
        %v1246 = vpop.f32.mrb[0].mxu0
        %1247 = vmatprep.mubr.f32.mxu0 0.0
        %1248 = vmatmul.mubr.f32.gmra.mrb[0].mxu0 %v376
        %v1249 = vpop.f32.mrb[0].mxu0
        %v1250 = vadd.f32 %v521, %v1249
        %v1251 = vpop.f32.mrb[0].mxu0
        %1252 = vmatprep.mubr.f32.mxu0 0.0
        %1253 = vmatmul.mubr.f32.gmra.mrb[0].mxu0 %v377
        %v1254 = vpop.f32.mrb[0].mxu0
        %v1255 = vadd.f32 %v521, %v1254
        %v1256 = vpop.f32.mrb[0].mxu0
        %1257 = vmatprep.mubr.f32.mxu0 0.0
        %1258 = vmatmul.mubr.f32.gmra.mrb[0].mxu0 %v378
        %v1259 = vpop.f32.mrb[0].mxu0
        %v1260 = vadd.f32 %v521, %v1259
        %v1261 = vpop.f32.mrb[0].mxu0
        %1262 = vmatprep.mubr.f32.mxu0 0.0
        %1263 = vmatmul.mubr.f32.gmra.mrb[0].mxu0 %v379
        %v1264 = vpop.f32.mrb[0].mxu0
        %v1265 = vadd.f32 %v521, %v1264
        %v1266 = vpop.f32.mrb[0].mxu0
        %1267 = vmatprep.mubr.f32.mxu0 0.0
        %1268 = vmatmul.mubr.f32.gmra.mrb[0].mxu0 %v380
        %v1269 = vpop.f32.mrb[0].mxu0
        %v1270 = vadd.f32 %v521, %v1269
        %v1271 = vpop.f32.mrb[0].mxu0
        %1272 = vmatprep.mubr.f32.mxu0 0.0
        %1273 = vmatmul.mubr.f32.gmra.mrb[0].mxu0 %v381
        %v1274 = vpop.f32.mrb[0].mxu0
        %v1275 = vadd.f32 %v521, %v1274
        %v1276 = vpop.f32.mrb[0].mxu0
        %1277 = vmatprep.mubr.f32.mxu0 0.0
        %1278 = vmatmul.mubr.f32.gmra.mrb[0].mxu0 %v382
        %v1279 = vpop.f32.mrb[0].mxu0
        %v1280 = vadd.f32 %v521, %v1279
        %v1281 = vpop.f32.mrb[0].mxu0
        %1282 = vmatprep.mubr.f32.mxu0 0.0
        %1283 = vmatmul.mubr.f32.gmra.mrb[0].mxu0 %v383
        %v1284 = vpop.f32.mrb[0].mxu0
        %v1285 = vadd.f32 %v521, %v1284
        %v1286 = vpop.f32.mrb[0].mxu0
        %1287 = vmatprep.mubr.f32.mxu0 0.0
        %1288 = vmatmul.mubr.f32.gmra.mrb[0].mxu0 %v384
        %v1289 = vpop.f32.mrb[0].mxu0
        %v1290 = vadd.f32 %v521, %v1289
        %v1291 = vpop.f32.mrb[0].mxu0
        %1292 = vmatprep.mubr.f32.mxu0 0.0
        %1293 = vmatmul.mubr.f32.gmra.mrb[0].mxu0 %v385
        %v1294 = vpop.f32.mrb[0].mxu0
        %v1295 = vadd.f32 %v521, %v1294
        %v1296 = vpop.f32.mrb[0].mxu0
        %1297 = vmatprep.mubr.f32.mxu0 0.0
        %1298 = vmatmul.mubr.f32.gmra.mrb[0].mxu0 %v386
        %v1299 = vpop.f32.mrb[0].mxu0
        %v1300 = vadd.f32 %v521, %v1299
        %v1301 = vpop.f32.mrb[0].mxu0
        %1302 = vmatprep.mubr.f32.mxu0 0.0
        %1303 = vmatmul.mubr.f32.gmra.mrb[0].mxu0 %v387
        %v1304 = vpop.f32.mrb[0].mxu0
        %v1305 = vadd.f32 %v521, %v1304
        %v1306 = vpop.f32.mrb[0].mxu0
        %1307 = vmatprep.mubr.f32.mxu0 0.0
        %1308 = vmatmul.mubr.f32.gmra.mrb[0].mxu0 %v388
        %v1309 = vpop.f32.mrb[0].mxu0
        %v1310 = vadd.f32 %v521, %v1309
        %v1311 = vpop.f32.mrb[0].mxu0
        %1312 = vmatprep.mubr.f32.mxu0 0.0
        %1313 = vmatmul.mubr.f32.gmra.mrb[0].mxu0 %v389
        %v1314 = vpop.f32.mrb[0].mxu0
        %v1315 = vadd.f32 %v521, %v1314
        %v1316 = vpop.f32.mrb[0].mxu0
        %1317 = vmatprep.mubr.f32.mxu0 0.0
        %1318 = vmatmul.mubr.f32.gmra.mrb[0].mxu0 %v390
        %v1319 = vpop.f32.mrb[0].mxu0
        %v1320 = vadd.f32 %v521, %v1319
        %v1321 = vpop.f32.mrb[0].mxu0
        %1322 = vmatprep.mubr.f32.mxu0 0.0
        %1323 = vmatmul.mubr.f32.gmra.mrb[0].mxu0 %v391
        %v1324 = vpop.f32.mrb[0].mxu0
        %v1325 = vadd.f32 %v521, %v1324
        %v1326 = vpop.f32.mrb[0].mxu0
        %1327 = vmatprep.mubr.f32.mxu0 0.0
        %1328 = vmatmul.mubr.f32.gmra.mrb[0].mxu0 %v392
        %v1329 = vpop.f32.mrb[0].mxu0
        %v1330 = vadd.f32 %v521, %v1329
        %v1331 = vpop.f32.mrb[0].mxu0
        %1332 = vmatprep.mubr.f32.mxu0 0.0
        %1333 = vmatmul.mubr.f32.gmra.mrb[0].mxu0 %v393
        %v1334 = vpop.f32.mrb[0].mxu0
        %v1335 = vadd.f32 %v521, %v1334
        %v1336 = vpop.f32.mrb[0].mxu0
        %1337 = vmatprep.mubr.f32.mxu0 0.0
        %1338 = vmatmul.mubr.f32.gmra.mrb[0].mxu0 %v394
        %v1339 = vpop.f32.mrb[0].mxu0
        %v1340 = vadd.f32 %v521, %v1339
        %v1341 = vpop.f32.mrb[0].mxu0
        %1342 = vmatprep.mubr.f32.mxu0 0.0
        %1343 = vmatmul.mubr.f32.gmra.mrb[0].mxu0 %v395
        %v1344 = vpop.f32.mrb[0].mxu0
        %v1345 = vadd.f32 %v521, %v1344
        %v1346 = vpop.f32.mrb[0].mxu0
        %1347 = vmatprep.mubr.f32.mxu0 0.0
        %1348 = vmatmul.mubr.f32.gmra.mrb[0].mxu0 %v396
        %v1349 = vpop.f32.mrb[0].mxu0
        %v1350 = vadd.f32 %v521, %v1349
        %v1351 = vpop.f32.mrb[0].mxu0
        %1352 = vmatprep.mubr.f32.mxu0 0.0
        %1353 = vmatmul.mubr.f32.gmra.mrb[0].mxu0 %v397
        %v1354 = vpop.f32.mrb[0].mxu0
        %v1355 = vadd.f32 %v521, %v1354
        %v1356 = vpop.f32.mrb[0].mxu0
        %1357 = vmatprep.mubr.f32.mxu0 0.0
        %1358 = vmatmul.mubr.f32.gmra.mrb[0].mxu0 %v398
        %v1359 = vpop.f32.mrb[0].mxu0
        %v1360 = vadd.f32 %v521, %v1359
        %v1361 = vpop.f32.mrb[0].mxu0
        %1362 = vmatprep.mubr.f32.mxu0 0.0
        %1363 = vmatmul.mubr.f32.gmra.mrb[0].mxu0 %v399
        %v1364 = vpop.f32.mrb[0].mxu0
        %v1365 = vadd.f32 %v521, %v1364
        %v1366 = vpop.f32.mrb[0].mxu0
        %1367 = vmatprep.mubr.f32.mxu0 0.0
        %1368 = vmatmul.mubr.f32.gmra.mrb[0].mxu0 %v400
        %v1369 = vpop.f32.mrb[0].mxu0
        %v1370 = vadd.f32 %v521, %v1369
        %v1371 = vpop.f32.mrb[0].mxu0
        %1372 = vmatprep.mubr.f32.mxu0 0.0
        %1373 = vmatmul.mubr.f32.gmra.mrb[0].mxu0 %v401
        %v1374 = vpop.f32.mrb[0].mxu0
        %v1375 = vadd.f32 %v521, %v1374
        %v1376 = vpop.f32.mrb[0].mxu0
        %1377 = vmatprep.mubr.f32.mxu0 0.0
        %1378 = vmatmul.mubr.f32.gmra.mrb[0].mxu0 %v402
        %v1379 = vpop.f32.mrb[0].mxu0
        %v1380 = vadd.f32 %v521, %v1379
        %v1381 = vpop.f32.mrb[0].mxu0
        %1382 = vmatprep.mubr.f32.mxu0 0.0
        %1383 = vmatmul.mubr.f32.gmra.mrb[0].mxu0 %v403
        %v1384 = vpop.f32.mrb[0].mxu0
        %v1385 = vadd.f32 %v521, %v1384
        %v1386 = vpop.f32.mrb[0].mxu0
        %1387 = vmatprep.mubr.f32.mxu0 0.0
        %1388 = vmatmul.mubr.f32.gmra.mrb[0].mxu0 %v404
        %v1389 = vpop.f32.mrb[0].mxu0
        %v1390 = vadd.f32 %v521, %v1389
        %v1391 = vpop.f32.mrb[0].mxu0
        %1392 = vmatprep.mubr.f32.mxu0 0.0
        %1393 = vmatmul.mubr.f32.gmra.mrb[0].mxu0 %v405
        %v1394 = vpop.f32.mrb[0].mxu0
        %v1395 = vadd.f32 %v521, %v1394
        %v1396 = vpop.f32.mrb[0].mxu0
        %1397 = vmatprep.mubr.f32.mxu0 0.0
        %1398 = vmatmul.mubr.f32.gmra.mrb[0].mxu0 %v406
        %v1399 = vpop.f32.mrb[0].mxu0
        %v1400 = vadd.f32 %v521, %v1399
        %v1401 = vpop.f32.mrb[0].mxu0
        %1402 = vmatprep.mubr.f32.mxu0 0.0
        %1403 = vmatmul.mubr.f32.gmra.mrb[0].mxu0 %v407
        %v1404 = vpop.f32.mrb[0].mxu0
        %v1405 = vadd.f32 %v521, %v1404
        %v1406 = vpop.f32.mrb[0].mxu0
        %1407 = vmatprep.mubr.f32.mxu0 0.0
        %1408 = vmatmul.mubr.f32.gmra.mrb[0].mxu0 %v408
        %v1409 = vpop.f32.mrb[0].mxu0
        %v1410 = vadd.f32 %v521, %v1409
        %v1411 = vpop.f32.mrb[0].mxu0
        %1412 = vmatprep.mubr.f32.mxu0 0.0
        %1413 = vmatmul.mubr.f32.gmra.mrb[0].mxu0 %v409
        %v1414 = vpop.f32.mrb[0].mxu0
        %v1415 = vadd.f32 %v521, %v1414
        %v1416 = vpop.f32.mrb[0].mxu0
        %1417 = vmatprep.mubr.f32.mxu0 0.0
        %1418 = vmatmul.mubr.f32.gmra.mrb[0].mxu0 %v410
        %v1419 = vpop.f32.mrb[0].mxu0
        %v1420 = vadd.f32 %v521, %v1419
        %v1421 = vpop.f32.mrb[0].mxu0
        %1422 = vmatprep.mubr.f32.mxu0 0.0
        %1423 = vmatmul.mubr.f32.gmra.mrb[0].mxu0 %v411
        %v1424 = vpop.f32.mrb[0].mxu0
        %v1425 = vadd.f32 %v521, %v1424
        %v1426 = vpop.f32.mrb[0].mxu0
        %1427 = vmatprep.mubr.f32.mxu0 0.0
        %1428 = vmatmul.mubr.f32.gmra.mrb[0].mxu0 %v412
        %v1429 = vpop.f32.mrb[0].mxu0
        %v1430 = vadd.f32 %v521, %v1429
        %v1431 = vpop.f32.mrb[0].mxu0
        %1432 = vmatprep.mubr.f32.mxu0 0.0
        %1433 = vmatmul.mubr.f32.gmra.mrb[0].mxu0 %v413
        %v1434 = vpop.f32.mrb[0].mxu0
        %v1435 = vadd.f32 %v521, %v1434
        %v1436 = vpop.f32.mrb[0].mxu0
        %1437 = vmatprep.mubr.f32.mxu0 0.0
        %1438 = vmatmul.mubr.f32.gmra.mrb[0].mxu0 %v414
        %v1439 = vpop.f32.mrb[0].mxu0
        %v1440 = vadd.f32 %v521, %v1439
        %v1441 = vpop.f32.mrb[0].mxu0
        %1442 = vmatprep.mubr.f32.mxu0 0.0
        %1443 = vmatmul.mubr.f32.gmra.mrb[0].mxu0 %v415
        %v1444 = vpop.f32.mrb[0].mxu0
        %v1445 = vadd.f32 %v521, %v1444
        %v1446 = vpop.f32.mrb[0].mxu0
        %1447 = vmatprep.mubr.f32.mxu0 0.0
        %1448 = vmatmul.mubr.f32.gmra.mrb[0].mxu0 %v416
        %v1449 = vpop.f32.mrb[0].mxu0
        %v1450 = vadd.f32 %v521, %v1449
        %v1451 = vpop.f32.mrb[0].mxu0
        %1452 = vmatprep.mubr.f32.mxu0 0.0
        %1453 = vmatmul.mubr.f32.gmra.mrb[0].mxu0 %v417
        %v1454 = vpop.f32.mrb[0].mxu0
        %v1455 = vadd.f32 %v521, %v1454
        %v1456 = vpop.f32.mrb[0].mxu0
        %1457 = vmatprep.mubr.f32.mxu0 0.0
        %1458 = vmatmul.mubr.f32.gmra.mrb[0].mxu0 %v418
        %v1459 = vpop.f32.mrb[0].mxu0
        %v1460 = vadd.f32 %v521, %v1459
        %v1461 = vpop.f32.mrb[0].mxu0
        %1462 = vmatprep.mubr.f32.mxu0 0.0
        %1463 = vmatmul.mubr.f32.gmra.mrb[0].mxu0 %v419
        %v1464 = vpop.f32.mrb[0].mxu0
        %v1465 = vadd.f32 %v521, %v1464
        %v1466 = vpop.f32.mrb[0].mxu0
        %1467 = vmatprep.mubr.f32.mxu0 0.0
        %1468 = vmatmul.mubr.f32.gmra.mrb[0].mxu0 %v420
        %v1469 = vpop.f32.mrb[0].mxu0
        %v1470 = vadd.f32 %v521, %v1469
        %v1471 = vpop.f32.mrb[0].mxu0
        %1472 = vmatprep.mubr.f32.mxu0 0.0
        %1473 = vmatmul.mubr.f32.gmra.mrb[0].mxu0 %v421
        %v1474 = vpop.f32.mrb[0].mxu0
        %v1475 = vadd.f32 %v521, %v1474
        %v1476 = vpop.f32.mrb[0].mxu0
        %1477 = vmatprep.mubr.f32.mxu0 0.0
        %1478 = vmatmul.mubr.f32.gmra.mrb[0].mxu0 %v422
        %v1479 = vpop.f32.mrb[0].mxu0
        %v1480 = vadd.f32 %v521, %v1479
        %v1481 = vpop.f32.mrb[0].mxu0
        %1482 = vmatprep.mubr.f32.mxu0 0.0
        %1483 = vmatmul.mubr.f32.gmra.mrb[0].mxu0 %v423
        %v1484 = vpop.f32.mrb[0].mxu0
        %v1485 = vadd.f32 %v521, %v1484
        %v1486 = vpop.f32.mrb[0].mxu0
        %1487 = vmatprep.mubr.f32.mxu0 0.0
        %1488 = vmatmul.mubr.f32.gmra.mrb[0].mxu0 %v424
        %v1489 = vpop.f32.mrb[0].mxu0
        %v1490 = vadd.f32 %v521, %v1489
        %v1491 = vpop.f32.mrb[0].mxu0
        %1492 = vmatprep.mubr.f32.mxu0 0.0
        %1493 = vmatmul.mubr.f32.gmra.mrb[0].mxu0 %v425
        %v1494 = vpop.f32.mrb[0].mxu0
        %v1495 = vadd.f32 %v521, %v1494
        %v1496 = vpop.f32.mrb[0].mxu0
        %1497 = vmatprep.mubr.f32.mxu0 0.0
        %1498 = vmatmul.mubr.f32.gmra.mrb[0].mxu0 %v426
        %v1499 = vpop.f32.mrb[0].mxu0
        %v1500 = vadd.f32 %v521, %v1499
        %v1501 = vpop.f32.mrb[0].mxu0
        %1502 = vmatprep.mubr.f32.mxu0 0.0
        %1503 = vmatmul.mubr.f32.gmra.mrb[0].mxu0 %v427
        %v1504 = vpop.f32.mrb[0].mxu0
        %v1505 = vadd.f32 %v521, %v1504
        %v1506 = vpop.f32.mrb[0].mxu0
        %1507 = vmatprep.mubr.f32.mxu0 0.0
        %1508 = vmatmul.mubr.f32.gmra.mrb[0].mxu0 %v428
        %v1509 = vpop.f32.mrb[0].mxu0
        %v1510 = vadd.f32 %v521, %v1509
        %v1511 = vpop.f32.mrb[0].mxu0
        %1512 = vmatprep.mubr.f32.mxu0 0.0
        %1513 = vmatmul.mubr.f32.gmra.mrb[0].mxu0 %v429
        %v1514 = vpop.f32.mrb[0].mxu0
        %v1515 = vadd.f32 %v521, %v1514
        %v1516 = vpop.f32.mrb[0].mxu0
        %1517 = vmatprep.mubr.f32.mxu0 0.0
        %1518 = vmatmul.mubr.f32.gmra.mrb[0].mxu0 %v430
        %v1519 = vpop.f32.mrb[0].mxu0
        %v1520 = vadd.f32 %v521, %v1519
        %v1521 = vpop.f32.mrb[0].mxu0
        %1522 = vmatprep.mubr.f32.mxu0 0.0
        %1523 = vmatmul.mubr.f32.gmra.mrb[0].mxu0 %v431
        %v1524 = vpop.f32.mrb[0].mxu0
        %v1525 = vadd.f32 %v521, %v1524
        %v1526 = vpop.f32.mrb[0].mxu0
        %1527 = vmatprep.mubr.f32.mxu0 0.0
        %1528 = vmatmul.mubr.f32.gmra.mrb[0].mxu0 %v432
        %v1529 = vpop.f32.mrb[0].mxu0
        %v1530 = vadd.f32 %v521, %v1529
        %v1531 = vpop.f32.mrb[0].mxu0
        %1532 = vmatprep.mubr.f32.mxu0 0.0
        %1533 = vmatmul.mubr.f32.gmra.mrb[0].mxu0 %v433
        %v1534 = vpop.f32.mrb[0].mxu0
        %v1535 = vadd.f32 %v521, %v1534
        %v1536 = vpop.f32.mrb[0].mxu0
        %1537 = vmatprep.mubr.f32.mxu0 0.0
        %1538 = vmatmul.mubr.f32.gmra.mrb[0].mxu0 %v434
        %v1539 = vpop.f32.mrb[0].mxu0
        %v1540 = vadd.f32 %v521, %v1539
        %v1541 = vpop.f32.mrb[0].mxu0
        %1542 = vmatprep.mubr.f32.mxu0 0.0
        %1543 = vmatmul.mubr.f32.gmra.mrb[0].mxu0 %v435
        %v1544 = vpop.f32.mrb[0].mxu0
        %v1545 = vadd.f32 %v521, %v1544
        %v1546 = vpop.f32.mrb[0].mxu0
        %1547 = vmatprep.mubr.f32.mxu0 0.0
        %1548 = vmatmul.mubr.f32.gmra.mrb[0].mxu0 %v436
        %v1549 = vpop.f32.mrb[0].mxu0
        %v1550 = vadd.f32 %v521, %v1549
        %v1551 = vpop.f32.mrb[0].mxu0
        %1552 = vmatprep.mubr.f32.mxu0 0.0
        %1553 = vmatmul.mubr.f32.gmra.mrb[0].mxu0 %v437
        %v1554 = vpop.f32.mrb[0].mxu0
        %v1555 = vadd.f32 %v521, %v1554
        %v1556 = vpop.f32.mrb[0].mxu0
        %1557 = vmatprep.mubr.f32.mxu0 0.0
        %1558 = vmatmul.mubr.f32.gmra.mrb[0].mxu0 %v438
        %v1559 = vpop.f32.mrb[0].mxu0
        %v1560 = vadd.f32 %v521, %v1559
        %v1561 = vpop.f32.mrb[0].mxu0
        %1562 = vmatprep.mubr.f32.mxu0 0.0
        %1563 = vmatmul.mubr.f32.gmra.mrb[0].mxu0 %v439
        %v1564 = vpop.f32.mrb[0].mxu0
        %v1565 = vadd.f32 %v521, %v1564
        %v1566 = vpop.f32.mrb[0].mxu0
        %1567 = vmatprep.mubr.f32.mxu0 0.0
        %1568 = vmatmul.mubr.f32.gmra.mrb[0].mxu0 %v440
        %v1569 = vpop.f32.mrb[0].mxu0
        %v1570 = vadd.f32 %v521, %v1569
        %v1571 = vpop.f32.mrb[0].mxu0
        %1572 = vmatprep.mubr.f32.mxu0 0.0
        %1573 = vmatmul.mubr.f32.gmra.mrb[0].mxu0 %v441
        %v1574 = vpop.f32.mrb[0].mxu0
        %v1575 = vadd.f32 %v521, %v1574
        %v1576 = vpop.f32.mrb[0].mxu0
        %1577 = vmatprep.mubr.f32.mxu0 0.0
        %1578 = vmatmul.mubr.f32.gmra.mrb[0].mxu0 %v442
        %v1579 = vpop.f32.mrb[0].mxu0
        %v1580 = vadd.f32 %v521, %v1579
        %v1581 = vpop.f32.mrb[0].mxu0
        %1582 = vmatprep.mubr.f32.mxu0 0.0
        %1583 = vmatmul.mubr.f32.gmra.mrb[0].mxu0 %v443
        %v1584 = vpop.f32.mrb[0].mxu0
        %v1585 = vadd.f32 %v521, %v1584
        %v1586 = vpop.f32.mrb[0].mxu0
        %1587 = vmatprep.mubr.f32.mxu0 0.0
        %1588 = vmatmul.mubr.f32.gmra.mrb[0].mxu0 %v444
        %v1589 = vpop.f32.mrb[0].mxu0
        %v1590 = vadd.f32 %v521, %v1589
        %v1591 = vpop.f32.mrb[0].mxu0
        %1592 = vmatprep.mubr.f32.mxu0 0.0
        %1593 = vmatmul.mubr.f32.gmra.mrb[0].mxu0 %v445
        %v1594 = vpop.f32.mrb[0].mxu0
        %v1595 = vadd.f32 %v521, %v1594
        %v1596 = vpop.f32.mrb[0].mxu0
        %1597 = vmatprep.mubr.f32.mxu0 0.0
        %1598 = vmatmul.mubr.f32.gmra.mrb[0].mxu0 %v446
        %v1599 = vpop.f32.mrb[0].mxu0
        %v1600 = vadd.f32 %v521, %v1599
        %v1601 = vpop.f32.mrb[0].mxu0
        %1602 = vmatprep.mubr.f32.mxu0 0.0
        %1603 = vmatmul.mubr.f32.gmra.mrb[0].mxu0 %v447
        %v1604 = vpop.f32.mrb[0].mxu0
        %v1605 = vadd.f32 %v521, %v1604
        %v1606 = vpop.f32.mrb[0].mxu0
        %1607 = vmatprep.mubr.f32.mxu0 0.0
        %1608 = vmatmul.mubr.f32.gmra.mrb[0].mxu0 %v448
        %v1609 = vpop.f32.mrb[0].mxu0
        %v1610 = vadd.f32 %v521, %v1609
        %v1611 = vpop.f32.mrb[0].mxu0
        %1612 = vmatprep.mubr.f32.mxu0 0.0
        %1613 = vmatmul.mubr.f32.gmra.mrb[0].mxu0 %v449
        %v1614 = vpop.f32.mrb[0].mxu0
        %v1615 = vadd.f32 %v521, %v1614
        %v1616 = vpop.f32.mrb[0].mxu0
        %1617 = vmatprep.mubr.f32.mxu0 0.0
        %1618 = vmatmul.mubr.f32.gmra.mrb[0].mxu0 %v450
        %v1619 = vpop.f32.mrb[0].mxu0
        %v1620 = vadd.f32 %v521, %v1619
        %v1621 = vpop.f32.mrb[0].mxu0
        %1622 = vmatprep.mubr.f32.mxu0 0.0
        %1623 = vmatmul.mubr.f32.gmra.mrb[0].mxu0 %v451
        %v1624 = vpop.f32.mrb[0].mxu0
        %v1625 = vadd.f32 %v521, %v1624
        %v1626 = vpop.f32.mrb[0].mxu0
        %1627 = vmatprep.mubr.f32.mxu0 0.0
        %1628 = vmatmul.mubr.f32.gmra.mrb[0].mxu0 %v452
        %v1629 = vpop.f32.mrb[0].mxu0
        %v1630 = vadd.f32 %v521, %v1629
        %v1631 = vpop.f32.mrb[0].mxu0
        %1632 = vmatprep.mubr.f32.mxu0 0.0
        %1633 = vmatmul.mubr.f32.gmra.mrb[0].mxu0 %v453
        %v1634 = vpop.f32.mrb[0].mxu0
        %v1635 = vadd.f32 %v521, %v1634
        %v1636 = vpop.f32.mrb[0].mxu0
        %1637 = vmatprep.mubr.f32.mxu0 0.0
        %1638 = vmatmul.mubr.f32.gmra.mrb[0].mxu0 %v454
        %v1639 = vpop.f32.mrb[0].mxu0
        %v1640 = vadd.f32 %v521, %v1639
        %v1641 = vpop.f32.mrb[0].mxu0
        %1642 = vmatprep.mubr.f32.mxu0 0.0
        %1643 = vmatmul.mubr.f32.gmra.mrb[0].mxu0 %v455
        %v1644 = vpop.f32.mrb[0].mxu0
        %v1645 = vadd.f32 %v521, %v1644
        %v1646 = vpop.f32.mrb[0].mxu0
        %1647 = vmatprep.mubr.f32.mxu0 0.0
        %1648 = vmatmul.mubr.f32.gmra.mrb[0].mxu0 %v456
        %v1649 = vpop.f32.mrb[0].mxu0
        %v1650 = vadd.f32 %v521, %v1649
        %v1651 = vpop.f32.mrb[0].mxu0
        %1652 = vmatprep.mubr.f32.mxu0 0.0
        %1653 = vmatmul.mubr.f32.gmra.mrb[0].mxu0 %v457
        %v1654 = vpop.f32.mrb[0].mxu0
        %v1655 = vadd.f32 %v521, %v1654
        %v1656 = vpop.f32.mrb[0].mxu0
        %1657 = vmatprep.mubr.f32.mxu0 0.0
        %1658 = vmatmul.mubr.f32.gmra.mrb[0].mxu0 %v458
        %v1659 = vpop.f32.mrb[0].mxu0
        %v1660 = vadd.f32 %v521, %v1659
        %v1661 = vpop.f32.mrb[0].mxu0
        %1662 = vmatprep.mubr.f32.mxu0 0.0
        %1663 = vmatmul.mubr.f32.gmra.mrb[0].mxu0 %v459
        %v1664 = vpop.f32.mrb[0].mxu0
        %v1665 = vadd.f32 %v521, %v1664
        %v1666 = vpop.f32.mrb[0].mxu0
        %1667 = vmatprep.mubr.f32.mxu0 0.0
        %1668 = vmatmul.mubr.f32.gmra.mrb[0].mxu0 %v460
        %v1669 = vpop.f32.mrb[0].mxu0
        %v1670 = vadd.f32 %v521, %v1669
        %v1671 = vpop.f32.mrb[0].mxu0
        %1672 = vmatprep.mubr.f32.mxu0 0.0
        %1673 = vmatmul.mubr.f32.gmra.mrb[0].mxu0 %v461
        %v1674 = vpop.f32.mrb[0].mxu0
        %v1675 = vadd.f32 %v521, %v1674
        %v1676 = vpop.f32.mrb[0].mxu0
        %1677 = vmatprep.mubr.f32.mxu0 0.0
        %1678 = vmatmul.mubr.f32.gmra.mrb[0].mxu0 %v462
        %v1679 = vpop.f32.mrb[0].mxu0
        %v1680 = vadd.f32 %v521, %v1679
        %v1681 = vpop.f32.mrb[0].mxu0
        %1682 = vmatprep.mubr.f32.mxu0 0.0
        %1683 = vmatmul.mubr.f32.gmra.mrb[0].mxu0 %v463
        %v1684 = vpop.f32.mrb[0].mxu0
        %v1685 = vadd.f32 %v521, %v1684
        %v1686 = vpop.f32.mrb[0].mxu0
        %1687 = vmatprep.mubr.f32.mxu0 0.0
        %1688 = vmatmul.mubr.f32.gmra.mrb[0].mxu0 %v464
        %v1689 = vpop.f32.mrb[0].mxu0
        %v1690 = vadd.f32 %v521, %v1689
        %v1691 = vpop.f32.mrb[0].mxu0
        %1692 = vmatprep.mubr.f32.mxu0 0.0
        %1693 = vmatmul.mubr.f32.gmra.mrb[0].mxu0 %v465
        %v1694 = vpop.f32.mrb[0].mxu0
        %v1695 = vadd.f32 %v521, %v1694
        %v1696 = vpop.f32.mrb[0].mxu0
        %1697 = vmatprep.mubr.f32.mxu0 0.0
        %1698 = vmatmul.mubr.f32.gmra.mrb[0].mxu0 %v466
        %v1699 = vpop.f32.mrb[0].mxu0
        %v1700 = vadd.f32 %v521, %v1699
        %v1701 = vpop.f32.mrb[0].mxu0
        %1702 = vmatprep.mubr.f32.mxu0 0.0
        %1703 = vmatmul.mubr.f32.gmra.mrb[0].mxu0 %v467
        %v1704 = vpop.f32.mrb[0].mxu0
        %v1705 = vadd.f32 %v521, %v1704
        %v1706 = vpop.f32.mrb[0].mxu0
        %1707 = vmatprep.mubr.f32.mxu0 0.0
        %1708 = vmatmul.mubr.f32.gmra.mrb[0].mxu0 %v468
        %v1709 = vpop.f32.mrb[0].mxu0
        %v1710 = vadd.f32 %v521, %v1709
        %v1711 = vpop.f32.mrb[0].mxu0
        %1712 = vmatprep.mubr.f32.mxu0 0.0
        %1713 = vmatmul.mubr.f32.gmra.mrb[0].mxu0 %v469
        %v1714 = vpop.f32.mrb[0].mxu0
        %v1715 = vadd.f32 %v521, %v1714
        %v1716 = vpop.f32.mrb[0].mxu0
        %1717 = vmatprep.mubr.f32.mxu0 0.0
        %1718 = vmatmul.mubr.f32.gmra.mrb[0].mxu0 %v470
        %v1719 = vpop.f32.mrb[0].mxu0
        %v1720 = vadd.f32 %v521, %v1719
        %v1721 = vpop.f32.mrb[0].mxu0
        %1722 = vmatprep.mubr.f32.mxu0 0.0
        %1723 = vmatmul.mubr.f32.gmra.mrb[0].mxu0 %v471
        %v1724 = vpop.f32.mrb[0].mxu0
        %v1725 = vadd.f32 %v521, %v1724
        %v1726 = vpop.f32.mrb[0].mxu0
        %1727 = vmatprep.mubr.f32.mxu0 0.0
        %1728 = vmatmul.mubr.f32.gmra.mrb[0].mxu0 %v472
        %v1729 = vpop.f32.mrb[0].mxu0
        %v1730 = vadd.f32 %v521, %v1729
        %v1731 = vpop.f32.mrb[0].mxu0
        %1732 = vmatprep.mubr.f32.mxu0 0.0
        %1733 = vmatmul.mubr.f32.gmra.mrb[0].mxu0 %v473
        %v1734 = vpop.f32.mrb[0].mxu0
        %v1735 = vadd.f32 %v521, %v1734
        %v1736 = vpop.f32.mrb[0].mxu0
        %1737 = vmatprep.mubr.f32.mxu0 0.0
        %1738 = vmatmul.mubr.f32.gmra.mrb[0].mxu0 %v474
        %v1739 = vpop.f32.mrb[0].mxu0
        %v1740 = vadd.f32 %v521, %v1739
        %v1741 = vpop.f32.mrb[0].mxu0
        %1742 = vmatprep.mubr.f32.mxu0 0.0
        %1743 = vmatmul.mubr.f32.gmra.mrb[0].mxu0 %v475
        %v1744 = vpop.f32.mrb[0].mxu0
        %v1745 = vadd.f32 %v521, %v1744
        %v1746 = vpop.f32.mrb[0].mxu0
        %1747 = vmatprep.mubr.f32.mxu0 0.0
        %1748 = vmatmul.mubr.f32.gmra.mrb[0].mxu0 %v476
        %v1749 = vpop.f32.mrb[0].mxu0
        %v1750 = vadd.f32 %v521, %v1749
        %v1751 = vpop.f32.mrb[0].mxu0
        %1752 = vmatprep.mubr.f32.mxu0 0.0
        %1753 = vmatmul.mubr.f32.gmra.mrb[0].mxu0 %v477
        %v1754 = vpop.f32.mrb[0].mxu0
        %v1755 = vadd.f32 %v521, %v1754
        %v1756 = vpop.f32.mrb[0].mxu0
        %1757 = vmatprep.mubr.f32.mxu0 0.0
        %1758 = vmatmul.mubr.f32.gmra.mrb[0].mxu0 %v478
        %v1759 = vpop.f32.mrb[0].mxu0
        %v1760 = vadd.f32 %v521, %v1759
        %v1761 = vpop.f32.mrb[0].mxu0
        %1762 = vmatprep.mubr.f32.mxu0 0.0
        %1763 = vmatmul.mubr.f32.gmra.mrb[0].mxu0 %v479
        %v1764 = vpop.f32.mrb[0].mxu0
        %v1765 = vadd.f32 %v521, %v1764
        %v1766 = vpop.f32.mrb[0].mxu0
        %1767 = vmatprep.mubr.f32.mxu0 0.0
        %1768 = vmatmul.mubr.f32.gmra.mrb[0].mxu0 %v480
        %v1769 = vpop.f32.mrb[0].mxu0
        %v1770 = vadd.f32 %v521, %v1769
        %v1771 = vpop.f32.mrb[0].mxu0
        %1772 = vmatprep.mubr.f32.mxu0 0.0
        %1773 = vmatmul.mubr.f32.gmra.mrb[0].mxu0 %v481
        %v1774 = vpop.f32.mrb[0].mxu0
        %v1775 = vadd.f32 %v521, %v1774
        %v1776 = vpop.f32.mrb[0].mxu0
        %1777 = vmatprep.mubr.f32.mxu0 0.0
        %1778 = vmatmul.mubr.f32.gmra.mrb[0].mxu0 %v482
        %v1779 = vpop.f32.mrb[0].mxu0
        %v1780 = vadd.f32 %v521, %v1779
        %v1781 = vpop.f32.mrb[0].mxu0
        %1782 = vmatprep.mubr.f32.mxu0 0.0
        %1783 = vmatmul.mubr.f32.gmra.mrb[0].mxu0 %v483
        %v1784 = vpop.f32.mrb[0].mxu0
        %v1785 = vadd.f32 %v521, %v1784
        %v1786 = vpop.f32.mrb[0].mxu0
        %1787 = vmatprep.mubr.f32.mxu0 0.0
        %1788 = vmatmul.mubr.f32.gmra.mrb[0].mxu0 %v484
        %v1789 = vpop.f32.mrb[0].mxu0
        %v1790 = vadd.f32 %v521, %v1789
        %v1791 = vpop.f32.mrb[0].mxu0
        %1792 = vmatprep.mubr.f32.mxu0 0.0
        %1793 = vmatmul.mubr.f32.gmra.mrb[0].mxu0 %v485
        %v1794 = vpop.f32.mrb[0].mxu0
        %v1795 = vadd.f32 %v521, %v1794
        %v1796 = vpop.f32.mrb[0].mxu0
        %1797 = vmatprep.mubr.f32.mxu0 0.0
        %1798 = vmatmul.mubr.f32.gmra.mrb[0].mxu0 %v486
        %v1799 = vpop.f32.mrb[0].mxu0
        %v1800 = vadd.f32 %v521, %v1799
        %v1801 = vpop.f32.mrb[0].mxu0
        %1802 = vmatprep.mubr.f32.mxu0 0.0
        %1803 = vmatmul.mubr.f32.gmra.mrb[0].mxu0 %v487
        %v1804 = vpop.f32.mrb[0].mxu0
        %v1805 = vadd.f32 %v521, %v1804
        %v1806 = vpop.f32.mrb[0].mxu0
        %1807 = vmatprep.mubr.f32.mxu0 0.0
        %1808 = vmatmul.mubr.f32.gmra.mrb[0].mxu0 %v488
        %v1809 = vpop.f32.mrb[0].mxu0
        %v1810 = vadd.f32 %v521, %v1809
        %v1811 = vpop.f32.mrb[0].mxu0
        %1812 = vmatprep.mubr.f32.mxu0 0.0
        %1813 = vmatmul.mubr.f32.gmra.mrb[0].mxu0 %v489
        %v1814 = vpop.f32.mrb[0].mxu0
        %v1815 = vadd.f32 %v521, %v1814
        %v1816 = vpop.f32.mrb[0].mxu0
        %1817 = vmatprep.mubr.f32.mxu0 0.0
        %1818 = vmatmul.mubr.f32.gmra.mrb[0].mxu0 %v490
        %v1819 = vpop.f32.mrb[0].mxu0
        %v1820 = vadd.f32 %v521, %v1819
        %v1821 = vpop.f32.mrb[0].mxu0
        %1822 = vmatprep.mubr.f32.mxu0 0.0
        %1823 = vmatmul.mubr.f32.gmra.mrb[0].mxu0 %v491
        %v1824 = vpop.f32.mrb[0].mxu0
        %v1825 = vadd.f32 %v521, %v1824
        %v1826 = vpop.f32.mrb[0].mxu0
        %1827 = vmatprep.mubr.f32.mxu0 0.0
        %1828 = vmatmul.mubr.f32.gmra.mrb[0].mxu0 %v492
        %v1829 = vpop.f32.mrb[0].mxu0
        %v1830 = vadd.f32 %v521, %v1829
        %v1831 = vpop.f32.mrb[0].mxu0
        %1832 = vmatprep.mubr.f32.mxu0 0.0
        %1833 = vmatmul.mubr.f32.gmra.mrb[0].mxu0 %v493
        %v1834 = vpop.f32.mrb[0].mxu0
        %v1835 = vadd.f32 %v521, %v1834
        %v1836 = vpop.f32.mrb[0].mxu0
        %1837 = vmatprep.mubr.f32.mxu0 0.0
        %1838 = vmatmul.mubr.f32.gmra.mrb[0].mxu0 %v494
        %v1839 = vpop.f32.mrb[0].mxu0
        %v1840 = vadd.f32 %v521, %v1839
        %v1841 = vpop.f32.mrb[0].mxu0
        %1842 = vmatprep.mubr.f32.mxu0 0.0
        %1843 = vmatmul.mubr.f32.gmra.mrb[0].mxu0 %v495
        %v1844 = vpop.f32.mrb[0].mxu0
        %v1845 = vadd.f32 %v521, %v1844
        %v1846 = vpop.f32.mrb[0].mxu0
        %1847 = vmatprep.mubr.f32.mxu0 0.0
        %1848 = vmatmul.mubr.f32.gmra.mrb[0].mxu0 %v496
        %v1849 = vpop.f32.mrb[0].mxu0
        %v1850 = vadd.f32 %v521, %v1849
        %v1851 = vpop.f32.mrb[0].mxu0
        %1852 = vmatprep.mubr.f32.mxu0 0.0
        %1853 = vmatmul.mubr.f32.gmra.mrb[0].mxu0 %v497
        %v1854 = vpop.f32.mrb[0].mxu0
        %v1855 = vadd.f32 %v521, %v1854
        %v1856 = vpop.f32.mrb[0].mxu0
        %1857 = vmatprep.mubr.f32.mxu0 0.0
        %1858 = vmatmul.mubr.f32.gmra.mrb[0].mxu0 %v498
        %v1859 = vpop.f32.mrb[0].mxu0
        %v1860 = vadd.f32 %v521, %v1859
        %v1861 = vpop.f32.mrb[0].mxu0
        %1862 = vmatprep.mubr.f32.mxu0 0.0
        %1863 = vmatmul.mubr.f32.gmra.mrb[0].mxu0 %v499
        %v1864 = vpop.f32.mrb[0].mxu0
        %v1865 = vadd.f32 %v521, %v1864
        %v1866 = vpop.f32.mrb[0].mxu0
        %1867 = vdwg.mxu0
        %v1868 = vtanh.pop %v590
        %v1869 = vtanh.pop %v595
        %v1870 = vtanh.pop %v600
        %v1871 = vtanh.pop %v605
        %v1872 = vtanh.pop %v610
        %v1873 = vtanh.pop %v615
        %v1874 = vtanh.pop %v620
        %v1875 = vtanh.pop %v625
        %v1876 = vtanh.pop %v630
        %v1877 = vtanh.pop %v635
        %v1878 = vtanh.pop %v640
        %v1879 = vtanh.pop %v645
        %v1880 = vtanh.pop %v650
        %v1881 = vtanh.pop %v655
        %v1882 = vtanh.pop %v660
        %v1883 = vtanh.pop %v665
        %v1884 = vtanh.pop %v670
        %v1885 = vtanh.pop %v675
        %v1886 = vtanh.pop %v680
        %v1887 = vtanh.pop %v685
        %v1888 = vtanh.pop %v690
        %v1889 = vtanh.pop %v695
        %v1890 = vtanh.pop %v700
        %v1891 = vtanh.pop %v705
        %v1892 = vtanh.pop %v710
        %v1893 = vtanh.pop %v715
        %v1894 = vtanh.pop %v720
        %v1895 = vtanh.pop %v725
        %v1896 = vtanh.pop %v730
        %v1897 = vtanh.pop %v735
        %v1898 = vtanh.pop %v740
        %v1899 = vtanh.pop %v745
        %v1900 = vtanh.pop %v750
        %v1901 = vtanh.pop %v755
        %v1902 = vtanh.pop %v760
        %v1903 = vtanh.pop %v765
        %v1904 = vtanh.pop %v770
        %v1905 = vtanh.pop %v775
        %v1906 = vtanh.pop %v780
        %v1907 = vtanh.pop %v785
        %v1908 = vtanh.pop %v790
        %v1909 = vtanh.pop %v795
        %v1910 = vtanh.pop %v800
        %v1911 = vtanh.pop %v805
        %v1912 = vtanh.pop %v810
        %v1913 = vtanh.pop %v815
        %v1914 = vtanh.pop %v820
        %v1915 = vtanh.pop %v825
        %v1916 = vtanh.pop %v830
        %v1917 = vtanh.pop %v835
        %v1918 = vtanh.pop %v840
        %v1919 = vtanh.pop %v845
        %v1920 = vtanh.pop %v850
        %v1921 = vtanh.pop %v855
        %v1922 = vtanh.pop %v860
        %v1923 = vtanh.pop %v865
        %v1924 = vtanh.pop %v870
        %v1925 = vtanh.pop %v875
        %v1926 = vtanh.pop %v880
        %v1927 = vtanh.pop %v885
        %v1928 = vtanh.pop %v890
        %v1929 = vtanh.pop %v895
        %v1930 = vtanh.pop %v900
        %v1931 = vtanh.pop %v905
        %v1932 = vtanh.pop %v910
        %v1933 = vtanh.pop %v915
        %v1934 = vtanh.pop %v920
        %v1935 = vtanh.pop %v925
        %v1936 = vtanh.pop %v930
        %v1937 = vtanh.pop %v935
        %v1938 = vtanh.pop %v940
        %v1939 = vtanh.pop %v945
        %v1940 = vtanh.pop %v950
        %v1941 = vtanh.pop %v955
        %v1942 = vtanh.pop %v960
        %v1943 = vtanh.pop %v965
        %v1944 = vtanh.pop %v970
        %v1945 = vtanh.pop %v975
        %v1946 = vtanh.pop %v980
        %v1947 = vtanh.pop %v985
        %v1948 = vtanh.pop %v990
        %v1949 = vtanh.pop %v995
        %v1950 = vtanh.pop %v1000
        %v1951 = vtanh.pop %v1005
        %v1952 = vtanh.pop %v1010
        %v1953 = vtanh.pop %v1015
        %v1954 = vtanh.pop %v1020
        %v1955 = vtanh.pop %v1025
        %v1956 = vtanh.pop %v1030
        %v1957 = vtanh.pop %v1035
        %v1958 = vtanh.pop %v1040
        %v1959 = vtanh.pop %v1045
        %v1960 = vtanh.pop %v1050
        %v1961 = vtanh.pop %v1055
        %v1962 = vtanh.pop %v1060
        %v1963 = vtanh.pop %v1065
        %v1964 = vtanh.pop %v1070
        %v1965 = vtanh.pop %v1075
        %v1966 = vtanh.pop %v1080
        %v1967 = vtanh.pop %v1085
        %v1968 = vtanh.pop %v1090
        %v1969 = vtanh.pop %v1095
        %v1970 = vtanh.pop %v1100
        %v1971 = vtanh.pop %v1105
        %v1972 = vtanh.pop %v1110
        %v1973 = vtanh.pop %v1115
        %v1974 = vtanh.pop %v1120
        %v1975 = vtanh.pop %v1125
        %v1976 = vtanh.pop %v1130
        %v1977 = vtanh.pop %v1135
        %v1978 = vtanh.pop %v1140
        %v1979 = vtanh.pop %v1145
        %v1980 = vtanh.pop %v1150
        %v1981 = vtanh.pop %v1155
        %v1982 = vtanh.pop %v1160
        %v1983 = vtanh.pop %v1165
        %v1984 = vtanh.pop %v1170
        %v1985 = vtanh.pop %v1175
        %v1986 = vtanh.pop %v1180
        %v1987 = vtanh.pop %v1185
        %v1988 = vtanh.pop %v1190
        %v1989 = vtanh.pop %v1195
        %v1990 = vtanh.pop %v1200
        %v1991 = vtanh.pop %v1205
        %v1992 = vtanh.pop %v1210
        %v1993 = vtanh.pop %v1215
        %v1994 = vtanh.pop %v1220
        %v1995 = vtanh.pop %v1225
        %v1996 = vtanh.pop %v1230
        %v1997 = vtanh.pop %v1235
        %v1998 = vtanh.pop %v1240
        %v1999 = vtanh.pop %v1245
        %v2000 = vtanh.pop %v1250
        %v2001 = vtanh.pop %v1255
        %v2002 = vtanh.pop %v1260
        %v2003 = vtanh.pop %v1265
        %v2004 = vtanh.pop %v1270
        %v2005 = vtanh.pop %v1275
        %v2006 = vtanh.pop %v1280
        %v2007 = vtanh.pop %v1285
        %v2008 = vtanh.pop %v1290
        %v2009 = vtanh.pop %v1295
        %v2010 = vtanh.pop %v1300
        %v2011 = vtanh.pop %v1305
        %v2012 = vtanh.pop %v1310
        %v2013 = vtanh.pop %v1315
        %v2014 = vtanh.pop %v1320
        %v2015 = vtanh.pop %v1325
        %v2016 = vtanh.pop %v1330
        %v2017 = vtanh.pop %v1335
        %v2018 = vtanh.pop %v1340
        %v2019 = vtanh.pop %v1345
        %v2020 = vtanh.pop %v1350
        %v2021 = vtanh.pop %v1355
        %v2022 = vtanh.pop %v1360
        %v2023 = vtanh.pop %v1365
        %v2024 = vtanh.pop %v1370
        %v2025 = vtanh.pop %v1375
        %v2026 = vtanh.pop %v1380
        %v2027 = vtanh.pop %v1385
        %v2028 = vtanh.pop %v1390
        %v2029 = vtanh.pop %v1395
        %v2030 = vtanh.pop %v1400
        %v2031 = vtanh.pop %v1405
        %v2032 = vtanh.pop %v1410
        %v2033 = vtanh.pop %v1415
        %v2034 = vtanh.pop %v1420
        %v2035 = vtanh.pop %v1425
        %v2036 = vtanh.pop %v1430
        %v2037 = vtanh.pop %v1435
        %v2038 = vtanh.pop %v1440
        %v2039 = vtanh.pop %v1445
        %v2040 = vtanh.pop %v1450
        %v2041 = vtanh.pop %v1455
        %v2042 = vtanh.pop %v1460
        %v2043 = vtanh.pop %v1465
        %v2044 = vtanh.pop %v1470
        %v2045 = vtanh.pop %v1475
        %v2046 = vtanh.pop %v1480
        %v2047 = vtanh.pop %v1485
        %v2048 = vtanh.pop %v1490
        %v2049 = vtanh.pop %v1495
        %v2050 = vtanh.pop %v1500
        %v2051 = vtanh.pop %v1505
        %v2052 = vtanh.pop %v1510
        %v2053 = vtanh.pop %v1515
        %v2054 = vtanh.pop %v1520
        %v2055 = vtanh.pop %v1525
        %v2056 = vtanh.pop %v1530
        %v2057 = vtanh.pop %v1535
        %v2058 = vtanh.pop %v1540
        %v2059 = vtanh.pop %v1545
        %v2060 = vtanh.pop %v1550
        %v2061 = vtanh.pop %v1555
        %v2062 = vtanh.pop %v1560
        %v2063 = vtanh.pop %v1565
        %v2064 = vtanh.pop %v1570
        %v2065 = vtanh.pop %v1575
        %v2066 = vtanh.pop %v1580
        %v2067 = vtanh.pop %v1585
        %v2068 = vtanh.pop %v1590
        %v2069 = vtanh.pop %v1595
        %v2070 = vtanh.pop %v1600
        %v2071 = vtanh.pop %v1605
        %v2072 = vtanh.pop %v1610
        %v2073 = vtanh.pop %v1615
        %v2074 = vtanh.pop %v1620
        %v2075 = vtanh.pop %v1625
        %v2076 = vtanh.pop %v1630
        %v2077 = vtanh.pop %v1635
        %v2078 = vtanh.pop %v1640
        %v2079 = vtanh.pop %v1645
        %v2080 = vtanh.pop %v1650
        %v2081 = vtanh.pop %v1655
        %v2082 = vtanh.pop %v1660
        %v2083 = vtanh.pop %v1665
        %v2084 = vtanh.pop %v1670
        %v2085 = vtanh.pop %v1675
        %v2086 = vtanh.pop %v1680
        %v2087 = vtanh.pop %v1685
        %v2088 = vtanh.pop %v1690
        %v2089 = vtanh.pop %v1695
        %v2090 = vtanh.pop %v1700
        %v2091 = vtanh.pop %v1705
        %v2092 = vtanh.pop %v1710
        %v2093 = vtanh.pop %v1715
        %v2094 = vtanh.pop %v1720
        %v2095 = vtanh.pop %v1725
        %v2096 = vtanh.pop %v1730
        %v2097 = vtanh.pop %v1735
        %v2098 = vtanh.pop %v1740
        %v2099 = vtanh.pop %v1745
        %v2100 = vtanh.pop %v1750
        %v2101 = vtanh.pop %v1755
        %v2102 = vtanh.pop %v1760
        %v2103 = vtanh.pop %v1765
        %v2104 = vtanh.pop %v1770
        %v2105 = vtanh.pop %v1775
        %v2106 = vtanh.pop %v1780
        %v2107 = vtanh.pop %v1785
        %v2108 = vtanh.pop %v1790
        %v2109 = vtanh.pop %v1795
        %v2110 = vtanh.pop %v1800
        %v2111 = vtanh.pop %v1805
        %v2112 = vtanh.pop %v1810
        %v2113 = vtanh.pop %v1815
        %v2114 = vtanh.pop %v1820
        %v2115 = vtanh.pop %v1825
        %v2116 = vtanh.pop %v1830
        %v2117 = vtanh.pop %v1835
        %v2118 = vtanh.pop %v1840
        %v2119 = vtanh.pop %v1845
        %v2120 = vtanh.pop %v1850
        %v2121 = vtanh.pop %v1855
        %v2122 = vtanh.pop %v1860
        %v2123 = vtanh.pop %v1865
        %v2124 = vld [vmem:[#allocation7] sm:$0x1]
        %v2126 = vlaneseq
        %v2127 = vshrl.u32 %v2126, 7
        %v2128 = vsub.s32 0, %v2127
        %v2129 = vrot.slane %v2124, %v2128
        %v2131 = vmul.f32 %v1868, %v2129
        %v2132 = vmul.f32 %v1869, %v2129
        %v2133 = vmul.f32 %v1870, %v2129
        %v2134 = vmul.f32 %v1871, %v2129
        %v2135 = vmul.f32 %v1872, %v2129
        %v2136 = vmul.f32 %v1873, %v2129
        %v2137 = vmul.f32 %v1874, %v2129
        %v2138 = vmul.f32 %v1875, %v2129
        %v2139 = vmul.f32 %v1876, %v2129
        %v2140 = vmul.f32 %v1877, %v2129
        %v2141 = vmul.f32 %v1878, %v2129
        %v2142 = vmul.f32 %v1879, %v2129
        %v2143 = vmul.f32 %v1880, %v2129
        %v2144 = vmul.f32 %v1881, %v2129
        %v2145 = vmul.f32 %v1882, %v2129
        %v2146 = vmul.f32 %v1883, %v2129
        %v2147 = vmul.f32 %v1884, %v2129
        %v2148 = vmul.f32 %v1885, %v2129
        %v2149 = vmul.f32 %v1886, %v2129
        %v2150 = vmul.f32 %v1887, %v2129
        %v2151 = vmul.f32 %v1888, %v2129
        %v2152 = vmul.f32 %v1889, %v2129
        %v2153 = vmul.f32 %v1890, %v2129
        %v2154 = vmul.f32 %v1891, %v2129
        %v2155 = vmul.f32 %v1892, %v2129
        %v2156 = vmul.f32 %v1893, %v2129
        %v2157 = vmul.f32 %v1894, %v2129
        %v2158 = vmul.f32 %v1895, %v2129
        %v2159 = vmul.f32 %v1896, %v2129
        %v2160 = vmul.f32 %v1897, %v2129
        %v2161 = vmul.f32 %v1898, %v2129
        %v2162 = vmul.f32 %v1899, %v2129
        %v2163 = vmul.f32 %v1900, %v2129
        %v2164 = vmul.f32 %v1901, %v2129
        %v2165 = vmul.f32 %v1902, %v2129
        %v2166 = vmul.f32 %v1903, %v2129
        %v2167 = vmul.f32 %v1904, %v2129
        %v2168 = vmul.f32 %v1905, %v2129
        %v2169 = vmul.f32 %v1906, %v2129
        %v2170 = vmul.f32 %v1907, %v2129
        %v2171 = vmul.f32 %v1908, %v2129
        %v2172 = vmul.f32 %v1909, %v2129
        %v2173 = vmul.f32 %v1910, %v2129
        %v2174 = vmul.f32 %v1911, %v2129
        %v2175 = vmul.f32 %v1912, %v2129
        %v2176 = vmul.f32 %v1913, %v2129
        %v2177 = vmul.f32 %v1914, %v2129
        %v2178 = vmul.f32 %v1915, %v2129
        %v2179 = vmul.f32 %v1916, %v2129
        %v2180 = vmul.f32 %v1917, %v2129
        %v2181 = vmul.f32 %v1918, %v2129
        %v2182 = vmul.f32 %v1919, %v2129
        %v2183 = vmul.f32 %v1920, %v2129
        %v2184 = vmul.f32 %v1921, %v2129
        %v2185 = vmul.f32 %v1922, %v2129
        %v2186 = vmul.f32 %v1923, %v2129
        %v2187 = vmul.f32 %v1924, %v2129
        %v2188 = vmul.f32 %v1925, %v2129
        %v2189 = vmul.f32 %v1926, %v2129
        %v2190 = vmul.f32 %v1927, %v2129
        %v2191 = vmul.f32 %v1928, %v2129
        %v2192 = vmul.f32 %v1929, %v2129
        %v2193 = vmul.f32 %v1930, %v2129
        %v2194 = vmul.f32 %v1931, %v2129
        %v2195 = vmul.f32 %v1932, %v2129
        %v2196 = vmul.f32 %v1933, %v2129
        %v2197 = vmul.f32 %v1934, %v2129
        %v2198 = vmul.f32 %v1935, %v2129
        %v2199 = vmul.f32 %v1936, %v2129
        %v2200 = vmul.f32 %v1937, %v2129
        %v2201 = vmul.f32 %v1938, %v2129
        %v2202 = vmul.f32 %v1939, %v2129
        %v2203 = vmul.f32 %v1940, %v2129
        %v2204 = vmul.f32 %v1941, %v2129
        %v2205 = vmul.f32 %v1942, %v2129
        %v2206 = vmul.f32 %v1943, %v2129
        %v2207 = vmul.f32 %v1944, %v2129
        %v2208 = vmul.f32 %v1945, %v2129
        %v2209 = vmul.f32 %v1946, %v2129
        %v2210 = vmul.f32 %v1947, %v2129
        %v2211 = vmul.f32 %v1948, %v2129
        %v2212 = vmul.f32 %v1949, %v2129
        %v2213 = vmul.f32 %v1950, %v2129
        %v2214 = vmul.f32 %v1951, %v2129
        %v2215 = vmul.f32 %v1952, %v2129
        %v2216 = vmul.f32 %v1953, %v2129
        %v2217 = vmul.f32 %v1954, %v2129
        %v2218 = vmul.f32 %v1955, %v2129
        %v2219 = vmul.f32 %v1956, %v2129
        %v2220 = vmul.f32 %v1957, %v2129
        %v2221 = vmul.f32 %v1958, %v2129
        %v2222 = vmul.f32 %v1959, %v2129
        %v2223 = vmul.f32 %v1960, %v2129
        %v2224 = vmul.f32 %v1961, %v2129
        %v2225 = vmul.f32 %v1962, %v2129
        %v2226 = vmul.f32 %v1963, %v2129
        %v2227 = vmul.f32 %v1964, %v2129
        %v2228 = vmul.f32 %v1965, %v2129
        %v2229 = vmul.f32 %v1966, %v2129
        %v2230 = vmul.f32 %v1967, %v2129
        %v2231 = vmul.f32 %v1968, %v2129
        %v2232 = vmul.f32 %v1969, %v2129
        %v2233 = vmul.f32 %v1970, %v2129
        %v2234 = vmul.f32 %v1971, %v2129
        %v2235 = vmul.f32 %v1972, %v2129
        %v2236 = vmul.f32 %v1973, %v2129
        %v2237 = vmul.f32 %v1974, %v2129
        %v2238 = vmul.f32 %v1975, %v2129
        %v2239 = vmul.f32 %v1976, %v2129
        %v2240 = vmul.f32 %v1977, %v2129
        %v2241 = vmul.f32 %v1978, %v2129
        %v2242 = vmul.f32 %v1979, %v2129
        %v2243 = vmul.f32 %v1980, %v2129
        %v2244 = vmul.f32 %v1981, %v2129
        %v2245 = vmul.f32 %v1982, %v2129
        %v2246 = vmul.f32 %v1983, %v2129
        %v2247 = vmul.f32 %v1984, %v2129
        %v2248 = vmul.f32 %v1985, %v2129
        %v2249 = vmul.f32 %v1986, %v2129
        %v2250 = vmul.f32 %v1987, %v2129
        %v2251 = vmul.f32 %v1988, %v2129
        %v2252 = vmul.f32 %v1989, %v2129
        %v2253 = vmul.f32 %v1990, %v2129
        %v2254 = vmul.f32 %v1991, %v2129
        %v2255 = vmul.f32 %v1992, %v2129
        %v2256 = vmul.f32 %v1993, %v2129
        %v2257 = vmul.f32 %v1994, %v2129
        %v2258 = vmul.f32 %v1995, %v2129
        %v2259 = vmul.f32 %v1996, %v2129
        %v2260 = vmul.f32 %v1997, %v2129
        %v2261 = vmul.f32 %v1998, %v2129
        %v2262 = vmul.f32 %v1999, %v2129
        %v2263 = vmul.f32 %v2000, %v2129
        %v2264 = vmul.f32 %v2001, %v2129
        %v2265 = vmul.f32 %v2002, %v2129
        %v2266 = vmul.f32 %v2003, %v2129
        %v2267 = vmul.f32 %v2004, %v2129
        %v2268 = vmul.f32 %v2005, %v2129
        %v2269 = vmul.f32 %v2006, %v2129
        %v2270 = vmul.f32 %v2007, %v2129
        %v2271 = vmul.f32 %v2008, %v2129
        %v2272 = vmul.f32 %v2009, %v2129
        %v2273 = vmul.f32 %v2010, %v2129
        %v2274 = vmul.f32 %v2011, %v2129
        %v2275 = vmul.f32 %v2012, %v2129
        %v2276 = vmul.f32 %v2013, %v2129
        %v2277 = vmul.f32 %v2014, %v2129
        %v2278 = vmul.f32 %v2015, %v2129
        %v2279 = vmul.f32 %v2016, %v2129
        %v2280 = vmul.f32 %v2017, %v2129
        %v2281 = vmul.f32 %v2018, %v2129
        %v2282 = vmul.f32 %v2019, %v2129
        %v2283 = vmul.f32 %v2020, %v2129
        %v2284 = vmul.f32 %v2021, %v2129
        %v2285 = vmul.f32 %v2022, %v2129
        %v2286 = vmul.f32 %v2023, %v2129
        %v2287 = vmul.f32 %v2024, %v2129
        %v2288 = vmul.f32 %v2025, %v2129
        %v2289 = vmul.f32 %v2026, %v2129
        %v2290 = vmul.f32 %v2027, %v2129
        %v2291 = vmul.f32 %v2028, %v2129
        %v2292 = vmul.f32 %v2029, %v2129
        %v2293 = vmul.f32 %v2030, %v2129
        %v2294 = vmul.f32 %v2031, %v2129
        %v2295 = vmul.f32 %v2032, %v2129
        %v2296 = vmul.f32 %v2033, %v2129
        %v2297 = vmul.f32 %v2034, %v2129
        %v2298 = vmul.f32 %v2035, %v2129
        %v2299 = vmul.f32 %v2036, %v2129
        %v2300 = vmul.f32 %v2037, %v2129
        %v2301 = vmul.f32 %v2038, %v2129
        %v2302 = vmul.f32 %v2039, %v2129
        %v2303 = vmul.f32 %v2040, %v2129
        %v2304 = vmul.f32 %v2041, %v2129
        %v2305 = vmul.f32 %v2042, %v2129
        %v2306 = vmul.f32 %v2043, %v2129
        %v2307 = vmul.f32 %v2044, %v2129
        %v2308 = vmul.f32 %v2045, %v2129
        %v2309 = vmul.f32 %v2046, %v2129
        %v2310 = vmul.f32 %v2047, %v2129
        %v2311 = vmul.f32 %v2048, %v2129
        %v2312 = vmul.f32 %v2049, %v2129
        %v2313 = vmul.f32 %v2050, %v2129
        %v2314 = vmul.f32 %v2051, %v2129
        %v2315 = vmul.f32 %v2052, %v2129
        %v2316 = vmul.f32 %v2053, %v2129
        %v2317 = vmul.f32 %v2054, %v2129
        %v2318 = vmul.f32 %v2055, %v2129
        %v2319 = vmul.f32 %v2056, %v2129
        %v2320 = vmul.f32 %v2057, %v2129
        %v2321 = vmul.f32 %v2058, %v2129
        %v2322 = vmul.f32 %v2059, %v2129
        %v2323 = vmul.f32 %v2060, %v2129
        %v2324 = vmul.f32 %v2061, %v2129
        %v2325 = vmul.f32 %v2062, %v2129
        %v2326 = vmul.f32 %v2063, %v2129
        %v2327 = vmul.f32 %v2064, %v2129
        %v2328 = vmul.f32 %v2065, %v2129
        %v2329 = vmul.f32 %v2066, %v2129
        %v2330 = vmul.f32 %v2067, %v2129
        %v2331 = vmul.f32 %v2068, %v2129
        %v2332 = vmul.f32 %v2069, %v2129
        %v2333 = vmul.f32 %v2070, %v2129
        %v2334 = vmul.f32 %v2071, %v2129
        %v2335 = vmul.f32 %v2072, %v2129
        %v2336 = vmul.f32 %v2073, %v2129
        %v2337 = vmul.f32 %v2074, %v2129
        %v2338 = vmul.f32 %v2075, %v2129
        %v2339 = vmul.f32 %v2076, %v2129
        %v2340 = vmul.f32 %v2077, %v2129
        %v2341 = vmul.f32 %v2078, %v2129
        %v2342 = vmul.f32 %v2079, %v2129
        %v2343 = vmul.f32 %v2080, %v2129
        %v2344 = vmul.f32 %v2081, %v2129
        %v2345 = vmul.f32 %v2082, %v2129
        %v2346 = vmul.f32 %v2083, %v2129
        %v2347 = vmul.f32 %v2084, %v2129
        %v2348 = vmul.f32 %v2085, %v2129
        %v2349 = vmul.f32 %v2086, %v2129
        %v2350 = vmul.f32 %v2087, %v2129
        %v2351 = vmul.f32 %v2088, %v2129
        %v2352 = vmul.f32 %v2089, %v2129
        %v2353 = vmul.f32 %v2090, %v2129
        %v2354 = vmul.f32 %v2091, %v2129
        %v2355 = vmul.f32 %v2092, %v2129
        %v2356 = vmul.f32 %v2093, %v2129
        %v2357 = vmul.f32 %v2094, %v2129
        %v2358 = vmul.f32 %v2095, %v2129
        %v2359 = vmul.f32 %v2096, %v2129
        %v2360 = vmul.f32 %v2097, %v2129
        %v2361 = vmul.f32 %v2098, %v2129
        %v2362 = vmul.f32 %v2099, %v2129
        %v2363 = vmul.f32 %v2100, %v2129
        %v2364 = vmul.f32 %v2101, %v2129
        %v2365 = vmul.f32 %v2102, %v2129
        %v2366 = vmul.f32 %v2103, %v2129
        %v2367 = vmul.f32 %v2104, %v2129
        %v2368 = vmul.f32 %v2105, %v2129
        %v2369 = vmul.f32 %v2106, %v2129
        %v2370 = vmul.f32 %v2107, %v2129
        %v2371 = vmul.f32 %v2108, %v2129
        %v2372 = vmul.f32 %v2109, %v2129
        %v2373 = vmul.f32 %v2110, %v2129
        %v2374 = vmul.f32 %v2111, %v2129
        %v2375 = vmul.f32 %v2112, %v2129
        %v2376 = vmul.f32 %v2113, %v2129
        %v2377 = vmul.f32 %v2114, %v2129
        %v2378 = vmul.f32 %v2115, %v2129
        %v2379 = vmul.f32 %v2116, %v2129
        %v2380 = vmul.f32 %v2117, %v2129
        %v2381 = vmul.f32 %v2118, %v2129
        %v2382 = vmul.f32 %v2119, %v2129
        %v2383 = vmul.f32 %v2120, %v2129
        %v2384 = vmul.f32 %v2121, %v2129
        %v2385 = vmul.f32 %v2122, %v2129
        %v2386 = vmul.f32 %v2123, %v2129
        %vm2387 = vcmask 523264
        %v2388 = vsel %vm2387, %v2131, 0.0
        %2389 = vadd.xlane.f32.xlu0 %v2388
        %v2390 = vpop.xlane.xlu0 %2389
        %v2391 = vsel %vm2387, %v2132, 0.0
        %2392 = vadd.xlane.f32.xlu0 %v2391
        %v2393 = vpop.xlane.xlu0 %2392
        %v2394 = vsel %vm2387, %v2133, 0.0
        %2395 = vadd.xlane.f32.xlu0 %v2394
        %v2396 = vpop.xlane.xlu0 %2395
        %v2397 = vsel %vm2387, %v2134, 0.0
        %2398 = vadd.xlane.f32.xlu0 %v2397
        %v2399 = vpop.xlane.xlu0 %2398
        %v2400 = vsel %vm2387, %v2135, 0.0
        %2401 = vadd.xlane.f32.xlu0 %v2400
        %v2402 = vpop.xlane.xlu0 %2401
        %v2403 = vsel %vm2387, %v2136, 0.0
        %2404 = vadd.xlane.f32.xlu0 %v2403
        %v2405 = vpop.xlane.xlu0 %2404
        %v2406 = vsel %vm2387, %v2137, 0.0
        %2407 = vadd.xlane.f32.xlu0 %v2406
        %v2408 = vpop.xlane.xlu0 %2407
        %v2409 = vsel %vm2387, %v2138, 0.0
        %2410 = vadd.xlane.f32.xlu0 %v2409
        %v2411 = vpop.xlane.xlu0 %2410
        %v2412 = vsel %vm2387, %v2139, 0.0
        %2413 = vadd.xlane.f32.xlu0 %v2412
        %v2414 = vpop.xlane.xlu0 %2413
        %v2415 = vsel %vm2387, %v2140, 0.0
        %2416 = vadd.xlane.f32.xlu0 %v2415
        %v2417 = vpop.xlane.xlu0 %2416
        %v2418 = vsel %vm2387, %v2141, 0.0
        %2419 = vadd.xlane.f32.xlu0 %v2418
        %v2420 = vpop.xlane.xlu0 %2419
        %v2421 = vsel %vm2387, %v2142, 0.0
        %2422 = vadd.xlane.f32.xlu0 %v2421
        %v2423 = vpop.xlane.xlu0 %2422
        %v2424 = vsel %vm2387, %v2143, 0.0
        %2425 = vadd.xlane.f32.xlu0 %v2424
        %v2426 = vpop.xlane.xlu0 %2425
        %v2427 = vsel %vm2387, %v2144, 0.0
        %2428 = vadd.xlane.f32.xlu0 %v2427
        %v2429 = vpop.xlane.xlu0 %2428
        %v2430 = vsel %vm2387, %v2145, 0.0
        %2431 = vadd.xlane.f32.xlu0 %v2430
        %v2432 = vpop.xlane.xlu0 %2431
        %v2433 = vsel %vm2387, %v2146, 0.0
        %2434 = vadd.xlane.f32.xlu0 %v2433
        %v2435 = vpop.xlane.xlu0 %2434
        %v2436 = vsel %vm2387, %v2147, 0.0
        %2437 = vadd.xlane.f32.xlu0 %v2436
        %v2438 = vpop.xlane.xlu0 %2437
        %v2439 = vsel %vm2387, %v2148, 0.0
        %2440 = vadd.xlane.f32.xlu0 %v2439
        %v2441 = vpop.xlane.xlu0 %2440
        %v2442 = vsel %vm2387, %v2149, 0.0
        %2443 = vadd.xlane.f32.xlu0 %v2442
        %v2444 = vpop.xlane.xlu0 %2443
        %v2445 = vsel %vm2387, %v2150, 0.0
        %2446 = vadd.xlane.f32.xlu0 %v2445
        %v2447 = vpop.xlane.xlu0 %2446
        %v2448 = vsel %vm2387, %v2151, 0.0
        %2449 = vadd.xlane.f32.xlu0 %v2448
        %v2450 = vpop.xlane.xlu0 %2449
        %v2451 = vsel %vm2387, %v2152, 0.0
        %2452 = vadd.xlane.f32.xlu0 %v2451
        %v2453 = vpop.xlane.xlu0 %2452
        %v2454 = vsel %vm2387, %v2153, 0.0
        %2455 = vadd.xlane.f32.xlu0 %v2454
        %v2456 = vpop.xlane.xlu0 %2455
        %v2457 = vsel %vm2387, %v2154, 0.0
        %2458 = vadd.xlane.f32.xlu0 %v2457
        %v2459 = vpop.xlane.xlu0 %2458
        %v2460 = vsel %vm2387, %v2155, 0.0
        %2461 = vadd.xlane.f32.xlu0 %v2460
        %v2462 = vpop.xlane.xlu0 %2461
        %v2463 = vsel %vm2387, %v2156, 0.0
        %2464 = vadd.xlane.f32.xlu0 %v2463
        %v2465 = vpop.xlane.xlu0 %2464
        %v2466 = vsel %vm2387, %v2157, 0.0
        %2467 = vadd.xlane.f32.xlu0 %v2466
        %v2468 = vpop.xlane.xlu0 %2467
        %v2469 = vsel %vm2387, %v2158, 0.0
        %2470 = vadd.xlane.f32.xlu0 %v2469
        %v2471 = vpop.xlane.xlu0 %2470
        %v2472 = vsel %vm2387, %v2159, 0.0
        %2473 = vadd.xlane.f32.xlu0 %v2472
        %v2474 = vpop.xlane.xlu0 %2473
        %v2475 = vsel %vm2387, %v2160, 0.0
        %2476 = vadd.xlane.f32.xlu0 %v2475
        %v2477 = vpop.xlane.xlu0 %2476
        %v2478 = vsel %vm2387, %v2161, 0.0
        %2479 = vadd.xlane.f32.xlu0 %v2478
        %v2480 = vpop.xlane.xlu0 %2479
        %v2481 = vsel %vm2387, %v2162, 0.0
        %2482 = vadd.xlane.f32.xlu0 %v2481
        %v2483 = vpop.xlane.xlu0 %2482
        %v2484 = vsel %vm2387, %v2163, 0.0
        %2485 = vadd.xlane.f32.xlu0 %v2484
        %v2486 = vpop.xlane.xlu0 %2485
        %v2487 = vsel %vm2387, %v2164, 0.0
        %2488 = vadd.xlane.f32.xlu0 %v2487
        %v2489 = vpop.xlane.xlu0 %2488
        %v2490 = vsel %vm2387, %v2165, 0.0
        %2491 = vadd.xlane.f32.xlu0 %v2490
        %v2492 = vpop.xlane.xlu0 %2491
        %v2493 = vsel %vm2387, %v2166, 0.0
        %2494 = vadd.xlane.f32.xlu0 %v2493
        %v2495 = vpop.xlane.xlu0 %2494
        %v2496 = vsel %vm2387, %v2167, 0.0
        %2497 = vadd.xlane.f32.xlu0 %v2496
        %v2498 = vpop.xlane.xlu0 %2497
        %v2499 = vsel %vm2387, %v2168, 0.0
        %2500 = vadd.xlane.f32.xlu0 %v2499
        %v2501 = vpop.xlane.xlu0 %2500
        %v2502 = vsel %vm2387, %v2169, 0.0
        %2503 = vadd.xlane.f32.xlu0 %v2502
        %v2504 = vpop.xlane.xlu0 %2503
        %v2505 = vsel %vm2387, %v2170, 0.0
        %2506 = vadd.xlane.f32.xlu0 %v2505
        %v2507 = vpop.xlane.xlu0 %2506
        %v2508 = vsel %vm2387, %v2171, 0.0
        %2509 = vadd.xlane.f32.xlu0 %v2508
        %v2510 = vpop.xlane.xlu0 %2509
        %v2511 = vsel %vm2387, %v2172, 0.0
        %2512 = vadd.xlane.f32.xlu0 %v2511
        %v2513 = vpop.xlane.xlu0 %2512
        %v2514 = vsel %vm2387, %v2173, 0.0
        %2515 = vadd.xlane.f32.xlu0 %v2514
        %v2516 = vpop.xlane.xlu0 %2515
        %v2517 = vsel %vm2387, %v2174, 0.0
        %2518 = vadd.xlane.f32.xlu0 %v2517
        %v2519 = vpop.xlane.xlu0 %2518
        %v2520 = vsel %vm2387, %v2175, 0.0
        %2521 = vadd.xlane.f32.xlu0 %v2520
        %v2522 = vpop.xlane.xlu0 %2521
        %v2523 = vsel %vm2387, %v2176, 0.0
        %2524 = vadd.xlane.f32.xlu0 %v2523
        %v2525 = vpop.xlane.xlu0 %2524
        %v2526 = vsel %vm2387, %v2177, 0.0
        %2527 = vadd.xlane.f32.xlu0 %v2526
        %v2528 = vpop.xlane.xlu0 %2527
        %v2529 = vsel %vm2387, %v2178, 0.0
        %2530 = vadd.xlane.f32.xlu0 %v2529
        %v2531 = vpop.xlane.xlu0 %2530
        %v2532 = vsel %vm2387, %v2179, 0.0
        %2533 = vadd.xlane.f32.xlu0 %v2532
        %v2534 = vpop.xlane.xlu0 %2533
        %v2535 = vsel %vm2387, %v2180, 0.0
        %2536 = vadd.xlane.f32.xlu0 %v2535
        %v2537 = vpop.xlane.xlu0 %2536
        %v2538 = vsel %vm2387, %v2181, 0.0
        %2539 = vadd.xlane.f32.xlu0 %v2538
        %v2540 = vpop.xlane.xlu0 %2539
        %v2541 = vsel %vm2387, %v2182, 0.0
        %2542 = vadd.xlane.f32.xlu0 %v2541
        %v2543 = vpop.xlane.xlu0 %2542
        %v2544 = vsel %vm2387, %v2183, 0.0
        %2545 = vadd.xlane.f32.xlu0 %v2544
        %v2546 = vpop.xlane.xlu0 %2545
        %v2547 = vsel %vm2387, %v2184, 0.0
        %2548 = vadd.xlane.f32.xlu0 %v2547
        %v2549 = vpop.xlane.xlu0 %2548
        %v2550 = vsel %vm2387, %v2185, 0.0
        %2551 = vadd.xlane.f32.xlu0 %v2550
        %v2552 = vpop.xlane.xlu0 %2551
        %v2553 = vsel %vm2387, %v2186, 0.0
        %2554 = vadd.xlane.f32.xlu0 %v2553
        %v2555 = vpop.xlane.xlu0 %2554
        %v2556 = vsel %vm2387, %v2187, 0.0
        %2557 = vadd.xlane.f32.xlu0 %v2556
        %v2558 = vpop.xlane.xlu0 %2557
        %v2559 = vsel %vm2387, %v2188, 0.0
        %2560 = vadd.xlane.f32.xlu0 %v2559
        %v2561 = vpop.xlane.xlu0 %2560
        %v2562 = vsel %vm2387, %v2189, 0.0
        %2563 = vadd.xlane.f32.xlu0 %v2562
        %v2564 = vpop.xlane.xlu0 %2563
        %v2565 = vsel %vm2387, %v2190, 0.0
        %2566 = vadd.xlane.f32.xlu0 %v2565
        %v2567 = vpop.xlane.xlu0 %2566
        %v2568 = vsel %vm2387, %v2191, 0.0
        %2569 = vadd.xlane.f32.xlu0 %v2568
        %v2570 = vpop.xlane.xlu0 %2569
        %v2571 = vsel %vm2387, %v2192, 0.0
        %2572 = vadd.xlane.f32.xlu0 %v2571
        %v2573 = vpop.xlane.xlu0 %2572
        %v2574 = vsel %vm2387, %v2193, 0.0
        %2575 = vadd.xlane.f32.xlu0 %v2574
        %v2576 = vpop.xlane.xlu0 %2575
        %v2577 = vsel %vm2387, %v2194, 0.0
        %2578 = vadd.xlane.f32.xlu0 %v2577
        %v2579 = vpop.xlane.xlu0 %2578
        %v2580 = vsel %vm2387, %v2195, 0.0
        %2581 = vadd.xlane.f32.xlu0 %v2580
        %v2582 = vpop.xlane.xlu0 %2581
        %v2583 = vsel %vm2387, %v2196, 0.0
        %2584 = vadd.xlane.f32.xlu0 %v2583
        %v2585 = vpop.xlane.xlu0 %2584
        %v2586 = vsel %vm2387, %v2197, 0.0
        %2587 = vadd.xlane.f32.xlu0 %v2586
        %v2588 = vpop.xlane.xlu0 %2587
        %v2589 = vsel %vm2387, %v2198, 0.0
        %2590 = vadd.xlane.f32.xlu0 %v2589
        %v2591 = vpop.xlane.xlu0 %2590
        %v2592 = vsel %vm2387, %v2199, 0.0
        %2593 = vadd.xlane.f32.xlu0 %v2592
        %v2594 = vpop.xlane.xlu0 %2593
        %v2595 = vsel %vm2387, %v2200, 0.0
        %2596 = vadd.xlane.f32.xlu0 %v2595
        %v2597 = vpop.xlane.xlu0 %2596
        %v2598 = vsel %vm2387, %v2201, 0.0
        %2599 = vadd.xlane.f32.xlu0 %v2598
        %v2600 = vpop.xlane.xlu0 %2599
        %v2601 = vsel %vm2387, %v2202, 0.0
        %2602 = vadd.xlane.f32.xlu0 %v2601
        %v2603 = vpop.xlane.xlu0 %2602
        %v2604 = vsel %vm2387, %v2203, 0.0
        %2605 = vadd.xlane.f32.xlu0 %v2604
        %v2606 = vpop.xlane.xlu0 %2605
        %v2607 = vsel %vm2387, %v2204, 0.0
        %2608 = vadd.xlane.f32.xlu0 %v2607
        %v2609 = vpop.xlane.xlu0 %2608
        %v2610 = vsel %vm2387, %v2205, 0.0
        %2611 = vadd.xlane.f32.xlu0 %v2610
        %v2612 = vpop.xlane.xlu0 %2611
        %v2613 = vsel %vm2387, %v2206, 0.0
        %2614 = vadd.xlane.f32.xlu0 %v2613
        %v2615 = vpop.xlane.xlu0 %2614
        %v2616 = vsel %vm2387, %v2207, 0.0
        %2617 = vadd.xlane.f32.xlu0 %v2616
        %v2618 = vpop.xlane.xlu0 %2617
        %v2619 = vsel %vm2387, %v2208, 0.0
        %2620 = vadd.xlane.f32.xlu0 %v2619
        %v2621 = vpop.xlane.xlu0 %2620
        %v2622 = vsel %vm2387, %v2209, 0.0
        %2623 = vadd.xlane.f32.xlu0 %v2622
        %v2624 = vpop.xlane.xlu0 %2623
        %v2625 = vsel %vm2387, %v2210, 0.0
        %2626 = vadd.xlane.f32.xlu0 %v2625
        %v2627 = vpop.xlane.xlu0 %2626
        %v2628 = vsel %vm2387, %v2211, 0.0
        %2629 = vadd.xlane.f32.xlu0 %v2628
        %v2630 = vpop.xlane.xlu0 %2629
        %v2631 = vsel %vm2387, %v2212, 0.0
        %2632 = vadd.xlane.f32.xlu0 %v2631
        %v2633 = vpop.xlane.xlu0 %2632
        %v2634 = vsel %vm2387, %v2213, 0.0
        %2635 = vadd.xlane.f32.xlu0 %v2634
        %v2636 = vpop.xlane.xlu0 %2635
        %v2637 = vsel %vm2387, %v2214, 0.0
        %2638 = vadd.xlane.f32.xlu0 %v2637
        %v2639 = vpop.xlane.xlu0 %2638
        %v2640 = vsel %vm2387, %v2215, 0.0
        %2641 = vadd.xlane.f32.xlu0 %v2640
        %v2642 = vpop.xlane.xlu0 %2641
        %v2643 = vsel %vm2387, %v2216, 0.0
        %2644 = vadd.xlane.f32.xlu0 %v2643
        %v2645 = vpop.xlane.xlu0 %2644
        %v2646 = vsel %vm2387, %v2217, 0.0
        %2647 = vadd.xlane.f32.xlu0 %v2646
        %v2648 = vpop.xlane.xlu0 %2647
        %v2649 = vsel %vm2387, %v2218, 0.0
        %2650 = vadd.xlane.f32.xlu0 %v2649
        %v2651 = vpop.xlane.xlu0 %2650
        %v2652 = vsel %vm2387, %v2219, 0.0
        %2653 = vadd.xlane.f32.xlu0 %v2652
        %v2654 = vpop.xlane.xlu0 %2653
        %v2655 = vsel %vm2387, %v2220, 0.0
        %2656 = vadd.xlane.f32.xlu0 %v2655
        %v2657 = vpop.xlane.xlu0 %2656
        %v2658 = vsel %vm2387, %v2221, 0.0
        %2659 = vadd.xlane.f32.xlu0 %v2658
        %v2660 = vpop.xlane.xlu0 %2659
        %v2661 = vsel %vm2387, %v2222, 0.0
        %2662 = vadd.xlane.f32.xlu0 %v2661
        %v2663 = vpop.xlane.xlu0 %2662
        %v2664 = vsel %vm2387, %v2223, 0.0
        %2665 = vadd.xlane.f32.xlu0 %v2664
        %v2666 = vpop.xlane.xlu0 %2665
        %v2667 = vsel %vm2387, %v2224, 0.0
        %2668 = vadd.xlane.f32.xlu0 %v2667
        %v2669 = vpop.xlane.xlu0 %2668
        %v2670 = vsel %vm2387, %v2225, 0.0
        %2671 = vadd.xlane.f32.xlu0 %v2670
        %v2672 = vpop.xlane.xlu0 %2671
        %v2673 = vsel %vm2387, %v2226, 0.0
        %2674 = vadd.xlane.f32.xlu0 %v2673
        %v2675 = vpop.xlane.xlu0 %2674
        %v2676 = vsel %vm2387, %v2227, 0.0
        %2677 = vadd.xlane.f32.xlu0 %v2676
        %v2678 = vpop.xlane.xlu0 %2677
        %v2679 = vsel %vm2387, %v2228, 0.0
        %2680 = vadd.xlane.f32.xlu0 %v2679
        %v2681 = vpop.xlane.xlu0 %2680
        %v2682 = vsel %vm2387, %v2229, 0.0
        %2683 = vadd.xlane.f32.xlu0 %v2682
        %v2684 = vpop.xlane.xlu0 %2683
        %v2685 = vsel %vm2387, %v2230, 0.0
        %2686 = vadd.xlane.f32.xlu0 %v2685
        %v2687 = vpop.xlane.xlu0 %2686
        %v2688 = vsel %vm2387, %v2231, 0.0
        %2689 = vadd.xlane.f32.xlu0 %v2688
        %v2690 = vpop.xlane.xlu0 %2689
        %v2691 = vsel %vm2387, %v2232, 0.0
        %2692 = vadd.xlane.f32.xlu0 %v2691
        %v2693 = vpop.xlane.xlu0 %2692
        %v2694 = vsel %vm2387, %v2233, 0.0
        %2695 = vadd.xlane.f32.xlu0 %v2694
        %v2696 = vpop.xlane.xlu0 %2695
        %v2697 = vsel %vm2387, %v2234, 0.0
        %2698 = vadd.xlane.f32.xlu0 %v2697
        %v2699 = vpop.xlane.xlu0 %2698
        %v2700 = vsel %vm2387, %v2235, 0.0
        %2701 = vadd.xlane.f32.xlu0 %v2700
        %v2702 = vpop.xlane.xlu0 %2701
        %v2703 = vsel %vm2387, %v2236, 0.0
        %2704 = vadd.xlane.f32.xlu0 %v2703
        %v2705 = vpop.xlane.xlu0 %2704
        %v2706 = vsel %vm2387, %v2237, 0.0
        %2707 = vadd.xlane.f32.xlu0 %v2706
        %v2708 = vpop.xlane.xlu0 %2707
        %v2709 = vsel %vm2387, %v2238, 0.0
        %2710 = vadd.xlane.f32.xlu0 %v2709
        %v2711 = vpop.xlane.xlu0 %2710
        %v2712 = vsel %vm2387, %v2239, 0.0
        %2713 = vadd.xlane.f32.xlu0 %v2712
        %v2714 = vpop.xlane.xlu0 %2713
        %v2715 = vsel %vm2387, %v2240, 0.0
        %2716 = vadd.xlane.f32.xlu0 %v2715
        %v2717 = vpop.xlane.xlu0 %2716
        %v2718 = vsel %vm2387, %v2241, 0.0
        %2719 = vadd.xlane.f32.xlu0 %v2718
        %v2720 = vpop.xlane.xlu0 %2719
        %v2721 = vsel %vm2387, %v2242, 0.0
        %2722 = vadd.xlane.f32.xlu0 %v2721
        %v2723 = vpop.xlane.xlu0 %2722
        %v2724 = vsel %vm2387, %v2243, 0.0
        %2725 = vadd.xlane.f32.xlu0 %v2724
        %v2726 = vpop.xlane.xlu0 %2725
        %v2727 = vsel %vm2387, %v2244, 0.0
        %2728 = vadd.xlane.f32.xlu0 %v2727
        %v2729 = vpop.xlane.xlu0 %2728
        %v2730 = vsel %vm2387, %v2245, 0.0
        %2731 = vadd.xlane.f32.xlu0 %v2730
        %v2732 = vpop.xlane.xlu0 %2731
        %v2733 = vsel %vm2387, %v2246, 0.0
        %2734 = vadd.xlane.f32.xlu0 %v2733
        %v2735 = vpop.xlane.xlu0 %2734
        %v2736 = vsel %vm2387, %v2247, 0.0
        %2737 = vadd.xlane.f32.xlu0 %v2736
        %v2738 = vpop.xlane.xlu0 %2737
        %v2739 = vsel %vm2387, %v2248, 0.0
        %2740 = vadd.xlane.f32.xlu0 %v2739
        %v2741 = vpop.xlane.xlu0 %2740
        %v2742 = vsel %vm2387, %v2249, 0.0
        %2743 = vadd.xlane.f32.xlu0 %v2742
        %v2744 = vpop.xlane.xlu0 %2743
        %v2745 = vsel %vm2387, %v2250, 0.0
        %2746 = vadd.xlane.f32.xlu0 %v2745
        %v2747 = vpop.xlane.xlu0 %2746
        %v2748 = vsel %vm2387, %v2251, 0.0
        %2749 = vadd.xlane.f32.xlu0 %v2748
        %v2750 = vpop.xlane.xlu0 %2749
        %v2751 = vsel %vm2387, %v2252, 0.0
        %2752 = vadd.xlane.f32.xlu0 %v2751
        %v2753 = vpop.xlane.xlu0 %2752
        %v2754 = vsel %vm2387, %v2253, 0.0
        %2755 = vadd.xlane.f32.xlu0 %v2754
        %v2756 = vpop.xlane.xlu0 %2755
        %v2757 = vsel %vm2387, %v2254, 0.0
        %2758 = vadd.xlane.f32.xlu0 %v2757
        %v2759 = vpop.xlane.xlu0 %2758
        %v2760 = vsel %vm2387, %v2255, 0.0
        %2761 = vadd.xlane.f32.xlu0 %v2760
        %v2762 = vpop.xlane.xlu0 %2761
        %v2763 = vsel %vm2387, %v2256, 0.0
        %2764 = vadd.xlane.f32.xlu0 %v2763
        %v2765 = vpop.xlane.xlu0 %2764
        %v2766 = vsel %vm2387, %v2257, 0.0
        %2767 = vadd.xlane.f32.xlu0 %v2766
        %v2768 = vpop.xlane.xlu0 %2767
        %v2769 = vsel %vm2387, %v2258, 0.0
        %2770 = vadd.xlane.f32.xlu0 %v2769
        %v2771 = vpop.xlane.xlu0 %2770
        %v2772 = vsel %vm2387, %v2259, 0.0
        %2773 = vadd.xlane.f32.xlu0 %v2772
        %v2774 = vpop.xlane.xlu0 %2773
        %v2775 = vsel %vm2387, %v2260, 0.0
        %2776 = vadd.xlane.f32.xlu0 %v2775
        %v2777 = vpop.xlane.xlu0 %2776
        %v2778 = vsel %vm2387, %v2261, 0.0
        %2779 = vadd.xlane.f32.xlu0 %v2778
        %v2780 = vpop.xlane.xlu0 %2779
        %v2781 = vsel %vm2387, %v2262, 0.0
        %2782 = vadd.xlane.f32.xlu0 %v2781
        %v2783 = vpop.xlane.xlu0 %2782
        %v2784 = vsel %vm2387, %v2263, 0.0
        %2785 = vadd.xlane.f32.xlu0 %v2784
        %v2786 = vpop.xlane.xlu0 %2785
        %v2787 = vsel %vm2387, %v2264, 0.0
        %2788 = vadd.xlane.f32.xlu0 %v2787
        %v2789 = vpop.xlane.xlu0 %2788
        %v2790 = vsel %vm2387, %v2265, 0.0
        %2791 = vadd.xlane.f32.xlu0 %v2790
        %v2792 = vpop.xlane.xlu0 %2791
        %v2793 = vsel %vm2387, %v2266, 0.0
        %2794 = vadd.xlane.f32.xlu0 %v2793
        %v2795 = vpop.xlane.xlu0 %2794
        %v2796 = vsel %vm2387, %v2267, 0.0
        %2797 = vadd.xlane.f32.xlu0 %v2796
        %v2798 = vpop.xlane.xlu0 %2797
        %v2799 = vsel %vm2387, %v2268, 0.0
        %2800 = vadd.xlane.f32.xlu0 %v2799
        %v2801 = vpop.xlane.xlu0 %2800
        %v2802 = vsel %vm2387, %v2269, 0.0
        %2803 = vadd.xlane.f32.xlu0 %v2802
        %v2804 = vpop.xlane.xlu0 %2803
        %v2805 = vsel %vm2387, %v2270, 0.0
        %2806 = vadd.xlane.f32.xlu0 %v2805
        %v2807 = vpop.xlane.xlu0 %2806
        %v2808 = vsel %vm2387, %v2271, 0.0
        %2809 = vadd.xlane.f32.xlu0 %v2808
        %v2810 = vpop.xlane.xlu0 %2809
        %v2811 = vsel %vm2387, %v2272, 0.0
        %2812 = vadd.xlane.f32.xlu0 %v2811
        %v2813 = vpop.xlane.xlu0 %2812
        %v2814 = vsel %vm2387, %v2273, 0.0
        %2815 = vadd.xlane.f32.xlu0 %v2814
        %v2816 = vpop.xlane.xlu0 %2815
        %v2817 = vsel %vm2387, %v2274, 0.0
        %2818 = vadd.xlane.f32.xlu0 %v2817
        %v2819 = vpop.xlane.xlu0 %2818
        %v2820 = vsel %vm2387, %v2275, 0.0
        %2821 = vadd.xlane.f32.xlu0 %v2820
        %v2822 = vpop.xlane.xlu0 %2821
        %v2823 = vsel %vm2387, %v2276, 0.0
        %2824 = vadd.xlane.f32.xlu0 %v2823
        %v2825 = vpop.xlane.xlu0 %2824
        %v2826 = vsel %vm2387, %v2277, 0.0
        %2827 = vadd.xlane.f32.xlu0 %v2826
        %v2828 = vpop.xlane.xlu0 %2827
        %v2829 = vsel %vm2387, %v2278, 0.0
        %2830 = vadd.xlane.f32.xlu0 %v2829
        %v2831 = vpop.xlane.xlu0 %2830
        %v2832 = vsel %vm2387, %v2279, 0.0
        %2833 = vadd.xlane.f32.xlu0 %v2832
        %v2834 = vpop.xlane.xlu0 %2833
        %v2835 = vsel %vm2387, %v2280, 0.0
        %2836 = vadd.xlane.f32.xlu0 %v2835
        %v2837 = vpop.xlane.xlu0 %2836
        %v2838 = vsel %vm2387, %v2281, 0.0
        %2839 = vadd.xlane.f32.xlu0 %v2838
        %v2840 = vpop.xlane.xlu0 %2839
        %v2841 = vsel %vm2387, %v2282, 0.0
        %2842 = vadd.xlane.f32.xlu0 %v2841
        %v2843 = vpop.xlane.xlu0 %2842
        %v2844 = vsel %vm2387, %v2283, 0.0
        %2845 = vadd.xlane.f32.xlu0 %v2844
        %v2846 = vpop.xlane.xlu0 %2845
        %v2847 = vsel %vm2387, %v2284, 0.0
        %2848 = vadd.xlane.f32.xlu0 %v2847
        %v2849 = vpop.xlane.xlu0 %2848
        %v2850 = vsel %vm2387, %v2285, 0.0
        %2851 = vadd.xlane.f32.xlu0 %v2850
        %v2852 = vpop.xlane.xlu0 %2851
        %v2853 = vsel %vm2387, %v2286, 0.0
        %2854 = vadd.xlane.f32.xlu0 %v2853
        %v2855 = vpop.xlane.xlu0 %2854
        %v2856 = vsel %vm2387, %v2287, 0.0
        %2857 = vadd.xlane.f32.xlu0 %v2856
        %v2858 = vpop.xlane.xlu0 %2857
        %v2859 = vsel %vm2387, %v2288, 0.0
        %2860 = vadd.xlane.f32.xlu0 %v2859
        %v2861 = vpop.xlane.xlu0 %2860
        %v2862 = vsel %vm2387, %v2289, 0.0
        %2863 = vadd.xlane.f32.xlu0 %v2862
        %v2864 = vpop.xlane.xlu0 %2863
        %v2865 = vsel %vm2387, %v2290, 0.0
        %2866 = vadd.xlane.f32.xlu0 %v2865
        %v2867 = vpop.xlane.xlu0 %2866
        %v2868 = vsel %vm2387, %v2291, 0.0
        %2869 = vadd.xlane.f32.xlu0 %v2868
        %v2870 = vpop.xlane.xlu0 %2869
        %v2871 = vsel %vm2387, %v2292, 0.0
        %2872 = vadd.xlane.f32.xlu0 %v2871
        %v2873 = vpop.xlane.xlu0 %2872
        %v2874 = vsel %vm2387, %v2293, 0.0
        %2875 = vadd.xlane.f32.xlu0 %v2874
        %v2876 = vpop.xlane.xlu0 %2875
        %v2877 = vsel %vm2387, %v2294, 0.0
        %2878 = vadd.xlane.f32.xlu0 %v2877
        %v2879 = vpop.xlane.xlu0 %2878
        %v2880 = vsel %vm2387, %v2295, 0.0
        %2881 = vadd.xlane.f32.xlu0 %v2880
        %v2882 = vpop.xlane.xlu0 %2881
        %v2883 = vsel %vm2387, %v2296, 0.0
        %2884 = vadd.xlane.f32.xlu0 %v2883
        %v2885 = vpop.xlane.xlu0 %2884
        %v2886 = vsel %vm2387, %v2297, 0.0
        %2887 = vadd.xlane.f32.xlu0 %v2886
        %v2888 = vpop.xlane.xlu0 %2887
        %v2889 = vsel %vm2387, %v2298, 0.0
        %2890 = vadd.xlane.f32.xlu0 %v2889
        %v2891 = vpop.xlane.xlu0 %2890
        %v2892 = vsel %vm2387, %v2299, 0.0
        %2893 = vadd.xlane.f32.xlu0 %v2892
        %v2894 = vpop.xlane.xlu0 %2893
        %v2895 = vsel %vm2387, %v2300, 0.0
        %2896 = vadd.xlane.f32.xlu0 %v2895
        %v2897 = vpop.xlane.xlu0 %2896
        %v2898 = vsel %vm2387, %v2301, 0.0
        %2899 = vadd.xlane.f32.xlu0 %v2898
        %v2900 = vpop.xlane.xlu0 %2899
        %v2901 = vsel %vm2387, %v2302, 0.0
        %2902 = vadd.xlane.f32.xlu0 %v2901
        %v2903 = vpop.xlane.xlu0 %2902
        %v2904 = vsel %vm2387, %v2303, 0.0
        %2905 = vadd.xlane.f32.xlu0 %v2904
        %v2906 = vpop.xlane.xlu0 %2905
        %v2907 = vsel %vm2387, %v2304, 0.0
        %2908 = vadd.xlane.f32.xlu0 %v2907
        %v2909 = vpop.xlane.xlu0 %2908
        %v2910 = vsel %vm2387, %v2305, 0.0
        %2911 = vadd.xlane.f32.xlu0 %v2910
        %v2912 = vpop.xlane.xlu0 %2911
        %v2913 = vsel %vm2387, %v2306, 0.0
        %2914 = vadd.xlane.f32.xlu0 %v2913
        %v2915 = vpop.xlane.xlu0 %2914
        %v2916 = vsel %vm2387, %v2307, 0.0
        %2917 = vadd.xlane.f32.xlu0 %v2916
        %v2918 = vpop.xlane.xlu0 %2917
        %v2919 = vsel %vm2387, %v2308, 0.0
        %2920 = vadd.xlane.f32.xlu0 %v2919
        %v2921 = vpop.xlane.xlu0 %2920
        %v2922 = vsel %vm2387, %v2309, 0.0
        %2923 = vadd.xlane.f32.xlu0 %v2922
        %v2924 = vpop.xlane.xlu0 %2923
        %v2925 = vsel %vm2387, %v2310, 0.0
        %2926 = vadd.xlane.f32.xlu0 %v2925
        %v2927 = vpop.xlane.xlu0 %2926
        %v2928 = vsel %vm2387, %v2311, 0.0
        %2929 = vadd.xlane.f32.xlu0 %v2928
        %v2930 = vpop.xlane.xlu0 %2929
        %v2931 = vsel %vm2387, %v2312, 0.0
        %2932 = vadd.xlane.f32.xlu0 %v2931
        %v2933 = vpop.xlane.xlu0 %2932
        %v2934 = vsel %vm2387, %v2313, 0.0
        %2935 = vadd.xlane.f32.xlu0 %v2934
        %v2936 = vpop.xlane.xlu0 %2935
        %v2937 = vsel %vm2387, %v2314, 0.0
        %2938 = vadd.xlane.f32.xlu0 %v2937
        %v2939 = vpop.xlane.xlu0 %2938
        %v2940 = vsel %vm2387, %v2315, 0.0
        %2941 = vadd.xlane.f32.xlu0 %v2940
        %v2942 = vpop.xlane.xlu0 %2941
        %v2943 = vsel %vm2387, %v2316, 0.0
        %2944 = vadd.xlane.f32.xlu0 %v2943
        %v2945 = vpop.xlane.xlu0 %2944
        %v2946 = vsel %vm2387, %v2317, 0.0
        %2947 = vadd.xlane.f32.xlu0 %v2946
        %v2948 = vpop.xlane.xlu0 %2947
        %v2949 = vsel %vm2387, %v2318, 0.0
        %2950 = vadd.xlane.f32.xlu0 %v2949
        %v2951 = vpop.xlane.xlu0 %2950
        %v2952 = vsel %vm2387, %v2319, 0.0
        %2953 = vadd.xlane.f32.xlu0 %v2952
        %v2954 = vpop.xlane.xlu0 %2953
        %v2955 = vsel %vm2387, %v2320, 0.0
        %2956 = vadd.xlane.f32.xlu0 %v2955
        %v2957 = vpop.xlane.xlu0 %2956
        %v2958 = vsel %vm2387, %v2321, 0.0
        %2959 = vadd.xlane.f32.xlu0 %v2958
        %v2960 = vpop.xlane.xlu0 %2959
        %v2961 = vsel %vm2387, %v2322, 0.0
        %2962 = vadd.xlane.f32.xlu0 %v2961
        %v2963 = vpop.xlane.xlu0 %2962
        %v2964 = vsel %vm2387, %v2323, 0.0
        %2965 = vadd.xlane.f32.xlu0 %v2964
        %v2966 = vpop.xlane.xlu0 %2965
        %v2967 = vsel %vm2387, %v2324, 0.0
        %2968 = vadd.xlane.f32.xlu0 %v2967
        %v2969 = vpop.xlane.xlu0 %2968
        %v2970 = vsel %vm2387, %v2325, 0.0
        %2971 = vadd.xlane.f32.xlu0 %v2970
        %v2972 = vpop.xlane.xlu0 %2971
        %v2973 = vsel %vm2387, %v2326, 0.0
        %2974 = vadd.xlane.f32.xlu0 %v2973
        %v2975 = vpop.xlane.xlu0 %2974
        %v2976 = vsel %vm2387, %v2327, 0.0
        %2977 = vadd.xlane.f32.xlu0 %v2976
        %v2978 = vpop.xlane.xlu0 %2977
        %v2979 = vsel %vm2387, %v2328, 0.0
        %2980 = vadd.xlane.f32.xlu0 %v2979
        %v2981 = vpop.xlane.xlu0 %2980
        %v2982 = vsel %vm2387, %v2329, 0.0
        %2983 = vadd.xlane.f32.xlu0 %v2982
        %v2984 = vpop.xlane.xlu0 %2983
        %v2985 = vsel %vm2387, %v2330, 0.0
        %2986 = vadd.xlane.f32.xlu0 %v2985
        %v2987 = vpop.xlane.xlu0 %2986
        %v2988 = vsel %vm2387, %v2331, 0.0
        %2989 = vadd.xlane.f32.xlu0 %v2988
        %v2990 = vpop.xlane.xlu0 %2989
        %v2991 = vsel %vm2387, %v2332, 0.0
        %2992 = vadd.xlane.f32.xlu0 %v2991
        %v2993 = vpop.xlane.xlu0 %2992
        %v2994 = vsel %vm2387, %v2333, 0.0
        %2995 = vadd.xlane.f32.xlu0 %v2994
        %v2996 = vpop.xlane.xlu0 %2995
        %v2997 = vsel %vm2387, %v2334, 0.0
        %2998 = vadd.xlane.f32.xlu0 %v2997
        %v2999 = vpop.xlane.xlu0 %2998
        %v3000 = vsel %vm2387, %v2335, 0.0
        %3001 = vadd.xlane.f32.xlu0 %v3000
        %v3002 = vpop.xlane.xlu0 %3001
        %v3003 = vsel %vm2387, %v2336, 0.0
        %3004 = vadd.xlane.f32.xlu0 %v3003
        %v3005 = vpop.xlane.xlu0 %3004
        %v3006 = vsel %vm2387, %v2337, 0.0
        %3007 = vadd.xlane.f32.xlu0 %v3006
        %v3008 = vpop.xlane.xlu0 %3007
        %v3009 = vsel %vm2387, %v2338, 0.0
        %3010 = vadd.xlane.f32.xlu0 %v3009
        %v3011 = vpop.xlane.xlu0 %3010
        %v3012 = vsel %vm2387, %v2339, 0.0
        %3013 = vadd.xlane.f32.xlu0 %v3012
        %v3014 = vpop.xlane.xlu0 %3013
        %v3015 = vsel %vm2387, %v2340, 0.0
        %3016 = vadd.xlane.f32.xlu0 %v3015
        %v3017 = vpop.xlane.xlu0 %3016
        %v3018 = vsel %vm2387, %v2341, 0.0
        %3019 = vadd.xlane.f32.xlu0 %v3018
        %v3020 = vpop.xlane.xlu0 %3019
        %v3021 = vsel %vm2387, %v2342, 0.0
        %3022 = vadd.xlane.f32.xlu0 %v3021
        %v3023 = vpop.xlane.xlu0 %3022
        %v3024 = vsel %vm2387, %v2343, 0.0
        %3025 = vadd.xlane.f32.xlu0 %v3024
        %v3026 = vpop.xlane.xlu0 %3025
        %v3027 = vsel %vm2387, %v2344, 0.0
        %3028 = vadd.xlane.f32.xlu0 %v3027
        %v3029 = vpop.xlane.xlu0 %3028
        %v3030 = vsel %vm2387, %v2345, 0.0
        %3031 = vadd.xlane.f32.xlu0 %v3030
        %v3032 = vpop.xlane.xlu0 %3031
        %v3033 = vsel %vm2387, %v2346, 0.0
        %3034 = vadd.xlane.f32.xlu0 %v3033
        %v3035 = vpop.xlane.xlu0 %3034
        %v3036 = vsel %vm2387, %v2347, 0.0
        %3037 = vadd.xlane.f32.xlu0 %v3036
        %v3038 = vpop.xlane.xlu0 %3037
        %v3039 = vsel %vm2387, %v2348, 0.0
        %3040 = vadd.xlane.f32.xlu0 %v3039
        %v3041 = vpop.xlane.xlu0 %3040
        %v3042 = vsel %vm2387, %v2349, 0.0
        %3043 = vadd.xlane.f32.xlu0 %v3042
        %v3044 = vpop.xlane.xlu0 %3043
        %v3045 = vsel %vm2387, %v2350, 0.0
        %3046 = vadd.xlane.f32.xlu0 %v3045
        %v3047 = vpop.xlane.xlu0 %3046
        %v3048 = vsel %vm2387, %v2351, 0.0
        %3049 = vadd.xlane.f32.xlu0 %v3048
        %v3050 = vpop.xlane.xlu0 %3049
        %v3051 = vsel %vm2387, %v2352, 0.0
        %3052 = vadd.xlane.f32.xlu0 %v3051
        %v3053 = vpop.xlane.xlu0 %3052
        %v3054 = vsel %vm2387, %v2353, 0.0
        %3055 = vadd.xlane.f32.xlu0 %v3054
        %v3056 = vpop.xlane.xlu0 %3055
        %v3057 = vsel %vm2387, %v2354, 0.0
        %3058 = vadd.xlane.f32.xlu0 %v3057
        %v3059 = vpop.xlane.xlu0 %3058
        %v3060 = vsel %vm2387, %v2355, 0.0
        %3061 = vadd.xlane.f32.xlu0 %v3060
        %v3062 = vpop.xlane.xlu0 %3061
        %v3063 = vsel %vm2387, %v2356, 0.0
        %3064 = vadd.xlane.f32.xlu0 %v3063
        %v3065 = vpop.xlane.xlu0 %3064
        %v3066 = vsel %vm2387, %v2357, 0.0
        %3067 = vadd.xlane.f32.xlu0 %v3066
        %v3068 = vpop.xlane.xlu0 %3067
        %v3069 = vsel %vm2387, %v2358, 0.0
        %3070 = vadd.xlane.f32.xlu0 %v3069
        %v3071 = vpop.xlane.xlu0 %3070
        %v3072 = vsel %vm2387, %v2359, 0.0
        %3073 = vadd.xlane.f32.xlu0 %v3072
        %v3074 = vpop.xlane.xlu0 %3073
        %v3075 = vsel %vm2387, %v2360, 0.0
        %3076 = vadd.xlane.f32.xlu0 %v3075
        %v3077 = vpop.xlane.xlu0 %3076
        %v3078 = vsel %vm2387, %v2361, 0.0
        %3079 = vadd.xlane.f32.xlu0 %v3078
        %v3080 = vpop.xlane.xlu0 %3079
        %v3081 = vsel %vm2387, %v2362, 0.0
        %3082 = vadd.xlane.f32.xlu0 %v3081
        %v3083 = vpop.xlane.xlu0 %3082
        %v3084 = vsel %vm2387, %v2363, 0.0
        %3085 = vadd.xlane.f32.xlu0 %v3084
        %v3086 = vpop.xlane.xlu0 %3085
        %v3087 = vsel %vm2387, %v2364, 0.0
        %3088 = vadd.xlane.f32.xlu0 %v3087
        %v3089 = vpop.xlane.xlu0 %3088
        %v3090 = vsel %vm2387, %v2365, 0.0
        %3091 = vadd.xlane.f32.xlu0 %v3090
        %v3092 = vpop.xlane.xlu0 %3091
        %v3093 = vsel %vm2387, %v2366, 0.0
        %3094 = vadd.xlane.f32.xlu0 %v3093
        %v3095 = vpop.xlane.xlu0 %3094
        %v3096 = vsel %vm2387, %v2367, 0.0
        %3097 = vadd.xlane.f32.xlu0 %v3096
        %v3098 = vpop.xlane.xlu0 %3097
        %v3099 = vsel %vm2387, %v2368, 0.0
        %3100 = vadd.xlane.f32.xlu0 %v3099
        %v3101 = vpop.xlane.xlu0 %3100
        %v3102 = vsel %vm2387, %v2369, 0.0
        %3103 = vadd.xlane.f32.xlu0 %v3102
        %v3104 = vpop.xlane.xlu0 %3103
        %v3105 = vsel %vm2387, %v2370, 0.0
        %3106 = vadd.xlane.f32.xlu0 %v3105
        %v3107 = vpop.xlane.xlu0 %3106
        %v3108 = vsel %vm2387, %v2371, 0.0
        %3109 = vadd.xlane.f32.xlu0 %v3108
        %v3110 = vpop.xlane.xlu0 %3109
        %v3111 = vsel %vm2387, %v2372, 0.0
        %3112 = vadd.xlane.f32.xlu0 %v3111
        %v3113 = vpop.xlane.xlu0 %3112
        %v3114 = vsel %vm2387, %v2373, 0.0
        %3115 = vadd.xlane.f32.xlu0 %v3114
        %v3116 = vpop.xlane.xlu0 %3115
        %v3117 = vsel %vm2387, %v2374, 0.0
        %3118 = vadd.xlane.f32.xlu0 %v3117
        %v3119 = vpop.xlane.xlu0 %3118
        %v3120 = vsel %vm2387, %v2375, 0.0
        %3121 = vadd.xlane.f32.xlu0 %v3120
        %v3122 = vpop.xlane.xlu0 %3121
        %v3123 = vsel %vm2387, %v2376, 0.0
        %3124 = vadd.xlane.f32.xlu0 %v3123
        %v3125 = vpop.xlane.xlu0 %3124
        %v3126 = vsel %vm2387, %v2377, 0.0
        %3127 = vadd.xlane.f32.xlu0 %v3126
        %v3128 = vpop.xlane.xlu0 %3127
        %v3129 = vsel %vm2387, %v2378, 0.0
        %3130 = vadd.xlane.f32.xlu0 %v3129
        %v3131 = vpop.xlane.xlu0 %3130
        %v3132 = vsel %vm2387, %v2379, 0.0
        %3133 = vadd.xlane.f32.xlu0 %v3132
        %v3134 = vpop.xlane.xlu0 %3133
        %v3135 = vsel %vm2387, %v2380, 0.0
        %3136 = vadd.xlane.f32.xlu0 %v3135
        %v3137 = vpop.xlane.xlu0 %3136
        %v3138 = vsel %vm2387, %v2381, 0.0
        %3139 = vadd.xlane.f32.xlu0 %v3138
        %v3140 = vpop.xlane.xlu0 %3139
        %v3141 = vsel %vm2387, %v2382, 0.0
        %3142 = vadd.xlane.f32.xlu0 %v3141
        %v3143 = vpop.xlane.xlu0 %3142
        %v3144 = vsel %vm2387, %v2383, 0.0
        %3145 = vadd.xlane.f32.xlu0 %v3144
        %v3146 = vpop.xlane.xlu0 %3145
        %v3147 = vsel %vm2387, %v2384, 0.0
        %3148 = vadd.xlane.f32.xlu0 %v3147
        %v3149 = vpop.xlane.xlu0 %3148
        %v3150 = vsel %vm2387, %v2385, 0.0
        %3151 = vadd.xlane.f32.xlu0 %v3150
        %v3152 = vpop.xlane.xlu0 %3151
        %v3153 = vsel %vm2387, %v2386, 0.0
        %3154 = vadd.xlane.f32.xlu0 %v3153
        %v3155 = vpop.xlane.xlu0 %3154
        %v3156 = vmax.f32 %v2390, %v2393
        %v3157 = vrot.slane %v3156, 4
        %v3158 = vmax.f32 %v3156, %v3157
        %v3159 = vrot.slane %v3158, 2
        %v3160 = vmax.f32 %v3158, %v3159
        %v3161 = vrot.slane %v3160, 1
        %v3162 = vmax.f32 %v3160, %v3161
        %v3163 = vmax.f32 %v2396, %v2399
        %v3164 = vrot.slane %v3163, 4
        %v3165 = vmax.f32 %v3163, %v3164
        %v3166 = vrot.slane %v3165, 2
        %v3167 = vmax.f32 %v3165, %v3166
        %v3168 = vrot.slane %v3167, 1
        %v3169 = vmax.f32 %v3167, %v3168
        %v3170 = vmax.f32 %v2402, %v2405
        %v3171 = vrot.slane %v3170, 4
        %v3172 = vmax.f32 %v3170, %v3171
        %v3173 = vrot.slane %v3172, 2
        %v3174 = vmax.f32 %v3172, %v3173
        %v3175 = vrot.slane %v3174, 1
        %v3176 = vmax.f32 %v3174, %v3175
        %v3177 = vmax.f32 %v2408, %v2411
        %v3178 = vrot.slane %v3177, 4
        %v3179 = vmax.f32 %v3177, %v3178
        %v3180 = vrot.slane %v3179, 2
        %v3181 = vmax.f32 %v3179, %v3180
        %v3182 = vrot.slane %v3181, 1
        %v3183 = vmax.f32 %v3181, %v3182
        %v3184 = vmax.f32 %v2414, %v2417
        %v3185 = vrot.slane %v3184, 4
        %v3186 = vmax.f32 %v3184, %v3185
        %v3187 = vrot.slane %v3186, 2
        %v3188 = vmax.f32 %v3186, %v3187
        %v3189 = vrot.slane %v3188, 1
        %v3190 = vmax.f32 %v3188, %v3189
        %v3191 = vmax.f32 %v2420, %v2423
        %v3192 = vrot.slane %v3191, 4
        %v3193 = vmax.f32 %v3191, %v3192
        %v3194 = vrot.slane %v3193, 2
        %v3195 = vmax.f32 %v3193, %v3194
        %v3196 = vrot.slane %v3195, 1
        %v3197 = vmax.f32 %v3195, %v3196
        %v3198 = vmax.f32 %v2426, %v2429
        %v3199 = vrot.slane %v3198, 4
        %v3200 = vmax.f32 %v3198, %v3199
        %v3201 = vrot.slane %v3200, 2
        %v3202 = vmax.f32 %v3200, %v3201
        %v3203 = vrot.slane %v3202, 1
        %v3204 = vmax.f32 %v3202, %v3203
        %v3205 = vmax.f32 %v2432, %v2435
        %v3206 = vrot.slane %v3205, 4
        %v3207 = vmax.f32 %v3205, %v3206
        %v3208 = vrot.slane %v3207, 2
        %v3209 = vmax.f32 %v3207, %v3208
        %v3210 = vrot.slane %v3209, 1
        %v3211 = vmax.f32 %v3209, %v3210
        %v3212 = vmax.f32 %v2438, %v2441
        %v3213 = vrot.slane %v3212, 4
        %v3214 = vmax.f32 %v3212, %v3213
        %v3215 = vrot.slane %v3214, 2
        %v3216 = vmax.f32 %v3214, %v3215
        %v3217 = vrot.slane %v3216, 1
        %v3218 = vmax.f32 %v3216, %v3217
        %v3219 = vmax.f32 %v2444, %v2447
        %v3220 = vrot.slane %v3219, 4
        %v3221 = vmax.f32 %v3219, %v3220
        %v3222 = vrot.slane %v3221, 2
        %v3223 = vmax.f32 %v3221, %v3222
        %v3224 = vrot.slane %v3223, 1
        %v3225 = vmax.f32 %v3223, %v3224
        %v3226 = vmax.f32 %v2450, %v2453
        %v3227 = vrot.slane %v3226, 4
        %v3228 = vmax.f32 %v3226, %v3227
        %v3229 = vrot.slane %v3228, 2
        %v3230 = vmax.f32 %v3228, %v3229
        %v3231 = vrot.slane %v3230, 1
        %v3232 = vmax.f32 %v3230, %v3231
        %v3233 = vmax.f32 %v2456, %v2459
        %v3234 = vrot.slane %v3233, 4
        %v3235 = vmax.f32 %v3233, %v3234
        %v3236 = vrot.slane %v3235, 2
        %v3237 = vmax.f32 %v3235, %v3236
        %v3238 = vrot.slane %v3237, 1
        %v3239 = vmax.f32 %v3237, %v3238
        %v3240 = vmax.f32 %v2462, %v2465
        %v3241 = vrot.slane %v3240, 4
        %v3242 = vmax.f32 %v3240, %v3241
        %v3243 = vrot.slane %v3242, 2
        %v3244 = vmax.f32 %v3242, %v3243
        %v3245 = vrot.slane %v3244, 1
        %v3246 = vmax.f32 %v3244, %v3245
        %v3247 = vmax.f32 %v2468, %v2471
        %v3248 = vrot.slane %v3247, 4
        %v3249 = vmax.f32 %v3247, %v3248
        %v3250 = vrot.slane %v3249, 2
        %v3251 = vmax.f32 %v3249, %v3250
        %v3252 = vrot.slane %v3251, 1
        %v3253 = vmax.f32 %v3251, %v3252
        %v3254 = vmax.f32 %v2474, %v2477
        %v3255 = vrot.slane %v3254, 4
        %v3256 = vmax.f32 %v3254, %v3255
        %v3257 = vrot.slane %v3256, 2
        %v3258 = vmax.f32 %v3256, %v3257
        %v3259 = vrot.slane %v3258, 1
        %v3260 = vmax.f32 %v3258, %v3259
        %v3261 = vmax.f32 %v2480, %v2483
        %v3262 = vrot.slane %v3261, 4
        %v3263 = vmax.f32 %v3261, %v3262
        %v3264 = vrot.slane %v3263, 2
        %v3265 = vmax.f32 %v3263, %v3264
        %v3266 = vrot.slane %v3265, 1
        %v3267 = vmax.f32 %v3265, %v3266
        %v3268 = vmax.f32 %v2486, %v2489
        %v3269 = vrot.slane %v3268, 4
        %v3270 = vmax.f32 %v3268, %v3269
        %v3271 = vrot.slane %v3270, 2
        %v3272 = vmax.f32 %v3270, %v3271
        %v3273 = vrot.slane %v3272, 1
        %v3274 = vmax.f32 %v3272, %v3273
        %v3275 = vmax.f32 %v2492, %v2495
        %v3276 = vrot.slane %v3275, 4
        %v3277 = vmax.f32 %v3275, %v3276
        %v3278 = vrot.slane %v3277, 2
        %v3279 = vmax.f32 %v3277, %v3278
        %v3280 = vrot.slane %v3279, 1
        %v3281 = vmax.f32 %v3279, %v3280
        %v3282 = vmax.f32 %v2498, %v2501
        %v3283 = vrot.slane %v3282, 4
        %v3284 = vmax.f32 %v3282, %v3283
        %v3285 = vrot.slane %v3284, 2
        %v3286 = vmax.f32 %v3284, %v3285
        %v3287 = vrot.slane %v3286, 1
        %v3288 = vmax.f32 %v3286, %v3287
        %v3289 = vmax.f32 %v2504, %v2507
        %v3290 = vrot.slane %v3289, 4
        %v3291 = vmax.f32 %v3289, %v3290
        %v3292 = vrot.slane %v3291, 2
        %v3293 = vmax.f32 %v3291, %v3292
        %v3294 = vrot.slane %v3293, 1
        %v3295 = vmax.f32 %v3293, %v3294
        %v3296 = vmax.f32 %v2510, %v2513
        %v3297 = vrot.slane %v3296, 4
        %v3298 = vmax.f32 %v3296, %v3297
        %v3299 = vrot.slane %v3298, 2
        %v3300 = vmax.f32 %v3298, %v3299
        %v3301 = vrot.slane %v3300, 1
        %v3302 = vmax.f32 %v3300, %v3301
        %v3303 = vmax.f32 %v2516, %v2519
        %v3304 = vrot.slane %v3303, 4
        %v3305 = vmax.f32 %v3303, %v3304
        %v3306 = vrot.slane %v3305, 2
        %v3307 = vmax.f32 %v3305, %v3306
        %v3308 = vrot.slane %v3307, 1
        %v3309 = vmax.f32 %v3307, %v3308
        %v3310 = vmax.f32 %v2522, %v2525
        %v3311 = vrot.slane %v3310, 4
        %v3312 = vmax.f32 %v3310, %v3311
        %v3313 = vrot.slane %v3312, 2
        %v3314 = vmax.f32 %v3312, %v3313
        %v3315 = vrot.slane %v3314, 1
        %v3316 = vmax.f32 %v3314, %v3315
        %v3317 = vmax.f32 %v2528, %v2531
        %v3318 = vrot.slane %v3317, 4
        %v3319 = vmax.f32 %v3317, %v3318
        %v3320 = vrot.slane %v3319, 2
        %v3321 = vmax.f32 %v3319, %v3320
        %v3322 = vrot.slane %v3321, 1
        %v3323 = vmax.f32 %v3321, %v3322
        %v3324 = vmax.f32 %v2534, %v2537
        %v3325 = vrot.slane %v3324, 4
        %v3326 = vmax.f32 %v3324, %v3325
        %v3327 = vrot.slane %v3326, 2
        %v3328 = vmax.f32 %v3326, %v3327
        %v3329 = vrot.slane %v3328, 1
        %v3330 = vmax.f32 %v3328, %v3329
        %v3331 = vmax.f32 %v2540, %v2543
        %v3332 = vrot.slane %v3331, 4
        %v3333 = vmax.f32 %v3331, %v3332
        %v3334 = vrot.slane %v3333, 2
        %v3335 = vmax.f32 %v3333, %v3334
        %v3336 = vrot.slane %v3335, 1
        %v3337 = vmax.f32 %v3335, %v3336
        %v3338 = vmax.f32 %v2546, %v2549
        %v3339 = vrot.slane %v3338, 4
        %v3340 = vmax.f32 %v3338, %v3339
        %v3341 = vrot.slane %v3340, 2
        %v3342 = vmax.f32 %v3340, %v3341
        %v3343 = vrot.slane %v3342, 1
        %v3344 = vmax.f32 %v3342, %v3343
        %v3345 = vmax.f32 %v2552, %v2555
        %v3346 = vrot.slane %v3345, 4
        %v3347 = vmax.f32 %v3345, %v3346
        %v3348 = vrot.slane %v3347, 2
        %v3349 = vmax.f32 %v3347, %v3348
        %v3350 = vrot.slane %v3349, 1
        %v3351 = vmax.f32 %v3349, %v3350
        %v3352 = vmax.f32 %v2558, %v2561
        %v3353 = vrot.slane %v3352, 4
        %v3354 = vmax.f32 %v3352, %v3353
        %v3355 = vrot.slane %v3354, 2
        %v3356 = vmax.f32 %v3354, %v3355
        %v3357 = vrot.slane %v3356, 1
        %v3358 = vmax.f32 %v3356, %v3357
        %v3359 = vmax.f32 %v2564, %v2567
        %v3360 = vrot.slane %v3359, 4
        %v3361 = vmax.f32 %v3359, %v3360
        %v3362 = vrot.slane %v3361, 2
        %v3363 = vmax.f32 %v3361, %v3362
        %v3364 = vrot.slane %v3363, 1
        %v3365 = vmax.f32 %v3363, %v3364
        %v3366 = vmax.f32 %v2570, %v2573
        %v3367 = vrot.slane %v3366, 4
        %v3368 = vmax.f32 %v3366, %v3367
        %v3369 = vrot.slane %v3368, 2
        %v3370 = vmax.f32 %v3368, %v3369
        %v3371 = vrot.slane %v3370, 1
        %v3372 = vmax.f32 %v3370, %v3371
        %v3373 = vmax.f32 %v2576, %v2579
        %v3374 = vrot.slane %v3373, 4
        %v3375 = vmax.f32 %v3373, %v3374
        %v3376 = vrot.slane %v3375, 2
        %v3377 = vmax.f32 %v3375, %v3376
        %v3378 = vrot.slane %v3377, 1
        %v3379 = vmax.f32 %v3377, %v3378
        %v3380 = vmax.f32 %v2582, %v2585
        %v3381 = vrot.slane %v3380, 4
        %v3382 = vmax.f32 %v3380, %v3381
        %v3383 = vrot.slane %v3382, 2
        %v3384 = vmax.f32 %v3382, %v3383
        %v3385 = vrot.slane %v3384, 1
        %v3386 = vmax.f32 %v3384, %v3385
        %v3387 = vmax.f32 %v2588, %v2591
        %v3388 = vrot.slane %v3387, 4
        %v3389 = vmax.f32 %v3387, %v3388
        %v3390 = vrot.slane %v3389, 2
        %v3391 = vmax.f32 %v3389, %v3390
        %v3392 = vrot.slane %v3391, 1
        %v3393 = vmax.f32 %v3391, %v3392
        %v3394 = vmax.f32 %v2594, %v2597
        %v3395 = vrot.slane %v3394, 4
        %v3396 = vmax.f32 %v3394, %v3395
        %v3397 = vrot.slane %v3396, 2
        %v3398 = vmax.f32 %v3396, %v3397
        %v3399 = vrot.slane %v3398, 1
        %v3400 = vmax.f32 %v3398, %v3399
        %v3401 = vmax.f32 %v2600, %v2603
        %v3402 = vrot.slane %v3401, 4
        %v3403 = vmax.f32 %v3401, %v3402
        %v3404 = vrot.slane %v3403, 2
        %v3405 = vmax.f32 %v3403, %v3404
        %v3406 = vrot.slane %v3405, 1
        %v3407 = vmax.f32 %v3405, %v3406
        %v3408 = vmax.f32 %v2606, %v2609
        %v3409 = vrot.slane %v3408, 4
        %v3410 = vmax.f32 %v3408, %v3409
        %v3411 = vrot.slane %v3410, 2
        %v3412 = vmax.f32 %v3410, %v3411
        %v3413 = vrot.slane %v3412, 1
        %v3414 = vmax.f32 %v3412, %v3413
        %v3415 = vmax.f32 %v2612, %v2615
        %v3416 = vrot.slane %v3415, 4
        %v3417 = vmax.f32 %v3415, %v3416
        %v3418 = vrot.slane %v3417, 2
        %v3419 = vmax.f32 %v3417, %v3418
        %v3420 = vrot.slane %v3419, 1
        %v3421 = vmax.f32 %v3419, %v3420
        %v3422 = vmax.f32 %v2618, %v2621
        %v3423 = vrot.slane %v3422, 4
        %v3424 = vmax.f32 %v3422, %v3423
        %v3425 = vrot.slane %v3424, 2
        %v3426 = vmax.f32 %v3424, %v3425
        %v3427 = vrot.slane %v3426, 1
        %v3428 = vmax.f32 %v3426, %v3427
        %v3429 = vmax.f32 %v2624, %v2627
        %v3430 = vrot.slane %v3429, 4
        %v3431 = vmax.f32 %v3429, %v3430
        %v3432 = vrot.slane %v3431, 2
        %v3433 = vmax.f32 %v3431, %v3432
        %v3434 = vrot.slane %v3433, 1
        %v3435 = vmax.f32 %v3433, %v3434
        %v3436 = vmax.f32 %v2630, %v2633
        %v3437 = vrot.slane %v3436, 4
        %v3438 = vmax.f32 %v3436, %v3437
        %v3439 = vrot.slane %v3438, 2
        %v3440 = vmax.f32 %v3438, %v3439
        %v3441 = vrot.slane %v3440, 1
        %v3442 = vmax.f32 %v3440, %v3441
        %v3443 = vmax.f32 %v2636, %v2639
        %v3444 = vrot.slane %v3443, 4
        %v3445 = vmax.f32 %v3443, %v3444
        %v3446 = vrot.slane %v3445, 2
        %v3447 = vmax.f32 %v3445, %v3446
        %v3448 = vrot.slane %v3447, 1
        %v3449 = vmax.f32 %v3447, %v3448
        %v3450 = vmax.f32 %v2642, %v2645
        %v3451 = vrot.slane %v3450, 4
        %v3452 = vmax.f32 %v3450, %v3451
        %v3453 = vrot.slane %v3452, 2
        %v3454 = vmax.f32 %v3452, %v3453
        %v3455 = vrot.slane %v3454, 1
        %v3456 = vmax.f32 %v3454, %v3455
        %v3457 = vmax.f32 %v2648, %v2651
        %v3458 = vrot.slane %v3457, 4
        %v3459 = vmax.f32 %v3457, %v3458
        %v3460 = vrot.slane %v3459, 2
        %v3461 = vmax.f32 %v3459, %v3460
        %v3462 = vrot.slane %v3461, 1
        %v3463 = vmax.f32 %v3461, %v3462
        %v3464 = vmax.f32 %v2654, %v2657
        %v3465 = vrot.slane %v3464, 4
        %v3466 = vmax.f32 %v3464, %v3465
        %v3467 = vrot.slane %v3466, 2
        %v3468 = vmax.f32 %v3466, %v3467
        %v3469 = vrot.slane %v3468, 1
        %v3470 = vmax.f32 %v3468, %v3469
        %v3471 = vmax.f32 %v2660, %v2663
        %v3472 = vrot.slane %v3471, 4
        %v3473 = vmax.f32 %v3471, %v3472
        %v3474 = vrot.slane %v3473, 2
        %v3475 = vmax.f32 %v3473, %v3474
        %v3476 = vrot.slane %v3475, 1
        %v3477 = vmax.f32 %v3475, %v3476
        %v3478 = vmax.f32 %v2666, %v2669
        %v3479 = vrot.slane %v3478, 4
        %v3480 = vmax.f32 %v3478, %v3479
        %v3481 = vrot.slane %v3480, 2
        %v3482 = vmax.f32 %v3480, %v3481
        %v3483 = vrot.slane %v3482, 1
        %v3484 = vmax.f32 %v3482, %v3483
        %v3485 = vmax.f32 %v2672, %v2675
        %v3486 = vrot.slane %v3485, 4
        %v3487 = vmax.f32 %v3485, %v3486
        %v3488 = vrot.slane %v3487, 2
        %v3489 = vmax.f32 %v3487, %v3488
        %v3490 = vrot.slane %v3489, 1
        %v3491 = vmax.f32 %v3489, %v3490
        %v3492 = vmax.f32 %v2678, %v2681
        %v3493 = vrot.slane %v3492, 4
        %v3494 = vmax.f32 %v3492, %v3493
        %v3495 = vrot.slane %v3494, 2
        %v3496 = vmax.f32 %v3494, %v3495
        %v3497 = vrot.slane %v3496, 1
        %v3498 = vmax.f32 %v3496, %v3497
        %v3499 = vmax.f32 %v2684, %v2687
        %v3500 = vrot.slane %v3499, 4
        %v3501 = vmax.f32 %v3499, %v3500
        %v3502 = vrot.slane %v3501, 2
        %v3503 = vmax.f32 %v3501, %v3502
        %v3504 = vrot.slane %v3503, 1
        %v3505 = vmax.f32 %v3503, %v3504
        %v3506 = vmax.f32 %v2690, %v2693
        %v3507 = vrot.slane %v3506, 4
        %v3508 = vmax.f32 %v3506, %v3507
        %v3509 = vrot.slane %v3508, 2
        %v3510 = vmax.f32 %v3508, %v3509
        %v3511 = vrot.slane %v3510, 1
        %v3512 = vmax.f32 %v3510, %v3511
        %v3513 = vmax.f32 %v2696, %v2699
        %v3514 = vrot.slane %v3513, 4
        %v3515 = vmax.f32 %v3513, %v3514
        %v3516 = vrot.slane %v3515, 2
        %v3517 = vmax.f32 %v3515, %v3516
        %v3518 = vrot.slane %v3517, 1
        %v3519 = vmax.f32 %v3517, %v3518
        %v3520 = vmax.f32 %v2702, %v2705
        %v3521 = vrot.slane %v3520, 4
        %v3522 = vmax.f32 %v3520, %v3521
        %v3523 = vrot.slane %v3522, 2
        %v3524 = vmax.f32 %v3522, %v3523
        %v3525 = vrot.slane %v3524, 1
        %v3526 = vmax.f32 %v3524, %v3525
        %v3527 = vmax.f32 %v2708, %v2711
        %v3528 = vrot.slane %v3527, 4
        %v3529 = vmax.f32 %v3527, %v3528
        %v3530 = vrot.slane %v3529, 2
        %v3531 = vmax.f32 %v3529, %v3530
        %v3532 = vrot.slane %v3531, 1
        %v3533 = vmax.f32 %v3531, %v3532
        %v3534 = vmax.f32 %v2714, %v2717
        %v3535 = vrot.slane %v3534, 4
        %v3536 = vmax.f32 %v3534, %v3535
        %v3537 = vrot.slane %v3536, 2
        %v3538 = vmax.f32 %v3536, %v3537
        %v3539 = vrot.slane %v3538, 1
        %v3540 = vmax.f32 %v3538, %v3539
        %v3541 = vmax.f32 %v2720, %v2723
        %v3542 = vrot.slane %v3541, 4
        %v3543 = vmax.f32 %v3541, %v3542
        %v3544 = vrot.slane %v3543, 2
        %v3545 = vmax.f32 %v3543, %v3544
        %v3546 = vrot.slane %v3545, 1
        %v3547 = vmax.f32 %v3545, %v3546
        %v3548 = vmax.f32 %v2726, %v2729
        %v3549 = vrot.slane %v3548, 4
        %v3550 = vmax.f32 %v3548, %v3549
        %v3551 = vrot.slane %v3550, 2
        %v3552 = vmax.f32 %v3550, %v3551
        %v3553 = vrot.slane %v3552, 1
        %v3554 = vmax.f32 %v3552, %v3553
        %v3555 = vmax.f32 %v2732, %v2735
        %v3556 = vrot.slane %v3555, 4
        %v3557 = vmax.f32 %v3555, %v3556
        %v3558 = vrot.slane %v3557, 2
        %v3559 = vmax.f32 %v3557, %v3558
        %v3560 = vrot.slane %v3559, 1
        %v3561 = vmax.f32 %v3559, %v3560
        %v3562 = vmax.f32 %v2738, %v2741
        %v3563 = vrot.slane %v3562, 4
        %v3564 = vmax.f32 %v3562, %v3563
        %v3565 = vrot.slane %v3564, 2
        %v3566 = vmax.f32 %v3564, %v3565
        %v3567 = vrot.slane %v3566, 1
        %v3568 = vmax.f32 %v3566, %v3567
        %v3569 = vmax.f32 %v2744, %v2747
        %v3570 = vrot.slane %v3569, 4
        %v3571 = vmax.f32 %v3569, %v3570
        %v3572 = vrot.slane %v3571, 2
        %v3573 = vmax.f32 %v3571, %v3572
        %v3574 = vrot.slane %v3573, 1
        %v3575 = vmax.f32 %v3573, %v3574
        %v3576 = vmax.f32 %v2750, %v2753
        %v3577 = vrot.slane %v3576, 4
        %v3578 = vmax.f32 %v3576, %v3577
        %v3579 = vrot.slane %v3578, 2
        %v3580 = vmax.f32 %v3578, %v3579
        %v3581 = vrot.slane %v3580, 1
        %v3582 = vmax.f32 %v3580, %v3581
        %v3583 = vmax.f32 %v2756, %v2759
        %v3584 = vrot.slane %v3583, 4
        %v3585 = vmax.f32 %v3583, %v3584
        %v3586 = vrot.slane %v3585, 2
        %v3587 = vmax.f32 %v3585, %v3586
        %v3588 = vrot.slane %v3587, 1
        %v3589 = vmax.f32 %v3587, %v3588
        %v3590 = vmax.f32 %v2762, %v2765
        %v3591 = vrot.slane %v3590, 4
        %v3592 = vmax.f32 %v3590, %v3591
        %v3593 = vrot.slane %v3592, 2
        %v3594 = vmax.f32 %v3592, %v3593
        %v3595 = vrot.slane %v3594, 1
        %v3596 = vmax.f32 %v3594, %v3595
        %v3597 = vmax.f32 %v2768, %v2771
        %v3598 = vrot.slane %v3597, 4
        %v3599 = vmax.f32 %v3597, %v3598
        %v3600 = vrot.slane %v3599, 2
        %v3601 = vmax.f32 %v3599, %v3600
        %v3602 = vrot.slane %v3601, 1
        %v3603 = vmax.f32 %v3601, %v3602
        %v3604 = vmax.f32 %v2774, %v2777
        %v3605 = vrot.slane %v3604, 4
        %v3606 = vmax.f32 %v3604, %v3605
        %v3607 = vrot.slane %v3606, 2
        %v3608 = vmax.f32 %v3606, %v3607
        %v3609 = vrot.slane %v3608, 1
        %v3610 = vmax.f32 %v3608, %v3609
        %v3611 = vmax.f32 %v2780, %v2783
        %v3612 = vrot.slane %v3611, 4
        %v3613 = vmax.f32 %v3611, %v3612
        %v3614 = vrot.slane %v3613, 2
        %v3615 = vmax.f32 %v3613, %v3614
        %v3616 = vrot.slane %v3615, 1
        %v3617 = vmax.f32 %v3615, %v3616
        %v3618 = vmax.f32 %v2786, %v2789
        %v3619 = vrot.slane %v3618, 4
        %v3620 = vmax.f32 %v3618, %v3619
        %v3621 = vrot.slane %v3620, 2
        %v3622 = vmax.f32 %v3620, %v3621
        %v3623 = vrot.slane %v3622, 1
        %v3624 = vmax.f32 %v3622, %v3623
        %v3625 = vmax.f32 %v2792, %v2795
        %v3626 = vrot.slane %v3625, 4
        %v3627 = vmax.f32 %v3625, %v3626
        %v3628 = vrot.slane %v3627, 2
        %v3629 = vmax.f32 %v3627, %v3628
        %v3630 = vrot.slane %v3629, 1
        %v3631 = vmax.f32 %v3629, %v3630
        %v3632 = vmax.f32 %v2798, %v2801
        %v3633 = vrot.slane %v3632, 4
        %v3634 = vmax.f32 %v3632, %v3633
        %v3635 = vrot.slane %v3634, 2
        %v3636 = vmax.f32 %v3634, %v3635
        %v3637 = vrot.slane %v3636, 1
        %v3638 = vmax.f32 %v3636, %v3637
        %v3639 = vmax.f32 %v2804, %v2807
        %v3640 = vrot.slane %v3639, 4
        %v3641 = vmax.f32 %v3639, %v3640
        %v3642 = vrot.slane %v3641, 2
        %v3643 = vmax.f32 %v3641, %v3642
        %v3644 = vrot.slane %v3643, 1
        %v3645 = vmax.f32 %v3643, %v3644
        %v3646 = vmax.f32 %v2810, %v2813
        %v3647 = vrot.slane %v3646, 4
        %v3648 = vmax.f32 %v3646, %v3647
        %v3649 = vrot.slane %v3648, 2
        %v3650 = vmax.f32 %v3648, %v3649
        %v3651 = vrot.slane %v3650, 1
        %v3652 = vmax.f32 %v3650, %v3651
        %v3653 = vmax.f32 %v2816, %v2819
        %v3654 = vrot.slane %v3653, 4
        %v3655 = vmax.f32 %v3653, %v3654
        %v3656 = vrot.slane %v3655, 2
        %v3657 = vmax.f32 %v3655, %v3656
        %v3658 = vrot.slane %v3657, 1
        %v3659 = vmax.f32 %v3657, %v3658
        %v3660 = vmax.f32 %v2822, %v2825
        %v3661 = vrot.slane %v3660, 4
        %v3662 = vmax.f32 %v3660, %v3661
        %v3663 = vrot.slane %v3662, 2
        %v3664 = vmax.f32 %v3662, %v3663
        %v3665 = vrot.slane %v3664, 1
        %v3666 = vmax.f32 %v3664, %v3665
        %v3667 = vmax.f32 %v2828, %v2831
        %v3668 = vrot.slane %v3667, 4
        %v3669 = vmax.f32 %v3667, %v3668
        %v3670 = vrot.slane %v3669, 2
        %v3671 = vmax.f32 %v3669, %v3670
        %v3672 = vrot.slane %v3671, 1
        %v3673 = vmax.f32 %v3671, %v3672
        %v3674 = vmax.f32 %v2834, %v2837
        %v3675 = vrot.slane %v3674, 4
        %v3676 = vmax.f32 %v3674, %v3675
        %v3677 = vrot.slane %v3676, 2
        %v3678 = vmax.f32 %v3676, %v3677
        %v3679 = vrot.slane %v3678, 1
        %v3680 = vmax.f32 %v3678, %v3679
        %v3681 = vmax.f32 %v2840, %v2843
        %v3682 = vrot.slane %v3681, 4
        %v3683 = vmax.f32 %v3681, %v3682
        %v3684 = vrot.slane %v3683, 2
        %v3685 = vmax.f32 %v3683, %v3684
        %v3686 = vrot.slane %v3685, 1
        %v3687 = vmax.f32 %v3685, %v3686
        %v3688 = vmax.f32 %v2846, %v2849
        %v3689 = vrot.slane %v3688, 4
        %v3690 = vmax.f32 %v3688, %v3689
        %v3691 = vrot.slane %v3690, 2
        %v3692 = vmax.f32 %v3690, %v3691
        %v3693 = vrot.slane %v3692, 1
        %v3694 = vmax.f32 %v3692, %v3693
        %v3695 = vmax.f32 %v2852, %v2855
        %v3696 = vrot.slane %v3695, 4
        %v3697 = vmax.f32 %v3695, %v3696
        %v3698 = vrot.slane %v3697, 2
        %v3699 = vmax.f32 %v3697, %v3698
        %v3700 = vrot.slane %v3699, 1
        %v3701 = vmax.f32 %v3699, %v3700
        %v3702 = vmax.f32 %v2858, %v2861
        %v3703 = vrot.slane %v3702, 4
        %v3704 = vmax.f32 %v3702, %v3703
        %v3705 = vrot.slane %v3704, 2
        %v3706 = vmax.f32 %v3704, %v3705
        %v3707 = vrot.slane %v3706, 1
        %v3708 = vmax.f32 %v3706, %v3707
        %v3709 = vmax.f32 %v2864, %v2867
        %v3710 = vrot.slane %v3709, 4
        %v3711 = vmax.f32 %v3709, %v3710
        %v3712 = vrot.slane %v3711, 2
        %v3713 = vmax.f32 %v3711, %v3712
        %v3714 = vrot.slane %v3713, 1
        %v3715 = vmax.f32 %v3713, %v3714
        %v3716 = vmax.f32 %v2870, %v2873
        %v3717 = vrot.slane %v3716, 4
        %v3718 = vmax.f32 %v3716, %v3717
        %v3719 = vrot.slane %v3718, 2
        %v3720 = vmax.f32 %v3718, %v3719
        %v3721 = vrot.slane %v3720, 1
        %v3722 = vmax.f32 %v3720, %v3721
        %v3723 = vmax.f32 %v2876, %v2879
        %v3724 = vrot.slane %v3723, 4
        %v3725 = vmax.f32 %v3723, %v3724
        %v3726 = vrot.slane %v3725, 2
        %v3727 = vmax.f32 %v3725, %v3726
        %v3728 = vrot.slane %v3727, 1
        %v3729 = vmax.f32 %v3727, %v3728
        %v3730 = vmax.f32 %v2882, %v2885
        %v3731 = vrot.slane %v3730, 4
        %v3732 = vmax.f32 %v3730, %v3731
        %v3733 = vrot.slane %v3732, 2
        %v3734 = vmax.f32 %v3732, %v3733
        %v3735 = vrot.slane %v3734, 1
        %v3736 = vmax.f32 %v3734, %v3735
        %v3737 = vmax.f32 %v2888, %v2891
        %v3738 = vrot.slane %v3737, 4
        %v3739 = vmax.f32 %v3737, %v3738
        %v3740 = vrot.slane %v3739, 2
        %v3741 = vmax.f32 %v3739, %v3740
        %v3742 = vrot.slane %v3741, 1
        %v3743 = vmax.f32 %v3741, %v3742
        %v3744 = vmax.f32 %v2894, %v2897
        %v3745 = vrot.slane %v3744, 4
        %v3746 = vmax.f32 %v3744, %v3745
        %v3747 = vrot.slane %v3746, 2
        %v3748 = vmax.f32 %v3746, %v3747
        %v3749 = vrot.slane %v3748, 1
        %v3750 = vmax.f32 %v3748, %v3749
        %v3751 = vmax.f32 %v2900, %v2903
        %v3752 = vrot.slane %v3751, 4
        %v3753 = vmax.f32 %v3751, %v3752
        %v3754 = vrot.slane %v3753, 2
        %v3755 = vmax.f32 %v3753, %v3754
        %v3756 = vrot.slane %v3755, 1
        %v3757 = vmax.f32 %v3755, %v3756
        %v3758 = vmax.f32 %v2906, %v2909
        %v3759 = vrot.slane %v3758, 4
        %v3760 = vmax.f32 %v3758, %v3759
        %v3761 = vrot.slane %v3760, 2
        %v3762 = vmax.f32 %v3760, %v3761
        %v3763 = vrot.slane %v3762, 1
        %v3764 = vmax.f32 %v3762, %v3763
        %v3765 = vmax.f32 %v2912, %v2915
        %v3766 = vrot.slane %v3765, 4
        %v3767 = vmax.f32 %v3765, %v3766
        %v3768 = vrot.slane %v3767, 2
        %v3769 = vmax.f32 %v3767, %v3768
        %v3770 = vrot.slane %v3769, 1
        %v3771 = vmax.f32 %v3769, %v3770
        %v3772 = vmax.f32 %v2918, %v2921
        %v3773 = vrot.slane %v3772, 4
        %v3774 = vmax.f32 %v3772, %v3773
        %v3775 = vrot.slane %v3774, 2
        %v3776 = vmax.f32 %v3774, %v3775
        %v3777 = vrot.slane %v3776, 1
        %v3778 = vmax.f32 %v3776, %v3777
        %v3779 = vmax.f32 %v2924, %v2927
        %v3780 = vrot.slane %v3779, 4
        %v3781 = vmax.f32 %v3779, %v3780
        %v3782 = vrot.slane %v3781, 2
        %v3783 = vmax.f32 %v3781, %v3782
        %v3784 = vrot.slane %v3783, 1
        %v3785 = vmax.f32 %v3783, %v3784
        %v3786 = vmax.f32 %v2930, %v2933
        %v3787 = vrot.slane %v3786, 4
        %v3788 = vmax.f32 %v3786, %v3787
        %v3789 = vrot.slane %v3788, 2
        %v3790 = vmax.f32 %v3788, %v3789
        %v3791 = vrot.slane %v3790, 1
        %v3792 = vmax.f32 %v3790, %v3791
        %v3793 = vmax.f32 %v2936, %v2939
        %v3794 = vrot.slane %v3793, 4
        %v3795 = vmax.f32 %v3793, %v3794
        %v3796 = vrot.slane %v3795, 2
        %v3797 = vmax.f32 %v3795, %v3796
        %v3798 = vrot.slane %v3797, 1
        %v3799 = vmax.f32 %v3797, %v3798
        %v3800 = vmax.f32 %v2942, %v2945
        %v3801 = vrot.slane %v3800, 4
        %v3802 = vmax.f32 %v3800, %v3801
        %v3803 = vrot.slane %v3802, 2
        %v3804 = vmax.f32 %v3802, %v3803
        %v3805 = vrot.slane %v3804, 1
        %v3806 = vmax.f32 %v3804, %v3805
        %v3807 = vmax.f32 %v2948, %v2951
        %v3808 = vrot.slane %v3807, 4
        %v3809 = vmax.f32 %v3807, %v3808
        %v3810 = vrot.slane %v3809, 2
        %v3811 = vmax.f32 %v3809, %v3810
        %v3812 = vrot.slane %v3811, 1
        %v3813 = vmax.f32 %v3811, %v3812
        %v3814 = vmax.f32 %v2954, %v2957
        %v3815 = vrot.slane %v3814, 4
        %v3816 = vmax.f32 %v3814, %v3815
        %v3817 = vrot.slane %v3816, 2
        %v3818 = vmax.f32 %v3816, %v3817
        %v3819 = vrot.slane %v3818, 1
        %v3820 = vmax.f32 %v3818, %v3819
        %v3821 = vmax.f32 %v2960, %v2963
        %v3822 = vrot.slane %v3821, 4
        %v3823 = vmax.f32 %v3821, %v3822
        %v3824 = vrot.slane %v3823, 2
        %v3825 = vmax.f32 %v3823, %v3824
        %v3826 = vrot.slane %v3825, 1
        %v3827 = vmax.f32 %v3825, %v3826
        %v3828 = vmax.f32 %v2966, %v2969
        %v3829 = vrot.slane %v3828, 4
        %v3830 = vmax.f32 %v3828, %v3829
        %v3831 = vrot.slane %v3830, 2
        %v3832 = vmax.f32 %v3830, %v3831
        %v3833 = vrot.slane %v3832, 1
        %v3834 = vmax.f32 %v3832, %v3833
        %v3835 = vmax.f32 %v2972, %v2975
        %v3836 = vrot.slane %v3835, 4
        %v3837 = vmax.f32 %v3835, %v3836
        %v3838 = vrot.slane %v3837, 2
        %v3839 = vmax.f32 %v3837, %v3838
        %v3840 = vrot.slane %v3839, 1
        %v3841 = vmax.f32 %v3839, %v3840
        %v3842 = vmax.f32 %v2978, %v2981
        %v3843 = vrot.slane %v3842, 4
        %v3844 = vmax.f32 %v3842, %v3843
        %v3845 = vrot.slane %v3844, 2
        %v3846 = vmax.f32 %v3844, %v3845
        %v3847 = vrot.slane %v3846, 1
        %v3848 = vmax.f32 %v3846, %v3847
        %v3849 = vmax.f32 %v2984, %v2987
        %v3850 = vrot.slane %v3849, 4
        %v3851 = vmax.f32 %v3849, %v3850
        %v3852 = vrot.slane %v3851, 2
        %v3853 = vmax.f32 %v3851, %v3852
        %v3854 = vrot.slane %v3853, 1
        %v3855 = vmax.f32 %v3853, %v3854
        %v3856 = vmax.f32 %v2990, %v2993
        %v3857 = vrot.slane %v3856, 4
        %v3858 = vmax.f32 %v3856, %v3857
        %v3859 = vrot.slane %v3858, 2
        %v3860 = vmax.f32 %v3858, %v3859
        %v3861 = vrot.slane %v3860, 1
        %v3862 = vmax.f32 %v3860, %v3861
        %v3863 = vmax.f32 %v2996, %v2999
        %v3864 = vrot.slane %v3863, 4
        %v3865 = vmax.f32 %v3863, %v3864
        %v3866 = vrot.slane %v3865, 2
        %v3867 = vmax.f32 %v3865, %v3866
        %v3868 = vrot.slane %v3867, 1
        %v3869 = vmax.f32 %v3867, %v3868
        %v3870 = vmax.f32 %v3002, %v3005
        %v3871 = vrot.slane %v3870, 4
        %v3872 = vmax.f32 %v3870, %v3871
        %v3873 = vrot.slane %v3872, 2
        %v3874 = vmax.f32 %v3872, %v3873
        %v3875 = vrot.slane %v3874, 1
        %v3876 = vmax.f32 %v3874, %v3875
        %v3877 = vmax.f32 %v3008, %v3011
        %v3878 = vrot.slane %v3877, 4
        %v3879 = vmax.f32 %v3877, %v3878
        %v3880 = vrot.slane %v3879, 2
        %v3881 = vmax.f32 %v3879, %v3880
        %v3882 = vrot.slane %v3881, 1
        %v3883 = vmax.f32 %v3881, %v3882
        %v3884 = vmax.f32 %v3014, %v3017
        %v3885 = vrot.slane %v3884, 4
        %v3886 = vmax.f32 %v3884, %v3885
        %v3887 = vrot.slane %v3886, 2
        %v3888 = vmax.f32 %v3886, %v3887
        %v3889 = vrot.slane %v3888, 1
        %v3890 = vmax.f32 %v3888, %v3889
        %v3891 = vmax.f32 %v3020, %v3023
        %v3892 = vrot.slane %v3891, 4
        %v3893 = vmax.f32 %v3891, %v3892
        %v3894 = vrot.slane %v3893, 2
        %v3895 = vmax.f32 %v3893, %v3894
        %v3896 = vrot.slane %v3895, 1
        %v3897 = vmax.f32 %v3895, %v3896
        %v3898 = vmax.f32 %v3026, %v3029
        %v3899 = vrot.slane %v3898, 4
        %v3900 = vmax.f32 %v3898, %v3899
        %v3901 = vrot.slane %v3900, 2
        %v3902 = vmax.f32 %v3900, %v3901
        %v3903 = vrot.slane %v3902, 1
        %v3904 = vmax.f32 %v3902, %v3903
        %v3905 = vmax.f32 %v3032, %v3035
        %v3906 = vrot.slane %v3905, 4
        %v3907 = vmax.f32 %v3905, %v3906
        %v3908 = vrot.slane %v3907, 2
        %v3909 = vmax.f32 %v3907, %v3908
        %v3910 = vrot.slane %v3909, 1
        %v3911 = vmax.f32 %v3909, %v3910
        %v3912 = vmax.f32 %v3038, %v3041
        %v3913 = vrot.slane %v3912, 4
        %v3914 = vmax.f32 %v3912, %v3913
        %v3915 = vrot.slane %v3914, 2
        %v3916 = vmax.f32 %v3914, %v3915
        %v3917 = vrot.slane %v3916, 1
        %v3918 = vmax.f32 %v3916, %v3917
        %v3919 = vmax.f32 %v3044, %v3047
        %v3920 = vrot.slane %v3919, 4
        %v3921 = vmax.f32 %v3919, %v3920
        %v3922 = vrot.slane %v3921, 2
        %v3923 = vmax.f32 %v3921, %v3922
        %v3924 = vrot.slane %v3923, 1
        %v3925 = vmax.f32 %v3923, %v3924
        %v3926 = vmax.f32 %v3050, %v3053
        %v3927 = vrot.slane %v3926, 4
        %v3928 = vmax.f32 %v3926, %v3927
        %v3929 = vrot.slane %v3928, 2
        %v3930 = vmax.f32 %v3928, %v3929
        %v3931 = vrot.slane %v3930, 1
        %v3932 = vmax.f32 %v3930, %v3931
        %v3933 = vmax.f32 %v3056, %v3059
        %v3934 = vrot.slane %v3933, 4
        %v3935 = vmax.f32 %v3933, %v3934
        %v3936 = vrot.slane %v3935, 2
        %v3937 = vmax.f32 %v3935, %v3936
        %v3938 = vrot.slane %v3937, 1
        %v3939 = vmax.f32 %v3937, %v3938
        %v3940 = vmax.f32 %v3062, %v3065
        %v3941 = vrot.slane %v3940, 4
        %v3942 = vmax.f32 %v3940, %v3941
        %v3943 = vrot.slane %v3942, 2
        %v3944 = vmax.f32 %v3942, %v3943
        %v3945 = vrot.slane %v3944, 1
        %v3946 = vmax.f32 %v3944, %v3945
        %v3947 = vmax.f32 %v3068, %v3071
        %v3948 = vrot.slane %v3947, 4
        %v3949 = vmax.f32 %v3947, %v3948
        %v3950 = vrot.slane %v3949, 2
        %v3951 = vmax.f32 %v3949, %v3950
        %v3952 = vrot.slane %v3951, 1
        %v3953 = vmax.f32 %v3951, %v3952
        %v3954 = vmax.f32 %v3074, %v3077
        %v3955 = vrot.slane %v3954, 4
        %v3956 = vmax.f32 %v3954, %v3955
        %v3957 = vrot.slane %v3956, 2
        %v3958 = vmax.f32 %v3956, %v3957
        %v3959 = vrot.slane %v3958, 1
        %v3960 = vmax.f32 %v3958, %v3959
        %v3961 = vmax.f32 %v3080, %v3083
        %v3962 = vrot.slane %v3961, 4
        %v3963 = vmax.f32 %v3961, %v3962
        %v3964 = vrot.slane %v3963, 2
        %v3965 = vmax.f32 %v3963, %v3964
        %v3966 = vrot.slane %v3965, 1
        %v3967 = vmax.f32 %v3965, %v3966
        %v3968 = vmax.f32 %v3086, %v3089
        %v3969 = vrot.slane %v3968, 4
        %v3970 = vmax.f32 %v3968, %v3969
        %v3971 = vrot.slane %v3970, 2
        %v3972 = vmax.f32 %v3970, %v3971
        %v3973 = vrot.slane %v3972, 1
        %v3974 = vmax.f32 %v3972, %v3973
        %v3975 = vmax.f32 %v3092, %v3095
        %v3976 = vrot.slane %v3975, 4
        %v3977 = vmax.f32 %v3975, %v3976
        %v3978 = vrot.slane %v3977, 2
        %v3979 = vmax.f32 %v3977, %v3978
        %v3980 = vrot.slane %v3979, 1
        %v3981 = vmax.f32 %v3979, %v3980
        %v3982 = vmax.f32 %v3098, %v3101
        %v3983 = vrot.slane %v3982, 4
        %v3984 = vmax.f32 %v3982, %v3983
        %v3985 = vrot.slane %v3984, 2
        %v3986 = vmax.f32 %v3984, %v3985
        %v3987 = vrot.slane %v3986, 1
        %v3988 = vmax.f32 %v3986, %v3987
        %v3989 = vmax.f32 %v3104, %v3107
        %v3990 = vrot.slane %v3989, 4
        %v3991 = vmax.f32 %v3989, %v3990
        %v3992 = vrot.slane %v3991, 2
        %v3993 = vmax.f32 %v3991, %v3992
        %v3994 = vrot.slane %v3993, 1
        %v3995 = vmax.f32 %v3993, %v3994
        %v3996 = vmax.f32 %v3110, %v3113
        %v3997 = vrot.slane %v3996, 4
        %v3998 = vmax.f32 %v3996, %v3997
        %v3999 = vrot.slane %v3998, 2
        %v4000 = vmax.f32 %v3998, %v3999
        %v4001 = vrot.slane %v4000, 1
        %v4002 = vmax.f32 %v4000, %v4001
        %v4003 = vmax.f32 %v3116, %v3119
        %v4004 = vrot.slane %v4003, 4
        %v4005 = vmax.f32 %v4003, %v4004
        %v4006 = vrot.slane %v4005, 2
        %v4007 = vmax.f32 %v4005, %v4006
        %v4008 = vrot.slane %v4007, 1
        %v4009 = vmax.f32 %v4007, %v4008
        %v4010 = vmax.f32 %v3122, %v3125
        %v4011 = vrot.slane %v4010, 4
        %v4012 = vmax.f32 %v4010, %v4011
        %v4013 = vrot.slane %v4012, 2
        %v4014 = vmax.f32 %v4012, %v4013
        %v4015 = vrot.slane %v4014, 1
        %v4016 = vmax.f32 %v4014, %v4015
        %v4017 = vmax.f32 %v3128, %v3131
        %v4018 = vrot.slane %v4017, 4
        %v4019 = vmax.f32 %v4017, %v4018
        %v4020 = vrot.slane %v4019, 2
        %v4021 = vmax.f32 %v4019, %v4020
        %v4022 = vrot.slane %v4021, 1
        %v4023 = vmax.f32 %v4021, %v4022
        %v4024 = vmax.f32 %v3134, %v3137
        %v4025 = vrot.slane %v4024, 4
        %v4026 = vmax.f32 %v4024, %v4025
        %v4027 = vrot.slane %v4026, 2
        %v4028 = vmax.f32 %v4026, %v4027
        %v4029 = vrot.slane %v4028, 1
        %v4030 = vmax.f32 %v4028, %v4029
        %v4031 = vmax.f32 %v3140, %v3143
        %v4032 = vrot.slane %v4031, 4
        %v4033 = vmax.f32 %v4031, %v4032
        %v4034 = vrot.slane %v4033, 2
        %v4035 = vmax.f32 %v4033, %v4034
        %v4036 = vrot.slane %v4035, 1
        %v4037 = vmax.f32 %v4035, %v4036
        %v4038 = vmax.f32 %v3146, %v3149
        %v4039 = vrot.slane %v4038, 4
        %v4040 = vmax.f32 %v4038, %v4039
        %v4041 = vrot.slane %v4040, 2
        %v4042 = vmax.f32 %v4040, %v4041
        %v4043 = vrot.slane %v4042, 1
        %v4044 = vmax.f32 %v4042, %v4043
        %v4045 = vmax.f32 %v3152, %v3155
        %v4046 = vrot.slane %v4045, 4
        %v4047 = vmax.f32 %v4045, %v4046
        %v4048 = vrot.slane %v4047, 2
        %v4049 = vmax.f32 %v4047, %v4048
        %v4050 = vrot.slane %v4049, 1
        %v4051 = vmax.f32 %v4049, %v4050
        %v4052 = vsub.f32 %v2390, %v3162
        %v4053 = vsub.f32 %v2393, %v3162
        %v4054 = vsub.f32 %v2396, %v3169
        %v4055 = vsub.f32 %v2399, %v3169
        %v4056 = vsub.f32 %v2402, %v3176
        %v4057 = vsub.f32 %v2405, %v3176
        %v4058 = vsub.f32 %v2408, %v3183
        %v4059 = vsub.f32 %v2411, %v3183
        %v4060 = vsub.f32 %v2414, %v3190
        %v4061 = vsub.f32 %v2417, %v3190
        %v4062 = vsub.f32 %v2420, %v3197
        %v4063 = vsub.f32 %v2423, %v3197
        %v4064 = vsub.f32 %v2426, %v3204
        %v4065 = vsub.f32 %v2429, %v3204
        %v4066 = vsub.f32 %v2432, %v3211
        %v4067 = vsub.f32 %v2435, %v3211
        %v4068 = vsub.f32 %v2438, %v3218
        %v4069 = vsub.f32 %v2441, %v3218
        %v4070 = vsub.f32 %v2444, %v3225
        %v4071 = vsub.f32 %v2447, %v3225
        %v4072 = vsub.f32 %v2450, %v3232
        %v4073 = vsub.f32 %v2453, %v3232
        %v4074 = vsub.f32 %v2456, %v3239
        %v4075 = vsub.f32 %v2459, %v3239
        %v4076 = vsub.f32 %v2462, %v3246
        %v4077 = vsub.f32 %v2465, %v3246
        %v4078 = vsub.f32 %v2468, %v3253
        %v4079 = vsub.f32 %v2471, %v3253
        %v4080 = vsub.f32 %v2474, %v3260
        %v4081 = vsub.f32 %v2477, %v3260
        %v4082 = vsub.f32 %v2480, %v3267
        %v4083 = vsub.f32 %v2483, %v3267
        %v4084 = vsub.f32 %v2486, %v3274
        %v4085 = vsub.f32 %v2489, %v3274
        %v4086 = vsub.f32 %v2492, %v3281
        %v4087 = vsub.f32 %v2495, %v3281
        %v4088 = vsub.f32 %v2498, %v3288
        %v4089 = vsub.f32 %v2501, %v3288
        %v4090 = vsub.f32 %v2504, %v3295
        %v4091 = vsub.f32 %v2507, %v3295
        %v4092 = vsub.f32 %v2510, %v3302
        %v4093 = vsub.f32 %v2513, %v3302
        %v4094 = vsub.f32 %v2516, %v3309
        %v4095 = vsub.f32 %v2519, %v3309
        %v4096 = vsub.f32 %v2522, %v3316
        %v4097 = vsub.f32 %v2525, %v3316
        %v4098 = vsub.f32 %v2528, %v3323
        %v4099 = vsub.f32 %v2531, %v3323
        %v4100 = vsub.f32 %v2534, %v3330
        %v4101 = vsub.f32 %v2537, %v3330
        %v4102 = vsub.f32 %v2540, %v3337
        %v4103 = vsub.f32 %v2543, %v3337
        %v4104 = vsub.f32 %v2546, %v3344
        %v4105 = vsub.f32 %v2549, %v3344
        %v4106 = vsub.f32 %v2552, %v3351
        %v4107 = vsub.f32 %v2555, %v3351
        %v4108 = vsub.f32 %v2558, %v3358
        %v4109 = vsub.f32 %v2561, %v3358
        %v4110 = vsub.f32 %v2564, %v3365
        %v4111 = vsub.f32 %v2567, %v3365
        %v4112 = vsub.f32 %v2570, %v3372
        %v4113 = vsub.f32 %v2573, %v3372
        %v4114 = vsub.f32 %v2576, %v3379
        %v4115 = vsub.f32 %v2579, %v3379
        %v4116 = vsub.f32 %v2582, %v3386
        %v4117 = vsub.f32 %v2585, %v3386
        %v4118 = vsub.f32 %v2588, %v3393
        %v4119 = vsub.f32 %v2591, %v3393
        %v4120 = vsub.f32 %v2594, %v3400
        %v4121 = vsub.f32 %v2597, %v3400
        %v4122 = vsub.f32 %v2600, %v3407
        %v4123 = vsub.f32 %v2603, %v3407
        %v4124 = vsub.f32 %v2606, %v3414
        %v4125 = vsub.f32 %v2609, %v3414
        %v4126 = vsub.f32 %v2612, %v3421
        %v4127 = vsub.f32 %v2615, %v3421
        %v4128 = vsub.f32 %v2618, %v3428
        %v4129 = vsub.f32 %v2621, %v3428
        %v4130 = vsub.f32 %v2624, %v3435
        %v4131 = vsub.f32 %v2627, %v3435
        %v4132 = vsub.f32 %v2630, %v3442
        %v4133 = vsub.f32 %v2633, %v3442
        %v4134 = vsub.f32 %v2636, %v3449
        %v4135 = vsub.f32 %v2639, %v3449
        %v4136 = vsub.f32 %v2642, %v3456
        %v4137 = vsub.f32 %v2645, %v3456
        %v4138 = vsub.f32 %v2648, %v3463
        %v4139 = vsub.f32 %v2651, %v3463
        %v4140 = vsub.f32 %v2654, %v3470
        %v4141 = vsub.f32 %v2657, %v3470
        %v4142 = vsub.f32 %v2660, %v3477
        %v4143 = vsub.f32 %v2663, %v3477
        %v4144 = vsub.f32 %v2666, %v3484
        %v4145 = vsub.f32 %v2669, %v3484
        %v4146 = vsub.f32 %v2672, %v3491
        %v4147 = vsub.f32 %v2675, %v3491
        %v4148 = vsub.f32 %v2678, %v3498
        %v4149 = vsub.f32 %v2681, %v3498
        %v4150 = vsub.f32 %v2684, %v3505
        %v4151 = vsub.f32 %v2687, %v3505
        %v4152 = vsub.f32 %v2690, %v3512
        %v4153 = vsub.f32 %v2693, %v3512
        %v4154 = vsub.f32 %v2696, %v3519
        %v4155 = vsub.f32 %v2699, %v3519
        %v4156 = vsub.f32 %v2702, %v3526
        %v4157 = vsub.f32 %v2705, %v3526
        %v4158 = vsub.f32 %v2708, %v3533
        %v4159 = vsub.f32 %v2711, %v3533
        %v4160 = vsub.f32 %v2714, %v3540
        %v4161 = vsub.f32 %v2717, %v3540
        %v4162 = vsub.f32 %v2720, %v3547
        %v4163 = vsub.f32 %v2723, %v3547
        %v4164 = vsub.f32 %v2726, %v3554
        %v4165 = vsub.f32 %v2729, %v3554
        %v4166 = vsub.f32 %v2732, %v3561
        %v4167 = vsub.f32 %v2735, %v3561
        %v4168 = vsub.f32 %v2738, %v3568
        %v4169 = vsub.f32 %v2741, %v3568
        %v4170 = vsub.f32 %v2744, %v3575
        %v4171 = vsub.f32 %v2747, %v3575
        %v4172 = vsub.f32 %v2750, %v3582
        %v4173 = vsub.f32 %v2753, %v3582
        %v4174 = vsub.f32 %v2756, %v3589
        %v4175 = vsub.f32 %v2759, %v3589
        %v4176 = vsub.f32 %v2762, %v3596
        %v4177 = vsub.f32 %v2765, %v3596
        %v4178 = vsub.f32 %v2768, %v3603
        %v4179 = vsub.f32 %v2771, %v3603
        %v4180 = vsub.f32 %v2774, %v3610
        %v4181 = vsub.f32 %v2777, %v3610
        %v4182 = vsub.f32 %v2780, %v3617
        %v4183 = vsub.f32 %v2783, %v3617
        %v4184 = vsub.f32 %v2786, %v3624
        %v4185 = vsub.f32 %v2789, %v3624
        %v4186 = vsub.f32 %v2792, %v3631
        %v4187 = vsub.f32 %v2795, %v3631
        %v4188 = vsub.f32 %v2798, %v3638
        %v4189 = vsub.f32 %v2801, %v3638
        %v4190 = vsub.f32 %v2804, %v3645
        %v4191 = vsub.f32 %v2807, %v3645
        %v4192 = vsub.f32 %v2810, %v3652
        %v4193 = vsub.f32 %v2813, %v3652
        %v4194 = vsub.f32 %v2816, %v3659
        %v4195 = vsub.f32 %v2819, %v3659
        %v4196 = vsub.f32 %v2822, %v3666
        %v4197 = vsub.f32 %v2825, %v3666
        %v4198 = vsub.f32 %v2828, %v3673
        %v4199 = vsub.f32 %v2831, %v3673
        %v4200 = vsub.f32 %v2834, %v3680
        %v4201 = vsub.f32 %v2837, %v3680
        %v4202 = vsub.f32 %v2840, %v3687
        %v4203 = vsub.f32 %v2843, %v3687
        %v4204 = vsub.f32 %v2846, %v3694
        %v4205 = vsub.f32 %v2849, %v3694
        %v4206 = vsub.f32 %v2852, %v3701
        %v4207 = vsub.f32 %v2855, %v3701
        %v4208 = vsub.f32 %v2858, %v3708
        %v4209 = vsub.f32 %v2861, %v3708
        %v4210 = vsub.f32 %v2864, %v3715
        %v4211 = vsub.f32 %v2867, %v3715
        %v4212 = vsub.f32 %v2870, %v3722
        %v4213 = vsub.f32 %v2873, %v3722
        %v4214 = vsub.f32 %v2876, %v3729
        %v4215 = vsub.f32 %v2879, %v3729
        %v4216 = vsub.f32 %v2882, %v3736
        %v4217 = vsub.f32 %v2885, %v3736
        %v4218 = vsub.f32 %v2888, %v3743
        %v4219 = vsub.f32 %v2891, %v3743
        %v4220 = vsub.f32 %v2894, %v3750
        %v4221 = vsub.f32 %v2897, %v3750
        %v4222 = vsub.f32 %v2900, %v3757
        %v4223 = vsub.f32 %v2903, %v3757
        %v4224 = vsub.f32 %v2906, %v3764
        %v4225 = vsub.f32 %v2909, %v3764
        %v4226 = vsub.f32 %v2912, %v3771
        %v4227 = vsub.f32 %v2915, %v3771
        %v4228 = vsub.f32 %v2918, %v3778
        %v4229 = vsub.f32 %v2921, %v3778
        %v4230 = vsub.f32 %v2924, %v3785
        %v4231 = vsub.f32 %v2927, %v3785
        %v4232 = vsub.f32 %v2930, %v3792
        %v4233 = vsub.f32 %v2933, %v3792
        %v4234 = vsub.f32 %v2936, %v3799
        %v4235 = vsub.f32 %v2939, %v3799
        %v4236 = vsub.f32 %v2942, %v3806
        %v4237 = vsub.f32 %v2945, %v3806
        %v4238 = vsub.f32 %v2948, %v3813
        %v4239 = vsub.f32 %v2951, %v3813
        %v4240 = vsub.f32 %v2954, %v3820
        %v4241 = vsub.f32 %v2957, %v3820
        %v4242 = vsub.f32 %v2960, %v3827
        %v4243 = vsub.f32 %v2963, %v3827
        %v4244 = vsub.f32 %v2966, %v3834
        %v4245 = vsub.f32 %v2969, %v3834
        %v4246 = vsub.f32 %v2972, %v3841
        %v4247 = vsub.f32 %v2975, %v3841
        %v4248 = vsub.f32 %v2978, %v3848
        %v4249 = vsub.f32 %v2981, %v3848
        %v4250 = vsub.f32 %v2984, %v3855
        %v4251 = vsub.f32 %v2987, %v3855
        %v4252 = vsub.f32 %v2990, %v3862
        %v4253 = vsub.f32 %v2993, %v3862
        %v4254 = vsub.f32 %v2996, %v3869
        %v4255 = vsub.f32 %v2999, %v3869
        %v4256 = vsub.f32 %v3002, %v3876
        %v4257 = vsub.f32 %v3005, %v3876
        %v4258 = vsub.f32 %v3008, %v3883
        %v4259 = vsub.f32 %v3011, %v3883
        %v4260 = vsub.f32 %v3014, %v3890
        %v4261 = vsub.f32 %v3017, %v3890
        %v4262 = vsub.f32 %v3020, %v3897
        %v4263 = vsub.f32 %v3023, %v3897
        %v4264 = vsub.f32 %v3026, %v3904
        %v4265 = vsub.f32 %v3029, %v3904
        %v4266 = vsub.f32 %v3032, %v3911
        %v4267 = vsub.f32 %v3035, %v3911
        %v4268 = vsub.f32 %v3038, %v3918
        %v4269 = vsub.f32 %v3041, %v3918
        %v4270 = vsub.f32 %v3044, %v3925
        %v4271 = vsub.f32 %v3047, %v3925
        %v4272 = vsub.f32 %v3050, %v3932
        %v4273 = vsub.f32 %v3053, %v3932
        %v4274 = vsub.f32 %v3056, %v3939
        %v4275 = vsub.f32 %v3059, %v3939
        %v4276 = vsub.f32 %v3062, %v3946
        %v4277 = vsub.f32 %v3065, %v3946
        %v4278 = vsub.f32 %v3068, %v3953
        %v4279 = vsub.f32 %v3071, %v3953
        %v4280 = vsub.f32 %v3074, %v3960
        %v4281 = vsub.f32 %v3077, %v3960
        %v4282 = vsub.f32 %v3080, %v3967
        %v4283 = vsub.f32 %v3083, %v3967
        %v4284 = vsub.f32 %v3086, %v3974
        %v4285 = vsub.f32 %v3089, %v3974
        %v4286 = vsub.f32 %v3092, %v3981
        %v4287 = vsub.f32 %v3095, %v3981
        %v4288 = vsub.f32 %v3098, %v3988
        %v4289 = vsub.f32 %v3101, %v3988
        %v4290 = vsub.f32 %v3104, %v3995
        %v4291 = vsub.f32 %v3107, %v3995
        %v4292 = vsub.f32 %v3110, %v4002
        %v4293 = vsub.f32 %v3113, %v4002
        %v4294 = vsub.f32 %v3116, %v4009
        %v4295 = vsub.f32 %v3119, %v4009
        %v4296 = vsub.f32 %v3122, %v4016
        %v4297 = vsub.f32 %v3125, %v4016
        %v4298 = vsub.f32 %v3128, %v4023
        %v4299 = vsub.f32 %v3131, %v4023
        %v4300 = vsub.f32 %v3134, %v4030
        %v4301 = vsub.f32 %v3137, %v4030
        %v4302 = vsub.f32 %v3140, %v4037
        %v4303 = vsub.f32 %v3143, %v4037
        %v4304 = vsub.f32 %v3146, %v4044
        %v4305 = vsub.f32 %v3149, %v4044
        %v4306 = vsub.f32 %v3152, %v4051
        %v4307 = vsub.f32 %v3155, %v4051
        %v4308 = vmul.f32 %v4052, 1.442695
        %v4309 = vpow.pop %v4308
        %v4310 = vmul.f32 %v4053, 1.442695
        %v4311 = vpow.pop %v4310
        %v4312 = vmul.f32 %v4054, 1.442695
        %v4313 = vpow.pop %v4312
        %v4314 = vmul.f32 %v4055, 1.442695
        %v4315 = vpow.pop %v4314
        %v4316 = vmul.f32 %v4056, 1.442695
        %v4317 = vpow.pop %v4316
        %v4318 = vmul.f32 %v4057, 1.442695
        %v4319 = vpow.pop %v4318
        %v4320 = vmul.f32 %v4058, 1.442695
        %v4321 = vpow.pop %v4320
        %v4322 = vmul.f32 %v4059, 1.442695
        %v4323 = vpow.pop %v4322
        %v4324 = vmul.f32 %v4060, 1.442695
        %v4325 = vpow.pop %v4324
        %v4326 = vmul.f32 %v4061, 1.442695
        %v4327 = vpow.pop %v4326
        %v4328 = vmul.f32 %v4062, 1.442695
        %v4329 = vpow.pop %v4328
        %v4330 = vmul.f32 %v4063, 1.442695
        %v4331 = vpow.pop %v4330
        %v4332 = vmul.f32 %v4064, 1.442695
        %v4333 = vpow.pop %v4332
        %v4334 = vmul.f32 %v4065, 1.442695
        %v4335 = vpow.pop %v4334
        %v4336 = vmul.f32 %v4066, 1.442695
        %v4337 = vpow.pop %v4336
        %v4338 = vmul.f32 %v4067, 1.442695
        %v4339 = vpow.pop %v4338
        %v4340 = vmul.f32 %v4068, 1.442695
        %v4341 = vpow.pop %v4340
        %v4342 = vmul.f32 %v4069, 1.442695
        %v4343 = vpow.pop %v4342
        %v4344 = vmul.f32 %v4070, 1.442695
        %v4345 = vpow.pop %v4344
        %v4346 = vmul.f32 %v4071, 1.442695
        %v4347 = vpow.pop %v4346
        %v4348 = vmul.f32 %v4072, 1.442695
        %v4349 = vpow.pop %v4348
        %v4350 = vmul.f32 %v4073, 1.442695
        %v4351 = vpow.pop %v4350
        %v4352 = vmul.f32 %v4074, 1.442695
        %v4353 = vpow.pop %v4352
        %v4354 = vmul.f32 %v4075, 1.442695
        %v4355 = vpow.pop %v4354
        %v4356 = vmul.f32 %v4076, 1.442695
        %v4357 = vpow.pop %v4356
        %v4358 = vmul.f32 %v4077, 1.442695
        %v4359 = vpow.pop %v4358
        %v4360 = vmul.f32 %v4078, 1.442695
        %v4361 = vpow.pop %v4360
        %v4362 = vmul.f32 %v4079, 1.442695
        %v4363 = vpow.pop %v4362
        %v4364 = vmul.f32 %v4080, 1.442695
        %v4365 = vpow.pop %v4364
        %v4366 = vmul.f32 %v4081, 1.442695
        %v4367 = vpow.pop %v4366
        %v4368 = vmul.f32 %v4082, 1.442695
        %v4369 = vpow.pop %v4368
        %v4370 = vmul.f32 %v4083, 1.442695
        %v4371 = vpow.pop %v4370
        %v4372 = vmul.f32 %v4084, 1.442695
        %v4373 = vpow.pop %v4372
        %v4374 = vmul.f32 %v4085, 1.442695
        %v4375 = vpow.pop %v4374
        %v4376 = vmul.f32 %v4086, 1.442695
        %v4377 = vpow.pop %v4376
        %v4378 = vmul.f32 %v4087, 1.442695
        %v4379 = vpow.pop %v4378
        %v4380 = vmul.f32 %v4088, 1.442695
        %v4381 = vpow.pop %v4380
        %v4382 = vmul.f32 %v4089, 1.442695
        %v4383 = vpow.pop %v4382
        %v4384 = vmul.f32 %v4090, 1.442695
        %v4385 = vpow.pop %v4384
        %v4386 = vmul.f32 %v4091, 1.442695
        %v4387 = vpow.pop %v4386
        %v4388 = vmul.f32 %v4092, 1.442695
        %v4389 = vpow.pop %v4388
        %v4390 = vmul.f32 %v4093, 1.442695
        %v4391 = vpow.pop %v4390
        %v4392 = vmul.f32 %v4094, 1.442695
        %v4393 = vpow.pop %v4392
        %v4394 = vmul.f32 %v4095, 1.442695
        %v4395 = vpow.pop %v4394
        %v4396 = vmul.f32 %v4096, 1.442695
        %v4397 = vpow.pop %v4396
        %v4398 = vmul.f32 %v4097, 1.442695
        %v4399 = vpow.pop %v4398
        %v4400 = vmul.f32 %v4098, 1.442695
        %v4401 = vpow.pop %v4400
        %v4402 = vmul.f32 %v4099, 1.442695
        %v4403 = vpow.pop %v4402
        %v4404 = vmul.f32 %v4100, 1.442695
        %v4405 = vpow.pop %v4404
        %v4406 = vmul.f32 %v4101, 1.442695
        %v4407 = vpow.pop %v4406
        %v4408 = vmul.f32 %v4102, 1.442695
        %v4409 = vpow.pop %v4408
        %v4410 = vmul.f32 %v4103, 1.442695
        %v4411 = vpow.pop %v4410
        %v4412 = vmul.f32 %v4104, 1.442695
        %v4413 = vpow.pop %v4412
        %v4414 = vmul.f32 %v4105, 1.442695
        %v4415 = vpow.pop %v4414
        %v4416 = vmul.f32 %v4106, 1.442695
        %v4417 = vpow.pop %v4416
        %v4418 = vmul.f32 %v4107, 1.442695
        %v4419 = vpow.pop %v4418
        %v4420 = vmul.f32 %v4108, 1.442695
        %v4421 = vpow.pop %v4420
        %v4422 = vmul.f32 %v4109, 1.442695
        %v4423 = vpow.pop %v4422
        %v4424 = vmul.f32 %v4110, 1.442695
        %v4425 = vpow.pop %v4424
        %v4426 = vmul.f32 %v4111, 1.442695
        %v4427 = vpow.pop %v4426
        %v4428 = vmul.f32 %v4112, 1.442695
        %v4429 = vpow.pop %v4428
        %v4430 = vmul.f32 %v4113, 1.442695
        %v4431 = vpow.pop %v4430
        %v4432 = vmul.f32 %v4114, 1.442695
        %v4433 = vpow.pop %v4432
        %v4434 = vmul.f32 %v4115, 1.442695
        %v4435 = vpow.pop %v4434
        %v4436 = vmul.f32 %v4116, 1.442695
        %v4437 = vpow.pop %v4436
        %v4438 = vmul.f32 %v4117, 1.442695
        %v4439 = vpow.pop %v4438
        %v4440 = vmul.f32 %v4118, 1.442695
        %v4441 = vpow.pop %v4440
        %v4442 = vmul.f32 %v4119, 1.442695
        %v4443 = vpow.pop %v4442
        %v4444 = vmul.f32 %v4120, 1.442695
        %v4445 = vpow.pop %v4444
        %v4446 = vmul.f32 %v4121, 1.442695
        %v4447 = vpow.pop %v4446
        %v4448 = vmul.f32 %v4122, 1.442695
        %v4449 = vpow.pop %v4448
        %v4450 = vmul.f32 %v4123, 1.442695
        %v4451 = vpow.pop %v4450
        %v4452 = vmul.f32 %v4124, 1.442695
        %v4453 = vpow.pop %v4452
        %v4454 = vmul.f32 %v4125, 1.442695
        %v4455 = vpow.pop %v4454
        %v4456 = vmul.f32 %v4126, 1.442695
        %v4457 = vpow.pop %v4456
        %v4458 = vmul.f32 %v4127, 1.442695
        %v4459 = vpow.pop %v4458
        %v4460 = vmul.f32 %v4128, 1.442695
        %v4461 = vpow.pop %v4460
        %v4462 = vmul.f32 %v4129, 1.442695
        %v4463 = vpow.pop %v4462
        %v4464 = vmul.f32 %v4130, 1.442695
        %v4465 = vpow.pop %v4464
        %v4466 = vmul.f32 %v4131, 1.442695
        %v4467 = vpow.pop %v4466
        %v4468 = vmul.f32 %v4132, 1.442695
        %v4469 = vpow.pop %v4468
        %v4470 = vmul.f32 %v4133, 1.442695
        %v4471 = vpow.pop %v4470
        %v4472 = vmul.f32 %v4134, 1.442695
        %v4473 = vpow.pop %v4472
        %v4474 = vmul.f32 %v4135, 1.442695
        %v4475 = vpow.pop %v4474
        %v4476 = vmul.f32 %v4136, 1.442695
        %v4477 = vpow.pop %v4476
        %v4478 = vmul.f32 %v4137, 1.442695
        %v4479 = vpow.pop %v4478
        %v4480 = vmul.f32 %v4138, 1.442695
        %v4481 = vpow.pop %v4480
        %v4482 = vmul.f32 %v4139, 1.442695
        %v4483 = vpow.pop %v4482
        %v4484 = vmul.f32 %v4140, 1.442695
        %v4485 = vpow.pop %v4484
        %v4486 = vmul.f32 %v4141, 1.442695
        %v4487 = vpow.pop %v4486
        %v4488 = vmul.f32 %v4142, 1.442695
        %v4489 = vpow.pop %v4488
        %v4490 = vmul.f32 %v4143, 1.442695
        %v4491 = vpow.pop %v4490
        %v4492 = vmul.f32 %v4144, 1.442695
        %v4493 = vpow.pop %v4492
        %v4494 = vmul.f32 %v4145, 1.442695
        %v4495 = vpow.pop %v4494
        %v4496 = vmul.f32 %v4146, 1.442695
        %v4497 = vpow.pop %v4496
        %v4498 = vmul.f32 %v4147, 1.442695
        %v4499 = vpow.pop %v4498
        %v4500 = vmul.f32 %v4148, 1.442695
        %v4501 = vpow.pop %v4500
        %v4502 = vmul.f32 %v4149, 1.442695
        %v4503 = vpow.pop %v4502
        %v4504 = vmul.f32 %v4150, 1.442695
        %v4505 = vpow.pop %v4504
        %v4506 = vmul.f32 %v4151, 1.442695
        %v4507 = vpow.pop %v4506
        %v4508 = vmul.f32 %v4152, 1.442695
        %v4509 = vpow.pop %v4508
        %v4510 = vmul.f32 %v4153, 1.442695
        %v4511 = vpow.pop %v4510
        %v4512 = vmul.f32 %v4154, 1.442695
        %v4513 = vpow.pop %v4512
        %v4514 = vmul.f32 %v4155, 1.442695
        %v4515 = vpow.pop %v4514
        %v4516 = vmul.f32 %v4156, 1.442695
        %v4517 = vpow.pop %v4516
        %v4518 = vmul.f32 %v4157, 1.442695
        %v4519 = vpow.pop %v4518
        %v4520 = vmul.f32 %v4158, 1.442695
        %v4521 = vpow.pop %v4520
        %v4522 = vmul.f32 %v4159, 1.442695
        %v4523 = vpow.pop %v4522
        %v4524 = vmul.f32 %v4160, 1.442695
        %v4525 = vpow.pop %v4524
        %v4526 = vmul.f32 %v4161, 1.442695
        %v4527 = vpow.pop %v4526
        %v4528 = vmul.f32 %v4162, 1.442695
        %v4529 = vpow.pop %v4528
        %v4530 = vmul.f32 %v4163, 1.442695
        %v4531 = vpow.pop %v4530
        %v4532 = vmul.f32 %v4164, 1.442695
        %v4533 = vpow.pop %v4532
        %v4534 = vmul.f32 %v4165, 1.442695
        %v4535 = vpow.pop %v4534
        %v4536 = vmul.f32 %v4166, 1.442695
        %v4537 = vpow.pop %v4536
        %v4538 = vmul.f32 %v4167, 1.442695
        %v4539 = vpow.pop %v4538
        %v4540 = vmul.f32 %v4168, 1.442695
        %v4541 = vpow.pop %v4540
        %v4542 = vmul.f32 %v4169, 1.442695
        %v4543 = vpow.pop %v4542
        %v4544 = vmul.f32 %v4170, 1.442695
        %v4545 = vpow.pop %v4544
        %v4546 = vmul.f32 %v4171, 1.442695
        %v4547 = vpow.pop %v4546
        %v4548 = vmul.f32 %v4172, 1.442695
        %v4549 = vpow.pop %v4548
        %v4550 = vmul.f32 %v4173, 1.442695
        %v4551 = vpow.pop %v4550
        %v4552 = vmul.f32 %v4174, 1.442695
        %v4553 = vpow.pop %v4552
        %v4554 = vmul.f32 %v4175, 1.442695
        %v4555 = vpow.pop %v4554
        %v4556 = vmul.f32 %v4176, 1.442695
        %v4557 = vpow.pop %v4556
        %v4558 = vmul.f32 %v4177, 1.442695
        %v4559 = vpow.pop %v4558
        %v4560 = vmul.f32 %v4178, 1.442695
        %v4561 = vpow.pop %v4560
        %v4562 = vmul.f32 %v4179, 1.442695
        %v4563 = vpow.pop %v4562
        %v4564 = vmul.f32 %v4180, 1.442695
        %v4565 = vpow.pop %v4564
        %v4566 = vmul.f32 %v4181, 1.442695
        %v4567 = vpow.pop %v4566
        %v4568 = vmul.f32 %v4182, 1.442695
        %v4569 = vpow.pop %v4568
        %v4570 = vmul.f32 %v4183, 1.442695
        %v4571 = vpow.pop %v4570
        %v4572 = vmul.f32 %v4184, 1.442695
        %v4573 = vpow.pop %v4572
        %v4574 = vmul.f32 %v4185, 1.442695
        %v4575 = vpow.pop %v4574
        %v4576 = vmul.f32 %v4186, 1.442695
        %v4577 = vpow.pop %v4576
        %v4578 = vmul.f32 %v4187, 1.442695
        %v4579 = vpow.pop %v4578
        %v4580 = vmul.f32 %v4188, 1.442695
        %v4581 = vpow.pop %v4580
        %v4582 = vmul.f32 %v4189, 1.442695
        %v4583 = vpow.pop %v4582
        %v4584 = vmul.f32 %v4190, 1.442695
        %v4585 = vpow.pop %v4584
        %v4586 = vmul.f32 %v4191, 1.442695
        %v4587 = vpow.pop %v4586
        %v4588 = vmul.f32 %v4192, 1.442695
        %v4589 = vpow.pop %v4588
        %v4590 = vmul.f32 %v4193, 1.442695
        %v4591 = vpow.pop %v4590
        %v4592 = vmul.f32 %v4194, 1.442695
        %v4593 = vpow.pop %v4592
        %v4594 = vmul.f32 %v4195, 1.442695
        %v4595 = vpow.pop %v4594
        %v4596 = vmul.f32 %v4196, 1.442695
        %v4597 = vpow.pop %v4596
        %v4598 = vmul.f32 %v4197, 1.442695
        %v4599 = vpow.pop %v4598
        %v4600 = vmul.f32 %v4198, 1.442695
        %v4601 = vpow.pop %v4600
        %v4602 = vmul.f32 %v4199, 1.442695
        %v4603 = vpow.pop %v4602
        %v4604 = vmul.f32 %v4200, 1.442695
        %v4605 = vpow.pop %v4604
        %v4606 = vmul.f32 %v4201, 1.442695
        %v4607 = vpow.pop %v4606
        %v4608 = vmul.f32 %v4202, 1.442695
        %v4609 = vpow.pop %v4608
        %v4610 = vmul.f32 %v4203, 1.442695
        %v4611 = vpow.pop %v4610
        %v4612 = vmul.f32 %v4204, 1.442695
        %v4613 = vpow.pop %v4612
        %v4614 = vmul.f32 %v4205, 1.442695
        %v4615 = vpow.pop %v4614
        %v4616 = vmul.f32 %v4206, 1.442695
        %v4617 = vpow.pop %v4616
        %v4618 = vmul.f32 %v4207, 1.442695
        %v4619 = vpow.pop %v4618
        %v4620 = vmul.f32 %v4208, 1.442695
        %v4621 = vpow.pop %v4620
        %v4622 = vmul.f32 %v4209, 1.442695
        %v4623 = vpow.pop %v4622
        %v4624 = vmul.f32 %v4210, 1.442695
        %v4625 = vpow.pop %v4624
        %v4626 = vmul.f32 %v4211, 1.442695
        %v4627 = vpow.pop %v4626
        %v4628 = vmul.f32 %v4212, 1.442695
        %v4629 = vpow.pop %v4628
        %v4630 = vmul.f32 %v4213, 1.442695
        %v4631 = vpow.pop %v4630
        %v4632 = vmul.f32 %v4214, 1.442695
        %v4633 = vpow.pop %v4632
        %v4634 = vmul.f32 %v4215, 1.442695
        %v4635 = vpow.pop %v4634
        %v4636 = vmul.f32 %v4216, 1.442695
        %v4637 = vpow.pop %v4636
        %v4638 = vmul.f32 %v4217, 1.442695
        %v4639 = vpow.pop %v4638
        %v4640 = vmul.f32 %v4218, 1.442695
        %v4641 = vpow.pop %v4640
        %v4642 = vmul.f32 %v4219, 1.442695
        %v4643 = vpow.pop %v4642
        %v4644 = vmul.f32 %v4220, 1.442695
        %v4645 = vpow.pop %v4644
        %v4646 = vmul.f32 %v4221, 1.442695
        %v4647 = vpow.pop %v4646
        %v4648 = vmul.f32 %v4222, 1.442695
        %v4649 = vpow.pop %v4648
        %v4650 = vmul.f32 %v4223, 1.442695
        %v4651 = vpow.pop %v4650
        %v4652 = vmul.f32 %v4224, 1.442695
        %v4653 = vpow.pop %v4652
        %v4654 = vmul.f32 %v4225, 1.442695
        %v4655 = vpow.pop %v4654
        %v4656 = vmul.f32 %v4226, 1.442695
        %v4657 = vpow.pop %v4656
        %v4658 = vmul.f32 %v4227, 1.442695
        %v4659 = vpow.pop %v4658
        %v4660 = vmul.f32 %v4228, 1.442695
        %v4661 = vpow.pop %v4660
        %v4662 = vmul.f32 %v4229, 1.442695
        %v4663 = vpow.pop %v4662
        %v4664 = vmul.f32 %v4230, 1.442695
        %v4665 = vpow.pop %v4664
        %v4666 = vmul.f32 %v4231, 1.442695
        %v4667 = vpow.pop %v4666
        %v4668 = vmul.f32 %v4232, 1.442695
        %v4669 = vpow.pop %v4668
        %v4670 = vmul.f32 %v4233, 1.442695
        %v4671 = vpow.pop %v4670
        %v4672 = vmul.f32 %v4234, 1.442695
        %v4673 = vpow.pop %v4672
        %v4674 = vmul.f32 %v4235, 1.442695
        %v4675 = vpow.pop %v4674
        %v4676 = vmul.f32 %v4236, 1.442695
        %v4677 = vpow.pop %v4676
        %v4678 = vmul.f32 %v4237, 1.442695
        %v4679 = vpow.pop %v4678
        %v4680 = vmul.f32 %v4238, 1.442695
        %v4681 = vpow.pop %v4680
        %v4682 = vmul.f32 %v4239, 1.442695
        %v4683 = vpow.pop %v4682
        %v4684 = vmul.f32 %v4240, 1.442695
        %v4685 = vpow.pop %v4684
        %v4686 = vmul.f32 %v4241, 1.442695
        %v4687 = vpow.pop %v4686
        %v4688 = vmul.f32 %v4242, 1.442695
        %v4689 = vpow.pop %v4688
        %v4690 = vmul.f32 %v4243, 1.442695
        %v4691 = vpow.pop %v4690
        %v4692 = vmul.f32 %v4244, 1.442695
        %v4693 = vpow.pop %v4692
        %v4694 = vmul.f32 %v4245, 1.442695
        %v4695 = vpow.pop %v4694
        %v4696 = vmul.f32 %v4246, 1.442695
        %v4697 = vpow.pop %v4696
        %v4698 = vmul.f32 %v4247, 1.442695
        %v4699 = vpow.pop %v4698
        %v4700 = vmul.f32 %v4248, 1.442695
        %v4701 = vpow.pop %v4700
        %v4702 = vmul.f32 %v4249, 1.442695
        %v4703 = vpow.pop %v4702
        %v4704 = vmul.f32 %v4250, 1.442695
        %v4705 = vpow.pop %v4704
        %v4706 = vmul.f32 %v4251, 1.442695
        %v4707 = vpow.pop %v4706
        %v4708 = vmul.f32 %v4252, 1.442695
        %v4709 = vpow.pop %v4708
        %v4710 = vmul.f32 %v4253, 1.442695
        %v4711 = vpow.pop %v4710
        %v4712 = vmul.f32 %v4254, 1.442695
        %v4713 = vpow.pop %v4712
        %v4714 = vmul.f32 %v4255, 1.442695
        %v4715 = vpow.pop %v4714
        %v4716 = vmul.f32 %v4256, 1.442695
        %v4717 = vpow.pop %v4716
        %v4718 = vmul.f32 %v4257, 1.442695
        %v4719 = vpow.pop %v4718
        %v4720 = vmul.f32 %v4258, 1.442695
        %v4721 = vpow.pop %v4720
        %v4722 = vmul.f32 %v4259, 1.442695
        %v4723 = vpow.pop %v4722
        %v4724 = vmul.f32 %v4260, 1.442695
        %v4725 = vpow.pop %v4724
        %v4726 = vmul.f32 %v4261, 1.442695
        %v4727 = vpow.pop %v4726
        %v4728 = vmul.f32 %v4262, 1.442695
        %v4729 = vpow.pop %v4728
        %v4730 = vmul.f32 %v4263, 1.442695
        %v4731 = vpow.pop %v4730
        %v4732 = vmul.f32 %v4264, 1.442695
        %v4733 = vpow.pop %v4732
        %v4734 = vmul.f32 %v4265, 1.442695
        %v4735 = vpow.pop %v4734
        %v4736 = vmul.f32 %v4266, 1.442695
        %v4737 = vpow.pop %v4736
        %v4738 = vmul.f32 %v4267, 1.442695
        %v4739 = vpow.pop %v4738
        %v4740 = vmul.f32 %v4268, 1.442695
        %v4741 = vpow.pop %v4740
        %v4742 = vmul.f32 %v4269, 1.442695
        %v4743 = vpow.pop %v4742
        %v4744 = vmul.f32 %v4270, 1.442695
        %v4745 = vpow.pop %v4744
        %v4746 = vmul.f32 %v4271, 1.442695
        %v4747 = vpow.pop %v4746
        %v4748 = vmul.f32 %v4272, 1.442695
        %v4749 = vpow.pop %v4748
        %v4750 = vmul.f32 %v4273, 1.442695
        %v4751 = vpow.pop %v4750
        %v4752 = vmul.f32 %v4274, 1.442695
        %v4753 = vpow.pop %v4752
        %v4754 = vmul.f32 %v4275, 1.442695
        %v4755 = vpow.pop %v4754
        %v4756 = vmul.f32 %v4276, 1.442695
        %v4757 = vpow.pop %v4756
        %v4758 = vmul.f32 %v4277, 1.442695
        %v4759 = vpow.pop %v4758
        %v4760 = vmul.f32 %v4278, 1.442695
        %v4761 = vpow.pop %v4760
        %v4762 = vmul.f32 %v4279, 1.442695
        %v4763 = vpow.pop %v4762
        %v4764 = vmul.f32 %v4280, 1.442695
        %v4765 = vpow.pop %v4764
        %v4766 = vmul.f32 %v4281, 1.442695
        %v4767 = vpow.pop %v4766
        %v4768 = vmul.f32 %v4282, 1.442695
        %v4769 = vpow.pop %v4768
        %v4770 = vmul.f32 %v4283, 1.442695
        %v4771 = vpow.pop %v4770
        %v4772 = vmul.f32 %v4284, 1.442695
        %v4773 = vpow.pop %v4772
        %v4774 = vmul.f32 %v4285, 1.442695
        %v4775 = vpow.pop %v4774
        %v4776 = vmul.f32 %v4286, 1.442695
        %v4777 = vpow.pop %v4776
        %v4778 = vmul.f32 %v4287, 1.442695
        %v4779 = vpow.pop %v4778
        %v4780 = vmul.f32 %v4288, 1.442695
        %v4781 = vpow.pop %v4780
        %v4782 = vmul.f32 %v4289, 1.442695
        %v4783 = vpow.pop %v4782
        %v4784 = vmul.f32 %v4290, 1.442695
        %v4785 = vpow.pop %v4784
        %v4786 = vmul.f32 %v4291, 1.442695
        %v4787 = vpow.pop %v4786
        %v4788 = vmul.f32 %v4292, 1.442695
        %v4789 = vpow.pop %v4788
        %v4790 = vmul.f32 %v4293, 1.442695
        %v4791 = vpow.pop %v4790
        %v4792 = vmul.f32 %v4294, 1.442695
        %v4793 = vpow.pop %v4792
        %v4794 = vmul.f32 %v4295, 1.442695
        %v4795 = vpow.pop %v4794
        %v4796 = vmul.f32 %v4296, 1.442695
        %v4797 = vpow.pop %v4796
        %v4798 = vmul.f32 %v4297, 1.442695
        %v4799 = vpow.pop %v4798
        %v4800 = vmul.f32 %v4298, 1.442695
        %v4801 = vpow.pop %v4800
        %v4802 = vmul.f32 %v4299, 1.442695
        %v4803 = vpow.pop %v4802
        %v4804 = vmul.f32 %v4300, 1.442695
        %v4805 = vpow.pop %v4804
        %v4806 = vmul.f32 %v4301, 1.442695
        %v4807 = vpow.pop %v4806
        %v4808 = vmul.f32 %v4302, 1.442695
        %v4809 = vpow.pop %v4808
        %v4810 = vmul.f32 %v4303, 1.442695
        %v4811 = vpow.pop %v4810
        %v4812 = vmul.f32 %v4304, 1.442695
        %v4813 = vpow.pop %v4812
        %v4814 = vmul.f32 %v4305, 1.442695
        %v4815 = vpow.pop %v4814
        %v4816 = vmul.f32 %v4306, 1.442695
        %v4817 = vpow.pop %v4816
        %v4818 = vmul.f32 %v4307, 1.442695
        %v4819 = vpow.pop %v4818
        %v4820 = vadd.f32 %v4309, %v4311
        %v4821 = vrot.slane %v4820, 4
        %v4822 = vadd.f32 %v4820, %v4821
        %v4823 = vrot.slane %v4822, 2
        %v4824 = vadd.f32 %v4822, %v4823
        %v4825 = vrot.slane %v4824, 1
        %v4826 = vadd.f32 %v4824, %v4825
        %v4827 = vadd.f32 %v4313, %v4315
        %v4828 = vrot.slane %v4827, 4
        %v4829 = vadd.f32 %v4827, %v4828
        %v4830 = vrot.slane %v4829, 2
        %v4831 = vadd.f32 %v4829, %v4830
        %v4832 = vrot.slane %v4831, 1
        %v4833 = vadd.f32 %v4831, %v4832
        %v4834 = vadd.f32 %v4317, %v4319
        %v4835 = vrot.slane %v4834, 4
        %v4836 = vadd.f32 %v4834, %v4835
        %v4837 = vrot.slane %v4836, 2
        %v4838 = vadd.f32 %v4836, %v4837
        %v4839 = vrot.slane %v4838, 1
        %v4840 = vadd.f32 %v4838, %v4839
        %v4841 = vadd.f32 %v4321, %v4323
        %v4842 = vrot.slane %v4841, 4
        %v4843 = vadd.f32 %v4841, %v4842
        %v4844 = vrot.slane %v4843, 2
        %v4845 = vadd.f32 %v4843, %v4844
        %v4846 = vrot.slane %v4845, 1
        %v4847 = vadd.f32 %v4845, %v4846
        %v4848 = vadd.f32 %v4325, %v4327
        %v4849 = vrot.slane %v4848, 4
        %v4850 = vadd.f32 %v4848, %v4849
        %v4851 = vrot.slane %v4850, 2
        %v4852 = vadd.f32 %v4850, %v4851
        %v4853 = vrot.slane %v4852, 1
        %v4854 = vadd.f32 %v4852, %v4853
        %v4855 = vadd.f32 %v4329, %v4331
        %v4856 = vrot.slane %v4855, 4
        %v4857 = vadd.f32 %v4855, %v4856
        %v4858 = vrot.slane %v4857, 2
        %v4859 = vadd.f32 %v4857, %v4858
        %v4860 = vrot.slane %v4859, 1
        %v4861 = vadd.f32 %v4859, %v4860
        %v4862 = vadd.f32 %v4333, %v4335
        %v4863 = vrot.slane %v4862, 4
        %v4864 = vadd.f32 %v4862, %v4863
        %v4865 = vrot.slane %v4864, 2
        %v4866 = vadd.f32 %v4864, %v4865
        %v4867 = vrot.slane %v4866, 1
        %v4868 = vadd.f32 %v4866, %v4867
        %v4869 = vadd.f32 %v4337, %v4339
        %v4870 = vrot.slane %v4869, 4
        %v4871 = vadd.f32 %v4869, %v4870
        %v4872 = vrot.slane %v4871, 2
        %v4873 = vadd.f32 %v4871, %v4872
        %v4874 = vrot.slane %v4873, 1
        %v4875 = vadd.f32 %v4873, %v4874
        %v4876 = vadd.f32 %v4341, %v4343
        %v4877 = vrot.slane %v4876, 4
        %v4878 = vadd.f32 %v4876, %v4877
        %v4879 = vrot.slane %v4878, 2
        %v4880 = vadd.f32 %v4878, %v4879
        %v4881 = vrot.slane %v4880, 1
        %v4882 = vadd.f32 %v4880, %v4881
        %v4883 = vadd.f32 %v4345, %v4347
        %v4884 = vrot.slane %v4883, 4
        %v4885 = vadd.f32 %v4883, %v4884
        %v4886 = vrot.slane %v4885, 2
        %v4887 = vadd.f32 %v4885, %v4886
        %v4888 = vrot.slane %v4887, 1
        %v4889 = vadd.f32 %v4887, %v4888
        %v4890 = vadd.f32 %v4349, %v4351
        %v4891 = vrot.slane %v4890, 4
        %v4892 = vadd.f32 %v4890, %v4891
        %v4893 = vrot.slane %v4892, 2
        %v4894 = vadd.f32 %v4892, %v4893
        %v4895 = vrot.slane %v4894, 1
        %v4896 = vadd.f32 %v4894, %v4895
        %v4897 = vadd.f32 %v4353, %v4355
        %v4898 = vrot.slane %v4897, 4
        %v4899 = vadd.f32 %v4897, %v4898
        %v4900 = vrot.slane %v4899, 2
        %v4901 = vadd.f32 %v4899, %v4900
        %v4902 = vrot.slane %v4901, 1
        %v4903 = vadd.f32 %v4901, %v4902
        %v4904 = vadd.f32 %v4357, %v4359
        %v4905 = vrot.slane %v4904, 4
        %v4906 = vadd.f32 %v4904, %v4905
        %v4907 = vrot.slane %v4906, 2
        %v4908 = vadd.f32 %v4906, %v4907
        %v4909 = vrot.slane %v4908, 1
        %v4910 = vadd.f32 %v4908, %v4909
        %v4911 = vadd.f32 %v4361, %v4363
        %v4912 = vrot.slane %v4911, 4
        %v4913 = vadd.f32 %v4911, %v4912
        %v4914 = vrot.slane %v4913, 2
        %v4915 = vadd.f32 %v4913, %v4914
        %v4916 = vrot.slane %v4915, 1
        %v4917 = vadd.f32 %v4915, %v4916
        %v4918 = vadd.f32 %v4365, %v4367
        %v4919 = vrot.slane %v4918, 4
        %v4920 = vadd.f32 %v4918, %v4919
        %v4921 = vrot.slane %v4920, 2
        %v4922 = vadd.f32 %v4920, %v4921
        %v4923 = vrot.slane %v4922, 1
        %v4924 = vadd.f32 %v4922, %v4923
        %v4925 = vadd.f32 %v4369, %v4371
        %v4926 = vrot.slane %v4925, 4
        %v4927 = vadd.f32 %v4925, %v4926
        %v4928 = vrot.slane %v4927, 2
        %v4929 = vadd.f32 %v4927, %v4928
        %v4930 = vrot.slane %v4929, 1
        %v4931 = vadd.f32 %v4929, %v4930
        %v4932 = vadd.f32 %v4373, %v4375
        %v4933 = vrot.slane %v4932, 4
        %v4934 = vadd.f32 %v4932, %v4933
        %v4935 = vrot.slane %v4934, 2
        %v4936 = vadd.f32 %v4934, %v4935
        %v4937 = vrot.slane %v4936, 1
        %v4938 = vadd.f32 %v4936, %v4937
        %v4939 = vadd.f32 %v4377, %v4379
        %v4940 = vrot.slane %v4939, 4
        %v4941 = vadd.f32 %v4939, %v4940
        %v4942 = vrot.slane %v4941, 2
        %v4943 = vadd.f32 %v4941, %v4942
        %v4944 = vrot.slane %v4943, 1
        %v4945 = vadd.f32 %v4943, %v4944
        %v4946 = vadd.f32 %v4381, %v4383
        %v4947 = vrot.slane %v4946, 4
        %v4948 = vadd.f32 %v4946, %v4947
        %v4949 = vrot.slane %v4948, 2
        %v4950 = vadd.f32 %v4948, %v4949
        %v4951 = vrot.slane %v4950, 1
        %v4952 = vadd.f32 %v4950, %v4951
        %v4953 = vadd.f32 %v4385, %v4387
        %v4954 = vrot.slane %v4953, 4
        %v4955 = vadd.f32 %v4953, %v4954
        %v4956 = vrot.slane %v4955, 2
        %v4957 = vadd.f32 %v4955, %v4956
        %v4958 = vrot.slane %v4957, 1
        %v4959 = vadd.f32 %v4957, %v4958
        %v4960 = vadd.f32 %v4389, %v4391
        %v4961 = vrot.slane %v4960, 4
        %v4962 = vadd.f32 %v4960, %v4961
        %v4963 = vrot.slane %v4962, 2
        %v4964 = vadd.f32 %v4962, %v4963
        %v4965 = vrot.slane %v4964, 1
        %v4966 = vadd.f32 %v4964, %v4965
        %v4967 = vadd.f32 %v4393, %v4395
        %v4968 = vrot.slane %v4967, 4
        %v4969 = vadd.f32 %v4967, %v4968
        %v4970 = vrot.slane %v4969, 2
        %v4971 = vadd.f32 %v4969, %v4970
        %v4972 = vrot.slane %v4971, 1
        %v4973 = vadd.f32 %v4971, %v4972
        %v4974 = vadd.f32 %v4397, %v4399
        %v4975 = vrot.slane %v4974, 4
        %v4976 = vadd.f32 %v4974, %v4975
        %v4977 = vrot.slane %v4976, 2
        %v4978 = vadd.f32 %v4976, %v4977
        %v4979 = vrot.slane %v4978, 1
        %v4980 = vadd.f32 %v4978, %v4979
        %v4981 = vadd.f32 %v4401, %v4403
        %v4982 = vrot.slane %v4981, 4
        %v4983 = vadd.f32 %v4981, %v4982
        %v4984 = vrot.slane %v4983, 2
        %v4985 = vadd.f32 %v4983, %v4984
        %v4986 = vrot.slane %v4985, 1
        %v4987 = vadd.f32 %v4985, %v4986
        %v4988 = vadd.f32 %v4405, %v4407
        %v4989 = vrot.slane %v4988, 4
        %v4990 = vadd.f32 %v4988, %v4989
        %v4991 = vrot.slane %v4990, 2
        %v4992 = vadd.f32 %v4990, %v4991
        %v4993 = vrot.slane %v4992, 1
        %v4994 = vadd.f32 %v4992, %v4993
        %v4995 = vadd.f32 %v4409, %v4411
        %v4996 = vrot.slane %v4995, 4
        %v4997 = vadd.f32 %v4995, %v4996
        %v4998 = vrot.slane %v4997, 2
        %v4999 = vadd.f32 %v4997, %v4998
        %v5000 = vrot.slane %v4999, 1
        %v5001 = vadd.f32 %v4999, %v5000
        %v5002 = vadd.f32 %v4413, %v4415
        %v5003 = vrot.slane %v5002, 4
        %v5004 = vadd.f32 %v5002, %v5003
        %v5005 = vrot.slane %v5004, 2
        %v5006 = vadd.f32 %v5004, %v5005
        %v5007 = vrot.slane %v5006, 1
        %v5008 = vadd.f32 %v5006, %v5007
        %v5009 = vadd.f32 %v4417, %v4419
        %v5010 = vrot.slane %v5009, 4
        %v5011 = vadd.f32 %v5009, %v5010
        %v5012 = vrot.slane %v5011, 2
        %v5013 = vadd.f32 %v5011, %v5012
        %v5014 = vrot.slane %v5013, 1
        %v5015 = vadd.f32 %v5013, %v5014
        %v5016 = vadd.f32 %v4421, %v4423
        %v5017 = vrot.slane %v5016, 4
        %v5018 = vadd.f32 %v5016, %v5017
        %v5019 = vrot.slane %v5018, 2
        %v5020 = vadd.f32 %v5018, %v5019
        %v5021 = vrot.slane %v5020, 1
        %v5022 = vadd.f32 %v5020, %v5021
        %v5023 = vadd.f32 %v4425, %v4427
        %v5024 = vrot.slane %v5023, 4
        %v5025 = vadd.f32 %v5023, %v5024
        %v5026 = vrot.slane %v5025, 2
        %v5027 = vadd.f32 %v5025, %v5026
        %v5028 = vrot.slane %v5027, 1
        %v5029 = vadd.f32 %v5027, %v5028
        %v5030 = vadd.f32 %v4429, %v4431
        %v5031 = vrot.slane %v5030, 4
        %v5032 = vadd.f32 %v5030, %v5031
        %v5033 = vrot.slane %v5032, 2
        %v5034 = vadd.f32 %v5032, %v5033
        %v5035 = vrot.slane %v5034, 1
        %v5036 = vadd.f32 %v5034, %v5035
        %v5037 = vadd.f32 %v4433, %v4435
        %v5038 = vrot.slane %v5037, 4
        %v5039 = vadd.f32 %v5037, %v5038
        %v5040 = vrot.slane %v5039, 2
        %v5041 = vadd.f32 %v5039, %v5040
        %v5042 = vrot.slane %v5041, 1
        %v5043 = vadd.f32 %v5041, %v5042
        %v5044 = vadd.f32 %v4437, %v4439
        %v5045 = vrot.slane %v5044, 4
        %v5046 = vadd.f32 %v5044, %v5045
        %v5047 = vrot.slane %v5046, 2
        %v5048 = vadd.f32 %v5046, %v5047
        %v5049 = vrot.slane %v5048, 1
        %v5050 = vadd.f32 %v5048, %v5049
        %v5051 = vadd.f32 %v4441, %v4443
        %v5052 = vrot.slane %v5051, 4
        %v5053 = vadd.f32 %v5051, %v5052
        %v5054 = vrot.slane %v5053, 2
        %v5055 = vadd.f32 %v5053, %v5054
        %v5056 = vrot.slane %v5055, 1
        %v5057 = vadd.f32 %v5055, %v5056
        %v5058 = vadd.f32 %v4445, %v4447
        %v5059 = vrot.slane %v5058, 4
        %v5060 = vadd.f32 %v5058, %v5059
        %v5061 = vrot.slane %v5060, 2
        %v5062 = vadd.f32 %v5060, %v5061
        %v5063 = vrot.slane %v5062, 1
        %v5064 = vadd.f32 %v5062, %v5063
        %v5065 = vadd.f32 %v4449, %v4451
        %v5066 = vrot.slane %v5065, 4
        %v5067 = vadd.f32 %v5065, %v5066
        %v5068 = vrot.slane %v5067, 2
        %v5069 = vadd.f32 %v5067, %v5068
        %v5070 = vrot.slane %v5069, 1
        %v5071 = vadd.f32 %v5069, %v5070
        %v5072 = vadd.f32 %v4453, %v4455
        %v5073 = vrot.slane %v5072, 4
        %v5074 = vadd.f32 %v5072, %v5073
        %v5075 = vrot.slane %v5074, 2
        %v5076 = vadd.f32 %v5074, %v5075
        %v5077 = vrot.slane %v5076, 1
        %v5078 = vadd.f32 %v5076, %v5077
        %v5079 = vadd.f32 %v4457, %v4459
        %v5080 = vrot.slane %v5079, 4
        %v5081 = vadd.f32 %v5079, %v5080
        %v5082 = vrot.slane %v5081, 2
        %v5083 = vadd.f32 %v5081, %v5082
        %v5084 = vrot.slane %v5083, 1
        %v5085 = vadd.f32 %v5083, %v5084
        %v5086 = vadd.f32 %v4461, %v4463
        %v5087 = vrot.slane %v5086, 4
        %v5088 = vadd.f32 %v5086, %v5087
        %v5089 = vrot.slane %v5088, 2
        %v5090 = vadd.f32 %v5088, %v5089
        %v5091 = vrot.slane %v5090, 1
        %v5092 = vadd.f32 %v5090, %v5091
        %v5093 = vadd.f32 %v4465, %v4467
        %v5094 = vrot.slane %v5093, 4
        %v5095 = vadd.f32 %v5093, %v5094
        %v5096 = vrot.slane %v5095, 2
        %v5097 = vadd.f32 %v5095, %v5096
        %v5098 = vrot.slane %v5097, 1
        %v5099 = vadd.f32 %v5097, %v5098
        %v5100 = vadd.f32 %v4469, %v4471
        %v5101 = vrot.slane %v5100, 4
        %v5102 = vadd.f32 %v5100, %v5101
        %v5103 = vrot.slane %v5102, 2
        %v5104 = vadd.f32 %v5102, %v5103
        %v5105 = vrot.slane %v5104, 1
        %v5106 = vadd.f32 %v5104, %v5105
        %v5107 = vadd.f32 %v4473, %v4475
        %v5108 = vrot.slane %v5107, 4
        %v5109 = vadd.f32 %v5107, %v5108
        %v5110 = vrot.slane %v5109, 2
        %v5111 = vadd.f32 %v5109, %v5110
        %v5112 = vrot.slane %v5111, 1
        %v5113 = vadd.f32 %v5111, %v5112
        %v5114 = vadd.f32 %v4477, %v4479
        %v5115 = vrot.slane %v5114, 4
        %v5116 = vadd.f32 %v5114, %v5115
        %v5117 = vrot.slane %v5116, 2
        %v5118 = vadd.f32 %v5116, %v5117
        %v5119 = vrot.slane %v5118, 1
        %v5120 = vadd.f32 %v5118, %v5119
        %v5121 = vadd.f32 %v4481, %v4483
        %v5122 = vrot.slane %v5121, 4
        %v5123 = vadd.f32 %v5121, %v5122
        %v5124 = vrot.slane %v5123, 2
        %v5125 = vadd.f32 %v5123, %v5124
        %v5126 = vrot.slane %v5125, 1
        %v5127 = vadd.f32 %v5125, %v5126
        %v5128 = vadd.f32 %v4485, %v4487
        %v5129 = vrot.slane %v5128, 4
        %v5130 = vadd.f32 %v5128, %v5129
        %v5131 = vrot.slane %v5130, 2
        %v5132 = vadd.f32 %v5130, %v5131
        %v5133 = vrot.slane %v5132, 1
        %v5134 = vadd.f32 %v5132, %v5133
        %v5135 = vadd.f32 %v4489, %v4491
        %v5136 = vrot.slane %v5135, 4
        %v5137 = vadd.f32 %v5135, %v5136
        %v5138 = vrot.slane %v5137, 2
        %v5139 = vadd.f32 %v5137, %v5138
        %v5140 = vrot.slane %v5139, 1
        %v5141 = vadd.f32 %v5139, %v5140
        %v5142 = vadd.f32 %v4493, %v4495
        %v5143 = vrot.slane %v5142, 4
        %v5144 = vadd.f32 %v5142, %v5143
        %v5145 = vrot.slane %v5144, 2
        %v5146 = vadd.f32 %v5144, %v5145
        %v5147 = vrot.slane %v5146, 1
        %v5148 = vadd.f32 %v5146, %v5147
        %v5149 = vadd.f32 %v4497, %v4499
        %v5150 = vrot.slane %v5149, 4
        %v5151 = vadd.f32 %v5149, %v5150
        %v5152 = vrot.slane %v5151, 2
        %v5153 = vadd.f32 %v5151, %v5152
        %v5154 = vrot.slane %v5153, 1
        %v5155 = vadd.f32 %v5153, %v5154
        %v5156 = vadd.f32 %v4501, %v4503
        %v5157 = vrot.slane %v5156, 4
        %v5158 = vadd.f32 %v5156, %v5157
        %v5159 = vrot.slane %v5158, 2
        %v5160 = vadd.f32 %v5158, %v5159
        %v5161 = vrot.slane %v5160, 1
        %v5162 = vadd.f32 %v5160, %v5161
        %v5163 = vadd.f32 %v4505, %v4507
        %v5164 = vrot.slane %v5163, 4
        %v5165 = vadd.f32 %v5163, %v5164
        %v5166 = vrot.slane %v5165, 2
        %v5167 = vadd.f32 %v5165, %v5166
        %v5168 = vrot.slane %v5167, 1
        %v5169 = vadd.f32 %v5167, %v5168
        %v5170 = vadd.f32 %v4509, %v4511
        %v5171 = vrot.slane %v5170, 4
        %v5172 = vadd.f32 %v5170, %v5171
        %v5173 = vrot.slane %v5172, 2
        %v5174 = vadd.f32 %v5172, %v5173
        %v5175 = vrot.slane %v5174, 1
        %v5176 = vadd.f32 %v5174, %v5175
        %v5177 = vadd.f32 %v4513, %v4515
        %v5178 = vrot.slane %v5177, 4
        %v5179 = vadd.f32 %v5177, %v5178
        %v5180 = vrot.slane %v5179, 2
        %v5181 = vadd.f32 %v5179, %v5180
        %v5182 = vrot.slane %v5181, 1
        %v5183 = vadd.f32 %v5181, %v5182
        %v5184 = vadd.f32 %v4517, %v4519
        %v5185 = vrot.slane %v5184, 4
        %v5186 = vadd.f32 %v5184, %v5185
        %v5187 = vrot.slane %v5186, 2
        %v5188 = vadd.f32 %v5186, %v5187
        %v5189 = vrot.slane %v5188, 1
        %v5190 = vadd.f32 %v5188, %v5189
        %v5191 = vadd.f32 %v4521, %v4523
        %v5192 = vrot.slane %v5191, 4
        %v5193 = vadd.f32 %v5191, %v5192
        %v5194 = vrot.slane %v5193, 2
        %v5195 = vadd.f32 %v5193, %v5194
        %v5196 = vrot.slane %v5195, 1
        %v5197 = vadd.f32 %v5195, %v5196
        %v5198 = vadd.f32 %v4525, %v4527
        %v5199 = vrot.slane %v5198, 4
        %v5200 = vadd.f32 %v5198, %v5199
        %v5201 = vrot.slane %v5200, 2
        %v5202 = vadd.f32 %v5200, %v5201
        %v5203 = vrot.slane %v5202, 1
        %v5204 = vadd.f32 %v5202, %v5203
        %v5205 = vadd.f32 %v4529, %v4531
        %v5206 = vrot.slane %v5205, 4
        %v5207 = vadd.f32 %v5205, %v5206
        %v5208 = vrot.slane %v5207, 2
        %v5209 = vadd.f32 %v5207, %v5208
        %v5210 = vrot.slane %v5209, 1
        %v5211 = vadd.f32 %v5209, %v5210
        %v5212 = vadd.f32 %v4533, %v4535
        %v5213 = vrot.slane %v5212, 4
        %v5214 = vadd.f32 %v5212, %v5213
        %v5215 = vrot.slane %v5214, 2
        %v5216 = vadd.f32 %v5214, %v5215
        %v5217 = vrot.slane %v5216, 1
        %v5218 = vadd.f32 %v5216, %v5217
        %v5219 = vadd.f32 %v4537, %v4539
        %v5220 = vrot.slane %v5219, 4
        %v5221 = vadd.f32 %v5219, %v5220
        %v5222 = vrot.slane %v5221, 2
        %v5223 = vadd.f32 %v5221, %v5222
        %v5224 = vrot.slane %v5223, 1
        %v5225 = vadd.f32 %v5223, %v5224
        %v5226 = vadd.f32 %v4541, %v4543
        %v5227 = vrot.slane %v5226, 4
        %v5228 = vadd.f32 %v5226, %v5227
        %v5229 = vrot.slane %v5228, 2
        %v5230 = vadd.f32 %v5228, %v5229
        %v5231 = vrot.slane %v5230, 1
        %v5232 = vadd.f32 %v5230, %v5231
        %v5233 = vadd.f32 %v4545, %v4547
        %v5234 = vrot.slane %v5233, 4
        %v5235 = vadd.f32 %v5233, %v5234
        %v5236 = vrot.slane %v5235, 2
        %v5237 = vadd.f32 %v5235, %v5236
        %v5238 = vrot.slane %v5237, 1
        %v5239 = vadd.f32 %v5237, %v5238
        %v5240 = vadd.f32 %v4549, %v4551
        %v5241 = vrot.slane %v5240, 4
        %v5242 = vadd.f32 %v5240, %v5241
        %v5243 = vrot.slane %v5242, 2
        %v5244 = vadd.f32 %v5242, %v5243
        %v5245 = vrot.slane %v5244, 1
        %v5246 = vadd.f32 %v5244, %v5245
        %v5247 = vadd.f32 %v4553, %v4555
        %v5248 = vrot.slane %v5247, 4
        %v5249 = vadd.f32 %v5247, %v5248
        %v5250 = vrot.slane %v5249, 2
        %v5251 = vadd.f32 %v5249, %v5250
        %v5252 = vrot.slane %v5251, 1
        %v5253 = vadd.f32 %v5251, %v5252
        %v5254 = vadd.f32 %v4557, %v4559
        %v5255 = vrot.slane %v5254, 4
        %v5256 = vadd.f32 %v5254, %v5255
        %v5257 = vrot.slane %v5256, 2
        %v5258 = vadd.f32 %v5256, %v5257
        %v5259 = vrot.slane %v5258, 1
        %v5260 = vadd.f32 %v5258, %v5259
        %v5261 = vadd.f32 %v4561, %v4563
        %v5262 = vrot.slane %v5261, 4
        %v5263 = vadd.f32 %v5261, %v5262
        %v5264 = vrot.slane %v5263, 2
        %v5265 = vadd.f32 %v5263, %v5264
        %v5266 = vrot.slane %v5265, 1
        %v5267 = vadd.f32 %v5265, %v5266
        %v5268 = vadd.f32 %v4565, %v4567
        %v5269 = vrot.slane %v5268, 4
        %v5270 = vadd.f32 %v5268, %v5269
        %v5271 = vrot.slane %v5270, 2
        %v5272 = vadd.f32 %v5270, %v5271
        %v5273 = vrot.slane %v5272, 1
        %v5274 = vadd.f32 %v5272, %v5273
        %v5275 = vadd.f32 %v4569, %v4571
        %v5276 = vrot.slane %v5275, 4
        %v5277 = vadd.f32 %v5275, %v5276
        %v5278 = vrot.slane %v5277, 2
        %v5279 = vadd.f32 %v5277, %v5278
        %v5280 = vrot.slane %v5279, 1
        %v5281 = vadd.f32 %v5279, %v5280
        %v5282 = vadd.f32 %v4573, %v4575
        %v5283 = vrot.slane %v5282, 4
        %v5284 = vadd.f32 %v5282, %v5283
        %v5285 = vrot.slane %v5284, 2
        %v5286 = vadd.f32 %v5284, %v5285
        %v5287 = vrot.slane %v5286, 1
        %v5288 = vadd.f32 %v5286, %v5287
        %v5289 = vadd.f32 %v4577, %v4579
        %v5290 = vrot.slane %v5289, 4
        %v5291 = vadd.f32 %v5289, %v5290
        %v5292 = vrot.slane %v5291, 2
        %v5293 = vadd.f32 %v5291, %v5292
        %v5294 = vrot.slane %v5293, 1
        %v5295 = vadd.f32 %v5293, %v5294
        %v5296 = vadd.f32 %v4581, %v4583
        %v5297 = vrot.slane %v5296, 4
        %v5298 = vadd.f32 %v5296, %v5297
        %v5299 = vrot.slane %v5298, 2
        %v5300 = vadd.f32 %v5298, %v5299
        %v5301 = vrot.slane %v5300, 1
        %v5302 = vadd.f32 %v5300, %v5301
        %v5303 = vadd.f32 %v4585, %v4587
        %v5304 = vrot.slane %v5303, 4
        %v5305 = vadd.f32 %v5303, %v5304
        %v5306 = vrot.slane %v5305, 2
        %v5307 = vadd.f32 %v5305, %v5306
        %v5308 = vrot.slane %v5307, 1
        %v5309 = vadd.f32 %v5307, %v5308
        %v5310 = vadd.f32 %v4589, %v4591
        %v5311 = vrot.slane %v5310, 4
        %v5312 = vadd.f32 %v5310, %v5311
        %v5313 = vrot.slane %v5312, 2
        %v5314 = vadd.f32 %v5312, %v5313
        %v5315 = vrot.slane %v5314, 1
        %v5316 = vadd.f32 %v5314, %v5315
        %v5317 = vadd.f32 %v4593, %v4595
        %v5318 = vrot.slane %v5317, 4
        %v5319 = vadd.f32 %v5317, %v5318
        %v5320 = vrot.slane %v5319, 2
        %v5321 = vadd.f32 %v5319, %v5320
        %v5322 = vrot.slane %v5321, 1
        %v5323 = vadd.f32 %v5321, %v5322
        %v5324 = vadd.f32 %v4597, %v4599
        %v5325 = vrot.slane %v5324, 4
        %v5326 = vadd.f32 %v5324, %v5325
        %v5327 = vrot.slane %v5326, 2
        %v5328 = vadd.f32 %v5326, %v5327
        %v5329 = vrot.slane %v5328, 1
        %v5330 = vadd.f32 %v5328, %v5329
        %v5331 = vadd.f32 %v4601, %v4603
        %v5332 = vrot.slane %v5331, 4
        %v5333 = vadd.f32 %v5331, %v5332
        %v5334 = vrot.slane %v5333, 2
        %v5335 = vadd.f32 %v5333, %v5334
        %v5336 = vrot.slane %v5335, 1
        %v5337 = vadd.f32 %v5335, %v5336
        %v5338 = vadd.f32 %v4605, %v4607
        %v5339 = vrot.slane %v5338, 4
        %v5340 = vadd.f32 %v5338, %v5339
        %v5341 = vrot.slane %v5340, 2
        %v5342 = vadd.f32 %v5340, %v5341
        %v5343 = vrot.slane %v5342, 1
        %v5344 = vadd.f32 %v5342, %v5343
        %v5345 = vadd.f32 %v4609, %v4611
        %v5346 = vrot.slane %v5345, 4
        %v5347 = vadd.f32 %v5345, %v5346
        %v5348 = vrot.slane %v5347, 2
        %v5349 = vadd.f32 %v5347, %v5348
        %v5350 = vrot.slane %v5349, 1
        %v5351 = vadd.f32 %v5349, %v5350
        %v5352 = vadd.f32 %v4613, %v4615
        %v5353 = vrot.slane %v5352, 4
        %v5354 = vadd.f32 %v5352, %v5353
        %v5355 = vrot.slane %v5354, 2
        %v5356 = vadd.f32 %v5354, %v5355
        %v5357 = vrot.slane %v5356, 1
        %v5358 = vadd.f32 %v5356, %v5357
        %v5359 = vadd.f32 %v4617, %v4619
        %v5360 = vrot.slane %v5359, 4
        %v5361 = vadd.f32 %v5359, %v5360
        %v5362 = vrot.slane %v5361, 2
        %v5363 = vadd.f32 %v5361, %v5362
        %v5364 = vrot.slane %v5363, 1
        %v5365 = vadd.f32 %v5363, %v5364
        %v5366 = vadd.f32 %v4621, %v4623
        %v5367 = vrot.slane %v5366, 4
        %v5368 = vadd.f32 %v5366, %v5367
        %v5369 = vrot.slane %v5368, 2
        %v5370 = vadd.f32 %v5368, %v5369
        %v5371 = vrot.slane %v5370, 1
        %v5372 = vadd.f32 %v5370, %v5371
        %v5373 = vadd.f32 %v4625, %v4627
        %v5374 = vrot.slane %v5373, 4
        %v5375 = vadd.f32 %v5373, %v5374
        %v5376 = vrot.slane %v5375, 2
        %v5377 = vadd.f32 %v5375, %v5376
        %v5378 = vrot.slane %v5377, 1
        %v5379 = vadd.f32 %v5377, %v5378
        %v5380 = vadd.f32 %v4629, %v4631
        %v5381 = vrot.slane %v5380, 4
        %v5382 = vadd.f32 %v5380, %v5381
        %v5383 = vrot.slane %v5382, 2
        %v5384 = vadd.f32 %v5382, %v5383
        %v5385 = vrot.slane %v5384, 1
        %v5386 = vadd.f32 %v5384, %v5385
        %v5387 = vadd.f32 %v4633, %v4635
        %v5388 = vrot.slane %v5387, 4
        %v5389 = vadd.f32 %v5387, %v5388
        %v5390 = vrot.slane %v5389, 2
        %v5391 = vadd.f32 %v5389, %v5390
        %v5392 = vrot.slane %v5391, 1
        %v5393 = vadd.f32 %v5391, %v5392
        %v5394 = vadd.f32 %v4637, %v4639
        %v5395 = vrot.slane %v5394, 4
        %v5396 = vadd.f32 %v5394, %v5395
        %v5397 = vrot.slane %v5396, 2
        %v5398 = vadd.f32 %v5396, %v5397
        %v5399 = vrot.slane %v5398, 1
        %v5400 = vadd.f32 %v5398, %v5399
        %v5401 = vadd.f32 %v4641, %v4643
        %v5402 = vrot.slane %v5401, 4
        %v5403 = vadd.f32 %v5401, %v5402
        %v5404 = vrot.slane %v5403, 2
        %v5405 = vadd.f32 %v5403, %v5404
        %v5406 = vrot.slane %v5405, 1
        %v5407 = vadd.f32 %v5405, %v5406
        %v5408 = vadd.f32 %v4645, %v4647
        %v5409 = vrot.slane %v5408, 4
        %v5410 = vadd.f32 %v5408, %v5409
        %v5411 = vrot.slane %v5410, 2
        %v5412 = vadd.f32 %v5410, %v5411
        %v5413 = vrot.slane %v5412, 1
        %v5414 = vadd.f32 %v5412, %v5413
        %v5415 = vadd.f32 %v4649, %v4651
        %v5416 = vrot.slane %v5415, 4
        %v5417 = vadd.f32 %v5415, %v5416
        %v5418 = vrot.slane %v5417, 2
        %v5419 = vadd.f32 %v5417, %v5418
        %v5420 = vrot.slane %v5419, 1
        %v5421 = vadd.f32 %v5419, %v5420
        %v5422 = vadd.f32 %v4653, %v4655
        %v5423 = vrot.slane %v5422, 4
        %v5424 = vadd.f32 %v5422, %v5423
        %v5425 = vrot.slane %v5424, 2
        %v5426 = vadd.f32 %v5424, %v5425
        %v5427 = vrot.slane %v5426, 1
        %v5428 = vadd.f32 %v5426, %v5427
        %v5429 = vadd.f32 %v4657, %v4659
        %v5430 = vrot.slane %v5429, 4
        %v5431 = vadd.f32 %v5429, %v5430
        %v5432 = vrot.slane %v5431, 2
        %v5433 = vadd.f32 %v5431, %v5432
        %v5434 = vrot.slane %v5433, 1
        %v5435 = vadd.f32 %v5433, %v5434
        %v5436 = vadd.f32 %v4661, %v4663
        %v5437 = vrot.slane %v5436, 4
        %v5438 = vadd.f32 %v5436, %v5437
        %v5439 = vrot.slane %v5438, 2
        %v5440 = vadd.f32 %v5438, %v5439
        %v5441 = vrot.slane %v5440, 1
        %v5442 = vadd.f32 %v5440, %v5441
        %v5443 = vadd.f32 %v4665, %v4667
        %v5444 = vrot.slane %v5443, 4
        %v5445 = vadd.f32 %v5443, %v5444
        %v5446 = vrot.slane %v5445, 2
        %v5447 = vadd.f32 %v5445, %v5446
        %v5448 = vrot.slane %v5447, 1
        %v5449 = vadd.f32 %v5447, %v5448
        %v5450 = vadd.f32 %v4669, %v4671
        %v5451 = vrot.slane %v5450, 4
        %v5452 = vadd.f32 %v5450, %v5451
        %v5453 = vrot.slane %v5452, 2
        %v5454 = vadd.f32 %v5452, %v5453
        %v5455 = vrot.slane %v5454, 1
        %v5456 = vadd.f32 %v5454, %v5455
        %v5457 = vadd.f32 %v4673, %v4675
        %v5458 = vrot.slane %v5457, 4
        %v5459 = vadd.f32 %v5457, %v5458
        %v5460 = vrot.slane %v5459, 2
        %v5461 = vadd.f32 %v5459, %v5460
        %v5462 = vrot.slane %v5461, 1
        %v5463 = vadd.f32 %v5461, %v5462
        %v5464 = vadd.f32 %v4677, %v4679
        %v5465 = vrot.slane %v5464, 4
        %v5466 = vadd.f32 %v5464, %v5465
        %v5467 = vrot.slane %v5466, 2
        %v5468 = vadd.f32 %v5466, %v5467
        %v5469 = vrot.slane %v5468, 1
        %v5470 = vadd.f32 %v5468, %v5469
        %v5471 = vadd.f32 %v4681, %v4683
        %v5472 = vrot.slane %v5471, 4
        %v5473 = vadd.f32 %v5471, %v5472
        %v5474 = vrot.slane %v5473, 2
        %v5475 = vadd.f32 %v5473, %v5474
        %v5476 = vrot.slane %v5475, 1
        %v5477 = vadd.f32 %v5475, %v5476
        %v5478 = vadd.f32 %v4685, %v4687
        %v5479 = vrot.slane %v5478, 4
        %v5480 = vadd.f32 %v5478, %v5479
        %v5481 = vrot.slane %v5480, 2
        %v5482 = vadd.f32 %v5480, %v5481
        %v5483 = vrot.slane %v5482, 1
        %v5484 = vadd.f32 %v5482, %v5483
        %v5485 = vadd.f32 %v4689, %v4691
        %v5486 = vrot.slane %v5485, 4
        %v5487 = vadd.f32 %v5485, %v5486
        %v5488 = vrot.slane %v5487, 2
        %v5489 = vadd.f32 %v5487, %v5488
        %v5490 = vrot.slane %v5489, 1
        %v5491 = vadd.f32 %v5489, %v5490
        %v5492 = vadd.f32 %v4693, %v4695
        %v5493 = vrot.slane %v5492, 4
        %v5494 = vadd.f32 %v5492, %v5493
        %v5495 = vrot.slane %v5494, 2
        %v5496 = vadd.f32 %v5494, %v5495
        %v5497 = vrot.slane %v5496, 1
        %v5498 = vadd.f32 %v5496, %v5497
        %v5499 = vadd.f32 %v4697, %v4699
        %v5500 = vrot.slane %v5499, 4
        %v5501 = vadd.f32 %v5499, %v5500
        %v5502 = vrot.slane %v5501, 2
        %v5503 = vadd.f32 %v5501, %v5502
        %v5504 = vrot.slane %v5503, 1
        %v5505 = vadd.f32 %v5503, %v5504
        %v5506 = vadd.f32 %v4701, %v4703
        %v5507 = vrot.slane %v5506, 4
        %v5508 = vadd.f32 %v5506, %v5507
        %v5509 = vrot.slane %v5508, 2
        %v5510 = vadd.f32 %v5508, %v5509
        %v5511 = vrot.slane %v5510, 1
        %v5512 = vadd.f32 %v5510, %v5511
        %v5513 = vadd.f32 %v4705, %v4707
        %v5514 = vrot.slane %v5513, 4
        %v5515 = vadd.f32 %v5513, %v5514
        %v5516 = vrot.slane %v5515, 2
        %v5517 = vadd.f32 %v5515, %v5516
        %v5518 = vrot.slane %v5517, 1
        %v5519 = vadd.f32 %v5517, %v5518
        %v5520 = vadd.f32 %v4709, %v4711
        %v5521 = vrot.slane %v5520, 4
        %v5522 = vadd.f32 %v5520, %v5521
        %v5523 = vrot.slane %v5522, 2
        %v5524 = vadd.f32 %v5522, %v5523
        %v5525 = vrot.slane %v5524, 1
        %v5526 = vadd.f32 %v5524, %v5525
        %v5527 = vadd.f32 %v4713, %v4715
        %v5528 = vrot.slane %v5527, 4
        %v5529 = vadd.f32 %v5527, %v5528
        %v5530 = vrot.slane %v5529, 2
        %v5531 = vadd.f32 %v5529, %v5530
        %v5532 = vrot.slane %v5531, 1
        %v5533 = vadd.f32 %v5531, %v5532
        %v5534 = vadd.f32 %v4717, %v4719
        %v5535 = vrot.slane %v5534, 4
        %v5536 = vadd.f32 %v5534, %v5535
        %v5537 = vrot.slane %v5536, 2
        %v5538 = vadd.f32 %v5536, %v5537
        %v5539 = vrot.slane %v5538, 1
        %v5540 = vadd.f32 %v5538, %v5539
        %v5541 = vadd.f32 %v4721, %v4723
        %v5542 = vrot.slane %v5541, 4
        %v5543 = vadd.f32 %v5541, %v5542
        %v5544 = vrot.slane %v5543, 2
        %v5545 = vadd.f32 %v5543, %v5544
        %v5546 = vrot.slane %v5545, 1
        %v5547 = vadd.f32 %v5545, %v5546
        %v5548 = vadd.f32 %v4725, %v4727
        %v5549 = vrot.slane %v5548, 4
        %v5550 = vadd.f32 %v5548, %v5549
        %v5551 = vrot.slane %v5550, 2
        %v5552 = vadd.f32 %v5550, %v5551
        %v5553 = vrot.slane %v5552, 1
        %v5554 = vadd.f32 %v5552, %v5553
        %v5555 = vadd.f32 %v4729, %v4731
        %v5556 = vrot.slane %v5555, 4
        %v5557 = vadd.f32 %v5555, %v5556
        %v5558 = vrot.slane %v5557, 2
        %v5559 = vadd.f32 %v5557, %v5558
        %v5560 = vrot.slane %v5559, 1
        %v5561 = vadd.f32 %v5559, %v5560
        %v5562 = vadd.f32 %v4733, %v4735
        %v5563 = vrot.slane %v5562, 4
        %v5564 = vadd.f32 %v5562, %v5563
        %v5565 = vrot.slane %v5564, 2
        %v5566 = vadd.f32 %v5564, %v5565
        %v5567 = vrot.slane %v5566, 1
        %v5568 = vadd.f32 %v5566, %v5567
        %v5569 = vadd.f32 %v4737, %v4739
        %v5570 = vrot.slane %v5569, 4
        %v5571 = vadd.f32 %v5569, %v5570
        %v5572 = vrot.slane %v5571, 2
        %v5573 = vadd.f32 %v5571, %v5572
        %v5574 = vrot.slane %v5573, 1
        %v5575 = vadd.f32 %v5573, %v5574
        %v5576 = vadd.f32 %v4741, %v4743
        %v5577 = vrot.slane %v5576, 4
        %v5578 = vadd.f32 %v5576, %v5577
        %v5579 = vrot.slane %v5578, 2
        %v5580 = vadd.f32 %v5578, %v5579
        %v5581 = vrot.slane %v5580, 1
        %v5582 = vadd.f32 %v5580, %v5581
        %v5583 = vadd.f32 %v4745, %v4747
        %v5584 = vrot.slane %v5583, 4
        %v5585 = vadd.f32 %v5583, %v5584
        %v5586 = vrot.slane %v5585, 2
        %v5587 = vadd.f32 %v5585, %v5586
        %v5588 = vrot.slane %v5587, 1
        %v5589 = vadd.f32 %v5587, %v5588
        %v5590 = vadd.f32 %v4749, %v4751
        %v5591 = vrot.slane %v5590, 4
        %v5592 = vadd.f32 %v5590, %v5591
        %v5593 = vrot.slane %v5592, 2
        %v5594 = vadd.f32 %v5592, %v5593
        %v5595 = vrot.slane %v5594, 1
        %v5596 = vadd.f32 %v5594, %v5595
        %v5597 = vadd.f32 %v4753, %v4755
        %v5598 = vrot.slane %v5597, 4
        %v5599 = vadd.f32 %v5597, %v5598
        %v5600 = vrot.slane %v5599, 2
        %v5601 = vadd.f32 %v5599, %v5600
        %v5602 = vrot.slane %v5601, 1
        %v5603 = vadd.f32 %v5601, %v5602
        %v5604 = vadd.f32 %v4757, %v4759
        %v5605 = vrot.slane %v5604, 4
        %v5606 = vadd.f32 %v5604, %v5605
        %v5607 = vrot.slane %v5606, 2
        %v5608 = vadd.f32 %v5606, %v5607
        %v5609 = vrot.slane %v5608, 1
        %v5610 = vadd.f32 %v5608, %v5609
        %v5611 = vadd.f32 %v4761, %v4763
        %v5612 = vrot.slane %v5611, 4
        %v5613 = vadd.f32 %v5611, %v5612
        %v5614 = vrot.slane %v5613, 2
        %v5615 = vadd.f32 %v5613, %v5614
        %v5616 = vrot.slane %v5615, 1
        %v5617 = vadd.f32 %v5615, %v5616
        %v5618 = vadd.f32 %v4765, %v4767
        %v5619 = vrot.slane %v5618, 4
        %v5620 = vadd.f32 %v5618, %v5619
        %v5621 = vrot.slane %v5620, 2
        %v5622 = vadd.f32 %v5620, %v5621
        %v5623 = vrot.slane %v5622, 1
        %v5624 = vadd.f32 %v5622, %v5623
        %v5625 = vadd.f32 %v4769, %v4771
        %v5626 = vrot.slane %v5625, 4
        %v5627 = vadd.f32 %v5625, %v5626
        %v5628 = vrot.slane %v5627, 2
        %v5629 = vadd.f32 %v5627, %v5628
        %v5630 = vrot.slane %v5629, 1
        %v5631 = vadd.f32 %v5629, %v5630
        %v5632 = vadd.f32 %v4773, %v4775
        %v5633 = vrot.slane %v5632, 4
        %v5634 = vadd.f32 %v5632, %v5633
        %v5635 = vrot.slane %v5634, 2
        %v5636 = vadd.f32 %v5634, %v5635
        %v5637 = vrot.slane %v5636, 1
        %v5638 = vadd.f32 %v5636, %v5637
        %v5639 = vadd.f32 %v4777, %v4779
        %v5640 = vrot.slane %v5639, 4
        %v5641 = vadd.f32 %v5639, %v5640
        %v5642 = vrot.slane %v5641, 2
        %v5643 = vadd.f32 %v5641, %v5642
        %v5644 = vrot.slane %v5643, 1
        %v5645 = vadd.f32 %v5643, %v5644
        %v5646 = vadd.f32 %v4781, %v4783
        %v5647 = vrot.slane %v5646, 4
        %v5648 = vadd.f32 %v5646, %v5647
        %v5649 = vrot.slane %v5648, 2
        %v5650 = vadd.f32 %v5648, %v5649
        %v5651 = vrot.slane %v5650, 1
        %v5652 = vadd.f32 %v5650, %v5651
        %v5653 = vadd.f32 %v4785, %v4787
        %v5654 = vrot.slane %v5653, 4
        %v5655 = vadd.f32 %v5653, %v5654
        %v5656 = vrot.slane %v5655, 2
        %v5657 = vadd.f32 %v5655, %v5656
        %v5658 = vrot.slane %v5657, 1
        %v5659 = vadd.f32 %v5657, %v5658
        %v5660 = vadd.f32 %v4789, %v4791
        %v5661 = vrot.slane %v5660, 4
        %v5662 = vadd.f32 %v5660, %v5661
        %v5663 = vrot.slane %v5662, 2
        %v5664 = vadd.f32 %v5662, %v5663
        %v5665 = vrot.slane %v5664, 1
        %v5666 = vadd.f32 %v5664, %v5665
        %v5667 = vadd.f32 %v4793, %v4795
        %v5668 = vrot.slane %v5667, 4
        %v5669 = vadd.f32 %v5667, %v5668
        %v5670 = vrot.slane %v5669, 2
        %v5671 = vadd.f32 %v5669, %v5670
        %v5672 = vrot.slane %v5671, 1
        %v5673 = vadd.f32 %v5671, %v5672
        %v5674 = vadd.f32 %v4797, %v4799
        %v5675 = vrot.slane %v5674, 4
        %v5676 = vadd.f32 %v5674, %v5675
        %v5677 = vrot.slane %v5676, 2
        %v5678 = vadd.f32 %v5676, %v5677
        %v5679 = vrot.slane %v5678, 1
        %v5680 = vadd.f32 %v5678, %v5679
        %v5681 = vadd.f32 %v4801, %v4803
        %v5682 = vrot.slane %v5681, 4
        %v5683 = vadd.f32 %v5681, %v5682
        %v5684 = vrot.slane %v5683, 2
        %v5685 = vadd.f32 %v5683, %v5684
        %v5686 = vrot.slane %v5685, 1
        %v5687 = vadd.f32 %v5685, %v5686
        %v5688 = vadd.f32 %v4805, %v4807
        %v5689 = vrot.slane %v5688, 4
        %v5690 = vadd.f32 %v5688, %v5689
        %v5691 = vrot.slane %v5690, 2
        %v5692 = vadd.f32 %v5690, %v5691
        %v5693 = vrot.slane %v5692, 1
        %v5694 = vadd.f32 %v5692, %v5693
        %v5695 = vadd.f32 %v4809, %v4811
        %v5696 = vrot.slane %v5695, 4
        %v5697 = vadd.f32 %v5695, %v5696
        %v5698 = vrot.slane %v5697, 2
        %v5699 = vadd.f32 %v5697, %v5698
        %v5700 = vrot.slane %v5699, 1
        %v5701 = vadd.f32 %v5699, %v5700
        %v5702 = vadd.f32 %v4813, %v4815
        %v5703 = vrot.slane %v5702, 4
        %v5704 = vadd.f32 %v5702, %v5703
        %v5705 = vrot.slane %v5704, 2
        %v5706 = vadd.f32 %v5704, %v5705
        %v5707 = vrot.slane %v5706, 1
        %v5708 = vadd.f32 %v5706, %v5707
        %v5709 = vadd.f32 %v4817, %v4819
        %v5710 = vrot.slane %v5709, 4
        %v5711 = vadd.f32 %v5709, %v5710
        %v5712 = vrot.slane %v5711, 2
        %v5713 = vadd.f32 %v5711, %v5712
        %v5714 = vrot.slane %v5713, 1
        %v5715 = vadd.f32 %v5713, %v5714
        %v5716 = vrcp.pop %v4826
        %v5717 = vrcp.pop %v4833
        %v5718 = vrcp.pop %v4840
        %v5719 = vrcp.pop %v4847
        %v5720 = vrcp.pop %v4854
        %v5721 = vrcp.pop %v4861
        %v5722 = vrcp.pop %v4868
        %v5723 = vrcp.pop %v4875
        %v5724 = vrcp.pop %v4882
        %v5725 = vrcp.pop %v4889
        %v5726 = vrcp.pop %v4896
        %v5727 = vrcp.pop %v4903
        %v5728 = vrcp.pop %v4910
        %v5729 = vrcp.pop %v4917
        %v5730 = vrcp.pop %v4924
        %v5731 = vrcp.pop %v4931
        %v5732 = vrcp.pop %v4938
        %v5733 = vrcp.pop %v4945
        %v5734 = vrcp.pop %v4952
        %v5735 = vrcp.pop %v4959
        %v5736 = vrcp.pop %v4966
        %v5737 = vrcp.pop %v4973
        %v5738 = vrcp.pop %v4980
        %v5739 = vrcp.pop %v4987
        %v5740 = vrcp.pop %v4994
        %v5741 = vrcp.pop %v5001
        %v5742 = vrcp.pop %v5008
        %v5743 = vrcp.pop %v5015
        %v5744 = vrcp.pop %v5022
        %v5745 = vrcp.pop %v5029
        %v5746 = vrcp.pop %v5036
        %v5747 = vrcp.pop %v5043
        %v5748 = vrcp.pop %v5050
        %v5749 = vrcp.pop %v5057
        %v5750 = vrcp.pop %v5064
        %v5751 = vrcp.pop %v5071
        %v5752 = vrcp.pop %v5078
        %v5753 = vrcp.pop %v5085
        %v5754 = vrcp.pop %v5092
        %v5755 = vrcp.pop %v5099
        %v5756 = vrcp.pop %v5106
        %v5757 = vrcp.pop %v5113
        %v5758 = vrcp.pop %v5120
        %v5759 = vrcp.pop %v5127
        %v5760 = vrcp.pop %v5134
        %v5761 = vrcp.pop %v5141
        %v5762 = vrcp.pop %v5148
        %v5763 = vrcp.pop %v5155
        %v5764 = vrcp.pop %v5162
        %v5765 = vrcp.pop %v5169
        %v5766 = vrcp.pop %v5176
        %v5767 = vrcp.pop %v5183
        %v5768 = vrcp.pop %v5190
        %v5769 = vrcp.pop %v5197
        %v5770 = vrcp.pop %v5204
        %v5771 = vrcp.pop %v5211
        %v5772 = vrcp.pop %v5218
        %v5773 = vrcp.pop %v5225
        %v5774 = vrcp.pop %v5232
        %v5775 = vrcp.pop %v5239
        %v5776 = vrcp.pop %v5246
        %v5777 = vrcp.pop %v5253
        %v5778 = vrcp.pop %v5260
        %v5779 = vrcp.pop %v5267
        %v5780 = vrcp.pop %v5274
        %v5781 = vrcp.pop %v5281
        %v5782 = vrcp.pop %v5288
        %v5783 = vrcp.pop %v5295
        %v5784 = vrcp.pop %v5302
        %v5785 = vrcp.pop %v5309
        %v5786 = vrcp.pop %v5316
        %v5787 = vrcp.pop %v5323
        %v5788 = vrcp.pop %v5330
        %v5789 = vrcp.pop %v5337
        %v5790 = vrcp.pop %v5344
        %v5791 = vrcp.pop %v5351
        %v5792 = vrcp.pop %v5358
        %v5793 = vrcp.pop %v5365
        %v5794 = vrcp.pop %v5372
        %v5795 = vrcp.pop %v5379
        %v5796 = vrcp.pop %v5386
        %v5797 = vrcp.pop %v5393
        %v5798 = vrcp.pop %v5400
        %v5799 = vrcp.pop %v5407
        %v5800 = vrcp.pop %v5414
        %v5801 = vrcp.pop %v5421
        %v5802 = vrcp.pop %v5428
        %v5803 = vrcp.pop %v5435
        %v5804 = vrcp.pop %v5442
        %v5805 = vrcp.pop %v5449
        %v5806 = vrcp.pop %v5456
        %v5807 = vrcp.pop %v5463
        %v5808 = vrcp.pop %v5470
        %v5809 = vrcp.pop %v5477
        %v5810 = vrcp.pop %v5484
        %v5811 = vrcp.pop %v5491
        %v5812 = vrcp.pop %v5498
        %v5813 = vrcp.pop %v5505
        %v5814 = vrcp.pop %v5512
        %v5815 = vrcp.pop %v5519
        %v5816 = vrcp.pop %v5526
        %v5817 = vrcp.pop %v5533
        %v5818 = vrcp.pop %v5540
        %v5819 = vrcp.pop %v5547
        %v5820 = vrcp.pop %v5554
        %v5821 = vrcp.pop %v5561
        %v5822 = vrcp.pop %v5568
        %v5823 = vrcp.pop %v5575
        %v5824 = vrcp.pop %v5582
        %v5825 = vrcp.pop %v5589
        %v5826 = vrcp.pop %v5596
        %v5827 = vrcp.pop %v5603
        %v5828 = vrcp.pop %v5610
        %v5829 = vrcp.pop %v5617
        %v5830 = vrcp.pop %v5624
        %v5831 = vrcp.pop %v5631
        %v5832 = vrcp.pop %v5638
        %v5833 = vrcp.pop %v5645
        %v5834 = vrcp.pop %v5652
        %v5835 = vrcp.pop %v5659
        %v5836 = vrcp.pop %v5666
        %v5837 = vrcp.pop %v5673
        %v5838 = vrcp.pop %v5680
        %v5839 = vrcp.pop %v5687
        %v5840 = vrcp.pop %v5694
        %v5841 = vrcp.pop %v5701
        %v5842 = vrcp.pop %v5708
        %v5843 = vrcp.pop %v5715
        %v5844 = vmul.f32 %v4309, %v5716
        %v5845 = vmul.f32 %v4311, %v5716
        %v5846 = vmul.f32 %v4313, %v5717
        %v5847 = vmul.f32 %v4315, %v5717
        %v5848 = vmul.f32 %v4317, %v5718
        %v5849 = vmul.f32 %v4319, %v5718
        %v5850 = vmul.f32 %v4321, %v5719
        %v5851 = vmul.f32 %v4323, %v5719
        %v5852 = vmul.f32 %v4325, %v5720
        %v5853 = vmul.f32 %v4327, %v5720
        %v5854 = vmul.f32 %v4329, %v5721
        %v5855 = vmul.f32 %v4331, %v5721
        %v5856 = vmul.f32 %v4333, %v5722
        %v5857 = vmul.f32 %v4335, %v5722
        %v5858 = vmul.f32 %v4337, %v5723
        %v5859 = vmul.f32 %v4339, %v5723
        %v5860 = vmul.f32 %v4341, %v5724
        %v5861 = vmul.f32 %v4343, %v5724
        %v5862 = vmul.f32 %v4345, %v5725
        %v5863 = vmul.f32 %v4347, %v5725
        %v5864 = vmul.f32 %v4349, %v5726
        %v5865 = vmul.f32 %v4351, %v5726
        %v5866 = vmul.f32 %v4353, %v5727
        %v5867 = vmul.f32 %v4355, %v5727
        %v5868 = vmul.f32 %v4357, %v5728
        %v5869 = vmul.f32 %v4359, %v5728
        %v5870 = vmul.f32 %v4361, %v5729
        %v5871 = vmul.f32 %v4363, %v5729
        %v5872 = vmul.f32 %v4365, %v5730
        %v5873 = vmul.f32 %v4367, %v5730
        %v5874 = vmul.f32 %v4369, %v5731
        %v5875 = vmul.f32 %v4371, %v5731
        %v5876 = vmul.f32 %v4373, %v5732
        %v5877 = vmul.f32 %v4375, %v5732
        %v5878 = vmul.f32 %v4377, %v5733
        %v5879 = vmul.f32 %v4379, %v5733
        %v5880 = vmul.f32 %v4381, %v5734
        %v5881 = vmul.f32 %v4383, %v5734
        %v5882 = vmul.f32 %v4385, %v5735
        %v5883 = vmul.f32 %v4387, %v5735
        %v5884 = vmul.f32 %v4389, %v5736
        %v5885 = vmul.f32 %v4391, %v5736
        %v5886 = vmul.f32 %v4393, %v5737
        %v5887 = vmul.f32 %v4395, %v5737
        %v5888 = vmul.f32 %v4397, %v5738
        %v5889 = vmul.f32 %v4399, %v5738
        %v5890 = vmul.f32 %v4401, %v5739
        %v5891 = vmul.f32 %v4403, %v5739
        %v5892 = vmul.f32 %v4405, %v5740
        %v5893 = vmul.f32 %v4407, %v5740
        %v5894 = vmul.f32 %v4409, %v5741
        %v5895 = vmul.f32 %v4411, %v5741
        %v5896 = vmul.f32 %v4413, %v5742
        %v5897 = vmul.f32 %v4415, %v5742
        %v5898 = vmul.f32 %v4417, %v5743
        %v5899 = vmul.f32 %v4419, %v5743
        %v5900 = vmul.f32 %v4421, %v5744
        %v5901 = vmul.f32 %v4423, %v5744
        %v5902 = vmul.f32 %v4425, %v5745
        %v5903 = vmul.f32 %v4427, %v5745
        %v5904 = vmul.f32 %v4429, %v5746
        %v5905 = vmul.f32 %v4431, %v5746
        %v5906 = vmul.f32 %v4433, %v5747
        %v5907 = vmul.f32 %v4435, %v5747
        %v5908 = vmul.f32 %v4437, %v5748
        %v5909 = vmul.f32 %v4439, %v5748
        %v5910 = vmul.f32 %v4441, %v5749
        %v5911 = vmul.f32 %v4443, %v5749
        %v5912 = vmul.f32 %v4445, %v5750
        %v5913 = vmul.f32 %v4447, %v5750
        %v5914 = vmul.f32 %v4449, %v5751
        %v5915 = vmul.f32 %v4451, %v5751
        %v5916 = vmul.f32 %v4453, %v5752
        %v5917 = vmul.f32 %v4455, %v5752
        %v5918 = vmul.f32 %v4457, %v5753
        %v5919 = vmul.f32 %v4459, %v5753
        %v5920 = vmul.f32 %v4461, %v5754
        %v5921 = vmul.f32 %v4463, %v5754
        %v5922 = vmul.f32 %v4465, %v5755
        %v5923 = vmul.f32 %v4467, %v5755
        %v5924 = vmul.f32 %v4469, %v5756
        %v5925 = vmul.f32 %v4471, %v5756
        %v5926 = vmul.f32 %v4473, %v5757
        %v5927 = vmul.f32 %v4475, %v5757
        %v5928 = vmul.f32 %v4477, %v5758
        %v5929 = vmul.f32 %v4479, %v5758
        %v5930 = vmul.f32 %v4481, %v5759
        %v5931 = vmul.f32 %v4483, %v5759
        %v5932 = vmul.f32 %v4485, %v5760
        %v5933 = vmul.f32 %v4487, %v5760
        %v5934 = vmul.f32 %v4489, %v5761
        %v5935 = vmul.f32 %v4491, %v5761
        %v5936 = vmul.f32 %v4493, %v5762
        %v5937 = vmul.f32 %v4495, %v5762
        %v5938 = vmul.f32 %v4497, %v5763
        %v5939 = vmul.f32 %v4499, %v5763
        %v5940 = vmul.f32 %v4501, %v5764
        %v5941 = vmul.f32 %v4503, %v5764
        %v5942 = vmul.f32 %v4505, %v5765
        %v5943 = vmul.f32 %v4507, %v5765
        %v5944 = vmul.f32 %v4509, %v5766
        %v5945 = vmul.f32 %v4511, %v5766
        %v5946 = vmul.f32 %v4513, %v5767
        %v5947 = vmul.f32 %v4515, %v5767
        %v5948 = vmul.f32 %v4517, %v5768
        %v5949 = vmul.f32 %v4519, %v5768
        %v5950 = vmul.f32 %v4521, %v5769
        %v5951 = vmul.f32 %v4523, %v5769
        %v5952 = vmul.f32 %v4525, %v5770
        %v5953 = vmul.f32 %v4527, %v5770
        %v5954 = vmul.f32 %v4529, %v5771
        %v5955 = vmul.f32 %v4531, %v5771
        %v5956 = vmul.f32 %v4533, %v5772
        %v5957 = vmul.f32 %v4535, %v5772
        %v5958 = vmul.f32 %v4537, %v5773
        %v5959 = vmul.f32 %v4539, %v5773
        %v5960 = vmul.f32 %v4541, %v5774
        %v5961 = vmul.f32 %v4543, %v5774
        %v5962 = vmul.f32 %v4545, %v5775
        %v5963 = vmul.f32 %v4547, %v5775
        %v5964 = vmul.f32 %v4549, %v5776
        %v5965 = vmul.f32 %v4551, %v5776
        %v5966 = vmul.f32 %v4553, %v5777
        %v5967 = vmul.f32 %v4555, %v5777
        %v5968 = vmul.f32 %v4557, %v5778
        %v5969 = vmul.f32 %v4559, %v5778
        %v5970 = vmul.f32 %v4561, %v5779
        %v5971 = vmul.f32 %v4563, %v5779
        %v5972 = vmul.f32 %v4565, %v5780
        %v5973 = vmul.f32 %v4567, %v5780
        %v5974 = vmul.f32 %v4569, %v5781
        %v5975 = vmul.f32 %v4571, %v5781
        %v5976 = vmul.f32 %v4573, %v5782
        %v5977 = vmul.f32 %v4575, %v5782
        %v5978 = vmul.f32 %v4577, %v5783
        %v5979 = vmul.f32 %v4579, %v5783
        %v5980 = vmul.f32 %v4581, %v5784
        %v5981 = vmul.f32 %v4583, %v5784
        %v5982 = vmul.f32 %v4585, %v5785
        %v5983 = vmul.f32 %v4587, %v5785
        %v5984 = vmul.f32 %v4589, %v5786
        %v5985 = vmul.f32 %v4591, %v5786
        %v5986 = vmul.f32 %v4593, %v5787
        %v5987 = vmul.f32 %v4595, %v5787
        %v5988 = vmul.f32 %v4597, %v5788
        %v5989 = vmul.f32 %v4599, %v5788
        %v5990 = vmul.f32 %v4601, %v5789
        %v5991 = vmul.f32 %v4603, %v5789
        %v5992 = vmul.f32 %v4605, %v5790
        %v5993 = vmul.f32 %v4607, %v5790
        %v5994 = vmul.f32 %v4609, %v5791
        %v5995 = vmul.f32 %v4611, %v5791
        %v5996 = vmul.f32 %v4613, %v5792
        %v5997 = vmul.f32 %v4615, %v5792
        %v5998 = vmul.f32 %v4617, %v5793
        %v5999 = vmul.f32 %v4619, %v5793
        %v6000 = vmul.f32 %v4621, %v5794
        %v6001 = vmul.f32 %v4623, %v5794
        %v6002 = vmul.f32 %v4625, %v5795
        %v6003 = vmul.f32 %v4627, %v5795
        %v6004 = vmul.f32 %v4629, %v5796
        %v6005 = vmul.f32 %v4631, %v5796
        %v6006 = vmul.f32 %v4633, %v5797
        %v6007 = vmul.f32 %v4635, %v5797
        %v6008 = vmul.f32 %v4637, %v5798
        %v6009 = vmul.f32 %v4639, %v5798
        %v6010 = vmul.f32 %v4641, %v5799
        %v6011 = vmul.f32 %v4643, %v5799
        %v6012 = vmul.f32 %v4645, %v5800
        %v6013 = vmul.f32 %v4647, %v5800
        %v6014 = vmul.f32 %v4649, %v5801
        %v6015 = vmul.f32 %v4651, %v5801
        %v6016 = vmul.f32 %v4653, %v5802
        %v6017 = vmul.f32 %v4655, %v5802
        %v6018 = vmul.f32 %v4657, %v5803
        %v6019 = vmul.f32 %v4659, %v5803
        %v6020 = vmul.f32 %v4661, %v5804
        %v6021 = vmul.f32 %v4663, %v5804
        %v6022 = vmul.f32 %v4665, %v5805
        %v6023 = vmul.f32 %v4667, %v5805
        %v6024 = vmul.f32 %v4669, %v5806
        %v6025 = vmul.f32 %v4671, %v5806
        %v6026 = vmul.f32 %v4673, %v5807
        %v6027 = vmul.f32 %v4675, %v5807
        %v6028 = vmul.f32 %v4677, %v5808
        %v6029 = vmul.f32 %v4679, %v5808
        %v6030 = vmul.f32 %v4681, %v5809
        %v6031 = vmul.f32 %v4683, %v5809
        %v6032 = vmul.f32 %v4685, %v5810
        %v6033 = vmul.f32 %v4687, %v5810
        %v6034 = vmul.f32 %v4689, %v5811
        %v6035 = vmul.f32 %v4691, %v5811
        %v6036 = vmul.f32 %v4693, %v5812
        %v6037 = vmul.f32 %v4695, %v5812
        %v6038 = vmul.f32 %v4697, %v5813
        %v6039 = vmul.f32 %v4699, %v5813
        %v6040 = vmul.f32 %v4701, %v5814
        %v6041 = vmul.f32 %v4703, %v5814
        %v6042 = vmul.f32 %v4705, %v5815
        %v6043 = vmul.f32 %v4707, %v5815
        %v6044 = vmul.f32 %v4709, %v5816
        %v6045 = vmul.f32 %v4711, %v5816
        %v6046 = vmul.f32 %v4713, %v5817
        %v6047 = vmul.f32 %v4715, %v5817
        %v6048 = vmul.f32 %v4717, %v5818
        %v6049 = vmul.f32 %v4719, %v5818
        %v6050 = vmul.f32 %v4721, %v5819
        %v6051 = vmul.f32 %v4723, %v5819
        %v6052 = vmul.f32 %v4725, %v5820
        %v6053 = vmul.f32 %v4727, %v5820
        %v6054 = vmul.f32 %v4729, %v5821
        %v6055 = vmul.f32 %v4731, %v5821
        %v6056 = vmul.f32 %v4733, %v5822
        %v6057 = vmul.f32 %v4735, %v5822
        %v6058 = vmul.f32 %v4737, %v5823
        %v6059 = vmul.f32 %v4739, %v5823
        %v6060 = vmul.f32 %v4741, %v5824
        %v6061 = vmul.f32 %v4743, %v5824
        %v6062 = vmul.f32 %v4745, %v5825
        %v6063 = vmul.f32 %v4747, %v5825
        %v6064 = vmul.f32 %v4749, %v5826
        %v6065 = vmul.f32 %v4751, %v5826
        %v6066 = vmul.f32 %v4753, %v5827
        %v6067 = vmul.f32 %v4755, %v5827
        %v6068 = vmul.f32 %v4757, %v5828
        %v6069 = vmul.f32 %v4759, %v5828
        %v6070 = vmul.f32 %v4761, %v5829
        %v6071 = vmul.f32 %v4763, %v5829
        %v6072 = vmul.f32 %v4765, %v5830
        %v6073 = vmul.f32 %v4767, %v5830
        %v6074 = vmul.f32 %v4769, %v5831
        %v6075 = vmul.f32 %v4771, %v5831
        %v6076 = vmul.f32 %v4773, %v5832
        %v6077 = vmul.f32 %v4775, %v5832
        %v6078 = vmul.f32 %v4777, %v5833
        %v6079 = vmul.f32 %v4779, %v5833
        %v6080 = vmul.f32 %v4781, %v5834
        %v6081 = vmul.f32 %v4783, %v5834
        %v6082 = vmul.f32 %v4785, %v5835
        %v6083 = vmul.f32 %v4787, %v5835
        %v6084 = vmul.f32 %v4789, %v5836
        %v6085 = vmul.f32 %v4791, %v5836
        %v6086 = vmul.f32 %v4793, %v5837
        %v6087 = vmul.f32 %v4795, %v5837
        %v6088 = vmul.f32 %v4797, %v5838
        %v6089 = vmul.f32 %v4799, %v5838
        %v6090 = vmul.f32 %v4801, %v5839
        %v6091 = vmul.f32 %v4803, %v5839
        %v6092 = vmul.f32 %v4805, %v5840
        %v6093 = vmul.f32 %v4807, %v5840
        %v6094 = vmul.f32 %v4809, %v5841
        %v6095 = vmul.f32 %v4811, %v5841
        %v6096 = vmul.f32 %v4813, %v5842
        %v6097 = vmul.f32 %v4815, %v5842
        %v6098 = vmul.f32 %v4817, %v5843
        %v6099 = vmul.f32 %v4819, %v5843
        %v6100 = vmul.f32 %v5844, %v244
        %v6101 = vmul.f32 %v5845, %v245
        %v6102 = vmul.f32 %v5846, %v246
        %v6103 = vmul.f32 %v5847, %v247
        %v6104 = vmul.f32 %v5848, %v248
        %v6105 = vmul.f32 %v5849, %v249
        %v6106 = vmul.f32 %v5850, %v250
        %v6107 = vmul.f32 %v5851, %v251
        %v6108 = vmul.f32 %v5852, %v252
        %v6109 = vmul.f32 %v5853, %v253
        %v6110 = vmul.f32 %v5854, %v254
        %v6111 = vmul.f32 %v5855, %v255
        %v6112 = vmul.f32 %v5856, %v256
        %v6113 = vmul.f32 %v5857, %v257
        %v6114 = vmul.f32 %v5858, %v258
        %v6115 = vmul.f32 %v5859, %v259
        %v6116 = vmul.f32 %v5860, %v260
        %v6117 = vmul.f32 %v5861, %v261
        %v6118 = vmul.f32 %v5862, %v262
        %v6119 = vmul.f32 %v5863, %v263
        %v6120 = vmul.f32 %v5864, %v264
        %v6121 = vmul.f32 %v5865, %v265
        %v6122 = vmul.f32 %v5866, %v266
        %v6123 = vmul.f32 %v5867, %v267
        %v6124 = vmul.f32 %v5868, %v268
        %v6125 = vmul.f32 %v5869, %v269
        %v6126 = vmul.f32 %v5870, %v270
        %v6127 = vmul.f32 %v5871, %v271
        %v6128 = vmul.f32 %v5872, %v272
        %v6129 = vmul.f32 %v5873, %v273
        %v6130 = vmul.f32 %v5874, %v274
        %v6131 = vmul.f32 %v5875, %v275
        %v6132 = vmul.f32 %v5876, %v276
        %v6133 = vmul.f32 %v5877, %v277
        %v6134 = vmul.f32 %v5878, %v278
        %v6135 = vmul.f32 %v5879, %v279
        %v6136 = vmul.f32 %v5880, %v280
        %v6137 = vmul.f32 %v5881, %v281
        %v6138 = vmul.f32 %v5882, %v282
        %v6139 = vmul.f32 %v5883, %v283
        %v6140 = vmul.f32 %v5884, %v284
        %v6141 = vmul.f32 %v5885, %v285
        %v6142 = vmul.f32 %v5886, %v286
        %v6143 = vmul.f32 %v5887, %v287
        %v6144 = vmul.f32 %v5888, %v288
        %v6145 = vmul.f32 %v5889, %v289
        %v6146 = vmul.f32 %v5890, %v290
        %v6147 = vmul.f32 %v5891, %v291
        %v6148 = vmul.f32 %v5892, %v292
        %v6149 = vmul.f32 %v5893, %v293
        %v6150 = vmul.f32 %v5894, %v294
        %v6151 = vmul.f32 %v5895, %v295
        %v6152 = vmul.f32 %v5896, %v296
        %v6153 = vmul.f32 %v5897, %v297
        %v6154 = vmul.f32 %v5898, %v298
        %v6155 = vmul.f32 %v5899, %v299
        %v6156 = vmul.f32 %v5900, %v300
        %v6157 = vmul.f32 %v5901, %v301
        %v6158 = vmul.f32 %v5902, %v302
        %v6159 = vmul.f32 %v5903, %v303
        %v6160 = vmul.f32 %v5904, %v304
        %v6161 = vmul.f32 %v5905, %v305
        %v6162 = vmul.f32 %v5906, %v306
        %v6163 = vmul.f32 %v5907, %v307
        %v6164 = vmul.f32 %v5908, %v308
        %v6165 = vmul.f32 %v5909, %v309
        %v6166 = vmul.f32 %v5910, %v310
        %v6167 = vmul.f32 %v5911, %v311
        %v6168 = vmul.f32 %v5912, %v312
        %v6169 = vmul.f32 %v5913, %v313
        %v6170 = vmul.f32 %v5914, %v314
        %v6171 = vmul.f32 %v5915, %v315
        %v6172 = vmul.f32 %v5916, %v316
        %v6173 = vmul.f32 %v5917, %v317
        %v6174 = vmul.f32 %v5918, %v318
        %v6175 = vmul.f32 %v5919, %v319
        %v6176 = vmul.f32 %v5920, %v320
        %v6177 = vmul.f32 %v5921, %v321
        %v6178 = vmul.f32 %v5922, %v322
        %v6179 = vmul.f32 %v5923, %v323
        %v6180 = vmul.f32 %v5924, %v324
        %v6181 = vmul.f32 %v5925, %v325
        %v6182 = vmul.f32 %v5926, %v326
        %v6183 = vmul.f32 %v5927, %v327
        %v6184 = vmul.f32 %v5928, %v328
        %v6185 = vmul.f32 %v5929, %v329
        %v6186 = vmul.f32 %v5930, %v330
        %v6187 = vmul.f32 %v5931, %v331
        %v6188 = vmul.f32 %v5932, %v332
        %v6189 = vmul.f32 %v5933, %v333
        %v6190 = vmul.f32 %v5934, %v334
        %v6191 = vmul.f32 %v5935, %v335
        %v6192 = vmul.f32 %v5936, %v336
        %v6193 = vmul.f32 %v5937, %v337
        %v6194 = vmul.f32 %v5938, %v338
        %v6195 = vmul.f32 %v5939, %v339
        %v6196 = vmul.f32 %v5940, %v340
        %v6197 = vmul.f32 %v5941, %v341
        %v6198 = vmul.f32 %v5942, %v342
        %v6199 = vmul.f32 %v5943, %v343
        %v6200 = vmul.f32 %v5944, %v344
        %v6201 = vmul.f32 %v5945, %v345
        %v6202 = vmul.f32 %v5946, %v346
        %v6203 = vmul.f32 %v5947, %v347
        %v6204 = vmul.f32 %v5948, %v348
        %v6205 = vmul.f32 %v5949, %v349
        %v6206 = vmul.f32 %v5950, %v350
        %v6207 = vmul.f32 %v5951, %v351
        %v6208 = vmul.f32 %v5952, %v352
        %v6209 = vmul.f32 %v5953, %v353
        %v6210 = vmul.f32 %v5954, %v354
        %v6211 = vmul.f32 %v5955, %v355
        %v6212 = vmul.f32 %v5956, %v356
        %v6213 = vmul.f32 %v5957, %v357
        %v6214 = vmul.f32 %v5958, %v358
        %v6215 = vmul.f32 %v5959, %v359
        %v6216 = vmul.f32 %v5960, %v360
        %v6217 = vmul.f32 %v5961, %v361
        %v6218 = vmul.f32 %v5962, %v362
        %v6219 = vmul.f32 %v5963, %v363
        %v6220 = vmul.f32 %v5964, %v364
        %v6221 = vmul.f32 %v5965, %v365
        %v6222 = vmul.f32 %v5966, %v366
        %v6223 = vmul.f32 %v5967, %v367
        %v6224 = vmul.f32 %v5968, %v368
        %v6225 = vmul.f32 %v5969, %v369
        %v6226 = vmul.f32 %v5970, %v370
        %v6227 = vmul.f32 %v5971, %v371
        %v6228 = vmul.f32 %v5972, %v372
        %v6229 = vmul.f32 %v5973, %v373
        %v6230 = vmul.f32 %v5974, %v374
        %v6231 = vmul.f32 %v5975, %v375
        %v6232 = vmul.f32 %v5976, %v376
        %v6233 = vmul.f32 %v5977, %v377
        %v6234 = vmul.f32 %v5978, %v378
        %v6235 = vmul.f32 %v5979, %v379
        %v6236 = vmul.f32 %v5980, %v380
        %v6237 = vmul.f32 %v5981, %v381
        %v6238 = vmul.f32 %v5982, %v382
        %v6239 = vmul.f32 %v5983, %v383
        %v6240 = vmul.f32 %v5984, %v384
        %v6241 = vmul.f32 %v5985, %v385
        %v6242 = vmul.f32 %v5986, %v386
        %v6243 = vmul.f32 %v5987, %v387
        %v6244 = vmul.f32 %v5988, %v388
        %v6245 = vmul.f32 %v5989, %v389
        %v6246 = vmul.f32 %v5990, %v390
        %v6247 = vmul.f32 %v5991, %v391
        %v6248 = vmul.f32 %v5992, %v392
        %v6249 = vmul.f32 %v5993, %v393
        %v6250 = vmul.f32 %v5994, %v394
        %v6251 = vmul.f32 %v5995, %v395
        %v6252 = vmul.f32 %v5996, %v396
        %v6253 = vmul.f32 %v5997, %v397
        %v6254 = vmul.f32 %v5998, %v398
        %v6255 = vmul.f32 %v5999, %v399
        %v6256 = vmul.f32 %v6000, %v400
        %v6257 = vmul.f32 %v6001, %v401
        %v6258 = vmul.f32 %v6002, %v402
        %v6259 = vmul.f32 %v6003, %v403
        %v6260 = vmul.f32 %v6004, %v404
        %v6261 = vmul.f32 %v6005, %v405
        %v6262 = vmul.f32 %v6006, %v406
        %v6263 = vmul.f32 %v6007, %v407
        %v6264 = vmul.f32 %v6008, %v408
        %v6265 = vmul.f32 %v6009, %v409
        %v6266 = vmul.f32 %v6010, %v410
        %v6267 = vmul.f32 %v6011, %v411
        %v6268 = vmul.f32 %v6012, %v412
        %v6269 = vmul.f32 %v6013, %v413
        %v6270 = vmul.f32 %v6014, %v414
        %v6271 = vmul.f32 %v6015, %v415
        %v6272 = vmul.f32 %v6016, %v416
        %v6273 = vmul.f32 %v6017, %v417
        %v6274 = vmul.f32 %v6018, %v418
        %v6275 = vmul.f32 %v6019, %v419
        %v6276 = vmul.f32 %v6020, %v420
        %v6277 = vmul.f32 %v6021, %v421
        %v6278 = vmul.f32 %v6022, %v422
        %v6279 = vmul.f32 %v6023, %v423
        %v6280 = vmul.f32 %v6024, %v424
        %v6281 = vmul.f32 %v6025, %v425
        %v6282 = vmul.f32 %v6026, %v426
        %v6283 = vmul.f32 %v6027, %v427
        %v6284 = vmul.f32 %v6028, %v428
        %v6285 = vmul.f32 %v6029, %v429
        %v6286 = vmul.f32 %v6030, %v430
        %v6287 = vmul.f32 %v6031, %v431
        %v6288 = vmul.f32 %v6032, %v432
        %v6289 = vmul.f32 %v6033, %v433
        %v6290 = vmul.f32 %v6034, %v434
        %v6291 = vmul.f32 %v6035, %v435
        %v6292 = vmul.f32 %v6036, %v436
        %v6293 = vmul.f32 %v6037, %v437
        %v6294 = vmul.f32 %v6038, %v438
        %v6295 = vmul.f32 %v6039, %v439
        %v6296 = vmul.f32 %v6040, %v440
        %v6297 = vmul.f32 %v6041, %v441
        %v6298 = vmul.f32 %v6042, %v442
        %v6299 = vmul.f32 %v6043, %v443
        %v6300 = vmul.f32 %v6044, %v444
        %v6301 = vmul.f32 %v6045, %v445
        %v6302 = vmul.f32 %v6046, %v446
        %v6303 = vmul.f32 %v6047, %v447
        %v6304 = vmul.f32 %v6048, %v448
        %v6305 = vmul.f32 %v6049, %v449
        %v6306 = vmul.f32 %v6050, %v450
        %v6307 = vmul.f32 %v6051, %v451
        %v6308 = vmul.f32 %v6052, %v452
        %v6309 = vmul.f32 %v6053, %v453
        %v6310 = vmul.f32 %v6054, %v454
        %v6311 = vmul.f32 %v6055, %v455
        %v6312 = vmul.f32 %v6056, %v456
        %v6313 = vmul.f32 %v6057, %v457
        %v6314 = vmul.f32 %v6058, %v458
        %v6315 = vmul.f32 %v6059, %v459
        %v6316 = vmul.f32 %v6060, %v460
        %v6317 = vmul.f32 %v6061, %v461
        %v6318 = vmul.f32 %v6062, %v462
        %v6319 = vmul.f32 %v6063, %v463
        %v6320 = vmul.f32 %v6064, %v464
        %v6321 = vmul.f32 %v6065, %v465
        %v6322 = vmul.f32 %v6066, %v466
        %v6323 = vmul.f32 %v6067, %v467
        %v6324 = vmul.f32 %v6068, %v468
        %v6325 = vmul.f32 %v6069, %v469
        %v6326 = vmul.f32 %v6070, %v470
        %v6327 = vmul.f32 %v6071, %v471
        %v6328 = vmul.f32 %v6072, %v472
        %v6329 = vmul.f32 %v6073, %v473
        %v6330 = vmul.f32 %v6074, %v474
        %v6331 = vmul.f32 %v6075, %v475
        %v6332 = vmul.f32 %v6076, %v476
        %v6333 = vmul.f32 %v6077, %v477
        %v6334 = vmul.f32 %v6078, %v478
        %v6335 = vmul.f32 %v6079, %v479
        %v6336 = vmul.f32 %v6080, %v480
        %v6337 = vmul.f32 %v6081, %v481
        %v6338 = vmul.f32 %v6082, %v482
        %v6339 = vmul.f32 %v6083, %v483
        %v6340 = vmul.f32 %v6084, %v484
        %v6341 = vmul.f32 %v6085, %v485
        %v6342 = vmul.f32 %v6086, %v486
        %v6343 = vmul.f32 %v6087, %v487
        %v6344 = vmul.f32 %v6088, %v488
        %v6345 = vmul.f32 %v6089, %v489
        %v6346 = vmul.f32 %v6090, %v490
        %v6347 = vmul.f32 %v6091, %v491
        %v6348 = vmul.f32 %v6092, %v492
        %v6349 = vmul.f32 %v6093, %v493
        %v6350 = vmul.f32 %v6094, %v494
        %v6351 = vmul.f32 %v6095, %v495
        %v6352 = vmul.f32 %v6096, %v496
        %v6353 = vmul.f32 %v6097, %v497
        %v6354 = vmul.f32 %v6098, %v498
        %v6355 = vmul.f32 %v6099, %v499
        %v6356 = vadd.f32 %v6100, %v6101
        %v6357 = vrot.slane %v6356, 4
        %v6358 = vadd.f32 %v6356, %v6357
        %v6359 = vrot.slane %v6358, 2
        %v6360 = vadd.f32 %v6358, %v6359
        %v6361 = vrot.slane %v6360, 1
        %v6362 = vadd.f32 %v6360, %v6361
        %v6363 = vadd.f32 %v6102, %v6103
        %v6364 = vrot.slane %v6363, 4
        %v6365 = vadd.f32 %v6363, %v6364
        %v6366 = vrot.slane %v6365, 2
        %v6367 = vadd.f32 %v6365, %v6366
        %v6368 = vrot.slane %v6367, 1
        %v6369 = vadd.f32 %v6367, %v6368
        %v6370 = vadd.f32 %v6104, %v6105
        %v6371 = vrot.slane %v6370, 4
        %v6372 = vadd.f32 %v6370, %v6371
        %v6373 = vrot.slane %v6372, 2
        %v6374 = vadd.f32 %v6372, %v6373
        %v6375 = vrot.slane %v6374, 1
        %v6376 = vadd.f32 %v6374, %v6375
        %v6377 = vadd.f32 %v6106, %v6107
        %v6378 = vrot.slane %v6377, 4
        %v6379 = vadd.f32 %v6377, %v6378
        %v6380 = vrot.slane %v6379, 2
        %v6381 = vadd.f32 %v6379, %v6380
        %v6382 = vrot.slane %v6381, 1
        %v6383 = vadd.f32 %v6381, %v6382
        %v6384 = vadd.f32 %v6108, %v6109
        %v6385 = vrot.slane %v6384, 4
        %v6386 = vadd.f32 %v6384, %v6385
        %v6387 = vrot.slane %v6386, 2
        %v6388 = vadd.f32 %v6386, %v6387
        %v6389 = vrot.slane %v6388, 1
        %v6390 = vadd.f32 %v6388, %v6389
        %v6391 = vadd.f32 %v6110, %v6111
        %v6392 = vrot.slane %v6391, 4
        %v6393 = vadd.f32 %v6391, %v6392
        %v6394 = vrot.slane %v6393, 2
        %v6395 = vadd.f32 %v6393, %v6394
        %v6396 = vrot.slane %v6395, 1
        %v6397 = vadd.f32 %v6395, %v6396
        %v6398 = vadd.f32 %v6112, %v6113
        %v6399 = vrot.slane %v6398, 4
        %v6400 = vadd.f32 %v6398, %v6399
        %v6401 = vrot.slane %v6400, 2
        %v6402 = vadd.f32 %v6400, %v6401
        %v6403 = vrot.slane %v6402, 1
        %v6404 = vadd.f32 %v6402, %v6403
        %v6405 = vadd.f32 %v6114, %v6115
        %v6406 = vrot.slane %v6405, 4
        %v6407 = vadd.f32 %v6405, %v6406
        %v6408 = vrot.slane %v6407, 2
        %v6409 = vadd.f32 %v6407, %v6408
        %v6410 = vrot.slane %v6409, 1
        %v6411 = vadd.f32 %v6409, %v6410
        %v6412 = vadd.f32 %v6116, %v6117
        %v6413 = vrot.slane %v6412, 4
        %v6414 = vadd.f32 %v6412, %v6413
        %v6415 = vrot.slane %v6414, 2
        %v6416 = vadd.f32 %v6414, %v6415
        %v6417 = vrot.slane %v6416, 1
        %v6418 = vadd.f32 %v6416, %v6417
        %v6419 = vadd.f32 %v6118, %v6119
        %v6420 = vrot.slane %v6419, 4
        %v6421 = vadd.f32 %v6419, %v6420
        %v6422 = vrot.slane %v6421, 2
        %v6423 = vadd.f32 %v6421, %v6422
        %v6424 = vrot.slane %v6423, 1
        %v6425 = vadd.f32 %v6423, %v6424
        %v6426 = vadd.f32 %v6120, %v6121
        %v6427 = vrot.slane %v6426, 4
        %v6428 = vadd.f32 %v6426, %v6427
        %v6429 = vrot.slane %v6428, 2
        %v6430 = vadd.f32 %v6428, %v6429
        %v6431 = vrot.slane %v6430, 1
        %v6432 = vadd.f32 %v6430, %v6431
        %v6433 = vadd.f32 %v6122, %v6123
        %v6434 = vrot.slane %v6433, 4
        %v6435 = vadd.f32 %v6433, %v6434
        %v6436 = vrot.slane %v6435, 2
        %v6437 = vadd.f32 %v6435, %v6436
        %v6438 = vrot.slane %v6437, 1
        %v6439 = vadd.f32 %v6437, %v6438
        %v6440 = vadd.f32 %v6124, %v6125
        %v6441 = vrot.slane %v6440, 4
        %v6442 = vadd.f32 %v6440, %v6441
        %v6443 = vrot.slane %v6442, 2
        %v6444 = vadd.f32 %v6442, %v6443
        %v6445 = vrot.slane %v6444, 1
        %v6446 = vadd.f32 %v6444, %v6445
        %v6447 = vadd.f32 %v6126, %v6127
        %v6448 = vrot.slane %v6447, 4
        %v6449 = vadd.f32 %v6447, %v6448
        %v6450 = vrot.slane %v6449, 2
        %v6451 = vadd.f32 %v6449, %v6450
        %v6452 = vrot.slane %v6451, 1
        %v6453 = vadd.f32 %v6451, %v6452
        %v6454 = vadd.f32 %v6128, %v6129
        %v6455 = vrot.slane %v6454, 4
        %v6456 = vadd.f32 %v6454, %v6455
        %v6457 = vrot.slane %v6456, 2
        %v6458 = vadd.f32 %v6456, %v6457
        %v6459 = vrot.slane %v6458, 1
        %v6460 = vadd.f32 %v6458, %v6459
        %v6461 = vadd.f32 %v6130, %v6131
        %v6462 = vrot.slane %v6461, 4
        %v6463 = vadd.f32 %v6461, %v6462
        %v6464 = vrot.slane %v6463, 2
        %v6465 = vadd.f32 %v6463, %v6464
        %v6466 = vrot.slane %v6465, 1
        %v6467 = vadd.f32 %v6465, %v6466
        %v6468 = vadd.f32 %v6132, %v6133
        %v6469 = vrot.slane %v6468, 4
        %v6470 = vadd.f32 %v6468, %v6469
        %v6471 = vrot.slane %v6470, 2
        %v6472 = vadd.f32 %v6470, %v6471
        %v6473 = vrot.slane %v6472, 1
        %v6474 = vadd.f32 %v6472, %v6473
        %v6475 = vadd.f32 %v6134, %v6135
        %v6476 = vrot.slane %v6475, 4
        %v6477 = vadd.f32 %v6475, %v6476
        %v6478 = vrot.slane %v6477, 2
        %v6479 = vadd.f32 %v6477, %v6478
        %v6480 = vrot.slane %v6479, 1
        %v6481 = vadd.f32 %v6479, %v6480
        %v6482 = vadd.f32 %v6136, %v6137
        %v6483 = vrot.slane %v6482, 4
        %v6484 = vadd.f32 %v6482, %v6483
        %v6485 = vrot.slane %v6484, 2
        %v6486 = vadd.f32 %v6484, %v6485
        %v6487 = vrot.slane %v6486, 1
        %v6488 = vadd.f32 %v6486, %v6487
        %v6489 = vadd.f32 %v6138, %v6139
        %v6490 = vrot.slane %v6489, 4
        %v6491 = vadd.f32 %v6489, %v6490
        %v6492 = vrot.slane %v6491, 2
        %v6493 = vadd.f32 %v6491, %v6492
        %v6494 = vrot.slane %v6493, 1
        %v6495 = vadd.f32 %v6493, %v6494
        %v6496 = vadd.f32 %v6140, %v6141
        %v6497 = vrot.slane %v6496, 4
        %v6498 = vadd.f32 %v6496, %v6497
        %v6499 = vrot.slane %v6498, 2
        %v6500 = vadd.f32 %v6498, %v6499
        %v6501 = vrot.slane %v6500, 1
        %v6502 = vadd.f32 %v6500, %v6501
        %v6503 = vadd.f32 %v6142, %v6143
        %v6504 = vrot.slane %v6503, 4
        %v6505 = vadd.f32 %v6503, %v6504
        %v6506 = vrot.slane %v6505, 2
        %v6507 = vadd.f32 %v6505, %v6506
        %v6508 = vrot.slane %v6507, 1
        %v6509 = vadd.f32 %v6507, %v6508
        %v6510 = vadd.f32 %v6144, %v6145
        %v6511 = vrot.slane %v6510, 4
        %v6512 = vadd.f32 %v6510, %v6511
        %v6513 = vrot.slane %v6512, 2
        %v6514 = vadd.f32 %v6512, %v6513
        %v6515 = vrot.slane %v6514, 1
        %v6516 = vadd.f32 %v6514, %v6515
        %v6517 = vadd.f32 %v6146, %v6147
        %v6518 = vrot.slane %v6517, 4
        %v6519 = vadd.f32 %v6517, %v6518
        %v6520 = vrot.slane %v6519, 2
        %v6521 = vadd.f32 %v6519, %v6520
        %v6522 = vrot.slane %v6521, 1
        %v6523 = vadd.f32 %v6521, %v6522
        %v6524 = vadd.f32 %v6148, %v6149
        %v6525 = vrot.slane %v6524, 4
        %v6526 = vadd.f32 %v6524, %v6525
        %v6527 = vrot.slane %v6526, 2
        %v6528 = vadd.f32 %v6526, %v6527
        %v6529 = vrot.slane %v6528, 1
        %v6530 = vadd.f32 %v6528, %v6529
        %v6531 = vadd.f32 %v6150, %v6151
        %v6532 = vrot.slane %v6531, 4
        %v6533 = vadd.f32 %v6531, %v6532
        %v6534 = vrot.slane %v6533, 2
        %v6535 = vadd.f32 %v6533, %v6534
        %v6536 = vrot.slane %v6535, 1
        %v6537 = vadd.f32 %v6535, %v6536
        %v6538 = vadd.f32 %v6152, %v6153
        %v6539 = vrot.slane %v6538, 4
        %v6540 = vadd.f32 %v6538, %v6539
        %v6541 = vrot.slane %v6540, 2
        %v6542 = vadd.f32 %v6540, %v6541
        %v6543 = vrot.slane %v6542, 1
        %v6544 = vadd.f32 %v6542, %v6543
        %v6545 = vadd.f32 %v6154, %v6155
        %v6546 = vrot.slane %v6545, 4
        %v6547 = vadd.f32 %v6545, %v6546
        %v6548 = vrot.slane %v6547, 2
        %v6549 = vadd.f32 %v6547, %v6548
        %v6550 = vrot.slane %v6549, 1
        %v6551 = vadd.f32 %v6549, %v6550
        %v6552 = vadd.f32 %v6156, %v6157
        %v6553 = vrot.slane %v6552, 4
        %v6554 = vadd.f32 %v6552, %v6553
        %v6555 = vrot.slane %v6554, 2
        %v6556 = vadd.f32 %v6554, %v6555
        %v6557 = vrot.slane %v6556, 1
        %v6558 = vadd.f32 %v6556, %v6557
        %v6559 = vadd.f32 %v6158, %v6159
        %v6560 = vrot.slane %v6559, 4
        %v6561 = vadd.f32 %v6559, %v6560
        %v6562 = vrot.slane %v6561, 2
        %v6563 = vadd.f32 %v6561, %v6562
        %v6564 = vrot.slane %v6563, 1
        %v6565 = vadd.f32 %v6563, %v6564
        %v6566 = vadd.f32 %v6160, %v6161
        %v6567 = vrot.slane %v6566, 4
        %v6568 = vadd.f32 %v6566, %v6567
        %v6569 = vrot.slane %v6568, 2
        %v6570 = vadd.f32 %v6568, %v6569
        %v6571 = vrot.slane %v6570, 1
        %v6572 = vadd.f32 %v6570, %v6571
        %v6573 = vadd.f32 %v6162, %v6163
        %v6574 = vrot.slane %v6573, 4
        %v6575 = vadd.f32 %v6573, %v6574
        %v6576 = vrot.slane %v6575, 2
        %v6577 = vadd.f32 %v6575, %v6576
        %v6578 = vrot.slane %v6577, 1
        %v6579 = vadd.f32 %v6577, %v6578
        %v6580 = vadd.f32 %v6164, %v6165
        %v6581 = vrot.slane %v6580, 4
        %v6582 = vadd.f32 %v6580, %v6581
        %v6583 = vrot.slane %v6582, 2
        %v6584 = vadd.f32 %v6582, %v6583
        %v6585 = vrot.slane %v6584, 1
        %v6586 = vadd.f32 %v6584, %v6585
        %v6587 = vadd.f32 %v6166, %v6167
        %v6588 = vrot.slane %v6587, 4
        %v6589 = vadd.f32 %v6587, %v6588
        %v6590 = vrot.slane %v6589, 2
        %v6591 = vadd.f32 %v6589, %v6590
        %v6592 = vrot.slane %v6591, 1
        %v6593 = vadd.f32 %v6591, %v6592
        %v6594 = vadd.f32 %v6168, %v6169
        %v6595 = vrot.slane %v6594, 4
        %v6596 = vadd.f32 %v6594, %v6595
        %v6597 = vrot.slane %v6596, 2
        %v6598 = vadd.f32 %v6596, %v6597
        %v6599 = vrot.slane %v6598, 1
        %v6600 = vadd.f32 %v6598, %v6599
        %v6601 = vadd.f32 %v6170, %v6171
        %v6602 = vrot.slane %v6601, 4
        %v6603 = vadd.f32 %v6601, %v6602
        %v6604 = vrot.slane %v6603, 2
        %v6605 = vadd.f32 %v6603, %v6604
        %v6606 = vrot.slane %v6605, 1
        %v6607 = vadd.f32 %v6605, %v6606
        %v6608 = vadd.f32 %v6172, %v6173
        %v6609 = vrot.slane %v6608, 4
        %v6610 = vadd.f32 %v6608, %v6609
        %v6611 = vrot.slane %v6610, 2
        %v6612 = vadd.f32 %v6610, %v6611
        %v6613 = vrot.slane %v6612, 1
        %v6614 = vadd.f32 %v6612, %v6613
        %v6615 = vadd.f32 %v6174, %v6175
        %v6616 = vrot.slane %v6615, 4
        %v6617 = vadd.f32 %v6615, %v6616
        %v6618 = vrot.slane %v6617, 2
        %v6619 = vadd.f32 %v6617, %v6618
        %v6620 = vrot.slane %v6619, 1
        %v6621 = vadd.f32 %v6619, %v6620
        %v6622 = vadd.f32 %v6176, %v6177
        %v6623 = vrot.slane %v6622, 4
        %v6624 = vadd.f32 %v6622, %v6623
        %v6625 = vrot.slane %v6624, 2
        %v6626 = vadd.f32 %v6624, %v6625
        %v6627 = vrot.slane %v6626, 1
        %v6628 = vadd.f32 %v6626, %v6627
        %v6629 = vadd.f32 %v6178, %v6179
        %v6630 = vrot.slane %v6629, 4
        %v6631 = vadd.f32 %v6629, %v6630
        %v6632 = vrot.slane %v6631, 2
        %v6633 = vadd.f32 %v6631, %v6632
        %v6634 = vrot.slane %v6633, 1
        %v6635 = vadd.f32 %v6633, %v6634
        %v6636 = vadd.f32 %v6180, %v6181
        %v6637 = vrot.slane %v6636, 4
        %v6638 = vadd.f32 %v6636, %v6637
        %v6639 = vrot.slane %v6638, 2
        %v6640 = vadd.f32 %v6638, %v6639
        %v6641 = vrot.slane %v6640, 1
        %v6642 = vadd.f32 %v6640, %v6641
        %v6643 = vadd.f32 %v6182, %v6183
        %v6644 = vrot.slane %v6643, 4
        %v6645 = vadd.f32 %v6643, %v6644
        %v6646 = vrot.slane %v6645, 2
        %v6647 = vadd.f32 %v6645, %v6646
        %v6648 = vrot.slane %v6647, 1
        %v6649 = vadd.f32 %v6647, %v6648
        %v6650 = vadd.f32 %v6184, %v6185
        %v6651 = vrot.slane %v6650, 4
        %v6652 = vadd.f32 %v6650, %v6651
        %v6653 = vrot.slane %v6652, 2
        %v6654 = vadd.f32 %v6652, %v6653
        %v6655 = vrot.slane %v6654, 1
        %v6656 = vadd.f32 %v6654, %v6655
        %v6657 = vadd.f32 %v6186, %v6187
        %v6658 = vrot.slane %v6657, 4
        %v6659 = vadd.f32 %v6657, %v6658
        %v6660 = vrot.slane %v6659, 2
        %v6661 = vadd.f32 %v6659, %v6660
        %v6662 = vrot.slane %v6661, 1
        %v6663 = vadd.f32 %v6661, %v6662
        %v6664 = vadd.f32 %v6188, %v6189
        %v6665 = vrot.slane %v6664, 4
        %v6666 = vadd.f32 %v6664, %v6665
        %v6667 = vrot.slane %v6666, 2
        %v6668 = vadd.f32 %v6666, %v6667
        %v6669 = vrot.slane %v6668, 1
        %v6670 = vadd.f32 %v6668, %v6669
        %v6671 = vadd.f32 %v6190, %v6191
        %v6672 = vrot.slane %v6671, 4
        %v6673 = vadd.f32 %v6671, %v6672
        %v6674 = vrot.slane %v6673, 2
        %v6675 = vadd.f32 %v6673, %v6674
        %v6676 = vrot.slane %v6675, 1
        %v6677 = vadd.f32 %v6675, %v6676
        %v6678 = vadd.f32 %v6192, %v6193
        %v6679 = vrot.slane %v6678, 4
        %v6680 = vadd.f32 %v6678, %v6679
        %v6681 = vrot.slane %v6680, 2
        %v6682 = vadd.f32 %v6680, %v6681
        %v6683 = vrot.slane %v6682, 1
        %v6684 = vadd.f32 %v6682, %v6683
        %v6685 = vadd.f32 %v6194, %v6195
        %v6686 = vrot.slane %v6685, 4
        %v6687 = vadd.f32 %v6685, %v6686
        %v6688 = vrot.slane %v6687, 2
        %v6689 = vadd.f32 %v6687, %v6688
        %v6690 = vrot.slane %v6689, 1
        %v6691 = vadd.f32 %v6689, %v6690
        %v6692 = vadd.f32 %v6196, %v6197
        %v6693 = vrot.slane %v6692, 4
        %v6694 = vadd.f32 %v6692, %v6693
        %v6695 = vrot.slane %v6694, 2
        %v6696 = vadd.f32 %v6694, %v6695
        %v6697 = vrot.slane %v6696, 1
        %v6698 = vadd.f32 %v6696, %v6697
        %v6699 = vadd.f32 %v6198, %v6199
        %v6700 = vrot.slane %v6699, 4
        %v6701 = vadd.f32 %v6699, %v6700
        %v6702 = vrot.slane %v6701, 2
        %v6703 = vadd.f32 %v6701, %v6702
        %v6704 = vrot.slane %v6703, 1
        %v6705 = vadd.f32 %v6703, %v6704
        %v6706 = vadd.f32 %v6200, %v6201
        %v6707 = vrot.slane %v6706, 4
        %v6708 = vadd.f32 %v6706, %v6707
        %v6709 = vrot.slane %v6708, 2
        %v6710 = vadd.f32 %v6708, %v6709
        %v6711 = vrot.slane %v6710, 1
        %v6712 = vadd.f32 %v6710, %v6711
        %v6713 = vadd.f32 %v6202, %v6203
        %v6714 = vrot.slane %v6713, 4
        %v6715 = vadd.f32 %v6713, %v6714
        %v6716 = vrot.slane %v6715, 2
        %v6717 = vadd.f32 %v6715, %v6716
        %v6718 = vrot.slane %v6717, 1
        %v6719 = vadd.f32 %v6717, %v6718
        %v6720 = vadd.f32 %v6204, %v6205
        %v6721 = vrot.slane %v6720, 4
        %v6722 = vadd.f32 %v6720, %v6721
        %v6723 = vrot.slane %v6722, 2
        %v6724 = vadd.f32 %v6722, %v6723
        %v6725 = vrot.slane %v6724, 1
        %v6726 = vadd.f32 %v6724, %v6725
        %v6727 = vadd.f32 %v6206, %v6207
        %v6728 = vrot.slane %v6727, 4
        %v6729 = vadd.f32 %v6727, %v6728
        %v6730 = vrot.slane %v6729, 2
        %v6731 = vadd.f32 %v6729, %v6730
        %v6732 = vrot.slane %v6731, 1
        %v6733 = vadd.f32 %v6731, %v6732
        %v6734 = vadd.f32 %v6208, %v6209
        %v6735 = vrot.slane %v6734, 4
        %v6736 = vadd.f32 %v6734, %v6735
        %v6737 = vrot.slane %v6736, 2
        %v6738 = vadd.f32 %v6736, %v6737
        %v6739 = vrot.slane %v6738, 1
        %v6740 = vadd.f32 %v6738, %v6739
        %v6741 = vadd.f32 %v6210, %v6211
        %v6742 = vrot.slane %v6741, 4
        %v6743 = vadd.f32 %v6741, %v6742
        %v6744 = vrot.slane %v6743, 2
        %v6745 = vadd.f32 %v6743, %v6744
        %v6746 = vrot.slane %v6745, 1
        %v6747 = vadd.f32 %v6745, %v6746
        %v6748 = vadd.f32 %v6212, %v6213
        %v6749 = vrot.slane %v6748, 4
        %v6750 = vadd.f32 %v6748, %v6749
        %v6751 = vrot.slane %v6750, 2
        %v6752 = vadd.f32 %v6750, %v6751
        %v6753 = vrot.slane %v6752, 1
        %v6754 = vadd.f32 %v6752, %v6753
        %v6755 = vadd.f32 %v6214, %v6215
        %v6756 = vrot.slane %v6755, 4
        %v6757 = vadd.f32 %v6755, %v6756
        %v6758 = vrot.slane %v6757, 2
        %v6759 = vadd.f32 %v6757, %v6758
        %v6760 = vrot.slane %v6759, 1
        %v6761 = vadd.f32 %v6759, %v6760
        %v6762 = vadd.f32 %v6216, %v6217
        %v6763 = vrot.slane %v6762, 4
        %v6764 = vadd.f32 %v6762, %v6763
        %v6765 = vrot.slane %v6764, 2
        %v6766 = vadd.f32 %v6764, %v6765
        %v6767 = vrot.slane %v6766, 1
        %v6768 = vadd.f32 %v6766, %v6767
        %v6769 = vadd.f32 %v6218, %v6219
        %v6770 = vrot.slane %v6769, 4
        %v6771 = vadd.f32 %v6769, %v6770
        %v6772 = vrot.slane %v6771, 2
        %v6773 = vadd.f32 %v6771, %v6772
        %v6774 = vrot.slane %v6773, 1
        %v6775 = vadd.f32 %v6773, %v6774
        %v6776 = vadd.f32 %v6220, %v6221
        %v6777 = vrot.slane %v6776, 4
        %v6778 = vadd.f32 %v6776, %v6777
        %v6779 = vrot.slane %v6778, 2
        %v6780 = vadd.f32 %v6778, %v6779
        %v6781 = vrot.slane %v6780, 1
        %v6782 = vadd.f32 %v6780, %v6781
        %v6783 = vadd.f32 %v6222, %v6223
        %v6784 = vrot.slane %v6783, 4
        %v6785 = vadd.f32 %v6783, %v6784
        %v6786 = vrot.slane %v6785, 2
        %v6787 = vadd.f32 %v6785, %v6786
        %v6788 = vrot.slane %v6787, 1
        %v6789 = vadd.f32 %v6787, %v6788
        %v6790 = vadd.f32 %v6224, %v6225
        %v6791 = vrot.slane %v6790, 4
        %v6792 = vadd.f32 %v6790, %v6791
        %v6793 = vrot.slane %v6792, 2
        %v6794 = vadd.f32 %v6792, %v6793
        %v6795 = vrot.slane %v6794, 1
        %v6796 = vadd.f32 %v6794, %v6795
        %v6797 = vadd.f32 %v6226, %v6227
        %v6798 = vrot.slane %v6797, 4
        %v6799 = vadd.f32 %v6797, %v6798
        %v6800 = vrot.slane %v6799, 2
        %v6801 = vadd.f32 %v6799, %v6800
        %v6802 = vrot.slane %v6801, 1
        %v6803 = vadd.f32 %v6801, %v6802
        %v6804 = vadd.f32 %v6228, %v6229
        %v6805 = vrot.slane %v6804, 4
        %v6806 = vadd.f32 %v6804, %v6805
        %v6807 = vrot.slane %v6806, 2
        %v6808 = vadd.f32 %v6806, %v6807
        %v6809 = vrot.slane %v6808, 1
        %v6810 = vadd.f32 %v6808, %v6809
        %v6811 = vadd.f32 %v6230, %v6231
        %v6812 = vrot.slane %v6811, 4
        %v6813 = vadd.f32 %v6811, %v6812
        %v6814 = vrot.slane %v6813, 2
        %v6815 = vadd.f32 %v6813, %v6814
        %v6816 = vrot.slane %v6815, 1
        %v6817 = vadd.f32 %v6815, %v6816
        %v6818 = vadd.f32 %v6232, %v6233
        %v6819 = vrot.slane %v6818, 4
        %v6820 = vadd.f32 %v6818, %v6819
        %v6821 = vrot.slane %v6820, 2
        %v6822 = vadd.f32 %v6820, %v6821
        %v6823 = vrot.slane %v6822, 1
        %v6824 = vadd.f32 %v6822, %v6823
        %v6825 = vadd.f32 %v6234, %v6235
        %v6826 = vrot.slane %v6825, 4
        %v6827 = vadd.f32 %v6825, %v6826
        %v6828 = vrot.slane %v6827, 2
        %v6829 = vadd.f32 %v6827, %v6828
        %v6830 = vrot.slane %v6829, 1
        %v6831 = vadd.f32 %v6829, %v6830
        %v6832 = vadd.f32 %v6236, %v6237
        %v6833 = vrot.slane %v6832, 4
        %v6834 = vadd.f32 %v6832, %v6833
        %v6835 = vrot.slane %v6834, 2
        %v6836 = vadd.f32 %v6834, %v6835
        %v6837 = vrot.slane %v6836, 1
        %v6838 = vadd.f32 %v6836, %v6837
        %v6839 = vadd.f32 %v6238, %v6239
        %v6840 = vrot.slane %v6839, 4
        %v6841 = vadd.f32 %v6839, %v6840
        %v6842 = vrot.slane %v6841, 2
        %v6843 = vadd.f32 %v6841, %v6842
        %v6844 = vrot.slane %v6843, 1
        %v6845 = vadd.f32 %v6843, %v6844
        %v6846 = vadd.f32 %v6240, %v6241
        %v6847 = vrot.slane %v6846, 4
        %v6848 = vadd.f32 %v6846, %v6847
        %v6849 = vrot.slane %v6848, 2
        %v6850 = vadd.f32 %v6848, %v6849
        %v6851 = vrot.slane %v6850, 1
        %v6852 = vadd.f32 %v6850, %v6851
        %v6853 = vadd.f32 %v6242, %v6243
        %v6854 = vrot.slane %v6853, 4
        %v6855 = vadd.f32 %v6853, %v6854
        %v6856 = vrot.slane %v6855, 2
        %v6857 = vadd.f32 %v6855, %v6856
        %v6858 = vrot.slane %v6857, 1
        %v6859 = vadd.f32 %v6857, %v6858
        %v6860 = vadd.f32 %v6244, %v6245
        %v6861 = vrot.slane %v6860, 4
        %v6862 = vadd.f32 %v6860, %v6861
        %v6863 = vrot.slane %v6862, 2
        %v6864 = vadd.f32 %v6862, %v6863
        %v6865 = vrot.slane %v6864, 1
        %v6866 = vadd.f32 %v6864, %v6865
        %v6867 = vadd.f32 %v6246, %v6247
        %v6868 = vrot.slane %v6867, 4
        %v6869 = vadd.f32 %v6867, %v6868
        %v6870 = vrot.slane %v6869, 2
        %v6871 = vadd.f32 %v6869, %v6870
        %v6872 = vrot.slane %v6871, 1
        %v6873 = vadd.f32 %v6871, %v6872
        %v6874 = vadd.f32 %v6248, %v6249
        %v6875 = vrot.slane %v6874, 4
        %v6876 = vadd.f32 %v6874, %v6875
        %v6877 = vrot.slane %v6876, 2
        %v6878 = vadd.f32 %v6876, %v6877
        %v6879 = vrot.slane %v6878, 1
        %v6880 = vadd.f32 %v6878, %v6879
        %v6881 = vadd.f32 %v6250, %v6251
        %v6882 = vrot.slane %v6881, 4
        %v6883 = vadd.f32 %v6881, %v6882
        %v6884 = vrot.slane %v6883, 2
        %v6885 = vadd.f32 %v6883, %v6884
        %v6886 = vrot.slane %v6885, 1
        %v6887 = vadd.f32 %v6885, %v6886
        %v6888 = vadd.f32 %v6252, %v6253
        %v6889 = vrot.slane %v6888, 4
        %v6890 = vadd.f32 %v6888, %v6889
        %v6891 = vrot.slane %v6890, 2
        %v6892 = vadd.f32 %v6890, %v6891
        %v6893 = vrot.slane %v6892, 1
        %v6894 = vadd.f32 %v6892, %v6893
        %v6895 = vadd.f32 %v6254, %v6255
        %v6896 = vrot.slane %v6895, 4
        %v6897 = vadd.f32 %v6895, %v6896
        %v6898 = vrot.slane %v6897, 2
        %v6899 = vadd.f32 %v6897, %v6898
        %v6900 = vrot.slane %v6899, 1
        %v6901 = vadd.f32 %v6899, %v6900
        %v6902 = vadd.f32 %v6256, %v6257
        %v6903 = vrot.slane %v6902, 4
        %v6904 = vadd.f32 %v6902, %v6903
        %v6905 = vrot.slane %v6904, 2
        %v6906 = vadd.f32 %v6904, %v6905
        %v6907 = vrot.slane %v6906, 1
        %v6908 = vadd.f32 %v6906, %v6907
        %v6909 = vadd.f32 %v6258, %v6259
        %v6910 = vrot.slane %v6909, 4
        %v6911 = vadd.f32 %v6909, %v6910
        %v6912 = vrot.slane %v6911, 2
        %v6913 = vadd.f32 %v6911, %v6912
        %v6914 = vrot.slane %v6913, 1
        %v6915 = vadd.f32 %v6913, %v6914
        %v6916 = vadd.f32 %v6260, %v6261
        %v6917 = vrot.slane %v6916, 4
        %v6918 = vadd.f32 %v6916, %v6917
        %v6919 = vrot.slane %v6918, 2
        %v6920 = vadd.f32 %v6918, %v6919
        %v6921 = vrot.slane %v6920, 1
        %v6922 = vadd.f32 %v6920, %v6921
        %v6923 = vadd.f32 %v6262, %v6263
        %v6924 = vrot.slane %v6923, 4
        %v6925 = vadd.f32 %v6923, %v6924
        %v6926 = vrot.slane %v6925, 2
        %v6927 = vadd.f32 %v6925, %v6926
        %v6928 = vrot.slane %v6927, 1
        %v6929 = vadd.f32 %v6927, %v6928
        %v6930 = vadd.f32 %v6264, %v6265
        %v6931 = vrot.slane %v6930, 4
        %v6932 = vadd.f32 %v6930, %v6931
        %v6933 = vrot.slane %v6932, 2
        %v6934 = vadd.f32 %v6932, %v6933
        %v6935 = vrot.slane %v6934, 1
        %v6936 = vadd.f32 %v6934, %v6935
        %v6937 = vadd.f32 %v6266, %v6267
        %v6938 = vrot.slane %v6937, 4
        %v6939 = vadd.f32 %v6937, %v6938
        %v6940 = vrot.slane %v6939, 2
        %v6941 = vadd.f32 %v6939, %v6940
        %v6942 = vrot.slane %v6941, 1
        %v6943 = vadd.f32 %v6941, %v6942
        %v6944 = vadd.f32 %v6268, %v6269
        %v6945 = vrot.slane %v6944, 4
        %v6946 = vadd.f32 %v6944, %v6945
        %v6947 = vrot.slane %v6946, 2
        %v6948 = vadd.f32 %v6946, %v6947
        %v6949 = vrot.slane %v6948, 1
        %v6950 = vadd.f32 %v6948, %v6949
        %v6951 = vadd.f32 %v6270, %v6271
        %v6952 = vrot.slane %v6951, 4
        %v6953 = vadd.f32 %v6951, %v6952
        %v6954 = vrot.slane %v6953, 2
        %v6955 = vadd.f32 %v6953, %v6954
        %v6956 = vrot.slane %v6955, 1
        %v6957 = vadd.f32 %v6955, %v6956
        %v6958 = vadd.f32 %v6272, %v6273
        %v6959 = vrot.slane %v6958, 4
        %v6960 = vadd.f32 %v6958, %v6959
        %v6961 = vrot.slane %v6960, 2
        %v6962 = vadd.f32 %v6960, %v6961
        %v6963 = vrot.slane %v6962, 1
        %v6964 = vadd.f32 %v6962, %v6963
        %v6965 = vadd.f32 %v6274, %v6275
        %v6966 = vrot.slane %v6965, 4
        %v6967 = vadd.f32 %v6965, %v6966
        %v6968 = vrot.slane %v6967, 2
        %v6969 = vadd.f32 %v6967, %v6968
        %v6970 = vrot.slane %v6969, 1
        %v6971 = vadd.f32 %v6969, %v6970
        %v6972 = vadd.f32 %v6276, %v6277
        %v6973 = vrot.slane %v6972, 4
        %v6974 = vadd.f32 %v6972, %v6973
        %v6975 = vrot.slane %v6974, 2
        %v6976 = vadd.f32 %v6974, %v6975
        %v6977 = vrot.slane %v6976, 1
        %v6978 = vadd.f32 %v6976, %v6977
        %v6979 = vadd.f32 %v6278, %v6279
        %v6980 = vrot.slane %v6979, 4
        %v6981 = vadd.f32 %v6979, %v6980
        %v6982 = vrot.slane %v6981, 2
        %v6983 = vadd.f32 %v6981, %v6982
        %v6984 = vrot.slane %v6983, 1
        %v6985 = vadd.f32 %v6983, %v6984
        %v6986 = vadd.f32 %v6280, %v6281
        %v6987 = vrot.slane %v6986, 4
        %v6988 = vadd.f32 %v6986, %v6987
        %v6989 = vrot.slane %v6988, 2
        %v6990 = vadd.f32 %v6988, %v6989
        %v6991 = vrot.slane %v6990, 1
        %v6992 = vadd.f32 %v6990, %v6991
        %v6993 = vadd.f32 %v6282, %v6283
        %v6994 = vrot.slane %v6993, 4
        %v6995 = vadd.f32 %v6993, %v6994
        %v6996 = vrot.slane %v6995, 2
        %v6997 = vadd.f32 %v6995, %v6996
        %v6998 = vrot.slane %v6997, 1
        %v6999 = vadd.f32 %v6997, %v6998
        %v7000 = vadd.f32 %v6284, %v6285
        %v7001 = vrot.slane %v7000, 4
        %v7002 = vadd.f32 %v7000, %v7001
        %v7003 = vrot.slane %v7002, 2
        %v7004 = vadd.f32 %v7002, %v7003
        %v7005 = vrot.slane %v7004, 1
        %v7006 = vadd.f32 %v7004, %v7005
        %v7007 = vadd.f32 %v6286, %v6287
        %v7008 = vrot.slane %v7007, 4
        %v7009 = vadd.f32 %v7007, %v7008
        %v7010 = vrot.slane %v7009, 2
        %v7011 = vadd.f32 %v7009, %v7010
        %v7012 = vrot.slane %v7011, 1
        %v7013 = vadd.f32 %v7011, %v7012
        %v7014 = vadd.f32 %v6288, %v6289
        %v7015 = vrot.slane %v7014, 4
        %v7016 = vadd.f32 %v7014, %v7015
        %v7017 = vrot.slane %v7016, 2
        %v7018 = vadd.f32 %v7016, %v7017
        %v7019 = vrot.slane %v7018, 1
        %v7020 = vadd.f32 %v7018, %v7019
        %v7021 = vadd.f32 %v6290, %v6291
        %v7022 = vrot.slane %v7021, 4
        %v7023 = vadd.f32 %v7021, %v7022
        %v7024 = vrot.slane %v7023, 2
        %v7025 = vadd.f32 %v7023, %v7024
        %v7026 = vrot.slane %v7025, 1
        %v7027 = vadd.f32 %v7025, %v7026
        %v7028 = vadd.f32 %v6292, %v6293
        %v7029 = vrot.slane %v7028, 4
        %v7030 = vadd.f32 %v7028, %v7029
        %v7031 = vrot.slane %v7030, 2
        %v7032 = vadd.f32 %v7030, %v7031
        %v7033 = vrot.slane %v7032, 1
        %v7034 = vadd.f32 %v7032, %v7033
        %v7035 = vadd.f32 %v6294, %v6295
        %v7036 = vrot.slane %v7035, 4
        %v7037 = vadd.f32 %v7035, %v7036
        %v7038 = vrot.slane %v7037, 2
        %v7039 = vadd.f32 %v7037, %v7038
        %v7040 = vrot.slane %v7039, 1
        %v7041 = vadd.f32 %v7039, %v7040
        %v7042 = vadd.f32 %v6296, %v6297
        %v7043 = vrot.slane %v7042, 4
        %v7044 = vadd.f32 %v7042, %v7043
        %v7045 = vrot.slane %v7044, 2
        %v7046 = vadd.f32 %v7044, %v7045
        %v7047 = vrot.slane %v7046, 1
        %v7048 = vadd.f32 %v7046, %v7047
        %v7049 = vadd.f32 %v6298, %v6299
        %v7050 = vrot.slane %v7049, 4
        %v7051 = vadd.f32 %v7049, %v7050
        %v7052 = vrot.slane %v7051, 2
        %v7053 = vadd.f32 %v7051, %v7052
        %v7054 = vrot.slane %v7053, 1
        %v7055 = vadd.f32 %v7053, %v7054
        %v7056 = vadd.f32 %v6300, %v6301
        %v7057 = vrot.slane %v7056, 4
        %v7058 = vadd.f32 %v7056, %v7057
        %v7059 = vrot.slane %v7058, 2
        %v7060 = vadd.f32 %v7058, %v7059
        %v7061 = vrot.slane %v7060, 1
        %v7062 = vadd.f32 %v7060, %v7061
        %v7063 = vadd.f32 %v6302, %v6303
        %v7064 = vrot.slane %v7063, 4
        %v7065 = vadd.f32 %v7063, %v7064
        %v7066 = vrot.slane %v7065, 2
        %v7067 = vadd.f32 %v7065, %v7066
        %v7068 = vrot.slane %v7067, 1
        %v7069 = vadd.f32 %v7067, %v7068
        %v7070 = vadd.f32 %v6304, %v6305
        %v7071 = vrot.slane %v7070, 4
        %v7072 = vadd.f32 %v7070, %v7071
        %v7073 = vrot.slane %v7072, 2
        %v7074 = vadd.f32 %v7072, %v7073
        %v7075 = vrot.slane %v7074, 1
        %v7076 = vadd.f32 %v7074, %v7075
        %v7077 = vadd.f32 %v6306, %v6307
        %v7078 = vrot.slane %v7077, 4
        %v7079 = vadd.f32 %v7077, %v7078
        %v7080 = vrot.slane %v7079, 2
        %v7081 = vadd.f32 %v7079, %v7080
        %v7082 = vrot.slane %v7081, 1
        %v7083 = vadd.f32 %v7081, %v7082
        %v7084 = vadd.f32 %v6308, %v6309
        %v7085 = vrot.slane %v7084, 4
        %v7086 = vadd.f32 %v7084, %v7085
        %v7087 = vrot.slane %v7086, 2
        %v7088 = vadd.f32 %v7086, %v7087
        %v7089 = vrot.slane %v7088, 1
        %v7090 = vadd.f32 %v7088, %v7089
        %v7091 = vadd.f32 %v6310, %v6311
        %v7092 = vrot.slane %v7091, 4
        %v7093 = vadd.f32 %v7091, %v7092
        %v7094 = vrot.slane %v7093, 2
        %v7095 = vadd.f32 %v7093, %v7094
        %v7096 = vrot.slane %v7095, 1
        %v7097 = vadd.f32 %v7095, %v7096
        %v7098 = vadd.f32 %v6312, %v6313
        %v7099 = vrot.slane %v7098, 4
        %v7100 = vadd.f32 %v7098, %v7099
        %v7101 = vrot.slane %v7100, 2
        %v7102 = vadd.f32 %v7100, %v7101
        %v7103 = vrot.slane %v7102, 1
        %v7104 = vadd.f32 %v7102, %v7103
        %v7105 = vadd.f32 %v6314, %v6315
        %v7106 = vrot.slane %v7105, 4
        %v7107 = vadd.f32 %v7105, %v7106
        %v7108 = vrot.slane %v7107, 2
        %v7109 = vadd.f32 %v7107, %v7108
        %v7110 = vrot.slane %v7109, 1
        %v7111 = vadd.f32 %v7109, %v7110
        %v7112 = vadd.f32 %v6316, %v6317
        %v7113 = vrot.slane %v7112, 4
        %v7114 = vadd.f32 %v7112, %v7113
        %v7115 = vrot.slane %v7114, 2
        %v7116 = vadd.f32 %v7114, %v7115
        %v7117 = vrot.slane %v7116, 1
        %v7118 = vadd.f32 %v7116, %v7117
        %v7119 = vadd.f32 %v6318, %v6319
        %v7120 = vrot.slane %v7119, 4
        %v7121 = vadd.f32 %v7119, %v7120
        %v7122 = vrot.slane %v7121, 2
        %v7123 = vadd.f32 %v7121, %v7122
        %v7124 = vrot.slane %v7123, 1
        %v7125 = vadd.f32 %v7123, %v7124
        %v7126 = vadd.f32 %v6320, %v6321
        %v7127 = vrot.slane %v7126, 4
        %v7128 = vadd.f32 %v7126, %v7127
        %v7129 = vrot.slane %v7128, 2
        %v7130 = vadd.f32 %v7128, %v7129
        %v7131 = vrot.slane %v7130, 1
        %v7132 = vadd.f32 %v7130, %v7131
        %v7133 = vadd.f32 %v6322, %v6323
        %v7134 = vrot.slane %v7133, 4
        %v7135 = vadd.f32 %v7133, %v7134
        %v7136 = vrot.slane %v7135, 2
        %v7137 = vadd.f32 %v7135, %v7136
        %v7138 = vrot.slane %v7137, 1
        %v7139 = vadd.f32 %v7137, %v7138
        %v7140 = vadd.f32 %v6324, %v6325
        %v7141 = vrot.slane %v7140, 4
        %v7142 = vadd.f32 %v7140, %v7141
        %v7143 = vrot.slane %v7142, 2
        %v7144 = vadd.f32 %v7142, %v7143
        %v7145 = vrot.slane %v7144, 1
        %v7146 = vadd.f32 %v7144, %v7145
        %v7147 = vadd.f32 %v6326, %v6327
        %v7148 = vrot.slane %v7147, 4
        %v7149 = vadd.f32 %v7147, %v7148
        %v7150 = vrot.slane %v7149, 2
        %v7151 = vadd.f32 %v7149, %v7150
        %v7152 = vrot.slane %v7151, 1
        %v7153 = vadd.f32 %v7151, %v7152
        %v7154 = vadd.f32 %v6328, %v6329
        %v7155 = vrot.slane %v7154, 4
        %v7156 = vadd.f32 %v7154, %v7155
        %v7157 = vrot.slane %v7156, 2
        %v7158 = vadd.f32 %v7156, %v7157
        %v7159 = vrot.slane %v7158, 1
        %v7160 = vadd.f32 %v7158, %v7159
        %v7161 = vadd.f32 %v6330, %v6331
        %v7162 = vrot.slane %v7161, 4
        %v7163 = vadd.f32 %v7161, %v7162
        %v7164 = vrot.slane %v7163, 2
        %v7165 = vadd.f32 %v7163, %v7164
        %v7166 = vrot.slane %v7165, 1
        %v7167 = vadd.f32 %v7165, %v7166
        %v7168 = vadd.f32 %v6332, %v6333
        %v7169 = vrot.slane %v7168, 4
        %v7170 = vadd.f32 %v7168, %v7169
        %v7171 = vrot.slane %v7170, 2
        %v7172 = vadd.f32 %v7170, %v7171
        %v7173 = vrot.slane %v7172, 1
        %v7174 = vadd.f32 %v7172, %v7173
        %v7175 = vadd.f32 %v6334, %v6335
        %v7176 = vrot.slane %v7175, 4
        %v7177 = vadd.f32 %v7175, %v7176
        %v7178 = vrot.slane %v7177, 2
        %v7179 = vadd.f32 %v7177, %v7178
        %v7180 = vrot.slane %v7179, 1
        %v7181 = vadd.f32 %v7179, %v7180
        %v7182 = vadd.f32 %v6336, %v6337
        %v7183 = vrot.slane %v7182, 4
        %v7184 = vadd.f32 %v7182, %v7183
        %v7185 = vrot.slane %v7184, 2
        %v7186 = vadd.f32 %v7184, %v7185
        %v7187 = vrot.slane %v7186, 1
        %v7188 = vadd.f32 %v7186, %v7187
        %v7189 = vadd.f32 %v6338, %v6339
        %v7190 = vrot.slane %v7189, 4
        %v7191 = vadd.f32 %v7189, %v7190
        %v7192 = vrot.slane %v7191, 2
        %v7193 = vadd.f32 %v7191, %v7192
        %v7194 = vrot.slane %v7193, 1
        %v7195 = vadd.f32 %v7193, %v7194
        %v7196 = vadd.f32 %v6340, %v6341
        %v7197 = vrot.slane %v7196, 4
        %v7198 = vadd.f32 %v7196, %v7197
        %v7199 = vrot.slane %v7198, 2
        %v7200 = vadd.f32 %v7198, %v7199
        %v7201 = vrot.slane %v7200, 1
        %v7202 = vadd.f32 %v7200, %v7201
        %v7203 = vadd.f32 %v6342, %v6343
        %v7204 = vrot.slane %v7203, 4
        %v7205 = vadd.f32 %v7203, %v7204
        %v7206 = vrot.slane %v7205, 2
        %v7207 = vadd.f32 %v7205, %v7206
        %v7208 = vrot.slane %v7207, 1
        %v7209 = vadd.f32 %v7207, %v7208
        %v7210 = vadd.f32 %v6344, %v6345
        %v7211 = vrot.slane %v7210, 4
        %v7212 = vadd.f32 %v7210, %v7211
        %v7213 = vrot.slane %v7212, 2
        %v7214 = vadd.f32 %v7212, %v7213
        %v7215 = vrot.slane %v7214, 1
        %v7216 = vadd.f32 %v7214, %v7215
        %v7217 = vadd.f32 %v6346, %v6347
        %v7218 = vrot.slane %v7217, 4
        %v7219 = vadd.f32 %v7217, %v7218
        %v7220 = vrot.slane %v7219, 2
        %v7221 = vadd.f32 %v7219, %v7220
        %v7222 = vrot.slane %v7221, 1
        %v7223 = vadd.f32 %v7221, %v7222
        %v7224 = vadd.f32 %v6348, %v6349
        %v7225 = vrot.slane %v7224, 4
        %v7226 = vadd.f32 %v7224, %v7225
        %v7227 = vrot.slane %v7226, 2
        %v7228 = vadd.f32 %v7226, %v7227
        %v7229 = vrot.slane %v7228, 1
        %v7230 = vadd.f32 %v7228, %v7229
        %v7231 = vadd.f32 %v6350, %v6351
        %v7232 = vrot.slane %v7231, 4
        %v7233 = vadd.f32 %v7231, %v7232
        %v7234 = vrot.slane %v7233, 2
        %v7235 = vadd.f32 %v7233, %v7234
        %v7236 = vrot.slane %v7235, 1
        %v7237 = vadd.f32 %v7235, %v7236
        %v7238 = vadd.f32 %v6352, %v6353
        %v7239 = vrot.slane %v7238, 4
        %v7240 = vadd.f32 %v7238, %v7239
        %v7241 = vrot.slane %v7240, 2
        %v7242 = vadd.f32 %v7240, %v7241
        %v7243 = vrot.slane %v7242, 1
        %v7244 = vadd.f32 %v7242, %v7243
        %v7245 = vadd.f32 %v6354, %v6355
        %v7246 = vrot.slane %v7245, 4
        %v7247 = vadd.f32 %v7245, %v7246
        %v7248 = vrot.slane %v7247, 2
        %v7249 = vadd.f32 %v7247, %v7248
        %v7250 = vrot.slane %v7249, 1
        %v7251 = vadd.f32 %v7249, %v7250
        %vm7380 = vcmask 1041409
        %v7381 = vsel %vm7380, %v6369, %v6362
        %vm7382 = vcmask 1042434
        %v7383 = vsel %vm7382, %v6376, %v7381
        %vm7384 = vcmask 1043459
        %v7385 = vsel %vm7384, %v6383, %v7383
        %vm7386 = vcmask 1044484
        %v7387 = vsel %vm7386, %v6390, %v7385
        %vm7388 = vcmask 1045509
        %v7389 = vsel %vm7388, %v6397, %v7387
        %vm7390 = vcmask 1046534
        %v7391 = vsel %vm7390, %v6404, %v7389
        %vm7392 = vcmask 1047559
        %v7393 = vsel %vm7392, %v6411, %v7391
        %v7394 = vsel %vm7380, %v6425, %v6418
        %v7395 = vsel %vm7382, %v6432, %v7394
        %v7396 = vsel %vm7384, %v6439, %v7395
        %v7397 = vsel %vm7386, %v6446, %v7396
        %v7398 = vsel %vm7388, %v6453, %v7397
        %v7399 = vsel %vm7390, %v6460, %v7398
        %v7400 = vsel %vm7392, %v6467, %v7399
        %v7401 = vsel %vm7380, %v6481, %v6474
        %v7402 = vsel %vm7382, %v6488, %v7401
        %v7403 = vsel %vm7384, %v6495, %v7402
        %v7404 = vsel %vm7386, %v6502, %v7403
        %v7405 = vsel %vm7388, %v6509, %v7404
        %v7406 = vsel %vm7390, %v6516, %v7405
        %v7407 = vsel %vm7392, %v6523, %v7406
        %v7408 = vsel %vm7380, %v6537, %v6530
        %v7409 = vsel %vm7382, %v6544, %v7408
        %v7410 = vsel %vm7384, %v6551, %v7409
        %v7411 = vsel %vm7386, %v6558, %v7410
        %v7412 = vsel %vm7388, %v6565, %v7411
        %v7413 = vsel %vm7390, %v6572, %v7412
        %v7414 = vsel %vm7392, %v6579, %v7413
        %v7415 = vsel %vm7380, %v6593, %v6586
        %v7416 = vsel %vm7382, %v6600, %v7415
        %v7417 = vsel %vm7384, %v6607, %v7416
        %v7418 = vsel %vm7386, %v6614, %v7417
        %v7419 = vsel %vm7388, %v6621, %v7418
        %v7420 = vsel %vm7390, %v6628, %v7419
        %v7421 = vsel %vm7392, %v6635, %v7420
        %v7422 = vsel %vm7380, %v6649, %v6642
        %v7423 = vsel %vm7382, %v6656, %v7422
        %v7424 = vsel %vm7384, %v6663, %v7423
        %v7425 = vsel %vm7386, %v6670, %v7424
        %v7426 = vsel %vm7388, %v6677, %v7425
        %v7427 = vsel %vm7390, %v6684, %v7426
        %v7428 = vsel %vm7392, %v6691, %v7427
        %v7429 = vsel %vm7380, %v6705, %v6698
        %v7430 = vsel %vm7382, %v6712, %v7429
        %v7431 = vsel %vm7384, %v6719, %v7430
        %v7432 = vsel %vm7386, %v6726, %v7431
        %v7433 = vsel %vm7388, %v6733, %v7432
        %v7434 = vsel %vm7390, %v6740, %v7433
        %v7435 = vsel %vm7392, %v6747, %v7434
        %v7436 = vsel %vm7380, %v6761, %v6754
        %v7437 = vsel %vm7382, %v6768, %v7436
        %v7438 = vsel %vm7384, %v6775, %v7437
        %v7439 = vsel %vm7386, %v6782, %v7438
        %v7440 = vsel %vm7388, %v6789, %v7439
        %v7441 = vsel %vm7390, %v6796, %v7440
        %v7442 = vsel %vm7392, %v6803, %v7441
        %v7443 = vsel %vm7380, %v6817, %v6810
        %v7444 = vsel %vm7382, %v6824, %v7443
        %v7445 = vsel %vm7384, %v6831, %v7444
        %v7446 = vsel %vm7386, %v6838, %v7445
        %v7447 = vsel %vm7388, %v6845, %v7446
        %v7448 = vsel %vm7390, %v6852, %v7447
        %v7449 = vsel %vm7392, %v6859, %v7448
        %v7450 = vsel %vm7380, %v6873, %v6866
        %v7451 = vsel %vm7382, %v6880, %v7450
        %v7452 = vsel %vm7384, %v6887, %v7451
        %v7453 = vsel %vm7386, %v6894, %v7452
        %v7454 = vsel %vm7388, %v6901, %v7453
        %v7455 = vsel %vm7390, %v6908, %v7454
        %v7456 = vsel %vm7392, %v6915, %v7455
        %v7457 = vsel %vm7380, %v6929, %v6922
        %v7458 = vsel %vm7382, %v6936, %v7457
        %v7459 = vsel %vm7384, %v6943, %v7458
        %v7460 = vsel %vm7386, %v6950, %v7459
        %v7461 = vsel %vm7388, %v6957, %v7460
        %v7462 = vsel %vm7390, %v6964, %v7461
        %v7463 = vsel %vm7392, %v6971, %v7462
        %v7464 = vsel %vm7380, %v6985, %v6978
        %v7465 = vsel %vm7382, %v6992, %v7464
        %v7466 = vsel %vm7384, %v6999, %v7465
        %v7467 = vsel %vm7386, %v7006, %v7466
        %v7468 = vsel %vm7388, %v7013, %v7467
        %v7469 = vsel %vm7390, %v7020, %v7468
        %v7470 = vsel %vm7392, %v7027, %v7469
        %v7471 = vsel %vm7380, %v7041, %v7034
        %v7472 = vsel %vm7382, %v7048, %v7471
        %v7473 = vsel %vm7384, %v7055, %v7472
        %v7474 = vsel %vm7386, %v7062, %v7473
        %v7475 = vsel %vm7388, %v7069, %v7474
        %v7476 = vsel %vm7390, %v7076, %v7475
        %v7477 = vsel %vm7392, %v7083, %v7476
        %v7478 = vsel %vm7380, %v7097, %v7090
        %v7479 = vsel %vm7382, %v7104, %v7478
        %v7480 = vsel %vm7384, %v7111, %v7479
        %v7481 = vsel %vm7386, %v7118, %v7480
        %v7482 = vsel %vm7388, %v7125, %v7481
        %v7483 = vsel %vm7390, %v7132, %v7482
        %v7484 = vsel %vm7392, %v7139, %v7483
        %v7485 = vsel %vm7380, %v7153, %v7146
        %v7486 = vsel %vm7382, %v7160, %v7485
        %v7487 = vsel %vm7384, %v7167, %v7486
        %v7488 = vsel %vm7386, %v7174, %v7487
        %v7489 = vsel %vm7388, %v7181, %v7488
        %v7490 = vsel %vm7390, %v7188, %v7489
        %v7491 = vsel %vm7392, %v7195, %v7490
        %v7492 = vsel %vm7380, %v7209, %v7202
        %v7493 = vsel %vm7382, %v7216, %v7492
        %v7494 = vsel %vm7384, %v7223, %v7493
        %v7495 = vsel %vm7386, %v7230, %v7494
        %v7496 = vsel %vm7388, %v7237, %v7495
        %v7497 = vsel %vm7390, %v7244, %v7496
        %v7498 = vsel %vm7392, %v7251, %v7497
        %7515 = vst [vmem:[%s241] sm:$0xff] %v7393
        %7516 = vst [vmem:[%s241 + $0x8] sm:$0xff] %v7400
        %7517 = vst [vmem:[%s241 + $0x10] sm:$0xff] %v7407
        %7518 = vst [vmem:[%s241 + $0x18] sm:$0xff] %v7414
        %7519 = vst [vmem:[%s241 + $0x20] sm:$0xff] %v7421
        %7520 = vst [vmem:[%s241 + $0x28] sm:$0xff] %v7428
        %7521 = vst [vmem:[%s241 + $0x30] sm:$0xff] %v7435
        %7522 = vst [vmem:[%s241 + $0x38] sm:$0xff] %v7442
        %7523 = vst [vmem:[%s241 + $0x40] sm:$0xff] %v7449
        %7524 = vst [vmem:[%s241 + $0x48] sm:$0xff] %v7456
        %7525 = vst [vmem:[%s241 + $0x50] sm:$0xff] %v7463
        %7526 = vst [vmem:[%s241 + $0x58] sm:$0xff] %v7470
        %7527 = vst [vmem:[%s241 + $0x60] sm:$0xff] %v7477
        %7528 = vst [vmem:[%s241 + $0x68] sm:$0xff] %v7484
        %7529 = vst [vmem:[%s241 + $0x70] sm:$0xff] %v7491
        %7530 = vst [vmem:[%s241 + $0x78] sm:$0xff] %v7498
        %s7531 = sand.u32 %s119, 1
        %s7532 = scalar_lea.sflag [#allocation4], %s7531
        %s7533 = sand.u32 %s119, 1
        %s7534 = smul.addr %s7533, 128
        %s7535 = scalar_lea.vmem [#allocation8], %s7534
        // Predicated region
        $region49: #{tpu_custom_call.1} parent=35 // pred_check
          %p7536 = pneg %p129
        $region50: #{tpu_custom_call.1} parent=35 // pred_check_branch
          %7538 = sbr.rel (%p7536) target = $region52
        $region51: #{tpu_custom_call.1} parent=35 // pred_region
          %s7539 = smul.u32 16, %s22
          %s7541 = ssub.s32 2048, 2048
          %7542 = vsyncadd %s7532, %s7541
          %s7543 = smul.addr %s7539, 128
          %s7544 = scalar_lea.hbm %s4, %s7543
          %s7545 = sshll.u32 %s7535, 4
          %s7546 = int_to_ptr.vmem [resolvable:$true] %s7545
          %7551 = dma.vmem_to_hbm [thread:$0]  %s7546, 2048, %s7544, %s7532, 128, 128, 8
        $region52: #{tpu_custom_call.1} parent=35 // pred_fallthru
          _
      $region36: #{tpu_custom_call.1} parent=5 // pred_fallthru
        _
      %p7552 = scmp.le.s32.totalorder 2, %s17
      // Predicated region
      $region53: #{tpu_custom_call.1} parent=5 // pred_check
        %p7553 = pneg %p7552
      $region54: #{tpu_custom_call.1} parent=5 // pred_check_branch
        %7555 = sbr.rel (%p7553) target = $region56
      $region55: #{tpu_custom_call.1} parent=5 // pred_region
        %s7556 = ssub.s32 %s17, 2
        // Predicated region
        $region57: #{tpu_custom_call.1} parent=55 // pred_check
          %p7557 = pneg %p135
        $region58: #{tpu_custom_call.1} parent=55 // pred_check_branch
          %7559 = sbr.rel (%p7557) target = $region60
        $region59: #{tpu_custom_call.1} parent=55 // pred_region
          %s7560 = sand.u32 %s120, 1
          %s7561 = scalar_lea.sflag [#allocation4], %s7560
          %s7562 = sand.u32 %s120, 1
          %s7563 = smul.addr %s7562, 128
          %s7564 = scalar_lea.vmem [#allocation8], %s7563
          %7565 = dma.done %s7561, 2048
        $region60: #{tpu_custom_call.1} parent=55 // pred_fallthru
          _
      $region56: #{tpu_custom_call.1} parent=5 // pred_fallthru
        _
    $region6: #{tpu_custom_call.1} parent=1 // loop_footer
      %s21 = sadd.s32 1, %s17
    $region7: #{tpu_custom_call.1} parent=1 // loop_footer_branch
      %16 = sbr.rel target = $region3
    $region8: #{tpu_custom_call.1} parent=1 // loop_exit
      _
    %7566 = vsyncpa [#allocation3], 1
    %s7567 = scalar_lea.sflag [#allocation3], 1
    %7568 = vsyncpa %s7567, 1
    %7569 = vsyncpa [#allocation6], 1
    %7570 = vsyncpa [#allocation4], 1
    %s7571 = scalar_lea.sflag [#allocation4], 1
    %7572 = vsyncpa %s7571, 1

</llo_original>
